<compile_context>
chip_gen: v7x
topology: tpu7x:2x2x1
jax: 0.10.0
libtpu: 0.0.40
codegen_flags: <defaults>
</compile_context>

<pallas_src>
import math
from functools import partial

import jax
import jax.numpy as jnp
from jax import lax
from jax.experimental import pallas as pl
from jax.experimental.pallas import tpu as pltpu


# ----------------------------------------------------------------------------
# Conv 3x3 (pad=1, stride=1, no bias) + folded BatchNorm (eval) + Hardtanh(0,20)
# with optional fused MaxPool2d(2, 2) epilogue.  One batch element per grid step.
# ----------------------------------------------------------------------------
def _conv3x3_bn_act_kernel(x_ref, w_ref, scale_ref, shift_ref, o_ref, *, pool):
    # x_ref : (1, H+2, W+2, Cin) padded NHWC tile (bf16; f32 for the Cin=1 stage)
    # w_ref : (9*Cin, Cout) bf16, im2col layout: row = (kh*3 + kw)*Cin + cin
    # scale/shift : (1, Cout) f32 folded BatchNorm (eval mode)
    # o_ref : (1, Ho, Wo, Cout) bf16
    _, Hp2, Wp2, Cin = x_ref.shape
    H, W = Hp2 - 2, Wp2 - 2
    Cout = o_ref.shape[-1]
    x = x_ref[0]                                         # (H+2, W+2, Cin)

    if Cin == 1:
        # Degenerate K: per-tap VPU outer-product FMA (K=1 MXU matmuls are
        # pure weight-push overhead, esp. on v5e).
        w = w_ref[...].astype(jnp.float32)               # (9, Cout)
        acc = jnp.zeros((H * W, Cout), jnp.float32)
        for kh in range(3):
            for kw in range(3):
                patch = x[kh:kh + H, kw:kw + W, :].reshape(H * W, 1)
                acc = acc + patch.astype(jnp.float32) * w[kh * 3 + kw, :].reshape(1, Cout)
    else:
        # im2col: ONE MXU matmul with K = 9*Cin instead of 9 K=Cin taps with a
        # VPU accumulator read-modify-write per tap.
        patches = [x[kh:kh + H, kw:kw + W, :].reshape(H * W, Cin)
                   for kh in range(3) for kw in range(3)]
        pm = jnp.concatenate(patches, axis=-1)           # (H*W, 9*Cin) bf16
        acc = jnp.dot(pm, w_ref[...], preferred_element_type=jnp.float32)

    y = acc * scale_ref[...] + shift_ref[...]            # folded BN (eval)
    y = jnp.clip(y, 0.0, 20.0)                           # Hardtanh(0, 20)
    y = y.reshape(H, W, Cout)

    if pool:                                             # fused MaxPool2d(2, 2)
        Ho, Wo = H // 2, W // 2
        y = y[:Ho * 2, :Wo * 2, :]                       # floor like PyTorch
        y = jnp.max(y.reshape(Ho, 2, Wo * 2, Cout), axis=1)
        y = jnp.max(y.reshape(Ho, Wo, 2, Cout), axis=2)

    # TODO(synk): for the Cout=64 stages a lane-dense (Ho, Wo*Cout) out_spec
    # would turn 64-lane masked stores into full-lane stores.
    o_ref[0] = y.astype(o_ref.dtype)


def conv3x3_bn_act(x, w, scale, shift, *, pool):
    # x: (B, H, W, Cin) NHWC (f32 for stage 1, bf16 after);  w: (9*Cin, Cout) bf16
    B, H, W, Cin = x.shape
    Cout = scale.shape[-1]
    Ho, Wo = (H // 2, W // 2) if pool else (H, W)
    # TODO(synk): fold this 1px halo into the kernel once the time axis is tiled.
    xp = jnp.pad(x, ((0, 0), (1, 1), (1, 1), (0, 0)))
    kern = partial(_conv3x3_bn_act_kernel, pool=pool)
    return pl.pallas_call(
        kern,
        out_shape=jax.ShapeDtypeStruct((B, Ho, Wo, Cout), jnp.bfloat16),
        grid_spec=pltpu.PrefetchScalarGridSpec(
            num_scalar_prefetch=0,
            grid=(B,),
            in_specs=[
                pl.BlockSpec((1, H + 2, W + 2, Cin), lambda b: (b, 0, 0, 0)),
                pl.BlockSpec(w.shape, lambda b: (0, 0)),
                pl.BlockSpec((1, Cout), lambda b: (0, 0)),
                pl.BlockSpec((1, Cout), lambda b: (0, 0)),
            ],
            out_specs=pl.BlockSpec((1, Ho, Wo, Cout), lambda b: (b, 0, 0, 0)),
        ),
        compiler_params=pltpu.CompilerParams(dimension_semantics=("parallel",)),
    )(xp, w, scale.reshape(1, Cout), shift.reshape(1, Cout))


# ----------------------------------------------------------------------------
# Fused bidirectional LSTM recurrence over precomputed input gates.
# grid = (2 directions [parallel], time blocks [arbitrary]).
# Packed-sequence semantics via per-timestep length masks; the backward
# direction walks the (unreversed) data in reverse through the index_map and a
# flipped in-block step order.
# ----------------------------------------------------------------------------
def _bilstm_block_kernel(len_ref, gx_ref, whh_ref, y_ref, h_ref, c_ref,
                         *, block_t, hidden):
    # len_ref : (B, 1) int32  valid sequence lengths
    # gx_ref  : (block_t, B, 4H) f32  precomputed x@Wih + (b_ih+b_hh), this dir
    # whh_ref : (1, H, 4H) bf16 recurrent weights, this direction
    # y_ref   : (block_t, B, H) f32 output slab (this direction's half of 2H)
    # h_ref/c_ref : (B, H) f32 VMEM scratch carried across time blocks
    d = pl.program_id(0)                  # 0 = forward, 1 = backward
    i = pl.program_id(1)                  # time-block step (monotone for both)
    nblk = pl.num_programs(1)
    H = hidden

    # Note: for the backward direction, step i==0 lands on the padded tail
    # block; the zero init is safe only because the length mask blocks all
    # state updates at padded timesteps (t >= length for every batch element).
    @pl.when(i == 0)
    def _():
        h_ref[...] = jnp.zeros_like(h_ref)
        c_ref[...] = jnp.zeros_like(c_ref)

    lengths = len_ref[...]                               # (B, 1) int32
    whh = whh_ref[0]                                     # (H, 4H) bf16
    data_blk = i + d * (nblk - 1 - 2 * i)                # fwd: i ; bwd: nblk-1-i
    t0 = data_blk * block_t

    def step(k, carry):
        h, c = carry
        kk = k + d * (block_t - 1 - 2 * k)               # in-block order flips for bwd
        t = t0 + kk                                      # absolute timestep
        # TODO(synk): keep whh resident in the MXU across the block (push_rhs).
        gates = gx_ref[kk] + jnp.dot(h.astype(jnp.bfloat16), whh,
                                     preferred_element_type=jnp.float32)
        # gate layout set at init: [i, f, o, g] -> one contiguous sigmoid slab
        sig = jax.nn.sigmoid(gates[:, :3 * H])
        gg = jnp.tanh(gates[:, 3 * H:])
        ig, fg, og = sig[:, :H], sig[:, H:2 * H], sig[:, 2 * H:]
        c_new = fg * c + ig * gg
        h_new = og * jnp.tanh(c_new)
        valid = t < lengths                              # (B, 1) bool
        c = jnp.where(valid, c_new, c)
        h = jnp.where(valid, h_new, h)
        y_ref[kk] = jnp.where(valid, h_new, 0.0)         # padded steps -> zeros
        return h, c

    h, c = lax.fori_loop(0, block_t, step, (h_ref[...], c_ref[...]), unroll=True)
    h_ref[...] = h
    c_ref[...] = c


def bilstm_layer(gx_all, lengths_col, whh_all, *, hidden, block_t):
    # gx_all: (T_pad, B, 8H) f32  ([fwd 4H | bwd 4H] gate preactivations)
    # whh_all: (2, H, 4H) bf16 ;  lengths_col: (B, 1) int32
    T_pad, B, _ = gx_all.shape
    H = hidden
    nblk = T_pad // block_t
    blk = lambda d, i: i + d * (nblk - 1 - 2 * i)        # fwd: i ; bwd: nblk-1-i
    kern = partial(_bilstm_block_kernel, block_t=block_t, hidden=H)
    return pl.pallas_call(
        kern,
        out_shape=jax.ShapeDtypeStruct((T_pad, B, 2 * H), jnp.float32),
        grid_spec=pltpu.PrefetchScalarGridSpec(
            num_scalar_prefetch=0,
            grid=(2, nblk),
            in_specs=[
                pl.BlockSpec((B, 1), lambda d, i: (0, 0)),
                pl.BlockSpec((block_t, B, 4 * H), lambda d, i: (blk(d, i), 0, d)),
                pl.BlockSpec((1, H, 4 * H), lambda d, i: (d, 0, 0)),
            ],
            out_specs=pl.BlockSpec((block_t, B, H), lambda d, i: (blk(d, i), 0, d)),
            scratch_shapes=[
                pltpu.VMEM((B, H), jnp.float32),         # h carry
                pltpu.VMEM((B, H), jnp.float32),         # c carry
            ],
        ),
        compiler_params=pltpu.CompilerParams(
            dimension_semantics=("parallel", "arbitrary")),
    )(lengths_col, gx_all, whh_all)


def _precompute_gates(x, wih_all, bias_all, t_pad):
    # Merged fwd+bwd hoisted input projection: ONE bf16 MXU GEMM per layer.
    # x: (T, B, In);  wih_all: (In, 8H) bf16;  bias_all: (8H,) f32 (= b_ih+b_hh)
    T, B, In = x.shape
    g = jnp.dot(x.reshape(T * B, In).astype(jnp.bfloat16), wih_all,
                preferred_element_type=jnp.float32)
    g = g.reshape(T, B, -1) + bias_all
    if t_pad > T:
        g = jnp.pad(g, ((0, t_pad - T), (0, 0), (0, 0)))
    return g


# ----------------------------------------------------------------------------
# Listener forward (VGG extractor + 3-layer bidirectional LSTM)
# ----------------------------------------------------------------------------
def listener_forward(params, inputs, input_lengths, hidden_dim, num_layers=3,
                     time_block=16):
    # inputs: (B, T, D) == PyTorch inputs before unsqueeze/permute.
    # PyTorch: inputs.unsqueeze(1).permute(0,1,3,2) -> NCHW (B, 1, D, T)
    # Here   : NHWC (B, D, T, 1)
    x = inputs.transpose(0, 2, 1)[..., None]

    x = conv3x3_bn_act(x, params['w1'], params['s1'], params['sh1'], pool=False)
    x = conv3x3_bn_act(x, params['w2'], params['s2'], params['sh2'], pool=True)
    x = conv3x3_bn_act(x, params['w3'], params['s3'], params['sh3'], pool=False)
    x = conv3x3_bn_act(x, params['w4'], params['s4'], params['sh4'], pool=True)
    # x: (B, D//4, T//4, 128) bf16

    seq_lengths = (input_lengths // 4).astype(jnp.int32)

    B, Hd, Tp, C = x.shape
    # torch: conv_feat.view(B, C*Hd, T').permute(2,0,1)  (feature index = c*Hd + f)
    feat = x.transpose(0, 3, 1, 2).reshape(B, C * Hd, Tp).transpose(2, 0, 1)

    block_t = min(time_block, Tp)
    t_pad = pl.cdiv(Tp, block_t) * block_t
    len_col = seq_lengths.reshape(B, 1)

    out = feat                                           # (T', B, C*Hd)
    for l in range(num_layers):
        gx = _precompute_gates(out, params[f'l{l}_wih'], params[f'l{l}_b'], t_pad)
        out = bilstm_layer(gx, len_col, params[f'l{l}_whh'],
                           hidden=hidden_dim, block_t=block_t)[:Tp]
        # TODO(synk): nn.LSTM inter-layer dropout (p=0.3) is train-only; this is
        # the eval-mode forward, so no dropout is applied.

    return out.transpose(1, 0, 2)                        # (B, T', 2*hidden_dim)


# ----------------------------------------------------------------------------
# Deterministic parameter initialization (shapes from the module __init__)
# ----------------------------------------------------------------------------
def init_listener_params(key, input_size, hidden_dim, num_layers=3):
    keys = iter(jax.random.split(key, 128))

    def uni(shape, scale):
        return jax.random.uniform(next(keys), shape, jnp.float32, -scale, scale)

    params = {}
    eps = 1e-5
    conv_dims = [(1, 64), (64, 64), (64, 128), (128, 128)]
    for idx, (cin, cout) in enumerate(conv_dims, start=1):
        w = uni((3, 3, cin, cout), 1.0 / math.sqrt(cin * 9))
        # im2col layout: row index = (kh*3 + kw)*cin + c
        params[f'w{idx}'] = w.reshape(9 * cin, cout).astype(jnp.bfloat16)
        gamma = 1.0 + 0.1 * jax.random.normal(next(keys), (cout,), jnp.float32)
        beta = 0.1 * jax.random.normal(next(keys), (cout,), jnp.float32)
        mean = 0.1 * jax.random.normal(next(keys), (cout,), jnp.float32)
        var = 1.0 + 0.1 * jax.random.uniform(next(keys), (cout,), jnp.float32)
        scale = gamma / jnp.sqrt(var + eps)
        params[f's{idx}'] = scale
        params[f'sh{idx}'] = beta - mean * scale

    rnn_in = (input_size // 4) * 128                     # == input_size << 5 for D%4==0
    k = 1.0 / math.sqrt(hidden_dim)
    H = hidden_dim
    # gate column reorder [i, f, g, o] (PyTorch) -> [i, f, o, g] (contiguous sigmoids)
    perm = jnp.concatenate([jnp.arange(0, 2 * H),
                            jnp.arange(3 * H, 4 * H),
                            jnp.arange(2 * H, 3 * H)])
    for l in range(num_layers):
        in_size = rnn_in if l == 0 else 2 * H
        wih_dirs, whh_dirs, b_dirs = [], [], []
        for _d in range(2):                              # 0 = fwd, 1 = bwd
            wih = uni((in_size, 4 * H), k)[:, perm]
            whh = uni((H, 4 * H), k)[:, perm]
            b = (uni((4 * H,), k) + uni((4 * H,), k))[perm]   # b_ih + b_hh folded
            wih_dirs.append(wih); whh_dirs.append(whh); b_dirs.append(b)
        params[f'l{l}_wih'] = jnp.concatenate(wih_dirs, axis=1).astype(jnp.bfloat16)  # (In, 8H)
        params[f'l{l}_b'] = jnp.concatenate(b_dirs)                                   # (8H,)
        params[f'l{l}_whh'] = jnp.stack(whh_dirs).astype(jnp.bfloat16)                # (2, H, 4H)
    return params


if __name__ == "__main__":
    key = jax.random.PRNGKey(0)
    k_in, k_par = jax.random.split(key)

    B, T, D = 2, 16, 8          # batch, time, feature (input_size)
    hidden_dim = 128            # lane-aligned hidden size (kospeech default 512)
    num_layers = 3

    inputs = jax.random.normal(k_in, (B, T, D), jnp.float32)
    # sorted descending (pack_padded_sequence enforce_sorted=True)
    input_lengths = jnp.array([16, 12], dtype=jnp.int32)

    params = init_listener_params(k_par, D, hidden_dim, num_layers)

    fwd_fn = jax.jit(partial(listener_forward, hidden_dim=hidden_dim,
                             num_layers=num_layers))
    out = fwd_fn(params, inputs, input_lengths)
    out = jax.block_until_ready(out)

    assert out.shape == (B, T // 4, 2 * hidden_dim), out.shape
    assert bool(jnp.all(jnp.isfinite(out)))
    print("KERNEL_OK")
</pallas_src>

<mosaic_0001>
module attributes {stable_mosaic.version = 11 : i64} {
  func.func @_conv3x3_bn_act_kernel(%arg0: i32, %arg1: memref<1x10x18x1xf32, #tpu.memory_space<vmem>>, %arg2: memref<9x64xbf16, #tpu.memory_space<vmem>>, %arg3: memref<1x64xf32, #tpu.memory_space<vmem>>, %arg4: memref<1x64xf32, #tpu.memory_space<vmem>>, %arg5: memref<1x8x16x64xbf16, #tpu.memory_space<vmem>>) attributes {dimension_semantics = [#tpu.dimension_semantics<parallel>], iteration_bounds = array<i64: 2>, scalar_prefetch = 0 : i64, scratch_operands = 0 : i64, tpu.core_type = #tpu.core_type<tc>, window_params = [{transform_indices = @transform_0, window_bounds = array<i64: 1, 10, 18, 1>}, {pipeline_mode = #tpu.pipeline_mode<synchronous>, transform_indices = @transform_1, window_bounds = array<i64: 9, 64>}, {pipeline_mode = #tpu.pipeline_mode<synchronous>, transform_indices = @transform_2, window_bounds = array<i64: 1, 64>}, {pipeline_mode = #tpu.pipeline_mode<synchronous>, transform_indices = @transform_3, window_bounds = array<i64: 1, 64>}, {transform_indices = @transform_4, window_bounds = array<i64: 1, 8, 16, 64>}]} {
    %c0 = arith.constant 0 : index
    %c0_0 = arith.constant 0 : index
    %c0_1 = arith.constant 0 : index
    %c0_2 = arith.constant 0 : index
    %0 = vector.load %arg1[%c0, %c0_0, %c0_1, %c0_2] : memref<1x10x18x1xf32, #tpu.memory_space<vmem>>, vector<1x10x18x1xf32>
    %1 = vector.shape_cast %0 : vector<1x10x18x1xf32> to vector<10x18x1xf32>
    %c0_3 = arith.constant 0 : index
    %c0_4 = arith.constant 0 : index
    %2 = vector.load %arg2[%c0_3, %c0_4] : memref<9x64xbf16, #tpu.memory_space<vmem>>, vector<9x64xbf16>
    %3 = arith.extf %2 : vector<9x64xbf16> to vector<9x64xf32>
    %cst = arith.constant 0.000000e+00 : f32
    %4 = vector.broadcast %cst : f32 to vector<128x64xf32>
    %5 = vector.extract_strided_slice %1 {offsets = [0, 0, 0], sizes = [8, 16, 1], strides = [1, 1, 1]} : vector<10x18x1xf32> to vector<8x16x1xf32>
    %6 = vector.shape_cast %5 : vector<8x16x1xf32> to vector<128x1xf32>
    %7 = vector.extract_strided_slice %3 {offsets = [0, 0], sizes = [1, 64], strides = [1, 1]} : vector<9x64xf32> to vector<1x64xf32>
    %8 = vector.shape_cast %7 : vector<1x64xf32> to vector<64xf32>
    %9 = vector.shape_cast %8 : vector<64xf32> to vector<1x64xf32>
    %10 = vector.broadcast %6 : vector<128x1xf32> to vector<128x64xf32>
    %11 = vector.broadcast %9 : vector<1x64xf32> to vector<128x64xf32>
    %12 = arith.mulf %10, %11 : vector<128x64xf32>
    %13 = arith.addf %4, %12 : vector<128x64xf32>
    %14 = vector.extract_strided_slice %1 {offsets = [0, 1, 0], sizes = [8, 16, 1], strides = [1, 1, 1]} : vector<10x18x1xf32> to vector<8x16x1xf32>
    %15 = vector.shape_cast %14 : vector<8x16x1xf32> to vector<128x1xf32>
    %16 = vector.extract_strided_slice %3 {offsets = [1, 0], sizes = [1, 64], strides = [1, 1]} : vector<9x64xf32> to vector<1x64xf32>
    %17 = vector.shape_cast %16 : vector<1x64xf32> to vector<64xf32>
    %18 = vector.shape_cast %17 : vector<64xf32> to vector<1x64xf32>
    %19 = vector.broadcast %15 : vector<128x1xf32> to vector<128x64xf32>
    %20 = vector.broadcast %18 : vector<1x64xf32> to vector<128x64xf32>
    %21 = arith.mulf %19, %20 : vector<128x64xf32>
    %22 = arith.addf %13, %21 : vector<128x64xf32>
    %23 = vector.extract_strided_slice %1 {offsets = [0, 2, 0], sizes = [8, 16, 1], strides = [1, 1, 1]} : vector<10x18x1xf32> to vector<8x16x1xf32>
    %24 = vector.shape_cast %23 : vector<8x16x1xf32> to vector<128x1xf32>
    %25 = vector.extract_strided_slice %3 {offsets = [2, 0], sizes = [1, 64], strides = [1, 1]} : vector<9x64xf32> to vector<1x64xf32>
    %26 = vector.shape_cast %25 : vector<1x64xf32> to vector<64xf32>
    %27 = vector.shape_cast %26 : vector<64xf32> to vector<1x64xf32>
    %28 = vector.broadcast %24 : vector<128x1xf32> to vector<128x64xf32>
    %29 = vector.broadcast %27 : vector<1x64xf32> to vector<128x64xf32>
    %30 = arith.mulf %28, %29 : vector<128x64xf32>
    %31 = arith.addf %22, %30 : vector<128x64xf32>
    %32 = vector.extract_strided_slice %1 {offsets = [1, 0, 0], sizes = [8, 16, 1], strides = [1, 1, 1]} : vector<10x18x1xf32> to vector<8x16x1xf32>
    %33 = vector.shape_cast %32 : vector<8x16x1xf32> to vector<128x1xf32>
    %34 = vector.extract_strided_slice %3 {offsets = [3, 0], sizes = [1, 64], strides = [1, 1]} : vector<9x64xf32> to vector<1x64xf32>
    %35 = vector.shape_cast %34 : vector<1x64xf32> to vector<64xf32>
    %36 = vector.shape_cast %35 : vector<64xf32> to vector<1x64xf32>
    %37 = vector.broadcast %33 : vector<128x1xf32> to vector<128x64xf32>
    %38 = vector.broadcast %36 : vector<1x64xf32> to vector<128x64xf32>
    %39 = arith.mulf %37, %38 : vector<128x64xf32>
    %40 = arith.addf %31, %39 : vector<128x64xf32>
    %41 = vector.extract_strided_slice %1 {offsets = [1, 1, 0], sizes = [8, 16, 1], strides = [1, 1, 1]} : vector<10x18x1xf32> to vector<8x16x1xf32>
    %42 = vector.shape_cast %41 : vector<8x16x1xf32> to vector<128x1xf32>
    %43 = vector.extract_strided_slice %3 {offsets = [4, 0], sizes = [1, 64], strides = [1, 1]} : vector<9x64xf32> to vector<1x64xf32>
    %44 = vector.shape_cast %43 : vector<1x64xf32> to vector<64xf32>
    %45 = vector.shape_cast %44 : vector<64xf32> to vector<1x64xf32>
    %46 = vector.broadcast %42 : vector<128x1xf32> to vector<128x64xf32>
    %47 = vector.broadcast %45 : vector<1x64xf32> to vector<128x64xf32>
    %48 = arith.mulf %46, %47 : vector<128x64xf32>
    %49 = arith.addf %40, %48 : vector<128x64xf32>
    %50 = vector.extract_strided_slice %1 {offsets = [1, 2, 0], sizes = [8, 16, 1], strides = [1, 1, 1]} : vector<10x18x1xf32> to vector<8x16x1xf32>
    %51 = vector.shape_cast %50 : vector<8x16x1xf32> to vector<128x1xf32>
    %52 = vector.extract_strided_slice %3 {offsets = [5, 0], sizes = [1, 64], strides = [1, 1]} : vector<9x64xf32> to vector<1x64xf32>
    %53 = vector.shape_cast %52 : vector<1x64xf32> to vector<64xf32>
    %54 = vector.shape_cast %53 : vector<64xf32> to vector<1x64xf32>
    %55 = vector.broadcast %51 : vector<128x1xf32> to vector<128x64xf32>
    %56 = vector.broadcast %54 : vector<1x64xf32> to vector<128x64xf32>
    %57 = arith.mulf %55, %56 : vector<128x64xf32>
    %58 = arith.addf %49, %57 : vector<128x64xf32>
    %59 = vector.extract_strided_slice %1 {offsets = [2, 0, 0], sizes = [8, 16, 1], strides = [1, 1, 1]} : vector<10x18x1xf32> to vector<8x16x1xf32>
    %60 = vector.shape_cast %59 : vector<8x16x1xf32> to vector<128x1xf32>
    %61 = vector.extract_strided_slice %3 {offsets = [6, 0], sizes = [1, 64], strides = [1, 1]} : vector<9x64xf32> to vector<1x64xf32>
    %62 = vector.shape_cast %61 : vector<1x64xf32> to vector<64xf32>
    %63 = vector.shape_cast %62 : vector<64xf32> to vector<1x64xf32>
    %64 = vector.broadcast %60 : vector<128x1xf32> to vector<128x64xf32>
    %65 = vector.broadcast %63 : vector<1x64xf32> to vector<128x64xf32>
    %66 = arith.mulf %64, %65 : vector<128x64xf32>
    %67 = arith.addf %58, %66 : vector<128x64xf32>
    %68 = vector.extract_strided_slice %1 {offsets = [2, 1, 0], sizes = [8, 16, 1], strides = [1, 1, 1]} : vector<10x18x1xf32> to vector<8x16x1xf32>
    %69 = vector.shape_cast %68 : vector<8x16x1xf32> to vector<128x1xf32>
    %70 = vector.extract_strided_slice %3 {offsets = [7, 0], sizes = [1, 64], strides = [1, 1]} : vector<9x64xf32> to vector<1x64xf32>
    %71 = vector.shape_cast %70 : vector<1x64xf32> to vector<64xf32>
    %72 = vector.shape_cast %71 : vector<64xf32> to vector<1x64xf32>
    %73 = vector.broadcast %69 : vector<128x1xf32> to vector<128x64xf32>
    %74 = vector.broadcast %72 : vector<1x64xf32> to vector<128x64xf32>
    %75 = arith.mulf %73, %74 : vector<128x64xf32>
    %76 = arith.addf %67, %75 : vector<128x64xf32>
    %77 = vector.extract_strided_slice %1 {offsets = [2, 2, 0], sizes = [8, 16, 1], strides = [1, 1, 1]} : vector<10x18x1xf32> to vector<8x16x1xf32>
    %78 = vector.shape_cast %77 : vector<8x16x1xf32> to vector<128x1xf32>
    %79 = vector.extract_strided_slice %3 {offsets = [8, 0], sizes = [1, 64], strides = [1, 1]} : vector<9x64xf32> to vector<1x64xf32>
    %80 = vector.shape_cast %79 : vector<1x64xf32> to vector<64xf32>
    %81 = vector.shape_cast %80 : vector<64xf32> to vector<1x64xf32>
    %82 = vector.broadcast %78 : vector<128x1xf32> to vector<128x64xf32>
    %83 = vector.broadcast %81 : vector<1x64xf32> to vector<128x64xf32>
    %84 = arith.mulf %82, %83 : vector<128x64xf32>
    %85 = arith.addf %76, %84 : vector<128x64xf32>
    %c0_5 = arith.constant 0 : index
    %c0_6 = arith.constant 0 : index
    %86 = vector.load %arg3[%c0_5, %c0_6] : memref<1x64xf32, #tpu.memory_space<vmem>>, vector<1x64xf32>
    %87 = vector.broadcast %86 : vector<1x64xf32> to vector<128x64xf32>
    %88 = arith.mulf %85, %87 : vector<128x64xf32>
    %c0_7 = arith.constant 0 : index
    %c0_8 = arith.constant 0 : index
    %89 = vector.load %arg4[%c0_7, %c0_8] : memref<1x64xf32, #tpu.memory_space<vmem>>, vector<1x64xf32>
    %90 = vector.broadcast %89 : vector<1x64xf32> to vector<128x64xf32>
    %91 = arith.addf %88, %90 : vector<128x64xf32>
    %cst_9 = arith.constant 0.000000e+00 : f32
    %cst_10 = arith.constant 2.000000e+01 : f32
    %92 = vector.broadcast %cst_9 : f32 to vector<128x64xf32>
    %93 = arith.maximumf %92, %91 : vector<128x64xf32>
    %94 = vector.broadcast %cst_10 : f32 to vector<128x64xf32>
    %95 = arith.minimumf %94, %93 : vector<128x64xf32>
    %96 = vector.shape_cast %95 : vector<128x64xf32> to vector<8x16x64xf32>
    %97 = arith.truncf %96 : vector<8x16x64xf32> to vector<8x16x64xbf16>
    %c0_11 = arith.constant 0 : index
    %c0_12 = arith.constant 0 : index
    %c0_13 = arith.constant 0 : index
    %c0_14 = arith.constant 0 : index
    %98 = vector.load %arg5[%c0_11, %c0_12, %c0_13, %c0_14] : memref<1x8x16x64xbf16, #tpu.memory_space<vmem>>, vector<1x8x16x64xbf16>
    %99 = vector.shape_cast %98 : vector<1x8x16x64xbf16> to vector<8x16x64xbf16>
    %100 = vector.shape_cast %97 : vector<8x16x64xbf16> to vector<1x8x16x64xbf16>
    tpu.vector_store %arg5[%c0_11, %c0_12, %c0_13, %c0_14], %100 {strides = array<i32>} : memref<1x8x16x64xbf16, #tpu.memory_space<vmem>>, vector<1x8x16x64xbf16>,
    return
  }
  func.func @transform_0(%arg0: i32) -> (i32, i32, i32, i32) {
    %c0_i32 = arith.constant 0 : i32
    %c0_i32_0 = arith.constant 0 : i32
    %c0_i32_1 = arith.constant 0 : i32
    %c0_i32_2 = arith.constant 0 : i32
    return %arg0, %c0_i32, %c0_i32_0, %c0_i32_1 : i32, i32, i32, i32
  }
  func.func @transform_1(%arg0: i32) -> (i32, i32) {
    %c0_i32 = arith.constant 0 : i32
    %c0_i32_0 = arith.constant 0 : i32
    %c0_i32_1 = arith.constant 0 : i32
    return %c0_i32, %c0_i32_0 : i32, i32
  }
  func.func @transform_2(%arg0: i32) -> (i32, i32) {
    %c0_i32 = arith.constant 0 : i32
    %c0_i32_0 = arith.constant 0 : i32
    %c0_i32_1 = arith.constant 0 : i32
    return %c0_i32, %c0_i32_0 : i32, i32
  }
  func.func @transform_3(%arg0: i32) -> (i32, i32) {
    %c0_i32 = arith.constant 0 : i32
    %c0_i32_0 = arith.constant 0 : i32
    %c0_i32_1 = arith.constant 0 : i32
    return %c0_i32, %c0_i32_0 : i32, i32
  }
  func.func @transform_4(%arg0: i32) -> (i32, i32, i32, i32) {
    %c0_i32 = arith.constant 0 : i32
    %c0_i32_0 = arith.constant 0 : i32
    %c0_i32_1 = arith.constant 0 : i32
    %c0_i32_2 = arith.constant 0 : i32
    return %arg0, %c0_i32, %c0_i32_0, %c0_i32_1 : i32, i32, i32, i32
  }
}

module attributes {stable_mosaic.version = 11 : i64} {
  func.func @_conv3x3_bn_act_kernel(%arg0: i32, %arg1: memref<1x10x18x64xbf16, #tpu.memory_space<vmem>>, %arg2: memref<576x64xbf16, #tpu.memory_space<vmem>>, %arg3: memref<1x64xf32, #tpu.memory_space<vmem>>, %arg4: memref<1x64xf32, #tpu.memory_space<vmem>>, %arg5: memref<1x4x8x64xbf16, #tpu.memory_space<vmem>>) attributes {dimension_semantics = [#tpu.dimension_semantics<parallel>], iteration_bounds = array<i64: 2>, scalar_prefetch = 0 : i64, scratch_operands = 0 : i64, tpu.core_type = #tpu.core_type<tc>, window_params = [{transform_indices = @transform_0, window_bounds = array<i64: 1, 10, 18, 64>}, {pipeline_mode = #tpu.pipeline_mode<synchronous>, transform_indices = @transform_1, window_bounds = array<i64: 576, 64>}, {pipeline_mode = #tpu.pipeline_mode<synchronous>, transform_indices = @transform_2, window_bounds = array<i64: 1, 64>}, {pipeline_mode = #tpu.pipeline_mode<synchronous>, transform_indices = @transform_3, window_bounds = array<i64: 1, 64>}, {transform_indices = @transform_4, window_bounds = array<i64: 1, 4, 8, 64>}]} {
    %c0 = arith.constant 0 : index
    %c0_0 = arith.constant 0 : index
    %c0_1 = arith.constant 0 : index
    %c0_2 = arith.constant 0 : index
    %0 = vector.load %arg1[%c0, %c0_0, %c0_1, %c0_2] : memref<1x10x18x64xbf16, #tpu.memory_space<vmem>>, vector<1x10x18x64xbf16>
    %1 = vector.shape_cast %0 : vector<1x10x18x64xbf16> to vector<10x18x64xbf16>
    %2 = vector.extract_strided_slice %1 {offsets = [0, 0, 0], sizes = [8, 16, 64], strides = [1, 1, 1]} : vector<10x18x64xbf16> to vector<8x16x64xbf16>
    %3 = vector.shape_cast %2 : vector<8x16x64xbf16> to vector<128x64xbf16>
    %4 = vector.extract_strided_slice %1 {offsets = [0, 1, 0], sizes = [8, 16, 64], strides = [1, 1, 1]} : vector<10x18x64xbf16> to vector<8x16x64xbf16>
    %5 = vector.shape_cast %4 : vector<8x16x64xbf16> to vector<128x64xbf16>
    %6 = vector.extract_strided_slice %1 {offsets = [0, 2, 0], sizes = [8, 16, 64], strides = [1, 1, 1]} : vector<10x18x64xbf16> to vector<8x16x64xbf16>
    %7 = vector.shape_cast %6 : vector<8x16x64xbf16> to vector<128x64xbf16>
    %8 = vector.extract_strided_slice %1 {offsets = [1, 0, 0], sizes = [8, 16, 64], strides = [1, 1, 1]} : vector<10x18x64xbf16> to vector<8x16x64xbf16>
    %9 = vector.shape_cast %8 : vector<8x16x64xbf16> to vector<128x64xbf16>
    %10 = vector.extract_strided_slice %1 {offsets = [1, 1, 0], sizes = [8, 16, 64], strides = [1, 1, 1]} : vector<10x18x64xbf16> to vector<8x16x64xbf16>
    %11 = vector.shape_cast %10 : vector<8x16x64xbf16> to vector<128x64xbf16>
    %12 = vector.extract_strided_slice %1 {offsets = [1, 2, 0], sizes = [8, 16, 64], strides = [1, 1, 1]} : vector<10x18x64xbf16> to vector<8x16x64xbf16>
    %13 = vector.shape_cast %12 : vector<8x16x64xbf16> to vector<128x64xbf16>
    %14 = vector.extract_strided_slice %1 {offsets = [2, 0, 0], sizes = [8, 16, 64], strides = [1, 1, 1]} : vector<10x18x64xbf16> to vector<8x16x64xbf16>
    %15 = vector.shape_cast %14 : vector<8x16x64xbf16> to vector<128x64xbf16>
    %16 = vector.extract_strided_slice %1 {offsets = [2, 1, 0], sizes = [8, 16, 64], strides = [1, 1, 1]} : vector<10x18x64xbf16> to vector<8x16x64xbf16>
    %17 = vector.shape_cast %16 : vector<8x16x64xbf16> to vector<128x64xbf16>
    %18 = vector.extract_strided_slice %1 {offsets = [2, 2, 0], sizes = [8, 16, 64], strides = [1, 1, 1]} : vector<10x18x64xbf16> to vector<8x16x64xbf16>
    %19 = vector.shape_cast %18 : vector<8x16x64xbf16> to vector<128x64xbf16>
    %20 = tpu.concatenate %3, %5, %7, %9, %11, %13, %15, %17, %19 in 1 : vector<128x64xbf16>, vector<128x64xbf16>, vector<128x64xbf16>, vector<128x64xbf16>, vector<128x64xbf16>, vector<128x64xbf16>, vector<128x64xbf16>, vector<128x64xbf16>, vector<128x64xbf16> -> vector<128x576xbf16>
    %c0_3 = arith.constant 0 : index
    %c0_4 = arith.constant 0 : index
    %21 = vector.load %arg2[%c0_3, %c0_4] : memref<576x64xbf16, #tpu.memory_space<vmem>>, vector<576x64xbf16>
    %cst = arith.constant dense<0.000000e+00> : vector<128x64xf32>
    %22 = tpu.matmul %20, %21, %cst {dimension_numbers = #tpu.dot_dimension_numbers<[1], [0], [0], [1], [0, 0, 1, 1], [], []>} : vector<128x576xbf16>, vector<576x64xbf16>, vector<128x64xf32> -> vector<128x64xf32>
    %c0_5 = arith.constant 0 : index
    %c0_6 = arith.constant 0 : index
    %23 = vector.load %arg3[%c0_5, %c0_6] : memref<1x64xf32, #tpu.memory_space<vmem>>, vector<1x64xf32>
    %24 = vector.broadcast %23 : vector<1x64xf32> to vector<128x64xf32>
    %25 = arith.mulf %22, %24 : vector<128x64xf32>
    %c0_7 = arith.constant 0 : index
    %c0_8 = arith.constant 0 : index
    %26 = vector.load %arg4[%c0_7, %c0_8] : memref<1x64xf32, #tpu.memory_space<vmem>>, vector<1x64xf32>
    %27 = vector.broadcast %26 : vector<1x64xf32> to vector<128x64xf32>
    %28 = arith.addf %25, %27 : vector<128x64xf32>
    %cst_9 = arith.constant 0.000000e+00 : f32
    %cst_10 = arith.constant 2.000000e+01 : f32
    %29 = vector.broadcast %cst_9 : f32 to vector<128x64xf32>
    %30 = arith.maximumf %29, %28 : vector<128x64xf32>
    %31 = vector.broadcast %cst_10 : f32 to vector<128x64xf32>
    %32 = arith.minimumf %31, %30 : vector<128x64xf32>
    %33 = vector.shape_cast %32 : vector<128x64xf32> to vector<8x16x64xf32>
    %34 = vector.shape_cast %33 : vector<8x16x64xf32> to vector<4x2x16x64xf32>
    %cst_11 = arith.constant dense<0xFF800000> : vector<4x16x64xf32>
    %35 = vector.multi_reduction <maximumf>, %34, %cst_11 [1] : vector<4x2x16x64xf32> to vector<4x16x64xf32>
    %36 = vector.shape_cast %35 : vector<4x16x64xf32> to vector<4x8x2x64xf32>
    %cst_12 = arith.constant dense<0xFF800000> : vector<4x8x64xf32>
    %37 = vector.multi_reduction <maximumf>, %36, %cst_12 [2] : vector<4x8x2x64xf32> to vector<4x8x64xf32>
    %38 = arith.truncf %37 : vector<4x8x64xf32> to vector<4x8x64xbf16>
    %c0_13 = arith.constant 0 : index
    %c0_14 = arith.constant 0 : index
    %c0_15 = arith.constant 0 : index
    %c0_16 = arith.constant 0 : index
    %39 = vector.load %arg5[%c0_13, %c0_14, %c0_15, %c0_16] : memref<1x4x8x64xbf16, #tpu.memory_space<vmem>>, vector<1x4x8x64xbf16>
    %40 = vector.shape_cast %39 : vector<1x4x8x64xbf16> to vector<4x8x64xbf16>
    %41 = vector.shape_cast %38 : vector<4x8x64xbf16> to vector<1x4x8x64xbf16>
    tpu.vector_store %arg5[%c0_13, %c0_14, %c0_15, %c0_16], %41 {strides = array<i32>} : memref<1x4x8x64xbf16, #tpu.memory_space<vmem>>, vector<1x4x8x64xbf16>,
    return
  }
  func.func @transform_0(%arg0: i32) -> (i32, i32, i32, i32) {
    %c0_i32 = arith.constant 0 : i32
    %c0_i32_0 = arith.constant 0 : i32
    %c0_i32_1 = arith.constant 0 : i32
    %c0_i32_2 = arith.constant 0 : i32
    return %arg0, %c0_i32, %c0_i32_0, %c0_i32_1 : i32, i32, i32, i32
  }
  func.func @transform_1(%arg0: i32) -> (i32, i32) {
    %c0_i32 = arith.constant 0 : i32
    %c0_i32_0 = arith.constant 0 : i32
    %c0_i32_1 = arith.constant 0 : i32
    return %c0_i32, %c0_i32_0 : i32, i32
  }
  func.func @transform_2(%arg0: i32) -> (i32, i32) {
    %c0_i32 = arith.constant 0 : i32
    %c0_i32_0 = arith.constant 0 : i32
    %c0_i32_1 = arith.constant 0 : i32
    return %c0_i32, %c0_i32_0 : i32, i32
  }
  func.func @transform_3(%arg0: i32) -> (i32, i32) {
    %c0_i32 = arith.constant 0 : i32
    %c0_i32_0 = arith.constant 0 : i32
    %c0_i32_1 = arith.constant 0 : i32
    return %c0_i32, %c0_i32_0 : i32, i32
  }
  func.func @transform_4(%arg0: i32) -> (i32, i32, i32, i32) {
    %c0_i32 = arith.constant 0 : i32
    %c0_i32_0 = arith.constant 0 : i32
    %c0_i32_1 = arith.constant 0 : i32
    %c0_i32_2 = arith.constant 0 : i32
    return %arg0, %c0_i32, %c0_i32_0, %c0_i32_1 : i32, i32, i32, i32
  }
}

module attributes {stable_mosaic.version = 11 : i64} {
  func.func @_conv3x3_bn_act_kernel(%arg0: i32, %arg1: memref<1x6x10x64xbf16, #tpu.memory_space<vmem>>, %arg2: memref<576x128xbf16, #tpu.memory_space<vmem>>, %arg3: memref<1x128xf32, #tpu.memory_space<vmem>>, %arg4: memref<1x128xf32, #tpu.memory_space<vmem>>, %arg5: memref<1x4x8x128xbf16, #tpu.memory_space<vmem>>) attributes {dimension_semantics = [#tpu.dimension_semantics<parallel>], iteration_bounds = array<i64: 2>, scalar_prefetch = 0 : i64, scratch_operands = 0 : i64, tpu.core_type = #tpu.core_type<tc>, window_params = [{transform_indices = @transform_0, window_bounds = array<i64: 1, 6, 10, 64>}, {pipeline_mode = #tpu.pipeline_mode<synchronous>, transform_indices = @transform_1, window_bounds = array<i64: 576, 128>}, {pipeline_mode = #tpu.pipeline_mode<synchronous>, transform_indices = @transform_2, window_bounds = array<i64: 1, 128>}, {pipeline_mode = #tpu.pipeline_mode<synchronous>, transform_indices = @transform_3, window_bounds = array<i64: 1, 128>}, {transform_indices = @transform_4, window_bounds = array<i64: 1, 4, 8, 128>}]} {
    %c0 = arith.constant 0 : index
    %c0_0 = arith.constant 0 : index
    %c0_1 = arith.constant 0 : index
    %c0_2 = arith.constant 0 : index
    %0 = vector.load %arg1[%c0, %c0_0, %c0_1, %c0_2] : memref<1x6x10x64xbf16, #tpu.memory_space<vmem>>, vector<1x6x10x64xbf16>
    %1 = vector.shape_cast %0 : vector<1x6x10x64xbf16> to vector<6x10x64xbf16>
    %2 = vector.extract_strided_slice %1 {offsets = [0, 0, 0], sizes = [4, 8, 64], strides = [1, 1, 1]} : vector<6x10x64xbf16> to vector<4x8x64xbf16>
    %3 = vector.shape_cast %2 : vector<4x8x64xbf16> to vector<32x64xbf16>
    %4 = vector.extract_strided_slice %1 {offsets = [0, 1, 0], sizes = [4, 8, 64], strides = [1, 1, 1]} : vector<6x10x64xbf16> to vector<4x8x64xbf16>
    %5 = vector.shape_cast %4 : vector<4x8x64xbf16> to vector<32x64xbf16>
    %6 = vector.extract_strided_slice %1 {offsets = [0, 2, 0], sizes = [4, 8, 64], strides = [1, 1, 1]} : vector<6x10x64xbf16> to vector<4x8x64xbf16>
    %7 = vector.shape_cast %6 : vector<4x8x64xbf16> to vector<32x64xbf16>
    %8 = vector.extract_strided_slice %1 {offsets = [1, 0, 0], sizes = [4, 8, 64], strides = [1, 1, 1]} : vector<6x10x64xbf16> to vector<4x8x64xbf16>
    %9 = vector.shape_cast %8 : vector<4x8x64xbf16> to vector<32x64xbf16>
    %10 = vector.extract_strided_slice %1 {offsets = [1, 1, 0], sizes = [4, 8, 64], strides = [1, 1, 1]} : vector<6x10x64xbf16> to vector<4x8x64xbf16>
    %11 = vector.shape_cast %10 : vector<4x8x64xbf16> to vector<32x64xbf16>
    %12 = vector.extract_strided_slice %1 {offsets = [1, 2, 0], sizes = [4, 8, 64], strides = [1, 1, 1]} : vector<6x10x64xbf16> to vector<4x8x64xbf16>
    %13 = vector.shape_cast %12 : vector<4x8x64xbf16> to vector<32x64xbf16>
    %14 = vector.extract_strided_slice %1 {offsets = [2, 0, 0], sizes = [4, 8, 64], strides = [1, 1, 1]} : vector<6x10x64xbf16> to vector<4x8x64xbf16>
    %15 = vector.shape_cast %14 : vector<4x8x64xbf16> to vector<32x64xbf16>
    %16 = vector.extract_strided_slice %1 {offsets = [2, 1, 0], sizes = [4, 8, 64], strides = [1, 1, 1]} : vector<6x10x64xbf16> to vector<4x8x64xbf16>
    %17 = vector.shape_cast %16 : vector<4x8x64xbf16> to vector<32x64xbf16>
    %18 = vector.extract_strided_slice %1 {offsets = [2, 2, 0], sizes = [4, 8, 64], strides = [1, 1, 1]} : vector<6x10x64xbf16> to vector<4x8x64xbf16>
    %19 = vector.shape_cast %18 : vector<4x8x64xbf16> to vector<32x64xbf16>
    %20 = tpu.concatenate %3, %5, %7, %9, %11, %13, %15, %17, %19 in 1 : vector<32x64xbf16>, vector<32x64xbf16>, vector<32x64xbf16>, vector<32x64xbf16>, vector<32x64xbf16>, vector<32x64xbf16>, vector<32x64xbf16>, vector<32x64xbf16>, vector<32x64xbf16> -> vector<32x576xbf16>
    %c0_3 = arith.constant 0 : index
    %c0_4 = arith.constant 0 : index
    %21 = vector.load %arg2[%c0_3, %c0_4] : memref<576x128xbf16, #tpu.memory_space<vmem>>, vector<576x128xbf16>
    %cst = arith.constant dense<0.000000e+00> : vector<32x128xf32>
    %22 = tpu.matmul %20, %21, %cst {dimension_numbers = #tpu.dot_dimension_numbers<[1], [0], [0], [1], [0, 0, 1, 1], [], []>} : vector<32x576xbf16>, vector<576x128xbf16>, vector<32x128xf32> -> vector<32x128xf32>
    %c0_5 = arith.constant 0 : index
    %c0_6 = arith.constant 0 : index
    %23 = vector.load %arg3[%c0_5, %c0_6] : memref<1x128xf32, #tpu.memory_space<vmem>>, vector<1x128xf32>
    %24 = vector.broadcast %23 : vector<1x128xf32> to vector<32x128xf32>
    %25 = arith.mulf %22, %24 : vector<32x128xf32>
    %c0_7 = arith.constant 0 : index
    %c0_8 = arith.constant 0 : index
    %26 = vector.load %arg4[%c0_7, %c0_8] : memref<1x128xf32, #tpu.memory_space<vmem>>, vector<1x128xf32>
    %27 = vector.broadcast %26 : vector<1x128xf32> to vector<32x128xf32>
    %28 = arith.addf %25, %27 : vector<32x128xf32>
    %cst_9 = arith.constant 0.000000e+00 : f32
    %cst_10 = arith.constant 2.000000e+01 : f32
    %29 = vector.broadcast %cst_9 : f32 to vector<32x128xf32>
    %30 = arith.maximumf %29, %28 : vector<32x128xf32>
    %31 = vector.broadcast %cst_10 : f32 to vector<32x128xf32>
    %32 = arith.minimumf %31, %30 : vector<32x128xf32>
    %33 = vector.shape_cast %32 : vector<32x128xf32> to vector<4x8x128xf32>
    %34 = arith.truncf %33 : vector<4x8x128xf32> to vector<4x8x128xbf16>
    %c0_11 = arith.constant 0 : index
    %c0_12 = arith.constant 0 : index
    %c0_13 = arith.constant 0 : index
    %c0_14 = arith.constant 0 : index
    %35 = vector.load %arg5[%c0_11, %c0_12, %c0_13, %c0_14] : memref<1x4x8x128xbf16, #tpu.memory_space<vmem>>, vector<1x4x8x128xbf16>
    %36 = vector.shape_cast %35 : vector<1x4x8x128xbf16> to vector<4x8x128xbf16>
    %37 = vector.shape_cast %34 : vector<4x8x128xbf16> to vector<1x4x8x128xbf16>
    tpu.vector_store %arg5[%c0_11, %c0_12, %c0_13, %c0_14], %37 {strides = array<i32>} : memref<1x4x8x128xbf16, #tpu.memory_space<vmem>>, vector<1x4x8x128xbf16>,
    return
  }
  func.func @transform_0(%arg0: i32) -> (i32, i32, i32, i32) {
    %c0_i32 = arith.constant 0 : i32
    %c0_i32_0 = arith.constant 0 : i32
    %c0_i32_1 = arith.constant 0 : i32
    %c0_i32_2 = arith.constant 0 : i32
    return %arg0, %c0_i32, %c0_i32_0, %c0_i32_1 : i32, i32, i32, i32
  }
  func.func @transform_1(%arg0: i32) -> (i32, i32) {
    %c0_i32 = arith.constant 0 : i32
    %c0_i32_0 = arith.constant 0 : i32
    %c0_i32_1 = arith.constant 0 : i32
    return %c0_i32, %c0_i32_0 : i32, i32
  }
  func.func @transform_2(%arg0: i32) -> (i32, i32) {
    %c0_i32 = arith.constant 0 : i32
    %c0_i32_0 = arith.constant 0 : i32
    %c0_i32_1 = arith.constant 0 : i32
    return %c0_i32, %c0_i32_0 : i32, i32
  }
  func.func @transform_3(%arg0: i32) -> (i32, i32) {
    %c0_i32 = arith.constant 0 : i32
    %c0_i32_0 = arith.constant 0 : i32
    %c0_i32_1 = arith.constant 0 : i32
    return %c0_i32, %c0_i32_0 : i32, i32
  }
  func.func @transform_4(%arg0: i32) -> (i32, i32, i32, i32) {
    %c0_i32 = arith.constant 0 : i32
    %c0_i32_0 = arith.constant 0 : i32
    %c0_i32_1 = arith.constant 0 : i32
    %c0_i32_2 = arith.constant 0 : i32
    return %arg0, %c0_i32, %c0_i32_0, %c0_i32_1 : i32, i32, i32, i32
  }
}

module attributes {stable_mosaic.version = 11 : i64} {
  func.func @_conv3x3_bn_act_kernel(%arg0: i32, %arg1: memref<1x6x10x128xbf16, #tpu.memory_space<vmem>>, %arg2: memref<1152x128xbf16, #tpu.memory_space<vmem>>, %arg3: memref<1x128xf32, #tpu.memory_space<vmem>>, %arg4: memref<1x128xf32, #tpu.memory_space<vmem>>, %arg5: memref<1x2x4x128xbf16, #tpu.memory_space<vmem>>) attributes {dimension_semantics = [#tpu.dimension_semantics<parallel>], iteration_bounds = array<i64: 2>, scalar_prefetch = 0 : i64, scratch_operands = 0 : i64, tpu.core_type = #tpu.core_type<tc>, window_params = [{transform_indices = @transform_0, window_bounds = array<i64: 1, 6, 10, 128>}, {pipeline_mode = #tpu.pipeline_mode<synchronous>, transform_indices = @transform_1, window_bounds = array<i64: 1152, 128>}, {pipeline_mode = #tpu.pipeline_mode<synchronous>, transform_indices = @transform_2, window_bounds = array<i64: 1, 128>}, {pipeline_mode = #tpu.pipeline_mode<synchronous>, transform_indices = @transform_3, window_bounds = array<i64: 1, 128>}, {transform_indices = @transform_4, window_bounds = array<i64: 1, 2, 4, 128>}]} {
    %c0 = arith.constant 0 : index
    %c0_0 = arith.constant 0 : index
    %c0_1 = arith.constant 0 : index
    %c0_2 = arith.constant 0 : index
    %0 = vector.load %arg1[%c0, %c0_0, %c0_1, %c0_2] : memref<1x6x10x128xbf16, #tpu.memory_space<vmem>>, vector<1x6x10x128xbf16>
    %1 = vector.shape_cast %0 : vector<1x6x10x128xbf16> to vector<6x10x128xbf16>
    %2 = vector.extract_strided_slice %1 {offsets = [0, 0, 0], sizes = [4, 8, 128], strides = [1, 1, 1]} : vector<6x10x128xbf16> to vector<4x8x128xbf16>
    %3 = vector.shape_cast %2 : vector<4x8x128xbf16> to vector<32x128xbf16>
    %4 = vector.extract_strided_slice %1 {offsets = [0, 1, 0], sizes = [4, 8, 128], strides = [1, 1, 1]} : vector<6x10x128xbf16> to vector<4x8x128xbf16>
    %5 = vector.shape_cast %4 : vector<4x8x128xbf16> to vector<32x128xbf16>
    %6 = vector.extract_strided_slice %1 {offsets = [0, 2, 0], sizes = [4, 8, 128], strides = [1, 1, 1]} : vector<6x10x128xbf16> to vector<4x8x128xbf16>
    %7 = vector.shape_cast %6 : vector<4x8x128xbf16> to vector<32x128xbf16>
    %8 = vector.extract_strided_slice %1 {offsets = [1, 0, 0], sizes = [4, 8, 128], strides = [1, 1, 1]} : vector<6x10x128xbf16> to vector<4x8x128xbf16>
    %9 = vector.shape_cast %8 : vector<4x8x128xbf16> to vector<32x128xbf16>
    %10 = vector.extract_strided_slice %1 {offsets = [1, 1, 0], sizes = [4, 8, 128], strides = [1, 1, 1]} : vector<6x10x128xbf16> to vector<4x8x128xbf16>
    %11 = vector.shape_cast %10 : vector<4x8x128xbf16> to vector<32x128xbf16>
    %12 = vector.extract_strided_slice %1 {offsets = [1, 2, 0], sizes = [4, 8, 128], strides = [1, 1, 1]} : vector<6x10x128xbf16> to vector<4x8x128xbf16>
    %13 = vector.shape_cast %12 : vector<4x8x128xbf16> to vector<32x128xbf16>
    %14 = vector.extract_strided_slice %1 {offsets = [2, 0, 0], sizes = [4, 8, 128], strides = [1, 1, 1]} : vector<6x10x128xbf16> to vector<4x8x128xbf16>
    %15 = vector.shape_cast %14 : vector<4x8x128xbf16> to vector<32x128xbf16>
    %16 = vector.extract_strided_slice %1 {offsets = [2, 1, 0], sizes = [4, 8, 128], strides = [1, 1, 1]} : vector<6x10x128xbf16> to vector<4x8x128xbf16>
    %17 = vector.shape_cast %16 : vector<4x8x128xbf16> to vector<32x128xbf16>
    %18 = vector.extract_strided_slice %1 {offsets = [2, 2, 0], sizes = [4, 8, 128], strides = [1, 1, 1]} : vector<6x10x128xbf16> to vector<4x8x128xbf16>
    %19 = vector.shape_cast %18 : vector<4x8x128xbf16> to vector<32x128xbf16>
    %20 = tpu.concatenate %3, %5, %7, %9, %11, %13, %15, %17, %19 in 1 : vector<32x128xbf16>, vector<32x128xbf16>, vector<32x128xbf16>, vector<32x128xbf16>, vector<32x128xbf16>, vector<32x128xbf16>, vector<32x128xbf16>, vector<32x128xbf16>, vector<32x128xbf16> -> vector<32x1152xbf16>
    %c0_3 = arith.constant 0 : index
    %c0_4 = arith.constant 0 : index
    %21 = vector.load %arg2[%c0_3, %c0_4] : memref<1152x128xbf16, #tpu.memory_space<vmem>>, vector<1152x128xbf16>
    %cst = arith.constant dense<0.000000e+00> : vector<32x128xf32>
    %22 = tpu.matmul %20, %21, %cst {dimension_numbers = #tpu.dot_dimension_numbers<[1], [0], [0], [1], [0, 0, 1, 1], [], []>} : vector<32x1152xbf16>, vector<1152x128xbf16>, vector<32x128xf32> -> vector<32x128xf32>
    %c0_5 = arith.constant 0 : index
    %c0_6 = arith.constant 0 : index
    %23 = vector.load %arg3[%c0_5, %c0_6] : memref<1x128xf32, #tpu.memory_space<vmem>>, vector<1x128xf32>
    %24 = vector.broadcast %23 : vector<1x128xf32> to vector<32x128xf32>
    %25 = arith.mulf %22, %24 : vector<32x128xf32>
    %c0_7 = arith.constant 0 : index
    %c0_8 = arith.constant 0 : index
    %26 = vector.load %arg4[%c0_7, %c0_8] : memref<1x128xf32, #tpu.memory_space<vmem>>, vector<1x128xf32>
    %27 = vector.broadcast %26 : vector<1x128xf32> to vector<32x128xf32>
    %28 = arith.addf %25, %27 : vector<32x128xf32>
    %cst_9 = arith.constant 0.000000e+00 : f32
    %cst_10 = arith.constant 2.000000e+01 : f32
    %29 = vector.broadcast %cst_9 : f32 to vector<32x128xf32>
    %30 = arith.maximumf %29, %28 : vector<32x128xf32>
    %31 = vector.broadcast %cst_10 : f32 to vector<32x128xf32>
    %32 = arith.minimumf %31, %30 : vector<32x128xf32>
    %33 = vector.shape_cast %32 : vector<32x128xf32> to vector<4x8x128xf32>
    %34 = vector.shape_cast %33 : vector<4x8x128xf32> to vector<2x2x8x128xf32>
    %cst_11 = arith.constant dense<0xFF800000> : vector<2x8x128xf32>
    %35 = vector.multi_reduction <maximumf>, %34, %cst_11 [1] : vector<2x2x8x128xf32> to vector<2x8x128xf32>
    %36 = vector.shape_cast %35 : vector<2x8x128xf32> to vector<2x4x2x128xf32>
    %cst_12 = arith.constant dense<0xFF800000> : vector<2x4x128xf32>
    %37 = vector.multi_reduction <maximumf>, %36, %cst_12 [2] : vector<2x4x2x128xf32> to vector<2x4x128xf32>
    %38 = arith.truncf %37 : vector<2x4x128xf32> to vector<2x4x128xbf16>
    %c0_13 = arith.constant 0 : index
    %c0_14 = arith.constant 0 : index
    %c0_15 = arith.constant 0 : index
    %c0_16 = arith.constant 0 : index
    %39 = vector.load %arg5[%c0_13, %c0_14, %c0_15, %c0_16] : memref<1x2x4x128xbf16, #tpu.memory_space<vmem>>, vector<1x2x4x128xbf16>
    %40 = vector.shape_cast %39 : vector<1x2x4x128xbf16> to vector<2x4x128xbf16>
    %41 = vector.shape_cast %38 : vector<2x4x128xbf16> to vector<1x2x4x128xbf16>
    tpu.vector_store %arg5[%c0_13, %c0_14, %c0_15, %c0_16], %41 {strides = array<i32>} : memref<1x2x4x128xbf16, #tpu.memory_space<vmem>>, vector<1x2x4x128xbf16>,
    return
  }
  func.func @transform_0(%arg0: i32) -> (i32, i32, i32, i32) {
    %c0_i32 = arith.constant 0 : i32
    %c0_i32_0 = arith.constant 0 : i32
    %c0_i32_1 = arith.constant 0 : i32
    %c0_i32_2 = arith.constant 0 : i32
    return %arg0, %c0_i32, %c0_i32_0, %c0_i32_1 : i32, i32, i32, i32
  }
  func.func @transform_1(%arg0: i32) -> (i32, i32) {
    %c0_i32 = arith.constant 0 : i32
    %c0_i32_0 = arith.constant 0 : i32
    %c0_i32_1 = arith.constant 0 : i32
    return %c0_i32, %c0_i32_0 : i32, i32
  }
  func.func @transform_2(%arg0: i32) -> (i32, i32) {
    %c0_i32 = arith.constant 0 : i32
    %c0_i32_0 = arith.constant 0 : i32
    %c0_i32_1 = arith.constant 0 : i32
    return %c0_i32, %c0_i32_0 : i32, i32
  }
  func.func @transform_3(%arg0: i32) -> (i32, i32) {
    %c0_i32 = arith.constant 0 : i32
    %c0_i32_0 = arith.constant 0 : i32
    %c0_i32_1 = arith.constant 0 : i32
    return %c0_i32, %c0_i32_0 : i32, i32
  }
  func.func @transform_4(%arg0: i32) -> (i32, i32, i32, i32) {
    %c0_i32 = arith.constant 0 : i32
    %c0_i32_0 = arith.constant 0 : i32
    %c0_i32_1 = arith.constant 0 : i32
    %c0_i32_2 = arith.constant 0 : i32
    return %arg0, %c0_i32, %c0_i32_0, %c0_i32_1 : i32, i32, i32, i32
  }
}

module attributes {stable_mosaic.version = 11 : i64} {
  func.func @_bilstm_block_kernel(%arg0: i32, %arg1: i32, %arg2: memref<2x1xi32, #tpu.memory_space<vmem>>, %arg3: memref<4x2x512xf32, #tpu.memory_space<vmem>>, %arg4: memref<1x128x512xbf16, #tpu.memory_space<vmem>>, %arg5: memref<4x2x128xf32, #tpu.memory_space<vmem>>, %arg6: memref<2x128xf32, #tpu.memory_space<vmem>>, %arg7: memref<2x128xf32, #tpu.memory_space<vmem>>) attributes {dimension_semantics = [#tpu.dimension_semantics<parallel>, #tpu.dimension_semantics<arbitrary>], iteration_bounds = array<i64: 2, 1>, scalar_prefetch = 0 : i64, scratch_operands = 2 : i64, tpu.core_type = #tpu.core_type<tc>, window_params = [{pipeline_mode = #tpu.pipeline_mode<synchronous>, transform_indices = @transform_0, window_bounds = array<i64: 2, 1>}, {transform_indices = @transform_1, window_bounds = array<i64: 4, 2, 512>}, {transform_indices = @transform_2, window_bounds = array<i64: 1, 128, 512>}, {transform_indices = @transform_3, window_bounds = array<i64: 4, 2, 128>}]} {
    %c0_i32 = arith.constant 0 : i32
    %0 = arith.cmpi eq, %arg1, %c0_i32 : i32
    %1 = arith.extui %0 : i1 to i32
    %c0_i32_0 = arith.constant 0 : i32
    %2 = arith.cmpi ne, %1, %c0_i32_0 : i32
    scf.if %2 {
      %cst_52 = arith.constant 0.000000e+00 : f32
      %187 = vector.broadcast %cst_52 : f32 to vector<2x128xf32>
      %c0_53 = arith.constant 0 : index
      %c0_54 = arith.constant 0 : index
      %188 = vector.load %arg6[%c0_53, %c0_54] : memref<2x128xf32, #tpu.memory_space<vmem>>, vector<2x128xf32>
      tpu.vector_store %arg6[%c0_53, %c0_54], %187 {strides = array<i32>} : memref<2x128xf32, #tpu.memory_space<vmem>>, vector<2x128xf32>,
      %cst_55 = arith.constant 0.000000e+00 : f32
      %189 = vector.broadcast %cst_55 : f32 to vector<2x128xf32>
      %c0_56 = arith.constant 0 : index
      %c0_57 = arith.constant 0 : index
      %190 = vector.load %arg7[%c0_56, %c0_57] : memref<2x128xf32, #tpu.memory_space<vmem>>, vector<2x128xf32>
      tpu.vector_store %arg7[%c0_56, %c0_57], %189 {strides = array<i32>} : memref<2x128xf32, #tpu.memory_space<vmem>>, vector<2x128xf32>,
    } else {
    }
    %c0 = arith.constant 0 : index
    %c0_1 = arith.constant 0 : index
    %3 = vector.load %arg2[%c0, %c0_1] : memref<2x1xi32, #tpu.memory_space<vmem>>, vector<2x1xi32>
    %c0_2 = arith.constant 0 : index
    %c0_3 = arith.constant 0 : index
    %c0_4 = arith.constant 0 : index
    %4 = vector.load %arg4[%c0_2, %c0_3, %c0_4] : memref<1x128x512xbf16, #tpu.memory_space<vmem>>, vector<1x128x512xbf16>
    %5 = vector.shape_cast %4 : vector<1x128x512xbf16> to vector<128x512xbf16>
    %c2_i32 = arith.constant 2 : i32
    %6 = arith.muli %c2_i32, %arg1 : i32
    %c0_i32_5 = arith.constant 0 : i32
    %7 = arith.subi %c0_i32_5, %6 : i32
    %8 = arith.muli %arg0, %7 : i32
    %9 = arith.addi %arg1, %8 : i32
    %c4_i32 = arith.constant 4 : i32
    %10 = arith.muli %9, %c4_i32 : i32
    %c0_6 = arith.constant 0 : index
    %c0_7 = arith.constant 0 : index
    %11 = vector.load %arg6[%c0_6, %c0_7] : memref<2x128xf32, #tpu.memory_space<vmem>>, vector<2x128xf32>
    %c0_8 = arith.constant 0 : index
    %c0_9 = arith.constant 0 : index
    %12 = vector.load %arg7[%c0_8, %c0_9] : memref<2x128xf32, #tpu.memory_space<vmem>>, vector<2x128xf32>
    %c0_i32_10 = arith.constant 0 : i32
    %c2_i32_11 = arith.constant 2 : i32
    %13 = arith.muli %c2_i32_11, %c0_i32_10 : i32
    %c3_i32 = arith.constant 3 : i32
    %14 = arith.subi %c3_i32, %13 : i32
    %15 = arith.muli %arg0, %14 : i32
    %16 = arith.addi %c0_i32_10, %15 : i32
    %17 = arith.addi %10, %16 : i32
    %18 = arith.index_cast %16 : i32 to index
    %c0_12 = arith.constant 0 : index
    %c0_13 = arith.constant 0 : index
    %19 = vector.load %arg3[%18, %c0_12, %c0_13] : memref<4x2x512xf32, #tpu.memory_space<vmem>>, vector<1x2x512xf32>
    %20 = vector.shape_cast %19 : vector<1x2x512xf32> to vector<2x512xf32>
    %21 = arith.truncf %11 : vector<2x128xf32> to vector<2x128xbf16>
    %cst = arith.constant dense<0.000000e+00> : vector<2x512xf32>
    %22 = tpu.matmul %21, %5, %cst {dimension_numbers = #tpu.dot_dimension_numbers<[1], [0], [0], [1], [0, 0, 1, 1], [], []>} : vector<2x128xbf16>, vector<128x512xbf16>, vector<2x512xf32> -> vector<2x512xf32>
    %23 = arith.addf %20, %22 : vector<2x512xf32>
    %24 = vector.extract_strided_slice %23 {offsets = [0, 0], sizes = [2, 384], strides = [1, 1]} : vector<2x512xf32> to vector<2x384xf32>
    %25 = arith.negf %24 : vector<2x384xf32>
    %26 = math.exp %25 : vector<2x384xf32>
    %cst_14 = arith.constant 1.000000e+00 : f32
    %27 = vector.broadcast %cst_14 : f32 to vector<2x384xf32>
    %28 = arith.addf %27, %26 : vector<2x384xf32>
    %29 = arith.divf %27, %28 : vector<2x384xf32>
    %30 = vector.extract_strided_slice %23 {offsets = [0, 384], sizes = [2, 128], strides = [1, 1]} : vector<2x512xf32> to vector<2x128xf32>
    %31 = math.tanh %30 : vector<2x128xf32>
    %32 = vector.extract_strided_slice %29 {offsets = [0, 0], sizes = [2, 128], strides = [1, 1]} : vector<2x384xf32> to vector<2x128xf32>
    %33 = vector.extract_strided_slice %29 {offsets = [0, 128], sizes = [2, 128], strides = [1, 1]} : vector<2x384xf32> to vector<2x128xf32>
    %34 = vector.extract_strided_slice %29 {offsets = [0, 256], sizes = [2, 128], strides = [1, 1]} : vector<2x384xf32> to vector<2x128xf32>
    %35 = arith.mulf %33, %12 : vector<2x128xf32>
    %36 = arith.mulf %32, %31 : vector<2x128xf32>
    %37 = arith.addf %35, %36 : vector<2x128xf32>
    %38 = math.tanh %37 : vector<2x128xf32>
    %39 = arith.mulf %34, %38 : vector<2x128xf32>
    %40 = vector.broadcast %17 : i32 to vector<2x1xi32>
    %41 = arith.cmpi slt, %40, %3 : vector<2x1xi32>
    %42 = vector.shape_cast %41 : vector<2x1xi1> to vector<2x1xi1>
    %43 = vector.broadcast %42 : vector<2x1xi1> to vector<2x128xi1>
    %44 = arith.select %43, %37, %12 : vector<2x128xi1>, vector<2x128xf32>
    %45 = vector.shape_cast %41 : vector<2x1xi1> to vector<2x1xi1>
    %46 = vector.broadcast %45 : vector<2x1xi1> to vector<2x128xi1>
    %47 = arith.select %46, %39, %11 : vector<2x128xi1>, vector<2x128xf32>
    %cst_15 = arith.constant 0.000000e+00 : f32
    %48 = vector.shape_cast %41 : vector<2x1xi1> to vector<2x1xi1>
    %49 = vector.broadcast %48 : vector<2x1xi1> to vector<2x128xi1>
    %50 = vector.broadcast %cst_15 : f32 to vector<2x128xf32>
    %51 = arith.select %49, %39, %50 : vector<2x128xi1>, vector<2x128xf32>
    %52 = arith.index_cast %16 : i32 to index
    %c0_16 = arith.constant 0 : index
    %c0_17 = arith.constant 0 : index
    %53 = vector.load %arg5[%52, %c0_16, %c0_17] : memref<4x2x128xf32, #tpu.memory_space<vmem>>, vector<1x2x128xf32>
    %54 = vector.shape_cast %53 : vector<1x2x128xf32> to vector<2x128xf32>
    %55 = vector.shape_cast %51 : vector<2x128xf32> to vector<1x2x128xf32>
    tpu.vector_store %arg5[%52, %c0_16, %c0_17], %55 {strides = array<i32>} : memref<4x2x128xf32, #tpu.memory_space<vmem>>, vector<1x2x128xf32>,
    %c1_i32 = arith.constant 1 : i32
    %c2_i32_18 = arith.constant 2 : i32
    %56 = arith.muli %c2_i32_18, %c1_i32 : i32
    %c3_i32_19 = arith.constant 3 : i32
    %57 = arith.subi %c3_i32_19, %56 : i32
    %58 = arith.muli %arg0, %57 : i32
    %59 = arith.addi %c1_i32, %58 : i32
    %60 = arith.addi %10, %59 : i32
    %61 = arith.index_cast %59 : i32 to index
    %c0_20 = arith.constant 0 : index
    %c0_21 = arith.constant 0 : index
    %62 = vector.load %arg3[%61, %c0_20, %c0_21] : memref<4x2x512xf32, #tpu.memory_space<vmem>>, vector<1x2x512xf32>
    %63 = vector.shape_cast %62 : vector<1x2x512xf32> to vector<2x512xf32>
    %64 = arith.truncf %47 : vector<2x128xf32> to vector<2x128xbf16>
    %cst_22 = arith.constant dense<0.000000e+00> : vector<2x512xf32>
    %65 = tpu.matmul %64, %5, %cst_22 {dimension_numbers = #tpu.dot_dimension_numbers<[1], [0], [0], [1], [0, 0, 1, 1], [], []>} : vector<2x128xbf16>, vector<128x512xbf16>, vector<2x512xf32> -> vector<2x512xf32>
    %66 = arith.addf %63, %65 : vector<2x512xf32>
    %67 = vector.extract_strided_slice %66 {offsets = [0, 0], sizes = [2, 384], strides = [1, 1]} : vector<2x512xf32> to vector<2x384xf32>
    %68 = arith.negf %67 : vector<2x384xf32>
    %69 = math.exp %68 : vector<2x384xf32>
    %cst_23 = arith.constant 1.000000e+00 : f32
    %70 = vector.broadcast %cst_23 : f32 to vector<2x384xf32>
    %71 = arith.addf %70, %69 : vector<2x384xf32>
    %72 = arith.divf %70, %71 : vector<2x384xf32>
    %73 = vector.extract_strided_slice %66 {offsets = [0, 384], sizes = [2, 128], strides = [1, 1]} : vector<2x512xf32> to vector<2x128xf32>
    %74 = math.tanh %73 : vector<2x128xf32>
    %75 = vector.extract_strided_slice %72 {offsets = [0, 0], sizes = [2, 128], strides = [1, 1]} : vector<2x384xf32> to vector<2x128xf32>
    %76 = vector.extract_strided_slice %72 {offsets = [0, 128], sizes = [2, 128], strides = [1, 1]} : vector<2x384xf32> to vector<2x128xf32>
    %77 = vector.extract_strided_slice %72 {offsets = [0, 256], sizes = [2, 128], strides = [1, 1]} : vector<2x384xf32> to vector<2x128xf32>
    %78 = arith.mulf %76, %44 : vector<2x128xf32>
    %79 = arith.mulf %75, %74 : vector<2x128xf32>
    %80 = arith.addf %78, %79 : vector<2x128xf32>
    %81 = math.tanh %80 : vector<2x128xf32>
    %82 = arith.mulf %77, %81 : vector<2x128xf32>
    %83 = vector.broadcast %60 : i32 to vector<2x1xi32>
    %84 = arith.cmpi slt, %83, %3 : vector<2x1xi32>
    %85 = vector.shape_cast %84 : vector<2x1xi1> to vector<2x1xi1>
    %86 = vector.broadcast %85 : vector<2x1xi1> to vector<2x128xi1>
    %87 = arith.select %86, %80, %44 : vector<2x128xi1>, vector<2x128xf32>
    %88 = vector.shape_cast %84 : vector<2x1xi1> to vector<2x1xi1>
    %89 = vector.broadcast %88 : vector<2x1xi1> to vector<2x128xi1>
    %90 = arith.select %89, %82, %47 : vector<2x128xi1>, vector<2x128xf32>
    %cst_24 = arith.constant 0.000000e+00 : f32
    %91 = vector.shape_cast %84 : vector<2x1xi1> to vector<2x1xi1>
    %92 = vector.broadcast %91 : vector<2x1xi1> to vector<2x128xi1>
    %93 = vector.broadcast %cst_24 : f32 to vector<2x128xf32>
    %94 = arith.select %92, %82, %93 : vector<2x128xi1>, vector<2x128xf32>
    %95 = arith.index_cast %59 : i32 to index
    %c0_25 = arith.constant 0 : index
    %c0_26 = arith.constant 0 : index
    %96 = vector.load %arg5[%95, %c0_25, %c0_26] : memref<4x2x128xf32, #tpu.memory_space<vmem>>, vector<1x2x128xf32>
    %97 = vector.shape_cast %96 : vector<1x2x128xf32> to vector<2x128xf32>
    %98 = vector.shape_cast %94 : vector<2x128xf32> to vector<1x2x128xf32>
    tpu.vector_store %arg5[%95, %c0_25, %c0_26], %98 {strides = array<i32>} : memref<4x2x128xf32, #tpu.memory_space<vmem>>, vector<1x2x128xf32>,
    %c2_i32_27 = arith.constant 2 : i32
    %c2_i32_28 = arith.constant 2 : i32
    %99 = arith.muli %c2_i32_28, %c2_i32_27 : i32
    %c3_i32_29 = arith.constant 3 : i32
    %100 = arith.subi %c3_i32_29, %99 : i32
    %101 = arith.muli %arg0, %100 : i32
    %102 = arith.addi %c2_i32_27, %101 : i32
    %103 = arith.addi %10, %102 : i32
    %104 = arith.index_cast %102 : i32 to index
    %c0_30 = arith.constant 0 : index
    %c0_31 = arith.constant 0 : index
    %105 = vector.load %arg3[%104, %c0_30, %c0_31] : memref<4x2x512xf32, #tpu.memory_space<vmem>>, vector<1x2x512xf32>
    %106 = vector.shape_cast %105 : vector<1x2x512xf32> to vector<2x512xf32>
    %107 = arith.truncf %90 : vector<2x128xf32> to vector<2x128xbf16>
    %cst_32 = arith.constant dense<0.000000e+00> : vector<2x512xf32>
    %108 = tpu.matmul %107, %5, %cst_32 {dimension_numbers = #tpu.dot_dimension_numbers<[1], [0], [0], [1], [0, 0, 1, 1], [], []>} : vector<2x128xbf16>, vector<128x512xbf16>, vector<2x512xf32> -> vector<2x512xf32>
    %109 = arith.addf %106, %108 : vector<2x512xf32>
    %110 = vector.extract_strided_slice %109 {offsets = [0, 0], sizes = [2, 384], strides = [1, 1]} : vector<2x512xf32> to vector<2x384xf32>
    %111 = arith.negf %110 : vector<2x384xf32>
    %112 = math.exp %111 : vector<2x384xf32>
    %cst_33 = arith.constant 1.000000e+00 : f32
    %113 = vector.broadcast %cst_33 : f32 to vector<2x384xf32>
    %114 = arith.addf %113, %112 : vector<2x384xf32>
    %115 = arith.divf %113, %114 : vector<2x384xf32>
    %116 = vector.extract_strided_slice %109 {offsets = [0, 384], sizes = [2, 128], strides = [1, 1]} : vector<2x512xf32> to vector<2x128xf32>
    %117 = math.tanh %116 : vector<2x128xf32>
    %118 = vector.extract_strided_slice %115 {offsets = [0, 0], sizes = [2, 128], strides = [1, 1]} : vector<2x384xf32> to vector<2x128xf32>
    %119 = vector.extract_strided_slice %115 {offsets = [0, 128], sizes = [2, 128], strides = [1, 1]} : vector<2x384xf32> to vector<2x128xf32>
    %120 = vector.extract_strided_slice %115 {offsets = [0, 256], sizes = [2, 128], strides = [1, 1]} : vector<2x384xf32> to vector<2x128xf32>
    %121 = arith.mulf %119, %87 : vector<2x128xf32>
    %122 = arith.mulf %118, %117 : vector<2x128xf32>
    %123 = arith.addf %121, %122 : vector<2x128xf32>
    %124 = math.tanh %123 : vector<2x128xf32>
    %125 = arith.mulf %120, %124 : vector<2x128xf32>
    %126 = vector.broadcast %103 : i32 to vector<2x1xi32>
    %127 = arith.cmpi slt, %126, %3 : vector<2x1xi32>
    %128 = vector.shape_cast %127 : vector<2x1xi1> to vector<2x1xi1>
    %129 = vector.broadcast %128 : vector<2x1xi1> to vector<2x128xi1>
    %130 = arith.select %129, %123, %87 : vector<2x128xi1>, vector<2x128xf32>
    %131 = vector.shape_cast %127 : vector<2x1xi1> to vector<2x1xi1>
    %132 = vector.broadcast %131 : vector<2x1xi1> to vector<2x128xi1>
    %133 = arith.select %132, %125, %90 : vector<2x128xi1>, vector<2x128xf32>
    %cst_34 = arith.constant 0.000000e+00 : f32
    %134 = vector.shape_cast %127 : vector<2x1xi1> to vector<2x1xi1>
    %135 = vector.broadcast %134 : vector<2x1xi1> to vector<2x128xi1>
    %136 = vector.broadcast %cst_34 : f32 to vector<2x128xf32>
    %137 = arith.select %135, %125, %136 : vector<2x128xi1>, vector<2x128xf32>
    %138 = arith.index_cast %102 : i32 to index
    %c0_35 = arith.constant 0 : index
    %c0_36 = arith.constant 0 : index
    %139 = vector.load %arg5[%138, %c0_35, %c0_36] : memref<4x2x128xf32, #tpu.memory_space<vmem>>, vector<1x2x128xf32>
    %140 = vector.shape_cast %139 : vector<1x2x128xf32> to vector<2x128xf32>
    %141 = vector.shape_cast %137 : vector<2x128xf32> to vector<1x2x128xf32>
    tpu.vector_store %arg5[%138, %c0_35, %c0_36], %141 {strides = array<i32>} : memref<4x2x128xf32, #tpu.memory_space<vmem>>, vector<1x2x128xf32>,
    %c3_i32_37 = arith.constant 3 : i32
    %c2_i32_38 = arith.constant 2 : i32
    %142 = arith.muli %c2_i32_38, %c3_i32_37 : i32
    %c3_i32_39 = arith.constant 3 : i32
    %143 = arith.subi %c3_i32_39, %142 : i32
    %144 = arith.muli %arg0, %143 : i32
    %145 = arith.addi %c3_i32_37, %144 : i32
    %146 = arith.addi %10, %145 : i32
    %147 = arith.index_cast %145 : i32 to index
    %c0_40 = arith.constant 0 : index
    %c0_41 = arith.constant 0 : index
    %148 = vector.load %arg3[%147, %c0_40, %c0_41] : memref<4x2x512xf32, #tpu.memory_space<vmem>>, vector<1x2x512xf32>
    %149 = vector.shape_cast %148 : vector<1x2x512xf32> to vector<2x512xf32>
    %150 = arith.truncf %133 : vector<2x128xf32> to vector<2x128xbf16>
    %cst_42 = arith.constant dense<0.000000e+00> : vector<2x512xf32>
    %151 = tpu.matmul %150, %5, %cst_42 {dimension_numbers = #tpu.dot_dimension_numbers<[1], [0], [0], [1], [0, 0, 1, 1], [], []>} : vector<2x128xbf16>, vector<128x512xbf16>, vector<2x512xf32> -> vector<2x512xf32>
    %152 = arith.addf %149, %151 : vector<2x512xf32>
    %153 = vector.extract_strided_slice %152 {offsets = [0, 0], sizes = [2, 384], strides = [1, 1]} : vector<2x512xf32> to vector<2x384xf32>
    %154 = arith.negf %153 : vector<2x384xf32>
    %155 = math.exp %154 : vector<2x384xf32>
    %cst_43 = arith.constant 1.000000e+00 : f32
    %156 = vector.broadcast %cst_43 : f32 to vector<2x384xf32>
    %157 = arith.addf %156, %155 : vector<2x384xf32>
    %158 = arith.divf %156, %157 : vector<2x384xf32>
    %159 = vector.extract_strided_slice %152 {offsets = [0, 384], sizes = [2, 128], strides = [1, 1]} : vector<2x512xf32> to vector<2x128xf32>
    %160 = math.tanh %159 : vector<2x128xf32>
    %161 = vector.extract_strided_slice %158 {offsets = [0, 0], sizes = [2, 128], strides = [1, 1]} : vector<2x384xf32> to vector<2x128xf32>
    %162 = vector.extract_strided_slice %158 {offsets = [0, 128], sizes = [2, 128], strides = [1, 1]} : vector<2x384xf32> to vector<2x128xf32>
    %163 = vector.extract_strided_slice %158 {offsets = [0, 256], sizes = [2, 128], strides = [1, 1]} : vector<2x384xf32> to vector<2x128xf32>
    %164 = arith.mulf %162, %130 : vector<2x128xf32>
    %165 = arith.mulf %161, %160 : vector<2x128xf32>
    %166 = arith.addf %164, %165 : vector<2x128xf32>
    %167 = math.tanh %166 : vector<2x128xf32>
    %168 = arith.mulf %163, %167 : vector<2x128xf32>
    %169 = vector.broadcast %146 : i32 to vector<2x1xi32>
    %170 = arith.cmpi slt, %169, %3 : vector<2x1xi32>
    %171 = vector.shape_cast %170 : vector<2x1xi1> to vector<2x1xi1>
    %172 = vector.broadcast %171 : vector<2x1xi1> to vector<2x128xi1>
    %173 = arith.select %172, %166, %130 : vector<2x128xi1>, vector<2x128xf32>
    %174 = vector.shape_cast %170 : vector<2x1xi1> to vector<2x1xi1>
    %175 = vector.broadcast %174 : vector<2x1xi1> to vector<2x128xi1>
    %176 = arith.select %175, %168, %133 : vector<2x128xi1>, vector<2x128xf32>
    %cst_44 = arith.constant 0.000000e+00 : f32
    %177 = vector.shape_cast %170 : vector<2x1xi1> to vector<2x1xi1>
    %178 = vector.broadcast %177 : vector<2x1xi1> to vector<2x128xi1>
    %179 = vector.broadcast %cst_44 : f32 to vector<2x128xf32>
    %180 = arith.select %178, %168, %179 : vector<2x128xi1>, vector<2x128xf32>
    %181 = arith.index_cast %145 : i32 to index
    %c0_45 = arith.constant 0 : index
    %c0_46 = arith.constant 0 : index
    %182 = vector.load %arg5[%181, %c0_45, %c0_46] : memref<4x2x128xf32, #tpu.memory_space<vmem>>, vector<1x2x128xf32>
    %183 = vector.shape_cast %182 : vector<1x2x128xf32> to vector<2x128xf32>
    %184 = vector.shape_cast %180 : vector<2x128xf32> to vector<1x2x128xf32>
    tpu.vector_store %arg5[%181, %c0_45, %c0_46], %184 {strides = array<i32>} : memref<4x2x128xf32, #tpu.memory_space<vmem>>, vector<1x2x128xf32>,
    %c4_i32_47 = arith.constant 4 : i32
    %c0_48 = arith.constant 0 : index
    %c0_49 = arith.constant 0 : index
    %185 = vector.load %arg6[%c0_48, %c0_49] : memref<2x128xf32, #tpu.memory_space<vmem>>, vector<2x128xf32>
    tpu.vector_store %arg6[%c0_48, %c0_49], %176 {strides = array<i32>} : memref<2x128xf32, #tpu.memory_space<vmem>>, vector<2x128xf32>,
    %c0_50 = arith.constant 0 : index
    %c0_51 = arith.constant 0 : index
    %186 = vector.load %arg7[%c0_50, %c0_51] : memref<2x128xf32, #tpu.memory_space<vmem>>, vector<2x128xf32>
    tpu.vector_store %arg7[%c0_50, %c0_51], %173 {strides = array<i32>} : memref<2x128xf32, #tpu.memory_space<vmem>>, vector<2x128xf32>,
    return
  }
  func.func @transform_0(%arg0: i32, %arg1: i32) -> (i32, i32) {
    %c0_i32 = arith.constant 0 : i32
    %c0_i32_0 = arith.constant 0 : i32
    %c0_i32_1 = arith.constant 0 : i32
    return %c0_i32, %c0_i32_0 : i32, i32
  }
  func.func @transform_1(%arg0: i32, %arg1: i32) -> (i32, i32, i32) {
    %c2_i32 = arith.constant 2 : i32
    %0 = arith.muli %c2_i32, %arg1 : i32
    %c0_i32 = arith.constant 0 : i32
    %1 = arith.subi %c0_i32, %0 : i32
    %2 = arith.muli %arg0, %1 : i32
    %3 = arith.addi %arg1, %2 : i32
    %c0_i32_0 = arith.constant 0 : i32
    %c0_i32_1 = arith.constant 0 : i32
    return %3, %c0_i32_0, %arg0 : i32, i32, i32
  }
  func.func @transform_2(%arg0: i32, %arg1: i32) -> (i32, i32, i32) {
    %c0_i32 = arith.constant 0 : i32
    %c0_i32_0 = arith.constant 0 : i32
    %c0_i32_1 = arith.constant 0 : i32
    return %arg0, %c0_i32, %c0_i32_0 : i32, i32, i32
  }
  func.func @transform_3(%arg0: i32, %arg1: i32) -> (i32, i32, i32) {
    %c2_i32 = arith.constant 2 : i32
    %0 = arith.muli %c2_i32, %arg1 : i32
    %c0_i32 = arith.constant 0 : i32
    %1 = arith.subi %c0_i32, %0 : i32
    %2 = arith.muli %arg0, %1 : i32
    %3 = arith.addi %arg1, %2 : i32
    %c0_i32_0 = arith.constant 0 : i32
    %c0_i32_1 = arith.constant 0 : i32
    return %3, %c0_i32_0, %arg0 : i32, i32, i32
  }
}

</mosaic_0001>

<llo_original>
// kernel: listener_forward.7
$region0: #{listener_forward.7}
  #allocation0 [shape = 'u32[]', space=smem, size = 0x4, offset = 0x4, fixed_abs, tag = 'smem constant byte address 0x4 - core index']
  #allocation1 [shape = 'u32[144,128]{1,0:T(1,128)}', space=vmem, size = 0x12000, scoped, tag = 'internal scratch']
  %s0 = inlined_call_operand.vmem [shape: f32[2,10,18,1], index: 0, kind: input, shape index: {}]
  %s1 = inlined_call_operand.vmem [shape: bf16[9,64], index: 1, kind: input, shape index: {}]
  %s2 = inlined_call_operand.vmem [shape: f32[1,64], index: 2, kind: input, shape index: {}]
  %s3 = inlined_call_operand.vmem [shape: f32[1,64], index: 3, kind: input, shape index: {}]
  %s4 = inlined_call_operand.vmem [shape: bf16[2,8,16,64], index: 4, kind: output, shape index: {}]
  %s5 = sld [smem:[#allocation0]]
  $region49: #{listener_forward.7} parent=0
    _
  %s7 = ssub.s32 1, %s5
  %s8 = scalar_select 0, %s7, %s5
  loop: start=0, step=1, limit=4
  $region2: #{listener_forward.7} parent=0 // loop_pre_header
    _
  $region3: #{listener_forward.7} parent=0 // loop_header
    %s10 = sphi 0, %s14
    %p11 = scmp.ge.s32.totalorder %s10, 4
    %s20 = sphi 0, %s22
    %s23 = sphi 0, %s20
    %s24 = sphi 0, %s23
    %s40 = sphi 0, %s24
    %s44 = sphi 0, %s44
    %s46 = sphi 0, %s44
    %s47 = sphi 0, %s46
    %s61 = sphi 0, %s47
    %s65 = sphi 0, %s65
    %s67 = sphi 0, %s65
    %s68 = sphi 0, %s67
    %s82 = sphi 0, %s68
    %s86 = sphi 0, %s86
    %s88 = sphi 0, %s86
    %s89 = sphi 0, %s88
    %s103 = sphi 0, %s89
    %s109 = sphi 0, %s111
    %s112 = sphi 0, %s109
    %s113 = sphi 0, %s112
    %s129 = sphi 0, %s113
  $region4: #{listener_forward.7} parent=0 // loop_header_branch
    %13 = sbr.rel (%p11) target = $region8
  $region5: #{listener_forward.7} parent=0 // loop_body
    %s15 = ssub.s32 %s10, 1
    %s16 = ssub.s32 %s10, 2
    %s17 = sadd.s32 %s10, 1
    %s18 = ssub.s32 %s10, %s17
    %p19 = scmp.eq.s32.totalorder %s18, 0
    %s21 = sadd.s32 %s20, 1
    %s22 = scalar_select %p19, %s20, %s21
    %p25 = pneg %p19
    %p26 = scmp.eq.s32.totalorder %s10, 1
    %p27 = por %p25, %p26
    %p28 = scmp.ne.s32.totalorder %s20, %s23
    %p29 = scmp.eq.s32.totalorder %s10, 0
    %p30 = por %p28, %p29
    %p31 = scmp.ne.s32.totalorder %s20, %s23
    %p32 = scmp.eq.s32.totalorder %s15, 1
    %p33 = por %p31, %p32
    %p34 = scmp.ne.s32.totalorder %s23, %s24
    %p35 = scmp.eq.s32.totalorder %s15, 0
    %p36 = por %p34, %p35
    %p37 = scmp.ne.s32.totalorder %s23, %s24
    %p38 = scmp.eq.s32.totalorder %s16, 1
    %p39 = por %p37, %p38
    %p41 = scmp.ne.s32.totalorder %s24, %s40
    %p42 = scmp.eq.s32.totalorder %s16, 0
    %p43 = por %p41, %p42
    %s45 = sadd.s32 %s44, 1
    %p48 = scmp.eq.s32.totalorder %s10, 1
    %p49 = scmp.ne.s32.totalorder %s44, %s46
    %p50 = scmp.eq.s32.totalorder %s10, 0
    %p51 = por %p49, %p50
    %p52 = scmp.ne.s32.totalorder %s44, %s46
    %p53 = scmp.eq.s32.totalorder %s15, 1
    %p54 = por %p52, %p53
    %p55 = scmp.ne.s32.totalorder %s46, %s47
    %p56 = scmp.eq.s32.totalorder %s15, 0
    %p57 = por %p55, %p56
    %p58 = scmp.ne.s32.totalorder %s46, %s47
    %p59 = scmp.eq.s32.totalorder %s16, 1
    %p60 = por %p58, %p59
    %p62 = scmp.ne.s32.totalorder %s47, %s61
    %p63 = scmp.eq.s32.totalorder %s16, 0
    %p64 = por %p62, %p63
    %s66 = sadd.s32 %s65, 1
    %p69 = scmp.eq.s32.totalorder %s10, 1
    %p70 = scmp.ne.s32.totalorder %s65, %s67
    %p71 = scmp.eq.s32.totalorder %s10, 0
    %p72 = por %p70, %p71
    %p73 = scmp.ne.s32.totalorder %s65, %s67
    %p74 = scmp.eq.s32.totalorder %s15, 1
    %p75 = por %p73, %p74
    %p76 = scmp.ne.s32.totalorder %s67, %s68
    %p77 = scmp.eq.s32.totalorder %s15, 0
    %p78 = por %p76, %p77
    %p79 = scmp.ne.s32.totalorder %s67, %s68
    %p80 = scmp.eq.s32.totalorder %s16, 1
    %p81 = por %p79, %p80
    %p83 = scmp.ne.s32.totalorder %s68, %s82
    %p84 = scmp.eq.s32.totalorder %s16, 0
    %p85 = por %p83, %p84
    %s87 = sadd.s32 %s86, 1
    %p90 = scmp.eq.s32.totalorder %s10, 1
    %p91 = scmp.ne.s32.totalorder %s86, %s88
    %p92 = scmp.eq.s32.totalorder %s10, 0
    %p93 = por %p91, %p92
    %p94 = scmp.ne.s32.totalorder %s86, %s88
    %p95 = scmp.eq.s32.totalorder %s15, 1
    %p96 = por %p94, %p95
    %p97 = scmp.ne.s32.totalorder %s88, %s89
    %p98 = scmp.eq.s32.totalorder %s15, 0
    %p99 = por %p97, %p98
    %p100 = scmp.ne.s32.totalorder %s88, %s89
    %p101 = scmp.eq.s32.totalorder %s16, 1
    %p102 = por %p100, %p101
    %p104 = scmp.ne.s32.totalorder %s89, %s103
    %p105 = scmp.eq.s32.totalorder %s16, 0
    %p106 = por %p104, %p105
    %s107 = ssub.s32 %s10, %s17
    %p108 = scmp.eq.s32.totalorder %s107, 0
    %s110 = sadd.s32 %s109, 1
    %s111 = scalar_select %p108, %s109, %s110
    %p114 = pneg %p108
    %p115 = scmp.eq.s32.totalorder %s10, 1
    %p116 = por %p114, %p115
    %p117 = scmp.ne.s32.totalorder %s109, %s112
    %p118 = scmp.eq.s32.totalorder %s10, 0
    %p119 = por %p117, %p118
    %p120 = scmp.ne.s32.totalorder %s109, %s112
    %p121 = scmp.eq.s32.totalorder %s15, 1
    %p122 = por %p120, %p121
    %p123 = scmp.ne.s32.totalorder %s112, %s113
    %p124 = scmp.eq.s32.totalorder %s15, 0
    %p125 = por %p123, %p124
    %p126 = scmp.ne.s32.totalorder %s112, %s113
    %p127 = scmp.eq.s32.totalorder %s16, 1
    %p128 = por %p126, %p127
    %p130 = scmp.ne.s32.totalorder %s113, %s129
    %p131 = scmp.eq.s32.totalorder %s16, 0
    %p132 = por %p130, %p131
    %p133 = scmp.le.s32.totalorder 1, %s10
    %p134 = scmp.lt.s32.totalorder %s10, 3
    %p135 = pnand %p133, %p134
    %p136 = pneg %p135
    // Predicated region
    $region9: #{listener_forward.7} parent=5 // pred_check
      _
    $region10: #{listener_forward.7} parent=5 // pred_check_branch
      %138 = sbr.rel (%p135) target = $region12
    $region11: #{listener_forward.7} parent=5 // pred_region
      %s139 = ssub.s32 %s10, 1
      // Predicated region
      $region13: #{listener_forward.7} parent=11 // pred_check
        %p140 = pneg %p57
      $region14: #{listener_forward.7} parent=11 // pred_check_branch
        %142 = sbr.rel (%p140) target = $region16
      $region15: #{listener_forward.7} parent=11 // pred_region
        _
      $region16: #{listener_forward.7} parent=11 // pred_fallthru
        _
      // Predicated region
      $region17: #{listener_forward.7} parent=11 // pred_check
        %p143 = pneg %p78
      $region18: #{listener_forward.7} parent=11 // pred_check_branch
        %145 = sbr.rel (%p143) target = $region20
      $region19: #{listener_forward.7} parent=11 // pred_region
        _
      $region20: #{listener_forward.7} parent=11 // pred_fallthru
        _
      // Predicated region
      $region21: #{listener_forward.7} parent=11 // pred_check
        %p146 = pneg %p99
      $region22: #{listener_forward.7} parent=11 // pred_check_branch
        %148 = sbr.rel (%p146) target = $region24
      $region23: #{listener_forward.7} parent=11 // pred_region
        _
      $region24: #{listener_forward.7} parent=11 // pred_fallthru
        _
    $region12: #{listener_forward.7} parent=5 // pred_fallthru
      _
    %p149 = scmp.lt.s32.totalorder %s10, 2
    // Predicated region
    $region25: #{listener_forward.7} parent=5 // pred_check
      %p150 = pneg %p149
    $region26: #{listener_forward.7} parent=5 // pred_check_branch
      %152 = sbr.rel (%p150) target = $region28
    $region27: #{listener_forward.7} parent=5 // pred_region
      // Predicated region
      $region29: #{listener_forward.7} parent=27 // pred_check
        %p153 = pneg %p30
      $region30: #{listener_forward.7} parent=27 // pred_check_branch
        %155 = sbr.rel (%p153) target = $region32
      $region31: #{listener_forward.7} parent=27 // pred_region
        %p156 = scmp.lt.s32.totalorder %s10, 1
        %s157 = scalar_select %p156, %s10, 1
        %s158 = smul.addr %s157, 30
        %s159 = smul.addr %s158, 8
        %s160 = scalar_lea.vmem %s0, %s159
      $region32: #{listener_forward.7} parent=27 // pred_fallthru
        _
    $region28: #{listener_forward.7} parent=5 // pred_fallthru
      _
    %p161 = scmp.le.s32.totalorder 1, %s10
    %p162 = scmp.lt.s32.totalorder %s10, 3
    %p163 = pnand %p161, %p162
    %p164 = pneg %p163
    // Predicated region
    $region33: #{listener_forward.7} parent=5 // pred_check
      _
    $region34: #{listener_forward.7} parent=5 // pred_check_branch
      %166 = sbr.rel (%p163) target = $region36
    $region35: #{listener_forward.7} parent=5 // pred_region
      %s167 = ssub.s32 %s10, 1
      %p168 = scmp.lt.s32.totalorder %s15, 1
      %s169 = scalar_select %p168, %s15, 1
      %s170 = smul.addr %s169, 30
      %s171 = smul.addr %s170, 8
      %s172 = scalar_lea.vmem %s0, %s171
      %p173 = pneg %p36
      %p174 = pneg %p33
      %p175 = pneg %p57
      %p176 = pneg %p54
      %p177 = pneg %p78
      %p178 = pneg %p75
      %p179 = pneg %p99
      %p180 = pneg %p96
      %p181 = pneg %p125
      %p182 = pneg %p122
      %p183 = scmp.lt.s32.totalorder %s15, 1
      %s184 = scalar_select %p183, %s15, 1
      %s185 = smul.addr %s184, 16
      %s186 = smul.addr %s185, 4
      %s187 = scalar_lea.vmem %s4, %s186
      %p188 = scmp.lt.s32.totalorder %s15, 1
      %s189 = scalar_select %p188, %s15, 1
      %s190 = smul.addr %s189, 30
      %s191 = smul.addr %s190, 8
      %s192 = scalar_lea.vmem %s0, %s191
      %p193 = scmp.lt.s32.totalorder %s15, 1
      %s194 = scalar_select %p193, %s15, 1
      %s195 = smul.addr %s194, 16
      %s196 = smul.addr %s195, 4
      %s197 = scalar_lea.vmem %s4, %s196
      %v198 = vld [vmem:[%s192] sm:$0xff]
      %v199 = vld [vmem:[%s192 + $0x8] sm:$0xff]
      %v200 = vld [vmem:[%s192 + $0x10] sm:$0x3]
      %v201 = vld [vmem:[%s192 + $0x18] sm:$0xff]
      %v202 = vld [vmem:[%s192 + $0x20] sm:$0xff]
      %v203 = vld [vmem:[%s192 + $0x28] sm:$0x3]
      %v204 = vld [vmem:[%s192 + $0x30] sm:$0xff]
      %v205 = vld [vmem:[%s192 + $0x38] sm:$0xff]
      %v206 = vld [vmem:[%s192 + $0x40] sm:$0x3]
      %v207 = vld [vmem:[%s192 + $0x48] sm:$0xff]
      %v208 = vld [vmem:[%s192 + $0x50] sm:$0xff]
      %v209 = vld [vmem:[%s192 + $0x58] sm:$0x3]
      %v210 = vld [vmem:[%s192 + $0x60] sm:$0xff]
      %v211 = vld [vmem:[%s192 + $0x68] sm:$0xff]
      %v212 = vld [vmem:[%s192 + $0x70] sm:$0x3]
      %v213 = vld [vmem:[%s192 + $0x78] sm:$0xff]
      %v214 = vld [vmem:[%s192 + $0x80] sm:$0xff]
      %v215 = vld [vmem:[%s192 + $0x88] sm:$0x3]
      %v216 = vld [vmem:[%s192 + $0x90] sm:$0xff]
      %v217 = vld [vmem:[%s192 + $0x98] sm:$0xff]
      %v218 = vld [vmem:[%s192 + $0xa0] sm:$0x3]
      %v219 = vld [vmem:[%s192 + $0xa8] sm:$0xff]
      %v220 = vld [vmem:[%s192 + $0xb0] sm:$0xff]
      %v221 = vld [vmem:[%s192 + $0xb8] sm:$0x3]
      %v222 = vld [vmem:[%s192 + $0xc0] sm:$0xff]
      %v223 = vld [vmem:[%s192 + $0xc8] sm:$0xff]
      %v224 = vld [vmem:[%s192 + $0xd0] sm:$0x3]
      %v225 = vld [vmem:[%s192 + $0xd8] sm:$0xff]
      %v226 = vld [vmem:[%s192 + $0xe0] sm:$0xff]
      %v227 = vld [vmem:[%s192 + $0xe8] sm:$0x3]
      %v228 = vld [vmem:[%s1] sm:$0xf]
      %v229 = vld [vmem:[%s1 + $0x4] sm:$0x1]
      %v230 = vunpack.c.l.bf16 %v228
      %v231 = vunpack.c.l.bf16 %v229
      %233 = vset.pattern.permute.xlu0 0
      %234 = vperm.xlu0 %233, %v198
      %v235 = vpop.permute.xlu0 %234
      %238 = vset.pattern.permute.xlu0 0
      %239 = vperm.xlu0 %238, %v199
      %v240 = vpop.permute.xlu0 %239
      %243 = vset.pattern.permute.xlu0 0
      %244 = vperm.xlu0 %243, %v201
      %v245 = vpop.permute.xlu0 %244
      %248 = vset.pattern.permute.xlu0 0
      %249 = vperm.xlu0 %248, %v202
      %v250 = vpop.permute.xlu0 %249
      %253 = vset.pattern.permute.xlu0 0
      %254 = vperm.xlu0 %253, %v204
      %v255 = vpop.permute.xlu0 %254
      %258 = vset.pattern.permute.xlu0 0
      %259 = vperm.xlu0 %258, %v205
      %v260 = vpop.permute.xlu0 %259
      %263 = vset.pattern.permute.xlu0 0
      %264 = vperm.xlu0 %263, %v207
      %v265 = vpop.permute.xlu0 %264
      %268 = vset.pattern.permute.xlu0 0
      %269 = vperm.xlu0 %268, %v208
      %v270 = vpop.permute.xlu0 %269
      %273 = vset.pattern.permute.xlu0 0
      %274 = vperm.xlu0 %273, %v210
      %v275 = vpop.permute.xlu0 %274
      %278 = vset.pattern.permute.xlu0 0
      %279 = vperm.xlu0 %278, %v211
      %v280 = vpop.permute.xlu0 %279
      %283 = vset.pattern.permute.xlu0 0
      %284 = vperm.xlu0 %283, %v213
      %v285 = vpop.permute.xlu0 %284
      %288 = vset.pattern.permute.xlu0 0
      %289 = vperm.xlu0 %288, %v214
      %v290 = vpop.permute.xlu0 %289
      %293 = vset.pattern.permute.xlu0 0
      %294 = vperm.xlu0 %293, %v216
      %v295 = vpop.permute.xlu0 %294
      %298 = vset.pattern.permute.xlu0 0
      %299 = vperm.xlu0 %298, %v217
      %v300 = vpop.permute.xlu0 %299
      %303 = vset.pattern.permute.xlu0 0
      %304 = vperm.xlu0 %303, %v219
      %v305 = vpop.permute.xlu0 %304
      %308 = vset.pattern.permute.xlu0 0
      %309 = vperm.xlu0 %308, %v220
      %v310 = vpop.permute.xlu0 %309
      %v312 = vlaneseq
      %v313 = vshrl.u32 %v312, 7
      %v314 = vsub.s32 0, %v313
      %v315 = vrot.slane %v230, %v314
      %v316 = vmul.f32 %v235, %v315
      %v317 = vmul.f32 %v240, %v315
      %v318 = vmul.f32 %v245, %v315
      %v319 = vmul.f32 %v250, %v315
      %v320 = vmul.f32 %v255, %v315
      %v321 = vmul.f32 %v260, %v315
      %v322 = vmul.f32 %v265, %v315
      %v323 = vmul.f32 %v270, %v315
      %v324 = vmul.f32 %v275, %v315
      %v325 = vmul.f32 %v280, %v315
      %v326 = vmul.f32 %v285, %v315
      %v327 = vmul.f32 %v290, %v315
      %v328 = vmul.f32 %v295, %v315
      %v329 = vmul.f32 %v300, %v315
      %v330 = vmul.f32 %v305, %v315
      %v331 = vmul.f32 %v310, %v315
      %v332 = vadd.f32 %v316, 0.0
      %v333 = vadd.f32 %v317, 0.0
      %v334 = vadd.f32 %v318, 0.0
      %v335 = vadd.f32 %v319, 0.0
      %v336 = vadd.f32 %v320, 0.0
      %v337 = vadd.f32 %v321, 0.0
      %v338 = vadd.f32 %v322, 0.0
      %v339 = vadd.f32 %v323, 0.0
      %v340 = vadd.f32 %v324, 0.0
      %v341 = vadd.f32 %v325, 0.0
      %v342 = vadd.f32 %v326, 0.0
      %v343 = vadd.f32 %v327, 0.0
      %v344 = vadd.f32 %v328, 0.0
      %v345 = vadd.f32 %v329, 0.0
      %v346 = vadd.f32 %v330, 0.0
      %v347 = vadd.f32 %v331, 0.0
      %vm356 = vcmask 1046528
      %v357 = vrot.slane %v198, 1
      %v358 = vrot.slane %v199, 1
      %v359 = vsel %vm356, %v357, %v358
      %v360 = vrot.slane %v200, 1
      %v361 = vsel %vm356, %v358, %v360
      %v362 = vrot.slane %v201, 1
      %v363 = vrot.slane %v202, 1
      %v364 = vsel %vm356, %v362, %v363
      %v365 = vrot.slane %v203, 1
      %v366 = vsel %vm356, %v363, %v365
      %v367 = vrot.slane %v204, 1
      %v368 = vrot.slane %v205, 1
      %v369 = vsel %vm356, %v367, %v368
      %v370 = vrot.slane %v206, 1
      %v371 = vsel %vm356, %v368, %v370
      %v372 = vrot.slane %v207, 1
      %v373 = vrot.slane %v208, 1
      %v374 = vsel %vm356, %v372, %v373
      %v375 = vrot.slane %v209, 1
      %v376 = vsel %vm356, %v373, %v375
      %v377 = vrot.slane %v210, 1
      %v378 = vrot.slane %v211, 1
      %v379 = vsel %vm356, %v377, %v378
      %v380 = vrot.slane %v212, 1
      %v381 = vsel %vm356, %v378, %v380
      %v382 = vrot.slane %v213, 1
      %v383 = vrot.slane %v214, 1
      %v384 = vsel %vm356, %v382, %v383
      %v385 = vrot.slane %v215, 1
      %v386 = vsel %vm356, %v383, %v385
      %v387 = vrot.slane %v216, 1
      %v388 = vrot.slane %v217, 1
      %v389 = vsel %vm356, %v387, %v388
      %v390 = vrot.slane %v218, 1
      %v391 = vsel %vm356, %v388, %v390
      %v392 = vrot.slane %v219, 1
      %v393 = vrot.slane %v220, 1
      %v394 = vsel %vm356, %v392, %v393
      %v395 = vrot.slane %v221, 1
      %v396 = vsel %vm356, %v393, %v395
      %397 = vset.pattern.permute.xlu0 0
      %398 = vperm.xlu0 %397, %v359
      %v399 = vpop.permute.xlu0 %398
      %401 = vset.pattern.permute.xlu0 0
      %402 = vperm.xlu0 %401, %v361
      %v403 = vpop.permute.xlu0 %402
      %405 = vset.pattern.permute.xlu0 0
      %406 = vperm.xlu0 %405, %v364
      %v407 = vpop.permute.xlu0 %406
      %409 = vset.pattern.permute.xlu0 0
      %410 = vperm.xlu0 %409, %v366
      %v411 = vpop.permute.xlu0 %410
      %413 = vset.pattern.permute.xlu0 0
      %414 = vperm.xlu0 %413, %v369
      %v415 = vpop.permute.xlu0 %414
      %417 = vset.pattern.permute.xlu0 0
      %418 = vperm.xlu0 %417, %v371
      %v419 = vpop.permute.xlu0 %418
      %421 = vset.pattern.permute.xlu0 0
      %422 = vperm.xlu0 %421, %v374
      %v423 = vpop.permute.xlu0 %422
      %425 = vset.pattern.permute.xlu0 0
      %426 = vperm.xlu0 %425, %v376
      %v427 = vpop.permute.xlu0 %426
      %429 = vset.pattern.permute.xlu0 0
      %430 = vperm.xlu0 %429, %v379
      %v431 = vpop.permute.xlu0 %430
      %433 = vset.pattern.permute.xlu0 0
      %434 = vperm.xlu0 %433, %v381
      %v435 = vpop.permute.xlu0 %434
      %437 = vset.pattern.permute.xlu0 0
      %438 = vperm.xlu0 %437, %v384
      %v439 = vpop.permute.xlu0 %438
      %441 = vset.pattern.permute.xlu0 0
      %442 = vperm.xlu0 %441, %v386
      %v443 = vpop.permute.xlu0 %442
      %445 = vset.pattern.permute.xlu0 0
      %446 = vperm.xlu0 %445, %v389
      %v447 = vpop.permute.xlu0 %446
      %449 = vset.pattern.permute.xlu0 0
      %450 = vperm.xlu0 %449, %v391
      %v451 = vpop.permute.xlu0 %450
      %453 = vset.pattern.permute.xlu0 0
      %454 = vperm.xlu0 %453, %v394
      %v455 = vpop.permute.xlu0 %454
      %457 = vset.pattern.permute.xlu0 0
      %458 = vperm.xlu0 %457, %v396
      %v459 = vpop.permute.xlu0 %458
      %v461 = vlaneseq
      %v462 = vshrl.u32 %v461, 7
      %v463 = vsub.s32 1, %v462
      %v464 = vrot.slane %v230, %v463
      %v465 = vmul.f32 %v399, %v464
      %v466 = vmul.f32 %v403, %v464
      %v467 = vmul.f32 %v407, %v464
      %v468 = vmul.f32 %v411, %v464
      %v469 = vmul.f32 %v415, %v464
      %v470 = vmul.f32 %v419, %v464
      %v471 = vmul.f32 %v423, %v464
      %v472 = vmul.f32 %v427, %v464
      %v473 = vmul.f32 %v431, %v464
      %v474 = vmul.f32 %v435, %v464
      %v475 = vmul.f32 %v439, %v464
      %v476 = vmul.f32 %v443, %v464
      %v477 = vmul.f32 %v447, %v464
      %v478 = vmul.f32 %v451, %v464
      %v479 = vmul.f32 %v455, %v464
      %v480 = vmul.f32 %v459, %v464
      %v481 = vadd.f32 %v332, %v465
      %v482 = vadd.f32 %v333, %v466
      %v483 = vadd.f32 %v334, %v467
      %v484 = vadd.f32 %v335, %v468
      %v485 = vadd.f32 %v336, %v469
      %v486 = vadd.f32 %v337, %v470
      %v487 = vadd.f32 %v338, %v471
      %v488 = vadd.f32 %v339, %v472
      %v489 = vadd.f32 %v340, %v473
      %v490 = vadd.f32 %v341, %v474
      %v491 = vadd.f32 %v342, %v475
      %v492 = vadd.f32 %v343, %v476
      %v493 = vadd.f32 %v344, %v477
      %v494 = vadd.f32 %v345, %v478
      %v495 = vadd.f32 %v346, %v479
      %v496 = vadd.f32 %v347, %v480
      %vm497 = vcmask 1045504
      %v498 = vrot.slane %v198, 2
      %v499 = vrot.slane %v199, 2
      %v500 = vsel %vm497, %v498, %v499
      %v501 = vrot.slane %v200, 2
      %v502 = vsel %vm497, %v499, %v501
      %v503 = vrot.slane %v201, 2
      %v504 = vrot.slane %v202, 2
      %v505 = vsel %vm497, %v503, %v504
      %v506 = vrot.slane %v203, 2
      %v507 = vsel %vm497, %v504, %v506
      %v508 = vrot.slane %v204, 2
      %v509 = vrot.slane %v205, 2
      %v510 = vsel %vm497, %v508, %v509
      %v511 = vrot.slane %v206, 2
      %v512 = vsel %vm497, %v509, %v511
      %v513 = vrot.slane %v207, 2
      %v514 = vrot.slane %v208, 2
      %v515 = vsel %vm497, %v513, %v514
      %v516 = vrot.slane %v209, 2
      %v517 = vsel %vm497, %v514, %v516
      %v518 = vrot.slane %v210, 2
      %v519 = vrot.slane %v211, 2
      %v520 = vsel %vm497, %v518, %v519
      %v521 = vrot.slane %v212, 2
      %v522 = vsel %vm497, %v519, %v521
      %v523 = vrot.slane %v213, 2
      %v524 = vrot.slane %v214, 2
      %v525 = vsel %vm497, %v523, %v524
      %v526 = vrot.slane %v215, 2
      %v527 = vsel %vm497, %v524, %v526
      %v528 = vrot.slane %v216, 2
      %v529 = vrot.slane %v217, 2
      %v530 = vsel %vm497, %v528, %v529
      %v531 = vrot.slane %v218, 2
      %v532 = vsel %vm497, %v529, %v531
      %v533 = vrot.slane %v219, 2
      %v534 = vrot.slane %v220, 2
      %v535 = vsel %vm497, %v533, %v534
      %v536 = vrot.slane %v221, 2
      %v537 = vsel %vm497, %v534, %v536
      %538 = vset.pattern.permute.xlu0 0
      %539 = vperm.xlu0 %538, %v500
      %v540 = vpop.permute.xlu0 %539
      %542 = vset.pattern.permute.xlu0 0
      %543 = vperm.xlu0 %542, %v502
      %v544 = vpop.permute.xlu0 %543
      %546 = vset.pattern.permute.xlu0 0
      %547 = vperm.xlu0 %546, %v505
      %v548 = vpop.permute.xlu0 %547
      %550 = vset.pattern.permute.xlu0 0
      %551 = vperm.xlu0 %550, %v507
      %v552 = vpop.permute.xlu0 %551
      %554 = vset.pattern.permute.xlu0 0
      %555 = vperm.xlu0 %554, %v510
      %v556 = vpop.permute.xlu0 %555
      %558 = vset.pattern.permute.xlu0 0
      %559 = vperm.xlu0 %558, %v512
      %v560 = vpop.permute.xlu0 %559
      %562 = vset.pattern.permute.xlu0 0
      %563 = vperm.xlu0 %562, %v515
      %v564 = vpop.permute.xlu0 %563
      %566 = vset.pattern.permute.xlu0 0
      %567 = vperm.xlu0 %566, %v517
      %v568 = vpop.permute.xlu0 %567
      %570 = vset.pattern.permute.xlu0 0
      %571 = vperm.xlu0 %570, %v520
      %v572 = vpop.permute.xlu0 %571
      %574 = vset.pattern.permute.xlu0 0
      %575 = vperm.xlu0 %574, %v522
      %v576 = vpop.permute.xlu0 %575
      %578 = vset.pattern.permute.xlu0 0
      %579 = vperm.xlu0 %578, %v525
      %v580 = vpop.permute.xlu0 %579
      %582 = vset.pattern.permute.xlu0 0
      %583 = vperm.xlu0 %582, %v527
      %v584 = vpop.permute.xlu0 %583
      %586 = vset.pattern.permute.xlu0 0
      %587 = vperm.xlu0 %586, %v530
      %v588 = vpop.permute.xlu0 %587
      %590 = vset.pattern.permute.xlu0 0
      %591 = vperm.xlu0 %590, %v532
      %v592 = vpop.permute.xlu0 %591
      %594 = vset.pattern.permute.xlu0 0
      %595 = vperm.xlu0 %594, %v535
      %v596 = vpop.permute.xlu0 %595
      %598 = vset.pattern.permute.xlu0 0
      %599 = vperm.xlu0 %598, %v537
      %v600 = vpop.permute.xlu0 %599
      %v602 = vlaneseq
      %v603 = vshrl.u32 %v602, 7
      %v604 = vsub.s32 2, %v603
      %v605 = vrot.slane %v230, %v604
      %v606 = vmul.f32 %v540, %v605
      %v607 = vmul.f32 %v544, %v605
      %v608 = vmul.f32 %v548, %v605
      %v609 = vmul.f32 %v552, %v605
      %v610 = vmul.f32 %v556, %v605
      %v611 = vmul.f32 %v560, %v605
      %v612 = vmul.f32 %v564, %v605
      %v613 = vmul.f32 %v568, %v605
      %v614 = vmul.f32 %v572, %v605
      %v615 = vmul.f32 %v576, %v605
      %v616 = vmul.f32 %v580, %v605
      %v617 = vmul.f32 %v584, %v605
      %v618 = vmul.f32 %v588, %v605
      %v619 = vmul.f32 %v592, %v605
      %v620 = vmul.f32 %v596, %v605
      %v621 = vmul.f32 %v600, %v605
      %v622 = vadd.f32 %v481, %v606
      %v623 = vadd.f32 %v482, %v607
      %v624 = vadd.f32 %v483, %v608
      %v625 = vadd.f32 %v484, %v609
      %v626 = vadd.f32 %v485, %v610
      %v627 = vadd.f32 %v486, %v611
      %v628 = vadd.f32 %v487, %v612
      %v629 = vadd.f32 %v488, %v613
      %v630 = vadd.f32 %v489, %v614
      %v631 = vadd.f32 %v490, %v615
      %v632 = vadd.f32 %v491, %v616
      %v633 = vadd.f32 %v492, %v617
      %v634 = vadd.f32 %v493, %v618
      %v635 = vadd.f32 %v494, %v619
      %v636 = vadd.f32 %v495, %v620
      %v637 = vadd.f32 %v496, %v621
      %639 = vset.pattern.permute.xlu0 0
      %640 = vperm.xlu0 %639, %v222
      %v641 = vpop.permute.xlu0 %640
      %644 = vset.pattern.permute.xlu0 0
      %645 = vperm.xlu0 %644, %v223
      %v646 = vpop.permute.xlu0 %645
      %v648 = vlaneseq
      %v649 = vshrl.u32 %v648, 7
      %v650 = vsub.s32 3, %v649
      %v651 = vrot.slane %v230, %v650
      %v652 = vmul.f32 %v245, %v651
      %v653 = vmul.f32 %v250, %v651
      %v654 = vmul.f32 %v255, %v651
      %v655 = vmul.f32 %v260, %v651
      %v656 = vmul.f32 %v265, %v651
      %v657 = vmul.f32 %v270, %v651
      %v658 = vmul.f32 %v275, %v651
      %v659 = vmul.f32 %v280, %v651
      %v660 = vmul.f32 %v285, %v651
      %v661 = vmul.f32 %v290, %v651
      %v662 = vmul.f32 %v295, %v651
      %v663 = vmul.f32 %v300, %v651
      %v664 = vmul.f32 %v305, %v651
      %v665 = vmul.f32 %v310, %v651
      %v666 = vmul.f32 %v641, %v651
      %v667 = vmul.f32 %v646, %v651
      %v668 = vadd.f32 %v622, %v652
      %v669 = vadd.f32 %v623, %v653
      %v670 = vadd.f32 %v624, %v654
      %v671 = vadd.f32 %v625, %v655
      %v672 = vadd.f32 %v626, %v656
      %v673 = vadd.f32 %v627, %v657
      %v674 = vadd.f32 %v628, %v658
      %v675 = vadd.f32 %v629, %v659
      %v676 = vadd.f32 %v630, %v660
      %v677 = vadd.f32 %v631, %v661
      %v678 = vadd.f32 %v632, %v662
      %v679 = vadd.f32 %v633, %v663
      %v680 = vadd.f32 %v634, %v664
      %v681 = vadd.f32 %v635, %v665
      %v682 = vadd.f32 %v636, %v666
      %v683 = vadd.f32 %v637, %v667
      %v685 = vrot.slane %v222, 1
      %v686 = vrot.slane %v223, 1
      %v687 = vsel %vm356, %v685, %v686
      %v688 = vrot.slane %v224, 1
      %v689 = vsel %vm356, %v686, %v688
      %690 = vset.pattern.permute.xlu0 0
      %691 = vperm.xlu0 %690, %v687
      %v692 = vpop.permute.xlu0 %691
      %694 = vset.pattern.permute.xlu0 0
      %695 = vperm.xlu0 %694, %v689
      %v696 = vpop.permute.xlu0 %695
      %v698 = vlaneseq
      %v699 = vshrl.u32 %v698, 7
      %v700 = vsub.s32 4, %v699
      %v701 = vrot.slane %v230, %v700
      %v702 = vmul.f32 %v407, %v701
      %v703 = vmul.f32 %v411, %v701
      %v704 = vmul.f32 %v415, %v701
      %v705 = vmul.f32 %v419, %v701
      %v706 = vmul.f32 %v423, %v701
      %v707 = vmul.f32 %v427, %v701
      %v708 = vmul.f32 %v431, %v701
      %v709 = vmul.f32 %v435, %v701
      %v710 = vmul.f32 %v439, %v701
      %v711 = vmul.f32 %v443, %v701
      %v712 = vmul.f32 %v447, %v701
      %v713 = vmul.f32 %v451, %v701
      %v714 = vmul.f32 %v455, %v701
      %v715 = vmul.f32 %v459, %v701
      %v716 = vmul.f32 %v692, %v701
      %v717 = vmul.f32 %v696, %v701
      %v718 = vadd.f32 %v668, %v702
      %v719 = vadd.f32 %v669, %v703
      %v720 = vadd.f32 %v670, %v704
      %v721 = vadd.f32 %v671, %v705
      %v722 = vadd.f32 %v672, %v706
      %v723 = vadd.f32 %v673, %v707
      %v724 = vadd.f32 %v674, %v708
      %v725 = vadd.f32 %v675, %v709
      %v726 = vadd.f32 %v676, %v710
      %v727 = vadd.f32 %v677, %v711
      %v728 = vadd.f32 %v678, %v712
      %v729 = vadd.f32 %v679, %v713
      %v730 = vadd.f32 %v680, %v714
      %v731 = vadd.f32 %v681, %v715
      %v732 = vadd.f32 %v682, %v716
      %v733 = vadd.f32 %v683, %v717
      %v734 = vrot.slane %v222, 2
      %v735 = vrot.slane %v223, 2
      %v736 = vsel %vm497, %v734, %v735
      %v737 = vrot.slane %v224, 2
      %v738 = vsel %vm497, %v735, %v737
      %739 = vset.pattern.permute.xlu0 0
      %740 = vperm.xlu0 %739, %v736
      %v741 = vpop.permute.xlu0 %740
      %743 = vset.pattern.permute.xlu0 0
      %744 = vperm.xlu0 %743, %v738
      %v745 = vpop.permute.xlu0 %744
      %v747 = vlaneseq
      %v748 = vshrl.u32 %v747, 7
      %v749 = vsub.s32 5, %v748
      %v750 = vrot.slane %v230, %v749
      %v751 = vmul.f32 %v548, %v750
      %v752 = vmul.f32 %v552, %v750
      %v753 = vmul.f32 %v556, %v750
      %v754 = vmul.f32 %v560, %v750
      %v755 = vmul.f32 %v564, %v750
      %v756 = vmul.f32 %v568, %v750
      %v757 = vmul.f32 %v572, %v750
      %v758 = vmul.f32 %v576, %v750
      %v759 = vmul.f32 %v580, %v750
      %v760 = vmul.f32 %v584, %v750
      %v761 = vmul.f32 %v588, %v750
      %v762 = vmul.f32 %v592, %v750
      %v763 = vmul.f32 %v596, %v750
      %v764 = vmul.f32 %v600, %v750
      %v765 = vmul.f32 %v741, %v750
      %v766 = vmul.f32 %v745, %v750
      %v767 = vadd.f32 %v718, %v751
      %v768 = vadd.f32 %v719, %v752
      %v769 = vadd.f32 %v720, %v753
      %v770 = vadd.f32 %v721, %v754
      %v771 = vadd.f32 %v722, %v755
      %v772 = vadd.f32 %v723, %v756
      %v773 = vadd.f32 %v724, %v757
      %v774 = vadd.f32 %v725, %v758
      %v775 = vadd.f32 %v726, %v759
      %v776 = vadd.f32 %v727, %v760
      %v777 = vadd.f32 %v728, %v761
      %v778 = vadd.f32 %v729, %v762
      %v779 = vadd.f32 %v730, %v763
      %v780 = vadd.f32 %v731, %v764
      %v781 = vadd.f32 %v732, %v765
      %v782 = vadd.f32 %v733, %v766
      %784 = vset.pattern.permute.xlu0 0
      %785 = vperm.xlu0 %784, %v225
      %v786 = vpop.permute.xlu0 %785
      %789 = vset.pattern.permute.xlu0 0
      %790 = vperm.xlu0 %789, %v226
      %v791 = vpop.permute.xlu0 %790
      %v793 = vlaneseq
      %v794 = vshrl.u32 %v793, 7
      %v795 = vsub.s32 6, %v794
      %v796 = vrot.slane %v230, %v795
      %v797 = vmul.f32 %v255, %v796
      %v798 = vmul.f32 %v260, %v796
      %v799 = vmul.f32 %v265, %v796
      %v800 = vmul.f32 %v270, %v796
      %v801 = vmul.f32 %v275, %v796
      %v802 = vmul.f32 %v280, %v796
      %v803 = vmul.f32 %v285, %v796
      %v804 = vmul.f32 %v290, %v796
      %v805 = vmul.f32 %v295, %v796
      %v806 = vmul.f32 %v300, %v796
      %v807 = vmul.f32 %v305, %v796
      %v808 = vmul.f32 %v310, %v796
      %v809 = vmul.f32 %v641, %v796
      %v810 = vmul.f32 %v646, %v796
      %v811 = vmul.f32 %v786, %v796
      %v812 = vmul.f32 %v791, %v796
      %v813 = vadd.f32 %v767, %v797
      %v814 = vadd.f32 %v768, %v798
      %v815 = vadd.f32 %v769, %v799
      %v816 = vadd.f32 %v770, %v800
      %v817 = vadd.f32 %v771, %v801
      %v818 = vadd.f32 %v772, %v802
      %v819 = vadd.f32 %v773, %v803
      %v820 = vadd.f32 %v774, %v804
      %v821 = vadd.f32 %v775, %v805
      %v822 = vadd.f32 %v776, %v806
      %v823 = vadd.f32 %v777, %v807
      %v824 = vadd.f32 %v778, %v808
      %v825 = vadd.f32 %v779, %v809
      %v826 = vadd.f32 %v780, %v810
      %v827 = vadd.f32 %v781, %v811
      %v828 = vadd.f32 %v782, %v812
      %v830 = vrot.slane %v225, 1
      %v831 = vrot.slane %v226, 1
      %v832 = vsel %vm356, %v830, %v831
      %v833 = vrot.slane %v227, 1
      %v834 = vsel %vm356, %v831, %v833
      %835 = vset.pattern.permute.xlu0 0
      %836 = vperm.xlu0 %835, %v832
      %v837 = vpop.permute.xlu0 %836
      %839 = vset.pattern.permute.xlu0 0
      %840 = vperm.xlu0 %839, %v834
      %v841 = vpop.permute.xlu0 %840
      %v843 = vlaneseq
      %v844 = vshrl.u32 %v843, 7
      %v845 = vsub.s32 7, %v844
      %v846 = vrot.slane %v230, %v845
      %v847 = vmul.f32 %v415, %v846
      %v848 = vmul.f32 %v419, %v846
      %v849 = vmul.f32 %v423, %v846
      %v850 = vmul.f32 %v427, %v846
      %v851 = vmul.f32 %v431, %v846
      %v852 = vmul.f32 %v435, %v846
      %v853 = vmul.f32 %v439, %v846
      %v854 = vmul.f32 %v443, %v846
      %v855 = vmul.f32 %v447, %v846
      %v856 = vmul.f32 %v451, %v846
      %v857 = vmul.f32 %v455, %v846
      %v858 = vmul.f32 %v459, %v846
      %v859 = vmul.f32 %v692, %v846
      %v860 = vmul.f32 %v696, %v846
      %v861 = vmul.f32 %v837, %v846
      %v862 = vmul.f32 %v841, %v846
      %v863 = vadd.f32 %v813, %v847
      %v864 = vadd.f32 %v814, %v848
      %v865 = vadd.f32 %v815, %v849
      %v866 = vadd.f32 %v816, %v850
      %v867 = vadd.f32 %v817, %v851
      %v868 = vadd.f32 %v818, %v852
      %v869 = vadd.f32 %v819, %v853
      %v870 = vadd.f32 %v820, %v854
      %v871 = vadd.f32 %v821, %v855
      %v872 = vadd.f32 %v822, %v856
      %v873 = vadd.f32 %v823, %v857
      %v874 = vadd.f32 %v824, %v858
      %v875 = vadd.f32 %v825, %v859
      %v876 = vadd.f32 %v826, %v860
      %v877 = vadd.f32 %v827, %v861
      %v878 = vadd.f32 %v828, %v862
      %v879 = vrot.slane %v225, 2
      %v880 = vrot.slane %v226, 2
      %v881 = vsel %vm497, %v879, %v880
      %v882 = vrot.slane %v227, 2
      %v883 = vsel %vm497, %v880, %v882
      %884 = vset.pattern.permute.xlu0 0
      %885 = vperm.xlu0 %884, %v881
      %v886 = vpop.permute.xlu0 %885
      %888 = vset.pattern.permute.xlu0 0
      %889 = vperm.xlu0 %888, %v883
      %v890 = vpop.permute.xlu0 %889
      %v892 = vlaneseq
      %v893 = vshrl.u32 %v892, 7
      %v894 = vsub.s32 0, %v893
      %v895 = vrot.slane %v231, %v894
      %v896 = vmul.f32 %v556, %v895
      %v897 = vmul.f32 %v560, %v895
      %v898 = vmul.f32 %v564, %v895
      %v899 = vmul.f32 %v568, %v895
      %v900 = vmul.f32 %v572, %v895
      %v901 = vmul.f32 %v576, %v895
      %v902 = vmul.f32 %v580, %v895
      %v903 = vmul.f32 %v584, %v895
      %v904 = vmul.f32 %v588, %v895
      %v905 = vmul.f32 %v592, %v895
      %v906 = vmul.f32 %v596, %v895
      %v907 = vmul.f32 %v600, %v895
      %v908 = vmul.f32 %v741, %v895
      %v909 = vmul.f32 %v745, %v895
      %v910 = vmul.f32 %v886, %v895
      %v911 = vmul.f32 %v890, %v895
      %v912 = vadd.f32 %v863, %v896
      %v913 = vadd.f32 %v864, %v897
      %v914 = vadd.f32 %v865, %v898
      %v915 = vadd.f32 %v866, %v899
      %v916 = vadd.f32 %v867, %v900
      %v917 = vadd.f32 %v868, %v901
      %v918 = vadd.f32 %v869, %v902
      %v919 = vadd.f32 %v870, %v903
      %v920 = vadd.f32 %v871, %v904
      %v921 = vadd.f32 %v872, %v905
      %v922 = vadd.f32 %v873, %v906
      %v923 = vadd.f32 %v874, %v907
      %v924 = vadd.f32 %v875, %v908
      %v925 = vadd.f32 %v876, %v909
      %v926 = vadd.f32 %v877, %v910
      %v927 = vadd.f32 %v878, %v911
      %v928 = vld [vmem:[%s2] sm:$0x1]
      %v930 = vlaneseq
      %v931 = vshrl.u32 %v930, 7
      %v932 = vsub.s32 0, %v931
      %v933 = vrot.slane %v928, %v932
      %v935 = vmul.f32 %v912, %v933
      %v936 = vmul.f32 %v913, %v933
      %v937 = vmul.f32 %v914, %v933
      %v938 = vmul.f32 %v915, %v933
      %v939 = vmul.f32 %v916, %v933
      %v940 = vmul.f32 %v917, %v933
      %v941 = vmul.f32 %v918, %v933
      %v942 = vmul.f32 %v919, %v933
      %v943 = vmul.f32 %v920, %v933
      %v944 = vmul.f32 %v921, %v933
      %v945 = vmul.f32 %v922, %v933
      %v946 = vmul.f32 %v923, %v933
      %v947 = vmul.f32 %v924, %v933
      %v948 = vmul.f32 %v925, %v933
      %v949 = vmul.f32 %v926, %v933
      %v950 = vmul.f32 %v927, %v933
      %v951 = vld [vmem:[%s3] sm:$0x1]
      %v953 = vlaneseq
      %v954 = vshrl.u32 %v953, 7
      %v955 = vsub.s32 0, %v954
      %v956 = vrot.slane %v951, %v955
      %v958 = vadd.f32 %v935, %v956
      %v959 = vadd.f32 %v936, %v956
      %v960 = vadd.f32 %v937, %v956
      %v961 = vadd.f32 %v938, %v956
      %v962 = vadd.f32 %v939, %v956
      %v963 = vadd.f32 %v940, %v956
      %v964 = vadd.f32 %v941, %v956
      %v965 = vadd.f32 %v942, %v956
      %v966 = vadd.f32 %v943, %v956
      %v967 = vadd.f32 %v944, %v956
      %v968 = vadd.f32 %v945, %v956
      %v969 = vadd.f32 %v946, %v956
      %v970 = vadd.f32 %v947, %v956
      %v971 = vadd.f32 %v948, %v956
      %v972 = vadd.f32 %v949, %v956
      %v973 = vadd.f32 %v950, %v956
      %v974 = vmax.f32 %v958, 0.0
      %v975 = vmax.f32 %v959, 0.0
      %v976 = vmax.f32 %v960, 0.0
      %v977 = vmax.f32 %v961, 0.0
      %v978 = vmax.f32 %v962, 0.0
      %v979 = vmax.f32 %v963, 0.0
      %v980 = vmax.f32 %v964, 0.0
      %v981 = vmax.f32 %v965, 0.0
      %v982 = vmax.f32 %v966, 0.0
      %v983 = vmax.f32 %v967, 0.0
      %v984 = vmax.f32 %v968, 0.0
      %v985 = vmax.f32 %v969, 0.0
      %v986 = vmax.f32 %v970, 0.0
      %v987 = vmax.f32 %v971, 0.0
      %v988 = vmax.f32 %v972, 0.0
      %v989 = vmax.f32 %v973, 0.0
      %v990 = vmin.f32 %v974, 20.0
      %v991 = vmin.f32 %v975, 20.0
      %v992 = vmin.f32 %v976, 20.0
      %v993 = vmin.f32 %v977, 20.0
      %v994 = vmin.f32 %v978, 20.0
      %v995 = vmin.f32 %v979, 20.0
      %v996 = vmin.f32 %v980, 20.0
      %v997 = vmin.f32 %v981, 20.0
      %v998 = vmin.f32 %v982, 20.0
      %v999 = vmin.f32 %v983, 20.0
      %v1000 = vmin.f32 %v984, 20.0
      %v1001 = vmin.f32 %v985, 20.0
      %v1002 = vmin.f32 %v986, 20.0
      %v1003 = vmin.f32 %v987, 20.0
      %v1004 = vmin.f32 %v988, 20.0
      %v1005 = vmin.f32 %v989, 20.0
      %v1006 = vpack.c.bf16 %v991, %v990
      %v1007 = vpack.c.bf16 %v993, %v992
      %v1008 = vpack.c.bf16 %v995, %v994
      %v1009 = vpack.c.bf16 %v997, %v996
      %v1010 = vpack.c.bf16 %v999, %v998
      %v1011 = vpack.c.bf16 %v1001, %v1000
      %v1012 = vpack.c.bf16 %v1003, %v1002
      %v1013 = vpack.c.bf16 %v1005, %v1004
      %v1022 = vunpack.c.l.b16 %v1006
      %v1023 = vunpack.c.h.b16 %v1006
      %v1024 = vunpack.c.l.b16 %v1007
      %v1025 = vunpack.c.h.b16 %v1007
      %v1026 = vunpack.c.l.b16 %v1008
      %v1027 = vunpack.c.h.b16 %v1008
      %v1028 = vunpack.c.l.b16 %v1009
      %v1029 = vunpack.c.h.b16 %v1009
      %v1030 = vunpack.c.l.b16 %v1010
      %v1031 = vunpack.c.h.b16 %v1010
      %v1032 = vunpack.c.l.b16 %v1011
      %v1033 = vunpack.c.h.b16 %v1011
      %v1034 = vunpack.c.l.b16 %v1012
      %v1035 = vunpack.c.h.b16 %v1012
      %v1036 = vunpack.c.l.b16 %v1013
      %v1037 = vunpack.c.h.b16 %v1013
      %v1038 = vpack.c.b16 %v1022, %v1022
      %v1039 = vpack.c.b16 %v1023, %v1023
      %v1040 = vpack.c.b16 %v1024, %v1024
      %v1041 = vpack.c.b16 %v1025, %v1025
      %v1042 = vpack.c.b16 %v1026, %v1026
      %v1043 = vpack.c.b16 %v1027, %v1027
      %v1044 = vpack.c.b16 %v1028, %v1028
      %v1045 = vpack.c.b16 %v1029, %v1029
      %v1046 = vpack.c.b16 %v1030, %v1030
      %v1047 = vpack.c.b16 %v1031, %v1031
      %v1048 = vpack.c.b16 %v1032, %v1032
      %v1049 = vpack.c.b16 %v1033, %v1033
      %v1050 = vpack.c.b16 %v1034, %v1034
      %v1051 = vpack.c.b16 %v1035, %v1035
      %v1052 = vpack.c.b16 %v1036, %v1036
      %v1053 = vpack.c.b16 %v1037, %v1037
      %vm1070 = vcmask 519168
      %1071 = vst.msk [vmem:[%s197] sm:$0xf] %vm1070, %v1038
      %1072 = vst.msk [vmem:[%s197 + $0x4] sm:$0xf] %vm1070, %v1039
      %1073 = vst.msk [vmem:[%s197 + $0x8] sm:$0xf] %vm1070, %v1040
      %1074 = vst.msk [vmem:[%s197 + $0xc] sm:$0xf] %vm1070, %v1041
      %1075 = vst.msk [vmem:[%s197 + $0x10] sm:$0xf] %vm1070, %v1042
      %1076 = vst.msk [vmem:[%s197 + $0x14] sm:$0xf] %vm1070, %v1043
      %1077 = vst.msk [vmem:[%s197 + $0x18] sm:$0xf] %vm1070, %v1044
      %1078 = vst.msk [vmem:[%s197 + $0x1c] sm:$0xf] %vm1070, %v1045
      %1079 = vst.msk [vmem:[%s197 + $0x20] sm:$0xf] %vm1070, %v1046
      %1080 = vst.msk [vmem:[%s197 + $0x24] sm:$0xf] %vm1070, %v1047
      %1081 = vst.msk [vmem:[%s197 + $0x28] sm:$0xf] %vm1070, %v1048
      %1082 = vst.msk [vmem:[%s197 + $0x2c] sm:$0xf] %vm1070, %v1049
      %1083 = vst.msk [vmem:[%s197 + $0x30] sm:$0xf] %vm1070, %v1050
      %1084 = vst.msk [vmem:[%s197 + $0x34] sm:$0xf] %vm1070, %v1051
      %1085 = vst.msk [vmem:[%s197 + $0x38] sm:$0xf] %vm1070, %v1052
      %1086 = vst.msk [vmem:[%s197 + $0x3c] sm:$0xf] %vm1070, %v1053
      %p1087 = scmp.lt.s32.totalorder %s15, 1
      %s1088 = scalar_select %p1087, %s15, 1
      %s1089 = smul.addr %s1088, 16
      %s1090 = smul.addr %s1089, 4
      %s1091 = scalar_lea.vmem %s4, %s1090
      // Predicated region
      $region37: #{listener_forward.7} parent=35 // pred_check
        %p1092 = pneg %p122
      $region38: #{listener_forward.7} parent=35 // pred_check_branch
        %1094 = sbr.rel (%p1092) target = $region40
      $region39: #{listener_forward.7} parent=35 // pred_region
        _
      $region40: #{listener_forward.7} parent=35 // pred_fallthru
        _
    $region36: #{listener_forward.7} parent=5 // pred_fallthru
      _
    %p1095 = scmp.le.s32.totalorder 2, %s10
    // Predicated region
    $region41: #{listener_forward.7} parent=5 // pred_check
      %p1096 = pneg %p1095
    $region42: #{listener_forward.7} parent=5 // pred_check_branch
      %1098 = sbr.rel (%p1096) target = $region44
    $region43: #{listener_forward.7} parent=5 // pred_region
      %s1099 = ssub.s32 %s10, 2
      // Predicated region
      $region45: #{listener_forward.7} parent=43 // pred_check
        %p1100 = pneg %p128
      $region46: #{listener_forward.7} parent=43 // pred_check_branch
        %1102 = sbr.rel (%p1100) target = $region48
      $region47: #{listener_forward.7} parent=43 // pred_region
        %p1103 = scmp.lt.s32.totalorder %s16, 1
        %s1104 = scalar_select %p1103, %s16, 1
        %s1105 = smul.addr %s1104, 16
        %s1106 = smul.addr %s1105, 4
        %s1107 = scalar_lea.vmem %s4, %s1106
      $region48: #{listener_forward.7} parent=43 // pred_fallthru
        _
    $region44: #{listener_forward.7} parent=5 // pred_fallthru
      _
  $region6: #{listener_forward.7} parent=0 // loop_footer
    %s14 = sadd.s32 1, %s10
  $region7: #{listener_forward.7} parent=0 // loop_footer_branch
    %9 = sbr.rel target = $region3
  $region8: #{listener_forward.7} parent=0 // loop_exit
    _

// kernel: listener_forward.9
$region0: #{listener_forward.9}
  #allocation0 [shape = 'u32[]', space=smem, size = 0x4, offset = 0x4, fixed_abs, tag = 'smem constant byte address 0x4 - core index']
  #allocation1 [shape = 'u32[144,128]{1,0:T(1,128)}', space=vmem, size = 0x12000, scoped, tag = 'internal scratch']
  %s0 = inlined_call_operand.vmem [shape: bf16[2,6,10,64], index: 0, kind: input, shape index: {}]
  %s1 = inlined_call_operand.vmem [shape: bf16[576,128], index: 1, kind: input, shape index: {}]
  %s2 = inlined_call_operand.vmem [shape: f32[1,128], index: 2, kind: input, shape index: {}]
  %s3 = inlined_call_operand.vmem [shape: f32[1,128], index: 3, kind: input, shape index: {}]
  %s4 = inlined_call_operand.vmem [shape: bf16[2,4,8,128], index: 4, kind: output, shape index: {}]
  %s5 = sld [smem:[#allocation0]]
  $region49: #{listener_forward.9} parent=0
    _
  %s7 = ssub.s32 1, %s5
  %s8 = scalar_select 0, %s7, %s5
  loop: start=0, step=1, limit=4
  $region2: #{listener_forward.9} parent=0 // loop_pre_header
    _
  $region3: #{listener_forward.9} parent=0 // loop_header
    %s10 = sphi 0, %s14
    %p11 = scmp.ge.s32.totalorder %s10, 4
    %s20 = sphi 0, %s22
    %s23 = sphi 0, %s20
    %s24 = sphi 0, %s23
    %s40 = sphi 0, %s24
    %s44 = sphi 0, %s44
    %s46 = sphi 0, %s44
    %s47 = sphi 0, %s46
    %s61 = sphi 0, %s47
    %s65 = sphi 0, %s65
    %s67 = sphi 0, %s65
    %s68 = sphi 0, %s67
    %s82 = sphi 0, %s68
    %s86 = sphi 0, %s86
    %s88 = sphi 0, %s86
    %s89 = sphi 0, %s88
    %s103 = sphi 0, %s89
    %s109 = sphi 0, %s111
    %s112 = sphi 0, %s109
    %s113 = sphi 0, %s112
    %s129 = sphi 0, %s113
  $region4: #{listener_forward.9} parent=0 // loop_header_branch
    %13 = sbr.rel (%p11) target = $region8
  $region5: #{listener_forward.9} parent=0 // loop_body
    %s15 = ssub.s32 %s10, 1
    %s16 = ssub.s32 %s10, 2
    %s17 = sadd.s32 %s10, 1
    %s18 = ssub.s32 %s10, %s17
    %p19 = scmp.eq.s32.totalorder %s18, 0
    %s21 = sadd.s32 %s20, 1
    %s22 = scalar_select %p19, %s20, %s21
    %p25 = pneg %p19
    %p26 = scmp.eq.s32.totalorder %s10, 1
    %p27 = por %p25, %p26
    %p28 = scmp.ne.s32.totalorder %s20, %s23
    %p29 = scmp.eq.s32.totalorder %s10, 0
    %p30 = por %p28, %p29
    %p31 = scmp.ne.s32.totalorder %s20, %s23
    %p32 = scmp.eq.s32.totalorder %s15, 1
    %p33 = por %p31, %p32
    %p34 = scmp.ne.s32.totalorder %s23, %s24
    %p35 = scmp.eq.s32.totalorder %s15, 0
    %p36 = por %p34, %p35
    %p37 = scmp.ne.s32.totalorder %s23, %s24
    %p38 = scmp.eq.s32.totalorder %s16, 1
    %p39 = por %p37, %p38
    %p41 = scmp.ne.s32.totalorder %s24, %s40
    %p42 = scmp.eq.s32.totalorder %s16, 0
    %p43 = por %p41, %p42
    %s45 = sadd.s32 %s44, 1
    %p48 = scmp.eq.s32.totalorder %s10, 1
    %p49 = scmp.ne.s32.totalorder %s44, %s46
    %p50 = scmp.eq.s32.totalorder %s10, 0
    %p51 = por %p49, %p50
    %p52 = scmp.ne.s32.totalorder %s44, %s46
    %p53 = scmp.eq.s32.totalorder %s15, 1
    %p54 = por %p52, %p53
    %p55 = scmp.ne.s32.totalorder %s46, %s47
    %p56 = scmp.eq.s32.totalorder %s15, 0
    %p57 = por %p55, %p56
    %p58 = scmp.ne.s32.totalorder %s46, %s47
    %p59 = scmp.eq.s32.totalorder %s16, 1
    %p60 = por %p58, %p59
    %p62 = scmp.ne.s32.totalorder %s47, %s61
    %p63 = scmp.eq.s32.totalorder %s16, 0
    %p64 = por %p62, %p63
    %s66 = sadd.s32 %s65, 1
    %p69 = scmp.eq.s32.totalorder %s10, 1
    %p70 = scmp.ne.s32.totalorder %s65, %s67
    %p71 = scmp.eq.s32.totalorder %s10, 0
    %p72 = por %p70, %p71
    %p73 = scmp.ne.s32.totalorder %s65, %s67
    %p74 = scmp.eq.s32.totalorder %s15, 1
    %p75 = por %p73, %p74
    %p76 = scmp.ne.s32.totalorder %s67, %s68
    %p77 = scmp.eq.s32.totalorder %s15, 0
    %p78 = por %p76, %p77
    %p79 = scmp.ne.s32.totalorder %s67, %s68
    %p80 = scmp.eq.s32.totalorder %s16, 1
    %p81 = por %p79, %p80
    %p83 = scmp.ne.s32.totalorder %s68, %s82
    %p84 = scmp.eq.s32.totalorder %s16, 0
    %p85 = por %p83, %p84
    %s87 = sadd.s32 %s86, 1
    %p90 = scmp.eq.s32.totalorder %s10, 1
    %p91 = scmp.ne.s32.totalorder %s86, %s88
    %p92 = scmp.eq.s32.totalorder %s10, 0
    %p93 = por %p91, %p92
    %p94 = scmp.ne.s32.totalorder %s86, %s88
    %p95 = scmp.eq.s32.totalorder %s15, 1
    %p96 = por %p94, %p95
    %p97 = scmp.ne.s32.totalorder %s88, %s89
    %p98 = scmp.eq.s32.totalorder %s15, 0
    %p99 = por %p97, %p98
    %p100 = scmp.ne.s32.totalorder %s88, %s89
    %p101 = scmp.eq.s32.totalorder %s16, 1
    %p102 = por %p100, %p101
    %p104 = scmp.ne.s32.totalorder %s89, %s103
    %p105 = scmp.eq.s32.totalorder %s16, 0
    %p106 = por %p104, %p105
    %s107 = ssub.s32 %s10, %s17
    %p108 = scmp.eq.s32.totalorder %s107, 0
    %s110 = sadd.s32 %s109, 1
    %s111 = scalar_select %p108, %s109, %s110
    %p114 = pneg %p108
    %p115 = scmp.eq.s32.totalorder %s10, 1
    %p116 = por %p114, %p115
    %p117 = scmp.ne.s32.totalorder %s109, %s112
    %p118 = scmp.eq.s32.totalorder %s10, 0
    %p119 = por %p117, %p118
    %p120 = scmp.ne.s32.totalorder %s109, %s112
    %p121 = scmp.eq.s32.totalorder %s15, 1
    %p122 = por %p120, %p121
    %p123 = scmp.ne.s32.totalorder %s112, %s113
    %p124 = scmp.eq.s32.totalorder %s15, 0
    %p125 = por %p123, %p124
    %p126 = scmp.ne.s32.totalorder %s112, %s113
    %p127 = scmp.eq.s32.totalorder %s16, 1
    %p128 = por %p126, %p127
    %p130 = scmp.ne.s32.totalorder %s113, %s129
    %p131 = scmp.eq.s32.totalorder %s16, 0
    %p132 = por %p130, %p131
    %p133 = scmp.le.s32.totalorder 1, %s10
    %p134 = scmp.lt.s32.totalorder %s10, 3
    %p135 = pnand %p133, %p134
    %p136 = pneg %p135
    // Predicated region
    $region9: #{listener_forward.9} parent=5 // pred_check
      _
    $region10: #{listener_forward.9} parent=5 // pred_check_branch
      %138 = sbr.rel (%p135) target = $region12
    $region11: #{listener_forward.9} parent=5 // pred_region
      %s139 = ssub.s32 %s10, 1
      // Predicated region
      $region13: #{listener_forward.9} parent=11 // pred_check
        %p140 = pneg %p57
      $region14: #{listener_forward.9} parent=11 // pred_check_branch
        %142 = sbr.rel (%p140) target = $region16
      $region15: #{listener_forward.9} parent=11 // pred_region
        _
      $region16: #{listener_forward.9} parent=11 // pred_fallthru
        _
      // Predicated region
      $region17: #{listener_forward.9} parent=11 // pred_check
        %p143 = pneg %p78
      $region18: #{listener_forward.9} parent=11 // pred_check_branch
        %145 = sbr.rel (%p143) target = $region20
      $region19: #{listener_forward.9} parent=11 // pred_region
        _
      $region20: #{listener_forward.9} parent=11 // pred_fallthru
        _
      // Predicated region
      $region21: #{listener_forward.9} parent=11 // pred_check
        %p146 = pneg %p99
      $region22: #{listener_forward.9} parent=11 // pred_check_branch
        %148 = sbr.rel (%p146) target = $region24
      $region23: #{listener_forward.9} parent=11 // pred_region
        _
      $region24: #{listener_forward.9} parent=11 // pred_fallthru
        _
    $region12: #{listener_forward.9} parent=5 // pred_fallthru
      _
    %p149 = scmp.lt.s32.totalorder %s10, 2
    // Predicated region
    $region25: #{listener_forward.9} parent=5 // pred_check
      %p150 = pneg %p149
    $region26: #{listener_forward.9} parent=5 // pred_check_branch
      %152 = sbr.rel (%p150) target = $region28
    $region27: #{listener_forward.9} parent=5 // pred_region
      // Predicated region
      $region29: #{listener_forward.9} parent=27 // pred_check
        %p153 = pneg %p30
      $region30: #{listener_forward.9} parent=27 // pred_check_branch
        %155 = sbr.rel (%p153) target = $region32
      $region31: #{listener_forward.9} parent=27 // pred_region
        %p156 = scmp.lt.s32.totalorder %s10, 1
        %s157 = scalar_select %p156, %s10, 1
        %s158 = smul.addr %s157, 12
        %s159 = smul.addr %s158, 4
        %s160 = scalar_lea.vmem %s0, %s159
      $region32: #{listener_forward.9} parent=27 // pred_fallthru
        _
    $region28: #{listener_forward.9} parent=5 // pred_fallthru
      _
    %p161 = scmp.le.s32.totalorder 1, %s10
    %p162 = scmp.lt.s32.totalorder %s10, 3
    %p163 = pnand %p161, %p162
    %p164 = pneg %p163
    // Predicated region
    $region33: #{listener_forward.9} parent=5 // pred_check
      _
    $region34: #{listener_forward.9} parent=5 // pred_check_branch
      %166 = sbr.rel (%p163) target = $region36
    $region35: #{listener_forward.9} parent=5 // pred_region
      %s167 = ssub.s32 %s10, 1
      %p168 = scmp.lt.s32.totalorder %s15, 1
      %s169 = scalar_select %p168, %s15, 1
      %s170 = smul.addr %s169, 12
      %s171 = smul.addr %s170, 4
      %s172 = scalar_lea.vmem %s0, %s171
      %p173 = pneg %p36
      %p174 = pneg %p33
      %p175 = pneg %p57
      %p176 = pneg %p54
      %p177 = pneg %p78
      %p178 = pneg %p75
      %p179 = pneg %p99
      %p180 = pneg %p96
      %p181 = pneg %p125
      %p182 = pneg %p122
      %p183 = scmp.lt.s32.totalorder %s15, 1
      %s184 = scalar_select %p183, %s15, 1
      %s185 = smul.addr %s184, 4
      %s186 = smul.addr %s185, 4
      %s187 = scalar_lea.vmem %s4, %s186
      %p188 = scmp.lt.s32.totalorder %s15, 1
      %s189 = scalar_select %p188, %s15, 1
      %s190 = smul.addr %s189, 12
      %s191 = smul.addr %s190, 4
      %s192 = scalar_lea.vmem %s0, %s191
      %p193 = scmp.lt.s32.totalorder %s15, 1
      %s194 = scalar_select %p193, %s15, 1
      %s195 = smul.addr %s194, 4
      %s196 = smul.addr %s195, 4
      %s197 = scalar_lea.vmem %s4, %s196
      %v199 = vld [vmem:[%s192] sm:$0xf]
      %v200 = vld [vmem:[%s192 + $0x4] sm:$0x1]
      %v201 = vld [vmem:[%s192 + $0x8] sm:$0xf]
      %v202 = vld [vmem:[%s192 + $0xc] sm:$0x1]
      %v203 = vld [vmem:[%s192 + $0x10] sm:$0xf]
      %v204 = vld [vmem:[%s192 + $0x14] sm:$0x1]
      %v205 = vld [vmem:[%s192 + $0x18] sm:$0xf]
      %v206 = vld [vmem:[%s192 + $0x1c] sm:$0x1]
      %v207 = vld [vmem:[%s192 + $0x20] sm:$0xf]
      %v208 = vld [vmem:[%s192 + $0x24] sm:$0x1]
      %v209 = vld [vmem:[%s192 + $0x28] sm:$0xf]
      %v210 = vld [vmem:[%s192 + $0x2c] sm:$0x1]
      %vm211 = vsmask.f32 3328
      %vm212 = vsmask.f32 7440
      %vm213 = vmor %vm211, %vm212
      %v215 = vshrl.u32 %v199, 16
      %v217 = vrot.slane %v215, 4
      %v218 = vshll.u32 %v199, 16
      %v220 = vrot.slane %v218, 5
      %v221 = vor.u32 %v217, %v220
      %v222 = vrot.slane %v221, 4
      %v224 = vshll.u32 %v200, 16
      %v226 = vrot.slane %v224, 5
      %v227 = vsel %vm213, %v222, %v226
      %v229 = vshrl.u32 %v201, 16
      %v231 = vrot.slane %v229, 4
      %v232 = vshll.u32 %v201, 16
      %v234 = vrot.slane %v232, 5
      %v235 = vor.u32 %v231, %v234
      %v236 = vrot.slane %v235, 4
      %v238 = vshll.u32 %v202, 16
      %v240 = vrot.slane %v238, 5
      %v241 = vsel %vm213, %v236, %v240
      %v243 = vshrl.u32 %v203, 16
      %v245 = vrot.slane %v243, 4
      %v246 = vshll.u32 %v203, 16
      %v248 = vrot.slane %v246, 5
      %v249 = vor.u32 %v245, %v248
      %v250 = vrot.slane %v249, 4
      %v252 = vshll.u32 %v204, 16
      %v254 = vrot.slane %v252, 5
      %v255 = vsel %vm213, %v250, %v254
      %v257 = vshrl.u32 %v205, 16
      %v259 = vrot.slane %v257, 4
      %v260 = vshll.u32 %v205, 16
      %v262 = vrot.slane %v260, 5
      %v263 = vor.u32 %v259, %v262
      %v264 = vrot.slane %v263, 4
      %v266 = vshll.u32 %v206, 16
      %v268 = vrot.slane %v266, 5
      %v269 = vsel %vm213, %v264, %v268
      %vm278 = vcmask 1042432
      %vm279 = vcmask 1046532
      %vm280 = vmor %vm278, %vm279
      %v281 = vrot.slane %v199, 5
      %v282 = vrot.slane %v281, 4
      %v283 = vrot.slane %v200, 5
      %v284 = vsel %vm280, %v282, %v283
      %v285 = vrot.slane %v201, 5
      %v286 = vrot.slane %v285, 4
      %v287 = vrot.slane %v202, 5
      %v288 = vsel %vm280, %v286, %v287
      %v289 = vrot.slane %v203, 5
      %v290 = vrot.slane %v289, 4
      %v291 = vrot.slane %v204, 5
      %v292 = vsel %vm280, %v290, %v291
      %v293 = vrot.slane %v205, 5
      %v294 = vrot.slane %v293, 4
      %v295 = vrot.slane %v206, 5
      %v296 = vsel %vm280, %v294, %v295
      %v298 = vshrl.u32 %v207, 16
      %v300 = vrot.slane %v298, 4
      %v301 = vshll.u32 %v207, 16
      %v303 = vrot.slane %v301, 5
      %v304 = vor.u32 %v300, %v303
      %v305 = vrot.slane %v304, 4
      %v307 = vshll.u32 %v208, 16
      %v309 = vrot.slane %v307, 5
      %v310 = vsel %vm213, %v305, %v309
      %v313 = vrot.slane %v207, 5
      %v314 = vrot.slane %v313, 4
      %v315 = vrot.slane %v208, 5
      %v316 = vsel %vm280, %v314, %v315
      %v318 = vshrl.u32 %v209, 16
      %v320 = vrot.slane %v318, 4
      %v321 = vshll.u32 %v209, 16
      %v323 = vrot.slane %v321, 5
      %v324 = vor.u32 %v320, %v323
      %v325 = vrot.slane %v324, 4
      %v327 = vshll.u32 %v210, 16
      %v329 = vrot.slane %v327, 5
      %v330 = vsel %vm213, %v325, %v329
      %v333 = vrot.slane %v209, 5
      %v334 = vrot.slane %v333, 4
      %v335 = vrot.slane %v210, 5
      %v336 = vsel %vm280, %v334, %v335
      %v337 = vunpack.c.l.b16 %v199
      %v338 = vunpack.c.l.b16 %v201
      %v339 = vunpack.c.l.b16 %v203
      %v340 = vunpack.c.l.b16 %v205
      %v341 = vpack.c.b16 %v338, %v337
      %v342 = vpack.c.b16 %v340, %v339
      %v343 = vunpack.c.l.b16 %v227
      %v344 = vunpack.c.l.b16 %v241
      %v345 = vunpack.c.l.b16 %v255
      %v346 = vunpack.c.l.b16 %v269
      %v347 = vpack.c.b16 %v344, %v343
      %v348 = vpack.c.b16 %v346, %v345
      %349 = vrot.lane.b32.xlu0 %v347, 64
      %v350 = vpop.permute.xlu0 %349
      %351 = vrot.lane.b32.xlu0 %v348, 64
      %v352 = vpop.permute.xlu0 %351
      %v353 = vunpack.c.l.b16 %v284
      %v354 = vunpack.c.l.b16 %v288
      %v355 = vunpack.c.l.b16 %v292
      %v356 = vunpack.c.l.b16 %v296
      %v357 = vpack.c.b16 %v354, %v353
      %v358 = vpack.c.b16 %v356, %v355
      %v359 = vunpack.c.l.b16 %v207
      %v360 = vpack.c.b16 %v339, %v338
      %v361 = vpack.c.b16 %v359, %v340
      %362 = vrot.lane.b32.xlu0 %v360, 64
      %v363 = vpop.permute.xlu0 %362
      %364 = vrot.lane.b32.xlu0 %v361, 64
      %v365 = vpop.permute.xlu0 %364
      %v366 = vunpack.c.l.b16 %v310
      %v367 = vpack.c.b16 %v345, %v344
      %v368 = vpack.c.b16 %v366, %v346
      %v369 = vunpack.c.l.b16 %v316
      %v370 = vpack.c.b16 %v355, %v354
      %v371 = vpack.c.b16 %v369, %v356
      %372 = vrot.lane.b32.xlu0 %v370, 64
      %v373 = vpop.permute.xlu0 %372
      %374 = vrot.lane.b32.xlu0 %v371, 64
      %v375 = vpop.permute.xlu0 %374
      %v376 = vunpack.c.l.b16 %v209
      %v377 = vpack.c.b16 %v376, %v359
      %v378 = vunpack.c.l.b16 %v330
      %v379 = vpack.c.b16 %v378, %v366
      %380 = vrot.lane.b32.xlu0 %v379, 64
      %v381 = vpop.permute.xlu0 %380
      %v382 = vunpack.c.l.b16 %v336
      %v383 = vpack.c.b16 %v382, %v369
      %vm384 = vcmask 523264
      %v387 = vsel %vm384, %v341, %v350
      %v391 = vsel %vm384, %v342, %v352
      %v395 = vsel %vm384, %v357, %v363
      %v399 = vsel %vm384, %v358, %v365
      %v403 = vsel %vm384, %v367, %v373
      %v407 = vsel %vm384, %v368, %v375
      %v411 = vsel %vm384, %v377, %v381
      %v413 = vld [vmem:[%s1] sm:$0xf]
      %v414 = vld [vmem:[%s1 + $0x4] sm:$0xf]
      %v415 = vld [vmem:[%s1 + $0x8] sm:$0xf]
      %v416 = vld [vmem:[%s1 + $0xc] sm:$0xf]
      %v417 = vld [vmem:[%s1 + $0x10] sm:$0xf]
      %v418 = vld [vmem:[%s1 + $0x14] sm:$0xf]
      %v419 = vld [vmem:[%s1 + $0x18] sm:$0xf]
      %v420 = vld [vmem:[%s1 + $0x1c] sm:$0xf]
      %v421 = vld [vmem:[%s1 + $0x20] sm:$0xf]
      %v422 = vld [vmem:[%s1 + $0x24] sm:$0xf]
      %v423 = vld [vmem:[%s1 + $0x28] sm:$0xf]
      %v424 = vld [vmem:[%s1 + $0x2c] sm:$0xf]
      %v425 = vld [vmem:[%s1 + $0x30] sm:$0xf]
      %v426 = vld [vmem:[%s1 + $0x34] sm:$0xf]
      %v427 = vld [vmem:[%s1 + $0x38] sm:$0xf]
      %v428 = vld [vmem:[%s1 + $0x3c] sm:$0xf]
      %v429 = vld [vmem:[%s1 + $0x40] sm:$0xf]
      %v430 = vld [vmem:[%s1 + $0x44] sm:$0xf]
      %v431 = vld [vmem:[%s1 + $0x48] sm:$0xf]
      %v432 = vld [vmem:[%s1 + $0x4c] sm:$0xf]
      %v433 = vld [vmem:[%s1 + $0x50] sm:$0xf]
      %v434 = vld [vmem:[%s1 + $0x54] sm:$0xf]
      %v435 = vld [vmem:[%s1 + $0x58] sm:$0xf]
      %v436 = vld [vmem:[%s1 + $0x5c] sm:$0xf]
      %v437 = vld [vmem:[%s1 + $0x60] sm:$0xf]
      %v438 = vld [vmem:[%s1 + $0x64] sm:$0xf]
      %v439 = vld [vmem:[%s1 + $0x68] sm:$0xf]
      %v440 = vld [vmem:[%s1 + $0x6c] sm:$0xf]
      %v441 = vld [vmem:[%s1 + $0x70] sm:$0xf]
      %v442 = vld [vmem:[%s1 + $0x74] sm:$0xf]
      %v443 = vld [vmem:[%s1 + $0x78] sm:$0xf]
      %v444 = vld [vmem:[%s1 + $0x7c] sm:$0xf]
      %v445 = vld [vmem:[%s1 + $0x80] sm:$0xf]
      %v446 = vld [vmem:[%s1 + $0x84] sm:$0xf]
      %v447 = vld [vmem:[%s1 + $0x88] sm:$0xf]
      %v448 = vld [vmem:[%s1 + $0x8c] sm:$0xf]
      %v449 = vld [vmem:[%s1 + $0x90] sm:$0xf]
      %v450 = vld [vmem:[%s1 + $0x94] sm:$0xf]
      %v451 = vld [vmem:[%s1 + $0x98] sm:$0xf]
      %v452 = vld [vmem:[%s1 + $0x9c] sm:$0xf]
      %v453 = vld [vmem:[%s1 + $0xa0] sm:$0xf]
      %v454 = vld [vmem:[%s1 + $0xa4] sm:$0xf]
      %v455 = vld [vmem:[%s1 + $0xa8] sm:$0xf]
      %v456 = vld [vmem:[%s1 + $0xac] sm:$0xf]
      %v457 = vld [vmem:[%s1 + $0xb0] sm:$0xf]
      %v458 = vld [vmem:[%s1 + $0xb4] sm:$0xf]
      %v459 = vld [vmem:[%s1 + $0xb8] sm:$0xf]
      %v460 = vld [vmem:[%s1 + $0xbc] sm:$0xf]
      %v461 = vld [vmem:[%s1 + $0xc0] sm:$0xf]
      %v462 = vld [vmem:[%s1 + $0xc4] sm:$0xf]
      %v463 = vld [vmem:[%s1 + $0xc8] sm:$0xf]
      %v464 = vld [vmem:[%s1 + $0xcc] sm:$0xf]
      %v465 = vld [vmem:[%s1 + $0xd0] sm:$0xf]
      %v466 = vld [vmem:[%s1 + $0xd4] sm:$0xf]
      %v467 = vld [vmem:[%s1 + $0xd8] sm:$0xf]
      %v468 = vld [vmem:[%s1 + $0xdc] sm:$0xf]
      %v469 = vld [vmem:[%s1 + $0xe0] sm:$0xf]
      %v470 = vld [vmem:[%s1 + $0xe4] sm:$0xf]
      %v471 = vld [vmem:[%s1 + $0xe8] sm:$0xf]
      %v472 = vld [vmem:[%s1 + $0xec] sm:$0xf]
      %v473 = vld [vmem:[%s1 + $0xf0] sm:$0xf]
      %v474 = vld [vmem:[%s1 + $0xf4] sm:$0xf]
      %v475 = vld [vmem:[%s1 + $0xf8] sm:$0xf]
      %v476 = vld [vmem:[%s1 + $0xfc] sm:$0xf]
      %v477 = vld [vmem:[%s1 + $0x100] sm:$0xf]
      %v478 = vld [vmem:[%s1 + $0x104] sm:$0xf]
      %v479 = vld [vmem:[%s1 + $0x108] sm:$0xf]
      %v480 = vld [vmem:[%s1 + $0x10c] sm:$0xf]
      %v481 = vld [vmem:[%s1 + $0x110] sm:$0xf]
      %v482 = vld [vmem:[%s1 + $0x114] sm:$0xf]
      %v483 = vld [vmem:[%s1 + $0x118] sm:$0xf]
      %v484 = vld [vmem:[%s1 + $0x11c] sm:$0xf]
      %v557 = vunpack.c.l.b16 %v413
      %v558 = vunpack.c.l.b16 %v414
      %v559 = vunpack.c.l.b16 %v415
      %v560 = vunpack.c.l.b16 %v416
      %v561 = vunpack.c.l.b16 %v417
      %v562 = vunpack.c.l.b16 %v418
      %v563 = vunpack.c.l.b16 %v419
      %v564 = vunpack.c.l.b16 %v420
      %v565 = vunpack.c.l.b16 %v421
      %v566 = vunpack.c.l.b16 %v422
      %v567 = vunpack.c.l.b16 %v423
      %v568 = vunpack.c.l.b16 %v424
      %v569 = vunpack.c.l.b16 %v425
      %v570 = vunpack.c.l.b16 %v426
      %v571 = vunpack.c.l.b16 %v427
      %v572 = vunpack.c.l.b16 %v428
      %v573 = vunpack.c.l.b16 %v429
      %v574 = vunpack.c.l.b16 %v430
      %v575 = vunpack.c.l.b16 %v431
      %v576 = vunpack.c.l.b16 %v432
      %v577 = vunpack.c.l.b16 %v433
      %v578 = vunpack.c.l.b16 %v434
      %v579 = vunpack.c.l.b16 %v435
      %v580 = vunpack.c.l.b16 %v436
      %v581 = vunpack.c.l.b16 %v437
      %v582 = vunpack.c.l.b16 %v438
      %v583 = vunpack.c.l.b16 %v439
      %v584 = vunpack.c.l.b16 %v440
      %v585 = vunpack.c.l.b16 %v441
      %v586 = vunpack.c.l.b16 %v442
      %v587 = vunpack.c.l.b16 %v443
      %v588 = vunpack.c.l.b16 %v444
      %v589 = vunpack.c.l.b16 %v445
      %v590 = vunpack.c.l.b16 %v446
      %v591 = vunpack.c.l.b16 %v447
      %v592 = vunpack.c.l.b16 %v448
      %v593 = vunpack.c.l.b16 %v449
      %v594 = vunpack.c.l.b16 %v450
      %v595 = vunpack.c.l.b16 %v451
      %v596 = vunpack.c.l.b16 %v452
      %v597 = vunpack.c.l.b16 %v453
      %v598 = vunpack.c.l.b16 %v454
      %v599 = vunpack.c.l.b16 %v455
      %v600 = vunpack.c.l.b16 %v456
      %v601 = vunpack.c.l.b16 %v457
      %v602 = vunpack.c.l.b16 %v458
      %v603 = vunpack.c.l.b16 %v459
      %v604 = vunpack.c.l.b16 %v460
      %v605 = vunpack.c.l.b16 %v461
      %v606 = vunpack.c.l.b16 %v462
      %v607 = vunpack.c.l.b16 %v463
      %v608 = vunpack.c.l.b16 %v464
      %v609 = vunpack.c.l.b16 %v465
      %v610 = vunpack.c.l.b16 %v466
      %v611 = vunpack.c.l.b16 %v467
      %v612 = vunpack.c.l.b16 %v468
      %v613 = vunpack.c.l.b16 %v469
      %v614 = vunpack.c.l.b16 %v470
      %v615 = vunpack.c.l.b16 %v471
      %v616 = vunpack.c.l.b16 %v472
      %v617 = vunpack.c.l.b16 %v473
      %v618 = vunpack.c.l.b16 %v474
      %v619 = vunpack.c.l.b16 %v475
      %v620 = vunpack.c.l.b16 %v476
      %v621 = vunpack.c.l.b16 %v477
      %v622 = vunpack.c.l.b16 %v478
      %v623 = vunpack.c.l.b16 %v479
      %v624 = vunpack.c.l.b16 %v480
      %v625 = vunpack.c.l.b16 %v481
      %v626 = vunpack.c.l.b16 %v482
      %v627 = vunpack.c.l.b16 %v483
      %v628 = vunpack.c.l.b16 %v484
      %v629 = vpack.c.b16 %v558, %v557
      %v630 = vpack.c.b16 %v560, %v559
      %v631 = vpack.c.b16 %v562, %v561
      %v632 = vpack.c.b16 %v564, %v563
      %v633 = vpack.c.b16 %v566, %v565
      %v634 = vpack.c.b16 %v568, %v567
      %v635 = vpack.c.b16 %v570, %v569
      %v636 = vpack.c.b16 %v572, %v571
      %v637 = vpack.c.b16 %v574, %v573
      %v638 = vpack.c.b16 %v576, %v575
      %v639 = vpack.c.b16 %v578, %v577
      %v640 = vpack.c.b16 %v580, %v579
      %v641 = vpack.c.b16 %v582, %v581
      %v642 = vpack.c.b16 %v584, %v583
      %v643 = vpack.c.b16 %v586, %v585
      %v644 = vpack.c.b16 %v588, %v587
      %v645 = vpack.c.b16 %v590, %v589
      %v646 = vpack.c.b16 %v592, %v591
      %v647 = vpack.c.b16 %v594, %v593
      %v648 = vpack.c.b16 %v596, %v595
      %v649 = vpack.c.b16 %v598, %v597
      %v650 = vpack.c.b16 %v600, %v599
      %v651 = vpack.c.b16 %v602, %v601
      %v652 = vpack.c.b16 %v604, %v603
      %v653 = vpack.c.b16 %v606, %v605
      %v654 = vpack.c.b16 %v608, %v607
      %v655 = vpack.c.b16 %v610, %v609
      %v656 = vpack.c.b16 %v612, %v611
      %v657 = vpack.c.b16 %v614, %v613
      %v658 = vpack.c.b16 %v616, %v615
      %v659 = vpack.c.b16 %v618, %v617
      %v660 = vpack.c.b16 %v620, %v619
      %v661 = vpack.c.b16 %v622, %v621
      %v662 = vpack.c.b16 %v624, %v623
      %v663 = vpack.c.b16 %v626, %v625
      %v664 = vpack.c.b16 %v628, %v627
      %v701 = vsel %vm384, %v358, 0
      %v704 = vsel %vm384, %v383, 0
      %706 = vmatprep.subr.bf16.mxu0 0
      %707 = vmatpush1.bf16.msra.mxu0 %v629
      %708 = vmatprep.subr.bf16.mxu0 0
      %709 = vmatpush1.bf16.msra.mxu0 %v630
      %710 = vmatprep.subr.bf16.mxu0 0
      %711 = vmatpush1.bf16.msra.mxu0 %v631
      %712 = vmatprep.subr.bf16.mxu0 0
      %713 = vmatpush1.bf16.msra.mxu0 %v632
      %714 = vmatprep.subr.bf16.mxu0 0
      %715 = vmatpush1.bf16.msra.mxu0 %v633
      %716 = vmatprep.subr.bf16.mxu0 0
      %717 = vmatpush1.bf16.msra.mxu0 %v634
      %718 = vmatprep.subr.bf16.mxu0 0
      %719 = vmatpush1.bf16.msra.mxu0 %v635
      %720 = vmatprep.subr.bf16.mxu0 0
      %721 = vmatpush1.bf16.msra.mxu0 %v636
      %722 = vmatprep.subr.bf16.mxu0 0
      %723 = vmatpush1.bf16.msra.mxu0 %v637
      %724 = vmatprep.subr.bf16.mxu0 0
      %725 = vmatpush1.bf16.msra.mxu0 %v638
      %726 = vmatprep.subr.bf16.mxu0 0
      %727 = vmatpush1.bf16.msra.mxu0 %v639
      %728 = vmatprep.subr.bf16.mxu0 0
      %729 = vmatpush1.bf16.msra.mxu0 %v640
      %730 = vmatprep.subr.bf16.mxu0 0
      %731 = vmatpush1.bf16.msra.mxu0 %v641
      %732 = vmatprep.subr.bf16.mxu0 0
      %733 = vmatpush1.bf16.msra.mxu0 %v642
      %734 = vmatprep.subr.bf16.mxu0 0
      %735 = vmatpush1.bf16.msra.mxu0 %v643
      %736 = vmatprep.subr.bf16.mxu0 0
      %737 = vmatpush1.bf16.msra.mxu0 %v644
      %738 = vmatprep.mubr.bf16.mxu0 %v395
      %739 = vmatmul.mubr.bf16.gmra.mrb[0].mxu0 %v387
      %v740 = vpop.f32.mrb[0].mxu0
      %v741 = vadd.f32 0.0, %v740
      %v742 = vpop.f32.mrb[0].mxu0
      %v743 = vpop.f32.mrb[0].mxu0
      %v744 = vadd.f32 0.0, %v743
      %v745 = vpop.f32.mrb[0].mxu0
      %746 = vmatprep.mubr.bf16.mxu0 %v399
      %747 = vmatmul.mubr.bf16.gmra.mrb[0].mxu0 %v391
      %v748 = vpop.f32.mrb[0].mxu0
      %v749 = vadd.f32 0.0, %v748
      %v750 = vpop.f32.mrb[0].mxu0
      %v751 = vpop.f32.mrb[0].mxu0
      %v752 = vadd.f32 0.0, %v751
      %v753 = vpop.f32.mrb[0].mxu0
      %754 = vdwg.mxu0
      %755 = vmatprep.subr.bf16.mxu0 0
      %756 = vmatpush1.bf16.msra.mxu0 %v645
      %757 = vmatprep.subr.bf16.mxu0 0
      %758 = vmatpush1.bf16.msra.mxu0 %v646
      %759 = vmatprep.subr.bf16.mxu0 0
      %760 = vmatpush1.bf16.msra.mxu0 %v647
      %761 = vmatprep.subr.bf16.mxu0 0
      %762 = vmatpush1.bf16.msra.mxu0 %v648
      %763 = vmatprep.subr.bf16.mxu0 0
      %764 = vmatpush1.bf16.msra.mxu0 %v649
      %765 = vmatprep.subr.bf16.mxu0 0
      %766 = vmatpush1.bf16.msra.mxu0 %v650
      %767 = vmatprep.subr.bf16.mxu0 0
      %768 = vmatpush1.bf16.msra.mxu0 %v651
      %769 = vmatprep.subr.bf16.mxu0 0
      %770 = vmatpush1.bf16.msra.mxu0 %v652
      %771 = vmatprep.subr.bf16.mxu0 0
      %772 = vmatpush1.bf16.msra.mxu0 %v653
      %773 = vmatprep.subr.bf16.mxu0 0
      %774 = vmatpush1.bf16.msra.mxu0 %v654
      %775 = vmatprep.subr.bf16.mxu0 0
      %776 = vmatpush1.bf16.msra.mxu0 %v655
      %777 = vmatprep.subr.bf16.mxu0 0
      %778 = vmatpush1.bf16.msra.mxu0 %v656
      %779 = vmatprep.subr.bf16.mxu0 0
      %780 = vmatpush1.bf16.msra.mxu0 %v657
      %781 = vmatprep.subr.bf16.mxu0 0
      %782 = vmatpush1.bf16.msra.mxu0 %v658
      %783 = vmatprep.subr.bf16.mxu0 0
      %784 = vmatpush1.bf16.msra.mxu0 %v659
      %785 = vmatprep.subr.bf16.mxu0 0
      %786 = vmatpush1.bf16.msra.mxu0 %v660
      %787 = vmatprep.mubr.bf16.mxu0 %v391
      %788 = vmatmul.mubr.bf16.gmra.mrb[0].mxu0 %v403
      %v789 = vpop.f32.mrb[0].mxu0
      %v790 = vadd.f32 %v741, %v789
      %v791 = vpop.f32.mrb[0].mxu0
      %v792 = vpop.f32.mrb[0].mxu0
      %v793 = vadd.f32 %v744, %v792
      %v794 = vpop.f32.mrb[0].mxu0
      %795 = vmatprep.mubr.bf16.mxu0 %v411
      %796 = vmatmul.mubr.bf16.gmra.mrb[0].mxu0 %v407
      %v797 = vpop.f32.mrb[0].mxu0
      %v798 = vadd.f32 %v749, %v797
      %v799 = vpop.f32.mrb[0].mxu0
      %v800 = vpop.f32.mrb[0].mxu0
      %v801 = vadd.f32 %v752, %v800
      %v802 = vpop.f32.mrb[0].mxu0
      %803 = vdwg.mxu0
      %804 = vmatprep.subr.bf16.mxu0 0
      %805 = vmatpush1.bf16.msra.mxu0 %v661
      %806 = vmatprep.subr.bf16.mxu0 0
      %807 = vmatpush1.bf16.msra.mxu0 %v662
      %808 = vmatprep.subr.bf16.mxu0 0
      %809 = vmatpush1.bf16.msra.mxu0 %v663
      %810 = vmatprep.subr.bf16.mxu0 0
      %811 = vmatpush1.bf16.msra.mxu0 %v664
      %812 = vmatprep.subr.bf16.mxu0 0
      %813 = vmatpush1.bf16.msra.mxu0 0
      %814 = vmatprep.subr.bf16.mxu0 0
      %815 = vmatpush1.bf16.msra.mxu0 0
      %816 = vmatprep.subr.bf16.mxu0 0
      %817 = vmatpush1.bf16.msra.mxu0 0
      %818 = vmatprep.subr.bf16.mxu0 0
      %819 = vmatpush1.bf16.msra.mxu0 0
      %820 = vmatprep.subr.bf16.mxu0 0
      %821 = vmatpush1.bf16.msra.mxu0 0
      %822 = vmatprep.subr.bf16.mxu0 0
      %823 = vmatpush1.bf16.msra.mxu0 0
      %824 = vmatprep.subr.bf16.mxu0 0
      %825 = vmatpush1.bf16.msra.mxu0 0
      %826 = vmatprep.subr.bf16.mxu0 0
      %827 = vmatpush1.bf16.msra.mxu0 0
      %828 = vmatprep.subr.bf16.mxu0 0
      %829 = vmatpush1.bf16.msra.mxu0 0
      %830 = vmatprep.subr.bf16.mxu0 0
      %831 = vmatpush1.bf16.msra.mxu0 0
      %832 = vmatprep.subr.bf16.mxu0 0
      %833 = vmatpush1.bf16.msra.mxu0 0
      %834 = vmatprep.subr.bf16.mxu0 0
      %835 = vmatpush1.bf16.msra.mxu0 0
      %836 = vmatprep.mubr.bf16.mxu0 0
      %837 = vmatmul.mubr.bf16.gmra.mrb[0].mxu0 %v701
      %v838 = vpop.f32.mrb[0].mxu0
      %v839 = vadd.f32 %v790, %v838
      %v840 = vpop.f32.mrb[0].mxu0
      %v841 = vpop.f32.mrb[0].mxu0
      %v842 = vadd.f32 %v793, %v841
      %v843 = vpop.f32.mrb[0].mxu0
      %844 = vmatprep.mubr.bf16.mxu0 0
      %845 = vmatmul.mubr.bf16.gmra.mrb[0].mxu0 %v704
      %v846 = vpop.f32.mrb[0].mxu0
      %v847 = vadd.f32 %v798, %v846
      %v848 = vpop.f32.mrb[0].mxu0
      %v849 = vpop.f32.mrb[0].mxu0
      %v850 = vadd.f32 %v801, %v849
      %v851 = vpop.f32.mrb[0].mxu0
      %852 = vdwg.mxu0
      %v853 = vld [vmem:[%s2] sm:$0x1]
      %v855 = vlaneseq
      %v856 = vshrl.u32 %v855, 7
      %v857 = vsub.s32 0, %v856
      %v858 = vrot.slane %v853, %v857
      %v860 = vmul.f32 %v839, %v858
      %v861 = vmul.f32 %v842, %v858
      %v862 = vmul.f32 %v847, %v858
      %v863 = vmul.f32 %v850, %v858
      %v864 = vld [vmem:[%s3] sm:$0x1]
      %v866 = vlaneseq
      %v867 = vshrl.u32 %v866, 7
      %v868 = vsub.s32 0, %v867
      %v869 = vrot.slane %v864, %v868
      %v871 = vadd.f32 %v860, %v869
      %v872 = vadd.f32 %v861, %v869
      %v873 = vadd.f32 %v862, %v869
      %v874 = vadd.f32 %v863, %v869
      %v875 = vmax.f32 %v871, 0.0
      %v876 = vmax.f32 %v872, 0.0
      %v877 = vmax.f32 %v873, 0.0
      %v878 = vmax.f32 %v874, 0.0
      %v879 = vmin.f32 %v875, 20.0
      %v880 = vmin.f32 %v876, 20.0
      %v881 = vmin.f32 %v877, 20.0
      %v882 = vmin.f32 %v878, 20.0
      %v883 = vpack.c.bf16 %v879, %v879
      %v884 = vpack.c.bf16 %v880, %v880
      %v885 = vpack.c.bf16 %v881, %v881
      %v886 = vpack.c.bf16 %v882, %v882
      %887 = vst [vmem:[%s197] sm:$0xf] %v883
      %888 = vst [vmem:[%s197 + $0x4] sm:$0xf] %v884
      %889 = vst [vmem:[%s197 + $0x8] sm:$0xf] %v885
      %890 = vst [vmem:[%s197 + $0xc] sm:$0xf] %v886
      %p891 = scmp.lt.s32.totalorder %s15, 1
      %s892 = scalar_select %p891, %s15, 1
      %s893 = smul.addr %s892, 4
      %s894 = smul.addr %s893, 4
      %s895 = scalar_lea.vmem %s4, %s894
      // Predicated region
      $region37: #{listener_forward.9} parent=35 // pred_check
        %p896 = pneg %p122
      $region38: #{listener_forward.9} parent=35 // pred_check_branch
        %898 = sbr.rel (%p896) target = $region40
      $region39: #{listener_forward.9} parent=35 // pred_region
        _
      $region40: #{listener_forward.9} parent=35 // pred_fallthru
        _
    $region36: #{listener_forward.9} parent=5 // pred_fallthru
      _
    %p899 = scmp.le.s32.totalorder 2, %s10
    // Predicated region
    $region41: #{listener_forward.9} parent=5 // pred_check
      %p900 = pneg %p899
    $region42: #{listener_forward.9} parent=5 // pred_check_branch
      %902 = sbr.rel (%p900) target = $region44
    $region43: #{listener_forward.9} parent=5 // pred_region
      %s903 = ssub.s32 %s10, 2
      // Predicated region
      $region45: #{listener_forward.9} parent=43 // pred_check
        %p904 = pneg %p128
      $region46: #{listener_forward.9} parent=43 // pred_check_branch
        %906 = sbr.rel (%p904) target = $region48
      $region47: #{listener_forward.9} parent=43 // pred_region
        %p907 = scmp.lt.s32.totalorder %s16, 1
        %s908 = scalar_select %p907, %s16, 1
        %s909 = smul.addr %s908, 4
        %s910 = smul.addr %s909, 4
        %s911 = scalar_lea.vmem %s4, %s910
      $region48: #{listener_forward.9} parent=43 // pred_fallthru
        _
    $region44: #{listener_forward.9} parent=5 // pred_fallthru
      _
  $region6: #{listener_forward.9} parent=0 // loop_footer
    %s14 = sadd.s32 1, %s10
  $region7: #{listener_forward.9} parent=0 // loop_footer_branch
    %9 = sbr.rel target = $region3
  $region8: #{listener_forward.9} parent=0 // loop_exit
    _

// kernel: listener_forward.8
$region0: #{listener_forward.8}
  #allocation0 [shape = 'u32[]', space=smem, size = 0x4, offset = 0x4, fixed_abs, tag = 'smem constant byte address 0x4 - core index']
  #allocation1 [shape = 'u32[144,128]{1,0:T(1,128)}', space=vmem, size = 0x12000, scoped, tag = 'internal scratch']
  %s0 = inlined_call_operand.vmem [shape: bf16[2,10,18,64], index: 0, kind: input, shape index: {}]
  %s1 = inlined_call_operand.vmem [shape: bf16[576,64], index: 1, kind: input, shape index: {}]
  %s2 = inlined_call_operand.vmem [shape: f32[1,64], index: 2, kind: input, shape index: {}]
  %s3 = inlined_call_operand.vmem [shape: f32[1,64], index: 3, kind: input, shape index: {}]
  %s4 = inlined_call_operand.vmem [shape: bf16[2,4,8,64], index: 4, kind: output, shape index: {}]
  %s5 = sld [smem:[#allocation0]]
  $region49: #{listener_forward.8} parent=0
    _
  %s7 = ssub.s32 1, %s5
  %s8 = scalar_select 0, %s7, %s5
  loop: start=0, step=1, limit=4
  $region2: #{listener_forward.8} parent=0 // loop_pre_header
    _
  $region3: #{listener_forward.8} parent=0 // loop_header
    %s10 = sphi 0, %s14
    %p11 = scmp.ge.s32.totalorder %s10, 4
    %s20 = sphi 0, %s22
    %s23 = sphi 0, %s20
    %s24 = sphi 0, %s23
    %s40 = sphi 0, %s24
    %s44 = sphi 0, %s44
    %s46 = sphi 0, %s44
    %s47 = sphi 0, %s46
    %s61 = sphi 0, %s47
    %s65 = sphi 0, %s65
    %s67 = sphi 0, %s65
    %s68 = sphi 0, %s67
    %s82 = sphi 0, %s68
    %s86 = sphi 0, %s86
    %s88 = sphi 0, %s86
    %s89 = sphi 0, %s88
    %s103 = sphi 0, %s89
    %s109 = sphi 0, %s111
    %s112 = sphi 0, %s109
    %s113 = sphi 0, %s112
    %s129 = sphi 0, %s113
  $region4: #{listener_forward.8} parent=0 // loop_header_branch
    %13 = sbr.rel (%p11) target = $region8
  $region5: #{listener_forward.8} parent=0 // loop_body
    %s15 = ssub.s32 %s10, 1
    %s16 = ssub.s32 %s10, 2
    %s17 = sadd.s32 %s10, 1
    %s18 = ssub.s32 %s10, %s17
    %p19 = scmp.eq.s32.totalorder %s18, 0
    %s21 = sadd.s32 %s20, 1
    %s22 = scalar_select %p19, %s20, %s21
    %p25 = pneg %p19
    %p26 = scmp.eq.s32.totalorder %s10, 1
    %p27 = por %p25, %p26
    %p28 = scmp.ne.s32.totalorder %s20, %s23
    %p29 = scmp.eq.s32.totalorder %s10, 0
    %p30 = por %p28, %p29
    %p31 = scmp.ne.s32.totalorder %s20, %s23
    %p32 = scmp.eq.s32.totalorder %s15, 1
    %p33 = por %p31, %p32
    %p34 = scmp.ne.s32.totalorder %s23, %s24
    %p35 = scmp.eq.s32.totalorder %s15, 0
    %p36 = por %p34, %p35
    %p37 = scmp.ne.s32.totalorder %s23, %s24
    %p38 = scmp.eq.s32.totalorder %s16, 1
    %p39 = por %p37, %p38
    %p41 = scmp.ne.s32.totalorder %s24, %s40
    %p42 = scmp.eq.s32.totalorder %s16, 0
    %p43 = por %p41, %p42
    %s45 = sadd.s32 %s44, 1
    %p48 = scmp.eq.s32.totalorder %s10, 1
    %p49 = scmp.ne.s32.totalorder %s44, %s46
    %p50 = scmp.eq.s32.totalorder %s10, 0
    %p51 = por %p49, %p50
    %p52 = scmp.ne.s32.totalorder %s44, %s46
    %p53 = scmp.eq.s32.totalorder %s15, 1
    %p54 = por %p52, %p53
    %p55 = scmp.ne.s32.totalorder %s46, %s47
    %p56 = scmp.eq.s32.totalorder %s15, 0
    %p57 = por %p55, %p56
    %p58 = scmp.ne.s32.totalorder %s46, %s47
    %p59 = scmp.eq.s32.totalorder %s16, 1
    %p60 = por %p58, %p59
    %p62 = scmp.ne.s32.totalorder %s47, %s61
    %p63 = scmp.eq.s32.totalorder %s16, 0
    %p64 = por %p62, %p63
    %s66 = sadd.s32 %s65, 1
    %p69 = scmp.eq.s32.totalorder %s10, 1
    %p70 = scmp.ne.s32.totalorder %s65, %s67
    %p71 = scmp.eq.s32.totalorder %s10, 0
    %p72 = por %p70, %p71
    %p73 = scmp.ne.s32.totalorder %s65, %s67
    %p74 = scmp.eq.s32.totalorder %s15, 1
    %p75 = por %p73, %p74
    %p76 = scmp.ne.s32.totalorder %s67, %s68
    %p77 = scmp.eq.s32.totalorder %s15, 0
    %p78 = por %p76, %p77
    %p79 = scmp.ne.s32.totalorder %s67, %s68
    %p80 = scmp.eq.s32.totalorder %s16, 1
    %p81 = por %p79, %p80
    %p83 = scmp.ne.s32.totalorder %s68, %s82
    %p84 = scmp.eq.s32.totalorder %s16, 0
    %p85 = por %p83, %p84
    %s87 = sadd.s32 %s86, 1
    %p90 = scmp.eq.s32.totalorder %s10, 1
    %p91 = scmp.ne.s32.totalorder %s86, %s88
    %p92 = scmp.eq.s32.totalorder %s10, 0
    %p93 = por %p91, %p92
    %p94 = scmp.ne.s32.totalorder %s86, %s88
    %p95 = scmp.eq.s32.totalorder %s15, 1
    %p96 = por %p94, %p95
    %p97 = scmp.ne.s32.totalorder %s88, %s89
    %p98 = scmp.eq.s32.totalorder %s15, 0
    %p99 = por %p97, %p98
    %p100 = scmp.ne.s32.totalorder %s88, %s89
    %p101 = scmp.eq.s32.totalorder %s16, 1
    %p102 = por %p100, %p101
    %p104 = scmp.ne.s32.totalorder %s89, %s103
    %p105 = scmp.eq.s32.totalorder %s16, 0
    %p106 = por %p104, %p105
    %s107 = ssub.s32 %s10, %s17
    %p108 = scmp.eq.s32.totalorder %s107, 0
    %s110 = sadd.s32 %s109, 1
    %s111 = scalar_select %p108, %s109, %s110
    %p114 = pneg %p108
    %p115 = scmp.eq.s32.totalorder %s10, 1
    %p116 = por %p114, %p115
    %p117 = scmp.ne.s32.totalorder %s109, %s112
    %p118 = scmp.eq.s32.totalorder %s10, 0
    %p119 = por %p117, %p118
    %p120 = scmp.ne.s32.totalorder %s109, %s112
    %p121 = scmp.eq.s32.totalorder %s15, 1
    %p122 = por %p120, %p121
    %p123 = scmp.ne.s32.totalorder %s112, %s113
    %p124 = scmp.eq.s32.totalorder %s15, 0
    %p125 = por %p123, %p124
    %p126 = scmp.ne.s32.totalorder %s112, %s113
    %p127 = scmp.eq.s32.totalorder %s16, 1
    %p128 = por %p126, %p127
    %p130 = scmp.ne.s32.totalorder %s113, %s129
    %p131 = scmp.eq.s32.totalorder %s16, 0
    %p132 = por %p130, %p131
    %p133 = scmp.le.s32.totalorder 1, %s10
    %p134 = scmp.lt.s32.totalorder %s10, 3
    %p135 = pnand %p133, %p134
    %p136 = pneg %p135
    // Predicated region
    $region9: #{listener_forward.8} parent=5 // pred_check
      _
    $region10: #{listener_forward.8} parent=5 // pred_check_branch
      %138 = sbr.rel (%p135) target = $region12
    $region11: #{listener_forward.8} parent=5 // pred_region
      %s139 = ssub.s32 %s10, 1
      // Predicated region
      $region13: #{listener_forward.8} parent=11 // pred_check
        %p140 = pneg %p57
      $region14: #{listener_forward.8} parent=11 // pred_check_branch
        %142 = sbr.rel (%p140) target = $region16
      $region15: #{listener_forward.8} parent=11 // pred_region
        _
      $region16: #{listener_forward.8} parent=11 // pred_fallthru
        _
      // Predicated region
      $region17: #{listener_forward.8} parent=11 // pred_check
        %p143 = pneg %p78
      $region18: #{listener_forward.8} parent=11 // pred_check_branch
        %145 = sbr.rel (%p143) target = $region20
      $region19: #{listener_forward.8} parent=11 // pred_region
        _
      $region20: #{listener_forward.8} parent=11 // pred_fallthru
        _
      // Predicated region
      $region21: #{listener_forward.8} parent=11 // pred_check
        %p146 = pneg %p99
      $region22: #{listener_forward.8} parent=11 // pred_check_branch
        %148 = sbr.rel (%p146) target = $region24
      $region23: #{listener_forward.8} parent=11 // pred_region
        _
      $region24: #{listener_forward.8} parent=11 // pred_fallthru
        _
    $region12: #{listener_forward.8} parent=5 // pred_fallthru
      _
    %p149 = scmp.lt.s32.totalorder %s10, 2
    // Predicated region
    $region25: #{listener_forward.8} parent=5 // pred_check
      %p150 = pneg %p149
    $region26: #{listener_forward.8} parent=5 // pred_check_branch
      %152 = sbr.rel (%p150) target = $region28
    $region27: #{listener_forward.8} parent=5 // pred_region
      // Predicated region
      $region29: #{listener_forward.8} parent=27 // pred_check
        %p153 = pneg %p30
      $region30: #{listener_forward.8} parent=27 // pred_check_branch
        %155 = sbr.rel (%p153) target = $region32
      $region31: #{listener_forward.8} parent=27 // pred_region
        %p156 = scmp.lt.s32.totalorder %s10, 1
        %s157 = scalar_select %p156, %s10, 1
        %s158 = smul.addr %s157, 30
        %s159 = smul.addr %s158, 4
        %s160 = scalar_lea.vmem %s0, %s159
      $region32: #{listener_forward.8} parent=27 // pred_fallthru
        _
    $region28: #{listener_forward.8} parent=5 // pred_fallthru
      _
    %p161 = scmp.le.s32.totalorder 1, %s10
    %p162 = scmp.lt.s32.totalorder %s10, 3
    %p163 = pnand %p161, %p162
    %p164 = pneg %p163
    // Predicated region
    $region33: #{listener_forward.8} parent=5 // pred_check
      _
    $region34: #{listener_forward.8} parent=5 // pred_check_branch
      %166 = sbr.rel (%p163) target = $region36
    $region35: #{listener_forward.8} parent=5 // pred_region
      %s167 = ssub.s32 %s10, 1
      %p168 = scmp.lt.s32.totalorder %s15, 1
      %s169 = scalar_select %p168, %s15, 1
      %s170 = smul.addr %s169, 30
      %s171 = smul.addr %s170, 4
      %s172 = scalar_lea.vmem %s0, %s171
      %p173 = pneg %p36
      %p174 = pneg %p33
      %p175 = pneg %p57
      %p176 = pneg %p54
      %p177 = pneg %p78
      %p178 = pneg %p75
      %p179 = pneg %p99
      %p180 = pneg %p96
      %p181 = pneg %p125
      %p182 = pneg %p122
      %p183 = scmp.lt.s32.totalorder %s15, 1
      %s184 = scalar_select %p183, %s15, 1
      %s185 = smul.addr %s184, 4
      %s186 = smul.addr %s185, 4
      %s187 = scalar_lea.vmem %s4, %s186
      %p188 = scmp.lt.s32.totalorder %s15, 1
      %s189 = scalar_select %p188, %s15, 1
      %s190 = smul.addr %s189, 30
      %s191 = smul.addr %s190, 4
      %s192 = scalar_lea.vmem %s0, %s191
      %p193 = scmp.lt.s32.totalorder %s15, 1
      %s194 = scalar_select %p193, %s15, 1
      %s195 = smul.addr %s194, 4
      %s196 = smul.addr %s195, 4
      %s197 = scalar_lea.vmem %s4, %s196
      %v199 = vld [vmem:[%s192] sm:$0xf]
      %v200 = vld [vmem:[%s192 + $0x4] sm:$0xf]
      %v201 = vld [vmem:[%s192 + $0x8] sm:$0x1]
      %v202 = vld [vmem:[%s192 + $0xc] sm:$0xf]
      %v203 = vld [vmem:[%s192 + $0x10] sm:$0xf]
      %v204 = vld [vmem:[%s192 + $0x14] sm:$0x1]
      %v205 = vld [vmem:[%s192 + $0x18] sm:$0xf]
      %v206 = vld [vmem:[%s192 + $0x1c] sm:$0xf]
      %v207 = vld [vmem:[%s192 + $0x20] sm:$0x1]
      %v208 = vld [vmem:[%s192 + $0x24] sm:$0xf]
      %v209 = vld [vmem:[%s192 + $0x28] sm:$0xf]
      %v210 = vld [vmem:[%s192 + $0x2c] sm:$0x1]
      %v211 = vld [vmem:[%s192 + $0x30] sm:$0xf]
      %v212 = vld [vmem:[%s192 + $0x34] sm:$0xf]
      %v213 = vld [vmem:[%s192 + $0x38] sm:$0x1]
      %v214 = vld [vmem:[%s192 + $0x3c] sm:$0xf]
      %v215 = vld [vmem:[%s192 + $0x40] sm:$0xf]
      %v216 = vld [vmem:[%s192 + $0x44] sm:$0x1]
      %v217 = vld [vmem:[%s192 + $0x48] sm:$0xf]
      %v218 = vld [vmem:[%s192 + $0x4c] sm:$0xf]
      %v219 = vld [vmem:[%s192 + $0x50] sm:$0x1]
      %v220 = vld [vmem:[%s192 + $0x54] sm:$0xf]
      %v221 = vld [vmem:[%s192 + $0x58] sm:$0xf]
      %v222 = vld [vmem:[%s192 + $0x5c] sm:$0x1]
      %v223 = vld [vmem:[%s192 + $0x60] sm:$0xf]
      %v224 = vld [vmem:[%s192 + $0x64] sm:$0xf]
      %v225 = vld [vmem:[%s192 + $0x68] sm:$0x1]
      %v226 = vld [vmem:[%s192 + $0x6c] sm:$0xf]
      %v227 = vld [vmem:[%s192 + $0x70] sm:$0xf]
      %v228 = vld [vmem:[%s192 + $0x74] sm:$0x1]
      %vm229 = vsmask.f32 3328
      %vm230 = vsmask.f32 7440
      %vm231 = vmor %vm229, %vm230
      %v233 = vshrl.u32 %v199, 16
      %v235 = vrot.slane %v233, 4
      %v236 = vshll.u32 %v199, 16
      %v238 = vrot.slane %v236, 5
      %v239 = vor.u32 %v235, %v238
      %v240 = vrot.slane %v239, 4
      %v242 = vshll.u32 %v200, 16
      %v244 = vrot.slane %v242, 5
      %v245 = vsel %vm231, %v240, %v244
      %v246 = vshrl.u32 %v200, 16
      %v248 = vrot.slane %v246, 4
      %v249 = vor.u32 %v248, %v244
      %v250 = vrot.slane %v249, 4
      %v252 = vshll.u32 %v201, 16
      %v254 = vrot.slane %v252, 5
      %v255 = vsel %vm231, %v250, %v254
      %v257 = vshrl.u32 %v202, 16
      %v259 = vrot.slane %v257, 4
      %v260 = vshll.u32 %v202, 16
      %v262 = vrot.slane %v260, 5
      %v263 = vor.u32 %v259, %v262
      %v264 = vrot.slane %v263, 4
      %v266 = vshll.u32 %v203, 16
      %v268 = vrot.slane %v266, 5
      %v269 = vsel %vm231, %v264, %v268
      %v270 = vshrl.u32 %v203, 16
      %v272 = vrot.slane %v270, 4
      %v273 = vor.u32 %v272, %v268
      %v274 = vrot.slane %v273, 4
      %v276 = vshll.u32 %v204, 16
      %v278 = vrot.slane %v276, 5
      %v279 = vsel %vm231, %v274, %v278
      %v281 = vshrl.u32 %v205, 16
      %v283 = vrot.slane %v281, 4
      %v284 = vshll.u32 %v205, 16
      %v286 = vrot.slane %v284, 5
      %v287 = vor.u32 %v283, %v286
      %v288 = vrot.slane %v287, 4
      %v290 = vshll.u32 %v206, 16
      %v292 = vrot.slane %v290, 5
      %v293 = vsel %vm231, %v288, %v292
      %v294 = vshrl.u32 %v206, 16
      %v296 = vrot.slane %v294, 4
      %v297 = vor.u32 %v296, %v292
      %v298 = vrot.slane %v297, 4
      %v300 = vshll.u32 %v207, 16
      %v302 = vrot.slane %v300, 5
      %v303 = vsel %vm231, %v298, %v302
      %v305 = vshrl.u32 %v208, 16
      %v307 = vrot.slane %v305, 4
      %v308 = vshll.u32 %v208, 16
      %v310 = vrot.slane %v308, 5
      %v311 = vor.u32 %v307, %v310
      %v312 = vrot.slane %v311, 4
      %v314 = vshll.u32 %v209, 16
      %v316 = vrot.slane %v314, 5
      %v317 = vsel %vm231, %v312, %v316
      %v318 = vshrl.u32 %v209, 16
      %v320 = vrot.slane %v318, 4
      %v321 = vor.u32 %v320, %v316
      %v322 = vrot.slane %v321, 4
      %v324 = vshll.u32 %v210, 16
      %v326 = vrot.slane %v324, 5
      %v327 = vsel %vm231, %v322, %v326
      %v329 = vshrl.u32 %v211, 16
      %v331 = vrot.slane %v329, 4
      %v332 = vshll.u32 %v211, 16
      %v334 = vrot.slane %v332, 5
      %v335 = vor.u32 %v331, %v334
      %v336 = vrot.slane %v335, 4
      %v338 = vshll.u32 %v212, 16
      %v340 = vrot.slane %v338, 5
      %v341 = vsel %vm231, %v336, %v340
      %v342 = vshrl.u32 %v212, 16
      %v344 = vrot.slane %v342, 4
      %v345 = vor.u32 %v344, %v340
      %v346 = vrot.slane %v345, 4
      %v348 = vshll.u32 %v213, 16
      %v350 = vrot.slane %v348, 5
      %v351 = vsel %vm231, %v346, %v350
      %v353 = vshrl.u32 %v214, 16
      %v355 = vrot.slane %v353, 4
      %v356 = vshll.u32 %v214, 16
      %v358 = vrot.slane %v356, 5
      %v359 = vor.u32 %v355, %v358
      %v360 = vrot.slane %v359, 4
      %v362 = vshll.u32 %v215, 16
      %v364 = vrot.slane %v362, 5
      %v365 = vsel %vm231, %v360, %v364
      %v366 = vshrl.u32 %v215, 16
      %v368 = vrot.slane %v366, 4
      %v369 = vor.u32 %v368, %v364
      %v370 = vrot.slane %v369, 4
      %v372 = vshll.u32 %v216, 16
      %v374 = vrot.slane %v372, 5
      %v375 = vsel %vm231, %v370, %v374
      %v377 = vshrl.u32 %v217, 16
      %v379 = vrot.slane %v377, 4
      %v380 = vshll.u32 %v217, 16
      %v382 = vrot.slane %v380, 5
      %v383 = vor.u32 %v379, %v382
      %v384 = vrot.slane %v383, 4
      %v386 = vshll.u32 %v218, 16
      %v388 = vrot.slane %v386, 5
      %v389 = vsel %vm231, %v384, %v388
      %v390 = vshrl.u32 %v218, 16
      %v392 = vrot.slane %v390, 4
      %v393 = vor.u32 %v392, %v388
      %v394 = vrot.slane %v393, 4
      %v396 = vshll.u32 %v219, 16
      %v398 = vrot.slane %v396, 5
      %v399 = vsel %vm231, %v394, %v398
      %v401 = vshrl.u32 %v220, 16
      %v403 = vrot.slane %v401, 4
      %v404 = vshll.u32 %v220, 16
      %v406 = vrot.slane %v404, 5
      %v407 = vor.u32 %v403, %v406
      %v408 = vrot.slane %v407, 4
      %v410 = vshll.u32 %v221, 16
      %v412 = vrot.slane %v410, 5
      %v413 = vsel %vm231, %v408, %v412
      %v414 = vshrl.u32 %v221, 16
      %v416 = vrot.slane %v414, 4
      %v417 = vor.u32 %v416, %v412
      %v418 = vrot.slane %v417, 4
      %v420 = vshll.u32 %v222, 16
      %v422 = vrot.slane %v420, 5
      %v423 = vsel %vm231, %v418, %v422
      %vm448 = vcmask 1042432
      %vm449 = vcmask 1046532
      %vm450 = vmor %vm448, %vm449
      %v451 = vrot.slane %v199, 5
      %v452 = vrot.slane %v451, 4
      %v453 = vrot.slane %v200, 5
      %v454 = vsel %vm450, %v452, %v453
      %v455 = vrot.slane %v453, 4
      %v456 = vrot.slane %v201, 5
      %v457 = vsel %vm450, %v455, %v456
      %v458 = vrot.slane %v202, 5
      %v459 = vrot.slane %v458, 4
      %v460 = vrot.slane %v203, 5
      %v461 = vsel %vm450, %v459, %v460
      %v462 = vrot.slane %v460, 4
      %v463 = vrot.slane %v204, 5
      %v464 = vsel %vm450, %v462, %v463
      %v465 = vrot.slane %v205, 5
      %v466 = vrot.slane %v465, 4
      %v467 = vrot.slane %v206, 5
      %v468 = vsel %vm450, %v466, %v467
      %v469 = vrot.slane %v467, 4
      %v470 = vrot.slane %v207, 5
      %v471 = vsel %vm450, %v469, %v470
      %v472 = vrot.slane %v208, 5
      %v473 = vrot.slane %v472, 4
      %v474 = vrot.slane %v209, 5
      %v475 = vsel %vm450, %v473, %v474
      %v476 = vrot.slane %v474, 4
      %v477 = vrot.slane %v210, 5
      %v478 = vsel %vm450, %v476, %v477
      %v479 = vrot.slane %v211, 5
      %v480 = vrot.slane %v479, 4
      %v481 = vrot.slane %v212, 5
      %v482 = vsel %vm450, %v480, %v481
      %v483 = vrot.slane %v481, 4
      %v484 = vrot.slane %v213, 5
      %v485 = vsel %vm450, %v483, %v484
      %v486 = vrot.slane %v214, 5
      %v487 = vrot.slane %v486, 4
      %v488 = vrot.slane %v215, 5
      %v489 = vsel %vm450, %v487, %v488
      %v490 = vrot.slane %v488, 4
      %v491 = vrot.slane %v216, 5
      %v492 = vsel %vm450, %v490, %v491
      %v493 = vrot.slane %v217, 5
      %v494 = vrot.slane %v493, 4
      %v495 = vrot.slane %v218, 5
      %v496 = vsel %vm450, %v494, %v495
      %v497 = vrot.slane %v495, 4
      %v498 = vrot.slane %v219, 5
      %v499 = vsel %vm450, %v497, %v498
      %v500 = vrot.slane %v220, 5
      %v501 = vrot.slane %v500, 4
      %v502 = vrot.slane %v221, 5
      %v503 = vsel %vm450, %v501, %v502
      %v504 = vrot.slane %v502, 4
      %v505 = vrot.slane %v222, 5
      %v506 = vsel %vm450, %v504, %v505
      %v508 = vshrl.u32 %v223, 16
      %v510 = vrot.slane %v508, 4
      %v511 = vshll.u32 %v223, 16
      %v513 = vrot.slane %v511, 5
      %v514 = vor.u32 %v510, %v513
      %v515 = vrot.slane %v514, 4
      %v517 = vshll.u32 %v224, 16
      %v519 = vrot.slane %v517, 5
      %v520 = vsel %vm231, %v515, %v519
      %v521 = vshrl.u32 %v224, 16
      %v523 = vrot.slane %v521, 4
      %v524 = vor.u32 %v523, %v519
      %v525 = vrot.slane %v524, 4
      %v527 = vshll.u32 %v225, 16
      %v529 = vrot.slane %v527, 5
      %v530 = vsel %vm231, %v525, %v529
      %v534 = vrot.slane %v223, 5
      %v535 = vrot.slane %v534, 4
      %v536 = vrot.slane %v224, 5
      %v537 = vsel %vm450, %v535, %v536
      %v538 = vrot.slane %v536, 4
      %v539 = vrot.slane %v225, 5
      %v540 = vsel %vm450, %v538, %v539
      %v542 = vshrl.u32 %v226, 16
      %v544 = vrot.slane %v542, 4
      %v545 = vshll.u32 %v226, 16
      %v547 = vrot.slane %v545, 5
      %v548 = vor.u32 %v544, %v547
      %v549 = vrot.slane %v548, 4
      %v551 = vshll.u32 %v227, 16
      %v553 = vrot.slane %v551, 5
      %v554 = vsel %vm231, %v549, %v553
      %v555 = vshrl.u32 %v227, 16
      %v557 = vrot.slane %v555, 4
      %v558 = vor.u32 %v557, %v553
      %v559 = vrot.slane %v558, 4
      %v561 = vshll.u32 %v228, 16
      %v563 = vrot.slane %v561, 5
      %v564 = vsel %vm231, %v559, %v563
      %v568 = vrot.slane %v226, 5
      %v569 = vrot.slane %v568, 4
      %v570 = vrot.slane %v227, 5
      %v571 = vsel %vm450, %v569, %v570
      %v572 = vrot.slane %v570, 4
      %v573 = vrot.slane %v228, 5
      %v574 = vsel %vm450, %v572, %v573
      %v575 = vunpack.c.l.b16 %v199
      %v576 = vunpack.c.l.b16 %v200
      %v577 = vunpack.c.l.b16 %v202
      %v578 = vunpack.c.l.b16 %v203
      %v579 = vunpack.c.l.b16 %v205
      %v580 = vunpack.c.l.b16 %v206
      %v581 = vunpack.c.l.b16 %v208
      %v582 = vunpack.c.l.b16 %v209
      %v583 = vunpack.c.l.b16 %v211
      %v584 = vunpack.c.l.b16 %v212
      %v585 = vunpack.c.l.b16 %v214
      %v586 = vunpack.c.l.b16 %v215
      %v587 = vunpack.c.l.b16 %v217
      %v588 = vunpack.c.l.b16 %v218
      %v589 = vunpack.c.l.b16 %v220
      %v590 = vunpack.c.l.b16 %v221
      %v591 = vpack.c.b16 %v576, %v575
      %v592 = vpack.c.b16 %v578, %v577
      %v593 = vpack.c.b16 %v580, %v579
      %v594 = vpack.c.b16 %v582, %v581
      %v595 = vpack.c.b16 %v584, %v583
      %v596 = vpack.c.b16 %v586, %v585
      %v597 = vpack.c.b16 %v588, %v587
      %v598 = vpack.c.b16 %v590, %v589
      %v599 = vunpack.c.l.b16 %v245
      %v600 = vunpack.c.l.b16 %v255
      %v601 = vunpack.c.l.b16 %v269
      %v602 = vunpack.c.l.b16 %v279
      %v603 = vunpack.c.l.b16 %v293
      %v604 = vunpack.c.l.b16 %v303
      %v605 = vunpack.c.l.b16 %v317
      %v606 = vunpack.c.l.b16 %v327
      %v607 = vunpack.c.l.b16 %v341
      %v608 = vunpack.c.l.b16 %v351
      %v609 = vunpack.c.l.b16 %v365
      %v610 = vunpack.c.l.b16 %v375
      %v611 = vunpack.c.l.b16 %v389
      %v612 = vunpack.c.l.b16 %v399
      %v613 = vunpack.c.l.b16 %v413
      %v614 = vunpack.c.l.b16 %v423
      %v615 = vpack.c.b16 %v600, %v599
      %v616 = vpack.c.b16 %v602, %v601
      %v617 = vpack.c.b16 %v604, %v603
      %v618 = vpack.c.b16 %v606, %v605
      %v619 = vpack.c.b16 %v608, %v607
      %v620 = vpack.c.b16 %v610, %v609
      %v621 = vpack.c.b16 %v612, %v611
      %v622 = vpack.c.b16 %v614, %v613
      %623 = vrot.lane.b32.xlu0 %v615, 64
      %v624 = vpop.permute.xlu0 %623
      %625 = vrot.lane.b32.xlu0 %v616, 64
      %v626 = vpop.permute.xlu0 %625
      %627 = vrot.lane.b32.xlu0 %v617, 64
      %v628 = vpop.permute.xlu0 %627
      %629 = vrot.lane.b32.xlu0 %v618, 64
      %v630 = vpop.permute.xlu0 %629
      %631 = vrot.lane.b32.xlu0 %v619, 64
      %v632 = vpop.permute.xlu0 %631
      %633 = vrot.lane.b32.xlu0 %v620, 64
      %v634 = vpop.permute.xlu0 %633
      %635 = vrot.lane.b32.xlu0 %v621, 64
      %v636 = vpop.permute.xlu0 %635
      %637 = vrot.lane.b32.xlu0 %v622, 64
      %v638 = vpop.permute.xlu0 %637
      %v639 = vunpack.c.l.b16 %v454
      %v640 = vunpack.c.l.b16 %v457
      %v641 = vunpack.c.l.b16 %v461
      %v642 = vunpack.c.l.b16 %v464
      %v643 = vunpack.c.l.b16 %v468
      %v644 = vunpack.c.l.b16 %v471
      %v645 = vunpack.c.l.b16 %v475
      %v646 = vunpack.c.l.b16 %v478
      %v647 = vunpack.c.l.b16 %v482
      %v648 = vunpack.c.l.b16 %v485
      %v649 = vunpack.c.l.b16 %v489
      %v650 = vunpack.c.l.b16 %v492
      %v651 = vunpack.c.l.b16 %v496
      %v652 = vunpack.c.l.b16 %v499
      %v653 = vunpack.c.l.b16 %v503
      %v654 = vunpack.c.l.b16 %v506
      %v655 = vpack.c.b16 %v640, %v639
      %v656 = vpack.c.b16 %v642, %v641
      %v657 = vpack.c.b16 %v644, %v643
      %v658 = vpack.c.b16 %v646, %v645
      %v659 = vpack.c.b16 %v648, %v647
      %v660 = vpack.c.b16 %v650, %v649
      %v661 = vpack.c.b16 %v652, %v651
      %v662 = vpack.c.b16 %v654, %v653
      %v663 = vunpack.c.l.b16 %v223
      %v664 = vunpack.c.l.b16 %v224
      %v665 = vpack.c.b16 %v664, %v663
      %666 = vrot.lane.b32.xlu0 %v592, 64
      %v667 = vpop.permute.xlu0 %666
      %668 = vrot.lane.b32.xlu0 %v593, 64
      %v669 = vpop.permute.xlu0 %668
      %670 = vrot.lane.b32.xlu0 %v594, 64
      %v671 = vpop.permute.xlu0 %670
      %672 = vrot.lane.b32.xlu0 %v595, 64
      %v673 = vpop.permute.xlu0 %672
      %674 = vrot.lane.b32.xlu0 %v596, 64
      %v675 = vpop.permute.xlu0 %674
      %676 = vrot.lane.b32.xlu0 %v597, 64
      %v677 = vpop.permute.xlu0 %676
      %678 = vrot.lane.b32.xlu0 %v598, 64
      %v679 = vpop.permute.xlu0 %678
      %680 = vrot.lane.b32.xlu0 %v665, 64
      %v681 = vpop.permute.xlu0 %680
      %v682 = vunpack.c.l.b16 %v520
      %v683 = vunpack.c.l.b16 %v530
      %v684 = vpack.c.b16 %v683, %v682
      %v685 = vunpack.c.l.b16 %v537
      %v686 = vunpack.c.l.b16 %v540
      %v687 = vpack.c.b16 %v686, %v685
      %688 = vrot.lane.b32.xlu0 %v656, 64
      %v689 = vpop.permute.xlu0 %688
      %690 = vrot.lane.b32.xlu0 %v657, 64
      %v691 = vpop.permute.xlu0 %690
      %692 = vrot.lane.b32.xlu0 %v658, 64
      %v693 = vpop.permute.xlu0 %692
      %694 = vrot.lane.b32.xlu0 %v659, 64
      %v695 = vpop.permute.xlu0 %694
      %696 = vrot.lane.b32.xlu0 %v660, 64
      %v697 = vpop.permute.xlu0 %696
      %698 = vrot.lane.b32.xlu0 %v661, 64
      %v699 = vpop.permute.xlu0 %698
      %700 = vrot.lane.b32.xlu0 %v662, 64
      %v701 = vpop.permute.xlu0 %700
      %702 = vrot.lane.b32.xlu0 %v687, 64
      %v703 = vpop.permute.xlu0 %702
      %v704 = vunpack.c.l.b16 %v226
      %v705 = vunpack.c.l.b16 %v227
      %v706 = vpack.c.b16 %v705, %v704
      %v707 = vunpack.c.l.b16 %v554
      %v708 = vunpack.c.l.b16 %v564
      %v709 = vpack.c.b16 %v708, %v707
      %710 = vrot.lane.b32.xlu0 %v684, 64
      %v711 = vpop.permute.xlu0 %710
      %712 = vrot.lane.b32.xlu0 %v709, 64
      %v713 = vpop.permute.xlu0 %712
      %v714 = vunpack.c.l.b16 %v571
      %v715 = vunpack.c.l.b16 %v574
      %v716 = vpack.c.b16 %v715, %v714
      %vm717 = vcmask 523264
      %v720 = vsel %vm717, %v591, %v624
      %v724 = vsel %vm717, %v592, %v626
      %v728 = vsel %vm717, %v593, %v628
      %v732 = vsel %vm717, %v594, %v630
      %v736 = vsel %vm717, %v595, %v632
      %v740 = vsel %vm717, %v596, %v634
      %v744 = vsel %vm717, %v597, %v636
      %v748 = vsel %vm717, %v598, %v638
      %v752 = vsel %vm717, %v655, %v667
      %v756 = vsel %vm717, %v656, %v669
      %v760 = vsel %vm717, %v657, %v671
      %v764 = vsel %vm717, %v658, %v673
      %v768 = vsel %vm717, %v659, %v675
      %v772 = vsel %vm717, %v660, %v677
      %v776 = vsel %vm717, %v661, %v679
      %v780 = vsel %vm717, %v662, %v681
      %v784 = vsel %vm717, %v616, %v689
      %v788 = vsel %vm717, %v617, %v691
      %v792 = vsel %vm717, %v618, %v693
      %v796 = vsel %vm717, %v619, %v695
      %v800 = vsel %vm717, %v620, %v697
      %v804 = vsel %vm717, %v621, %v699
      %v808 = vsel %vm717, %v622, %v701
      %v812 = vsel %vm717, %v684, %v703
      %v816 = vsel %vm717, %v665, %v711
      %v820 = vsel %vm717, %v706, %v713
      %v822 = vld [vmem:[%s1] sm:$0xf]
      %v823 = vld [vmem:[%s1 + $0x4] sm:$0xf]
      %v824 = vld [vmem:[%s1 + $0x8] sm:$0xf]
      %v825 = vld [vmem:[%s1 + $0xc] sm:$0xf]
      %v826 = vld [vmem:[%s1 + $0x10] sm:$0xf]
      %v827 = vld [vmem:[%s1 + $0x14] sm:$0xf]
      %v828 = vld [vmem:[%s1 + $0x18] sm:$0xf]
      %v829 = vld [vmem:[%s1 + $0x1c] sm:$0xf]
      %v830 = vld [vmem:[%s1 + $0x20] sm:$0xf]
      %v831 = vld [vmem:[%s1 + $0x24] sm:$0xf]
      %v832 = vld [vmem:[%s1 + $0x28] sm:$0xf]
      %v833 = vld [vmem:[%s1 + $0x2c] sm:$0xf]
      %v834 = vld [vmem:[%s1 + $0x30] sm:$0xf]
      %v835 = vld [vmem:[%s1 + $0x34] sm:$0xf]
      %v836 = vld [vmem:[%s1 + $0x38] sm:$0xf]
      %v837 = vld [vmem:[%s1 + $0x3c] sm:$0xf]
      %v838 = vld [vmem:[%s1 + $0x40] sm:$0xf]
      %v839 = vld [vmem:[%s1 + $0x44] sm:$0xf]
      %v840 = vld [vmem:[%s1 + $0x48] sm:$0xf]
      %v841 = vld [vmem:[%s1 + $0x4c] sm:$0xf]
      %v842 = vld [vmem:[%s1 + $0x50] sm:$0xf]
      %v843 = vld [vmem:[%s1 + $0x54] sm:$0xf]
      %v844 = vld [vmem:[%s1 + $0x58] sm:$0xf]
      %v845 = vld [vmem:[%s1 + $0x5c] sm:$0xf]
      %v846 = vld [vmem:[%s1 + $0x60] sm:$0xf]
      %v847 = vld [vmem:[%s1 + $0x64] sm:$0xf]
      %v848 = vld [vmem:[%s1 + $0x68] sm:$0xf]
      %v849 = vld [vmem:[%s1 + $0x6c] sm:$0xf]
      %v850 = vld [vmem:[%s1 + $0x70] sm:$0xf]
      %v851 = vld [vmem:[%s1 + $0x74] sm:$0xf]
      %v852 = vld [vmem:[%s1 + $0x78] sm:$0xf]
      %v853 = vld [vmem:[%s1 + $0x7c] sm:$0xf]
      %v854 = vld [vmem:[%s1 + $0x80] sm:$0xf]
      %v855 = vld [vmem:[%s1 + $0x84] sm:$0xf]
      %v856 = vld [vmem:[%s1 + $0x88] sm:$0xf]
      %v857 = vld [vmem:[%s1 + $0x8c] sm:$0xf]
      %v858 = vld [vmem:[%s1 + $0x90] sm:$0xf]
      %v859 = vld [vmem:[%s1 + $0x94] sm:$0xf]
      %v860 = vld [vmem:[%s1 + $0x98] sm:$0xf]
      %v861 = vld [vmem:[%s1 + $0x9c] sm:$0xf]
      %v862 = vld [vmem:[%s1 + $0xa0] sm:$0xf]
      %v863 = vld [vmem:[%s1 + $0xa4] sm:$0xf]
      %v864 = vld [vmem:[%s1 + $0xa8] sm:$0xf]
      %v865 = vld [vmem:[%s1 + $0xac] sm:$0xf]
      %v866 = vld [vmem:[%s1 + $0xb0] sm:$0xf]
      %v867 = vld [vmem:[%s1 + $0xb4] sm:$0xf]
      %v868 = vld [vmem:[%s1 + $0xb8] sm:$0xf]
      %v869 = vld [vmem:[%s1 + $0xbc] sm:$0xf]
      %v870 = vld [vmem:[%s1 + $0xc0] sm:$0xf]
      %v871 = vld [vmem:[%s1 + $0xc4] sm:$0xf]
      %v872 = vld [vmem:[%s1 + $0xc8] sm:$0xf]
      %v873 = vld [vmem:[%s1 + $0xcc] sm:$0xf]
      %v874 = vld [vmem:[%s1 + $0xd0] sm:$0xf]
      %v875 = vld [vmem:[%s1 + $0xd4] sm:$0xf]
      %v876 = vld [vmem:[%s1 + $0xd8] sm:$0xf]
      %v877 = vld [vmem:[%s1 + $0xdc] sm:$0xf]
      %v878 = vld [vmem:[%s1 + $0xe0] sm:$0xf]
      %v879 = vld [vmem:[%s1 + $0xe4] sm:$0xf]
      %v880 = vld [vmem:[%s1 + $0xe8] sm:$0xf]
      %v881 = vld [vmem:[%s1 + $0xec] sm:$0xf]
      %v882 = vld [vmem:[%s1 + $0xf0] sm:$0xf]
      %v883 = vld [vmem:[%s1 + $0xf4] sm:$0xf]
      %v884 = vld [vmem:[%s1 + $0xf8] sm:$0xf]
      %v885 = vld [vmem:[%s1 + $0xfc] sm:$0xf]
      %v886 = vld [vmem:[%s1 + $0x100] sm:$0xf]
      %v887 = vld [vmem:[%s1 + $0x104] sm:$0xf]
      %v888 = vld [vmem:[%s1 + $0x108] sm:$0xf]
      %v889 = vld [vmem:[%s1 + $0x10c] sm:$0xf]
      %v890 = vld [vmem:[%s1 + $0x110] sm:$0xf]
      %v891 = vld [vmem:[%s1 + $0x114] sm:$0xf]
      %v892 = vld [vmem:[%s1 + $0x118] sm:$0xf]
      %v893 = vld [vmem:[%s1 + $0x11c] sm:$0xf]
      %v966 = vunpack.c.l.b16 %v822
      %v967 = vunpack.c.l.b16 %v823
      %v968 = vunpack.c.l.b16 %v824
      %v969 = vunpack.c.l.b16 %v825
      %v970 = vunpack.c.l.b16 %v826
      %v971 = vunpack.c.l.b16 %v827
      %v972 = vunpack.c.l.b16 %v828
      %v973 = vunpack.c.l.b16 %v829
      %v974 = vunpack.c.l.b16 %v830
      %v975 = vunpack.c.l.b16 %v831
      %v976 = vunpack.c.l.b16 %v832
      %v977 = vunpack.c.l.b16 %v833
      %v978 = vunpack.c.l.b16 %v834
      %v979 = vunpack.c.l.b16 %v835
      %v980 = vunpack.c.l.b16 %v836
      %v981 = vunpack.c.l.b16 %v837
      %v982 = vunpack.c.l.b16 %v838
      %v983 = vunpack.c.l.b16 %v839
      %v984 = vunpack.c.l.b16 %v840
      %v985 = vunpack.c.l.b16 %v841
      %v986 = vunpack.c.l.b16 %v842
      %v987 = vunpack.c.l.b16 %v843
      %v988 = vunpack.c.l.b16 %v844
      %v989 = vunpack.c.l.b16 %v845
      %v990 = vunpack.c.l.b16 %v846
      %v991 = vunpack.c.l.b16 %v847
      %v992 = vunpack.c.l.b16 %v848
      %v993 = vunpack.c.l.b16 %v849
      %v994 = vunpack.c.l.b16 %v850
      %v995 = vunpack.c.l.b16 %v851
      %v996 = vunpack.c.l.b16 %v852
      %v997 = vunpack.c.l.b16 %v853
      %v998 = vunpack.c.l.b16 %v854
      %v999 = vunpack.c.l.b16 %v855
      %v1000 = vunpack.c.l.b16 %v856
      %v1001 = vunpack.c.l.b16 %v857
      %v1002 = vunpack.c.l.b16 %v858
      %v1003 = vunpack.c.l.b16 %v859
      %v1004 = vunpack.c.l.b16 %v860
      %v1005 = vunpack.c.l.b16 %v861
      %v1006 = vunpack.c.l.b16 %v862
      %v1007 = vunpack.c.l.b16 %v863
      %v1008 = vunpack.c.l.b16 %v864
      %v1009 = vunpack.c.l.b16 %v865
      %v1010 = vunpack.c.l.b16 %v866
      %v1011 = vunpack.c.l.b16 %v867
      %v1012 = vunpack.c.l.b16 %v868
      %v1013 = vunpack.c.l.b16 %v869
      %v1014 = vunpack.c.l.b16 %v870
      %v1015 = vunpack.c.l.b16 %v871
      %v1016 = vunpack.c.l.b16 %v872
      %v1017 = vunpack.c.l.b16 %v873
      %v1018 = vunpack.c.l.b16 %v874
      %v1019 = vunpack.c.l.b16 %v875
      %v1020 = vunpack.c.l.b16 %v876
      %v1021 = vunpack.c.l.b16 %v877
      %v1022 = vunpack.c.l.b16 %v878
      %v1023 = vunpack.c.l.b16 %v879
      %v1024 = vunpack.c.l.b16 %v880
      %v1025 = vunpack.c.l.b16 %v881
      %v1026 = vunpack.c.l.b16 %v882
      %v1027 = vunpack.c.l.b16 %v883
      %v1028 = vunpack.c.l.b16 %v884
      %v1029 = vunpack.c.l.b16 %v885
      %v1030 = vunpack.c.l.b16 %v886
      %v1031 = vunpack.c.l.b16 %v887
      %v1032 = vunpack.c.l.b16 %v888
      %v1033 = vunpack.c.l.b16 %v889
      %v1034 = vunpack.c.l.b16 %v890
      %v1035 = vunpack.c.l.b16 %v891
      %v1036 = vunpack.c.l.b16 %v892
      %v1037 = vunpack.c.l.b16 %v893
      %v1038 = vpack.c.b16 %v967, %v966
      %v1039 = vpack.c.b16 %v969, %v968
      %v1040 = vpack.c.b16 %v971, %v970
      %v1041 = vpack.c.b16 %v973, %v972
      %v1042 = vpack.c.b16 %v975, %v974
      %v1043 = vpack.c.b16 %v977, %v976
      %v1044 = vpack.c.b16 %v979, %v978
      %v1045 = vpack.c.b16 %v981, %v980
      %v1046 = vpack.c.b16 %v983, %v982
      %v1047 = vpack.c.b16 %v985, %v984
      %v1048 = vpack.c.b16 %v987, %v986
      %v1049 = vpack.c.b16 %v989, %v988
      %v1050 = vpack.c.b16 %v991, %v990
      %v1051 = vpack.c.b16 %v993, %v992
      %v1052 = vpack.c.b16 %v995, %v994
      %v1053 = vpack.c.b16 %v997, %v996
      %v1054 = vpack.c.b16 %v999, %v998
      %v1055 = vpack.c.b16 %v1001, %v1000
      %v1056 = vpack.c.b16 %v1003, %v1002
      %v1057 = vpack.c.b16 %v1005, %v1004
      %v1058 = vpack.c.b16 %v1007, %v1006
      %v1059 = vpack.c.b16 %v1009, %v1008
      %v1060 = vpack.c.b16 %v1011, %v1010
      %v1061 = vpack.c.b16 %v1013, %v1012
      %v1062 = vpack.c.b16 %v1015, %v1014
      %v1063 = vpack.c.b16 %v1017, %v1016
      %v1064 = vpack.c.b16 %v1019, %v1018
      %v1065 = vpack.c.b16 %v1021, %v1020
      %v1066 = vpack.c.b16 %v1023, %v1022
      %v1067 = vpack.c.b16 %v1025, %v1024
      %v1068 = vpack.c.b16 %v1027, %v1026
      %v1069 = vpack.c.b16 %v1029, %v1028
      %v1070 = vpack.c.b16 %v1031, %v1030
      %v1071 = vpack.c.b16 %v1033, %v1032
      %v1072 = vpack.c.b16 %v1035, %v1034
      %v1073 = vpack.c.b16 %v1037, %v1036
      %v1110 = vsel %vm717, %v657, 0
      %v1112 = vsel %vm717, %v658, 0
      %v1114 = vsel %vm717, %v659, 0
      %v1116 = vsel %vm717, %v660, 0
      %v1118 = vsel %vm717, %v661, 0
      %v1120 = vsel %vm717, %v662, 0
      %v1123 = vsel %vm717, %v687, 0
      %v1126 = vsel %vm717, %v716, 0
      %1128 = vmatprep.subr.bf16.mxu0 0
      %1129 = vmatpush1.bf16.msra.mxu0 %v1038
      %1130 = vmatprep.subr.bf16.mxu0 0
      %1131 = vmatpush1.bf16.msra.mxu0 %v1039
      %1132 = vmatprep.subr.bf16.mxu0 0
      %1133 = vmatpush1.bf16.msra.mxu0 %v1040
      %1134 = vmatprep.subr.bf16.mxu0 0
      %1135 = vmatpush1.bf16.msra.mxu0 %v1041
      %1136 = vmatprep.subr.bf16.mxu0 0
      %1137 = vmatpush1.bf16.msra.mxu0 %v1042
      %1138 = vmatprep.subr.bf16.mxu0 0
      %1139 = vmatpush1.bf16.msra.mxu0 %v1043
      %1140 = vmatprep.subr.bf16.mxu0 0
      %1141 = vmatpush1.bf16.msra.mxu0 %v1044
      %1142 = vmatprep.subr.bf16.mxu0 0
      %1143 = vmatpush1.bf16.msra.mxu0 %v1045
      %1144 = vmatprep.subr.bf16.mxu0 0
      %1145 = vmatpush1.bf16.msra.mxu0 %v1046
      %1146 = vmatprep.subr.bf16.mxu0 0
      %1147 = vmatpush1.bf16.msra.mxu0 %v1047
      %1148 = vmatprep.subr.bf16.mxu0 0
      %1149 = vmatpush1.bf16.msra.mxu0 %v1048
      %1150 = vmatprep.subr.bf16.mxu0 0
      %1151 = vmatpush1.bf16.msra.mxu0 %v1049
      %1152 = vmatprep.subr.bf16.mxu0 0
      %1153 = vmatpush1.bf16.msra.mxu0 %v1050
      %1154 = vmatprep.subr.bf16.mxu0 0
      %1155 = vmatpush1.bf16.msra.mxu0 %v1051
      %1156 = vmatprep.subr.bf16.mxu0 0
      %1157 = vmatpush1.bf16.msra.mxu0 %v1052
      %1158 = vmatprep.subr.bf16.mxu0 0
      %1159 = vmatpush1.bf16.msra.mxu0 %v1053
      %1160 = vmatprep.mubr.bf16.mxu0 %v752
      %1161 = vmatmul.mubr.bf16.gmra.mrb[0].mxu0 %v720
      %v1162 = vpop.f32.mrb[0].mxu0
      %v1163 = vadd.f32 0.0, %v1162
      %v1164 = vpop.f32.mrb[0].mxu0
      %v1165 = vpop.f32.mrb[0].mxu0
      %v1166 = vadd.f32 0.0, %v1165
      %v1167 = vpop.f32.mrb[0].mxu0
      %1168 = vmatprep.mubr.bf16.mxu0 %v756
      %1169 = vmatmul.mubr.bf16.gmra.mrb[0].mxu0 %v724
      %v1170 = vpop.f32.mrb[0].mxu0
      %v1171 = vadd.f32 0.0, %v1170
      %v1172 = vpop.f32.mrb[0].mxu0
      %v1173 = vpop.f32.mrb[0].mxu0
      %v1174 = vadd.f32 0.0, %v1173
      %v1175 = vpop.f32.mrb[0].mxu0
      %1176 = vmatprep.mubr.bf16.mxu0 %v760
      %1177 = vmatmul.mubr.bf16.gmra.mrb[0].mxu0 %v728
      %v1178 = vpop.f32.mrb[0].mxu0
      %v1179 = vadd.f32 0.0, %v1178
      %v1180 = vpop.f32.mrb[0].mxu0
      %v1181 = vpop.f32.mrb[0].mxu0
      %v1182 = vadd.f32 0.0, %v1181
      %v1183 = vpop.f32.mrb[0].mxu0
      %1184 = vmatprep.mubr.bf16.mxu0 %v764
      %1185 = vmatmul.mubr.bf16.gmra.mrb[0].mxu0 %v732
      %v1186 = vpop.f32.mrb[0].mxu0
      %v1187 = vadd.f32 0.0, %v1186
      %v1188 = vpop.f32.mrb[0].mxu0
      %v1189 = vpop.f32.mrb[0].mxu0
      %v1190 = vadd.f32 0.0, %v1189
      %v1191 = vpop.f32.mrb[0].mxu0
      %1192 = vmatprep.mubr.bf16.mxu0 %v768
      %1193 = vmatmul.mubr.bf16.gmra.mrb[0].mxu0 %v736
      %v1194 = vpop.f32.mrb[0].mxu0
      %v1195 = vadd.f32 0.0, %v1194
      %v1196 = vpop.f32.mrb[0].mxu0
      %v1197 = vpop.f32.mrb[0].mxu0
      %v1198 = vadd.f32 0.0, %v1197
      %v1199 = vpop.f32.mrb[0].mxu0
      %1200 = vmatprep.mubr.bf16.mxu0 %v772
      %1201 = vmatmul.mubr.bf16.gmra.mrb[0].mxu0 %v740
      %v1202 = vpop.f32.mrb[0].mxu0
      %v1203 = vadd.f32 0.0, %v1202
      %v1204 = vpop.f32.mrb[0].mxu0
      %v1205 = vpop.f32.mrb[0].mxu0
      %v1206 = vadd.f32 0.0, %v1205
      %v1207 = vpop.f32.mrb[0].mxu0
      %1208 = vmatprep.mubr.bf16.mxu0 %v776
      %1209 = vmatmul.mubr.bf16.gmra.mrb[0].mxu0 %v744
      %v1210 = vpop.f32.mrb[0].mxu0
      %v1211 = vadd.f32 0.0, %v1210
      %v1212 = vpop.f32.mrb[0].mxu0
      %v1213 = vpop.f32.mrb[0].mxu0
      %v1214 = vadd.f32 0.0, %v1213
      %v1215 = vpop.f32.mrb[0].mxu0
      %1216 = vmatprep.mubr.bf16.mxu0 %v780
      %1217 = vmatmul.mubr.bf16.gmra.mrb[0].mxu0 %v748
      %v1218 = vpop.f32.mrb[0].mxu0
      %v1219 = vadd.f32 0.0, %v1218
      %v1220 = vpop.f32.mrb[0].mxu0
      %v1221 = vpop.f32.mrb[0].mxu0
      %v1222 = vadd.f32 0.0, %v1221
      %v1223 = vpop.f32.mrb[0].mxu0
      %1224 = vdwg.mxu0
      %1225 = vmatprep.subr.bf16.mxu0 0
      %1226 = vmatpush1.bf16.msra.mxu0 %v1054
      %1227 = vmatprep.subr.bf16.mxu0 0
      %1228 = vmatpush1.bf16.msra.mxu0 %v1055
      %1229 = vmatprep.subr.bf16.mxu0 0
      %1230 = vmatpush1.bf16.msra.mxu0 %v1056
      %1231 = vmatprep.subr.bf16.mxu0 0
      %1232 = vmatpush1.bf16.msra.mxu0 %v1057
      %1233 = vmatprep.subr.bf16.mxu0 0
      %1234 = vmatpush1.bf16.msra.mxu0 %v1058
      %1235 = vmatprep.subr.bf16.mxu0 0
      %1236 = vmatpush1.bf16.msra.mxu0 %v1059
      %1237 = vmatprep.subr.bf16.mxu0 0
      %1238 = vmatpush1.bf16.msra.mxu0 %v1060
      %1239 = vmatprep.subr.bf16.mxu0 0
      %1240 = vmatpush1.bf16.msra.mxu0 %v1061
      %1241 = vmatprep.subr.bf16.mxu0 0
      %1242 = vmatpush1.bf16.msra.mxu0 %v1062
      %1243 = vmatprep.subr.bf16.mxu0 0
      %1244 = vmatpush1.bf16.msra.mxu0 %v1063
      %1245 = vmatprep.subr.bf16.mxu0 0
      %1246 = vmatpush1.bf16.msra.mxu0 %v1064
      %1247 = vmatprep.subr.bf16.mxu0 0
      %1248 = vmatpush1.bf16.msra.mxu0 %v1065
      %1249 = vmatprep.subr.bf16.mxu0 0
      %1250 = vmatpush1.bf16.msra.mxu0 %v1066
      %1251 = vmatprep.subr.bf16.mxu0 0
      %1252 = vmatpush1.bf16.msra.mxu0 %v1067
      %1253 = vmatprep.subr.bf16.mxu0 0
      %1254 = vmatpush1.bf16.msra.mxu0 %v1068
      %1255 = vmatprep.subr.bf16.mxu0 0
      %1256 = vmatpush1.bf16.msra.mxu0 %v1069
      %1257 = vmatprep.mubr.bf16.mxu0 %v728
      %1258 = vmatmul.mubr.bf16.gmra.mrb[0].mxu0 %v784
      %v1259 = vpop.f32.mrb[0].mxu0
      %v1260 = vadd.f32 %v1163, %v1259
      %v1261 = vpop.f32.mrb[0].mxu0
      %v1262 = vpop.f32.mrb[0].mxu0
      %v1263 = vadd.f32 %v1166, %v1262
      %v1264 = vpop.f32.mrb[0].mxu0
      %1265 = vmatprep.mubr.bf16.mxu0 %v732
      %1266 = vmatmul.mubr.bf16.gmra.mrb[0].mxu0 %v788
      %v1267 = vpop.f32.mrb[0].mxu0
      %v1268 = vadd.f32 %v1171, %v1267
      %v1269 = vpop.f32.mrb[0].mxu0
      %v1270 = vpop.f32.mrb[0].mxu0
      %v1271 = vadd.f32 %v1174, %v1270
      %v1272 = vpop.f32.mrb[0].mxu0
      %1273 = vmatprep.mubr.bf16.mxu0 %v736
      %1274 = vmatmul.mubr.bf16.gmra.mrb[0].mxu0 %v792
      %v1275 = vpop.f32.mrb[0].mxu0
      %v1276 = vadd.f32 %v1179, %v1275
      %v1277 = vpop.f32.mrb[0].mxu0
      %v1278 = vpop.f32.mrb[0].mxu0
      %v1279 = vadd.f32 %v1182, %v1278
      %v1280 = vpop.f32.mrb[0].mxu0
      %1281 = vmatprep.mubr.bf16.mxu0 %v740
      %1282 = vmatmul.mubr.bf16.gmra.mrb[0].mxu0 %v796
      %v1283 = vpop.f32.mrb[0].mxu0
      %v1284 = vadd.f32 %v1187, %v1283
      %v1285 = vpop.f32.mrb[0].mxu0
      %v1286 = vpop.f32.mrb[0].mxu0
      %v1287 = vadd.f32 %v1190, %v1286
      %v1288 = vpop.f32.mrb[0].mxu0
      %1289 = vmatprep.mubr.bf16.mxu0 %v744
      %1290 = vmatmul.mubr.bf16.gmra.mrb[0].mxu0 %v800
      %v1291 = vpop.f32.mrb[0].mxu0
      %v1292 = vadd.f32 %v1195, %v1291
      %v1293 = vpop.f32.mrb[0].mxu0
      %v1294 = vpop.f32.mrb[0].mxu0
      %v1295 = vadd.f32 %v1198, %v1294
      %v1296 = vpop.f32.mrb[0].mxu0
      %1297 = vmatprep.mubr.bf16.mxu0 %v748
      %1298 = vmatmul.mubr.bf16.gmra.mrb[0].mxu0 %v804
      %v1299 = vpop.f32.mrb[0].mxu0
      %v1300 = vadd.f32 %v1203, %v1299
      %v1301 = vpop.f32.mrb[0].mxu0
      %v1302 = vpop.f32.mrb[0].mxu0
      %v1303 = vadd.f32 %v1206, %v1302
      %v1304 = vpop.f32.mrb[0].mxu0
      %1305 = vmatprep.mubr.bf16.mxu0 %v816
      %1306 = vmatmul.mubr.bf16.gmra.mrb[0].mxu0 %v808
      %v1307 = vpop.f32.mrb[0].mxu0
      %v1308 = vadd.f32 %v1211, %v1307
      %v1309 = vpop.f32.mrb[0].mxu0
      %v1310 = vpop.f32.mrb[0].mxu0
      %v1311 = vadd.f32 %v1214, %v1310
      %v1312 = vpop.f32.mrb[0].mxu0
      %1313 = vmatprep.mubr.bf16.mxu0 %v820
      %1314 = vmatmul.mubr.bf16.gmra.mrb[0].mxu0 %v812
      %v1315 = vpop.f32.mrb[0].mxu0
      %v1316 = vadd.f32 %v1219, %v1315
      %v1317 = vpop.f32.mrb[0].mxu0
      %v1318 = vpop.f32.mrb[0].mxu0
      %v1319 = vadd.f32 %v1222, %v1318
      %v1320 = vpop.f32.mrb[0].mxu0
      %1321 = vdwg.mxu0
      %1322 = vmatprep.subr.bf16.mxu0 0
      %1323 = vmatpush1.bf16.msra.mxu0 %v1070
      %1324 = vmatprep.subr.bf16.mxu0 0
      %1325 = vmatpush1.bf16.msra.mxu0 %v1071
      %1326 = vmatprep.subr.bf16.mxu0 0
      %1327 = vmatpush1.bf16.msra.mxu0 %v1072
      %1328 = vmatprep.subr.bf16.mxu0 0
      %1329 = vmatpush1.bf16.msra.mxu0 %v1073
      %1330 = vmatprep.subr.bf16.mxu0 0
      %1331 = vmatpush1.bf16.msra.mxu0 0
      %1332 = vmatprep.subr.bf16.mxu0 0
      %1333 = vmatpush1.bf16.msra.mxu0 0
      %1334 = vmatprep.subr.bf16.mxu0 0
      %1335 = vmatpush1.bf16.msra.mxu0 0
      %1336 = vmatprep.subr.bf16.mxu0 0
      %1337 = vmatpush1.bf16.msra.mxu0 0
      %1338 = vmatprep.subr.bf16.mxu0 0
      %1339 = vmatpush1.bf16.msra.mxu0 0
      %1340 = vmatprep.subr.bf16.mxu0 0
      %1341 = vmatpush1.bf16.msra.mxu0 0
      %1342 = vmatprep.subr.bf16.mxu0 0
      %1343 = vmatpush1.bf16.msra.mxu0 0
      %1344 = vmatprep.subr.bf16.mxu0 0
      %1345 = vmatpush1.bf16.msra.mxu0 0
      %1346 = vmatprep.subr.bf16.mxu0 0
      %1347 = vmatpush1.bf16.msra.mxu0 0
      %1348 = vmatprep.subr.bf16.mxu0 0
      %1349 = vmatpush1.bf16.msra.mxu0 0
      %1350 = vmatprep.subr.bf16.mxu0 0
      %1351 = vmatpush1.bf16.msra.mxu0 0
      %1352 = vmatprep.subr.bf16.mxu0 0
      %1353 = vmatpush1.bf16.msra.mxu0 0
      %1354 = vmatprep.mubr.bf16.mxu0 0
      %1355 = vmatmul.mubr.bf16.gmra.mrb[0].mxu0 %v1110
      %v1356 = vpop.f32.mrb[0].mxu0
      %v1357 = vadd.f32 %v1260, %v1356
      %v1358 = vpop.f32.mrb[0].mxu0
      %v1359 = vpop.f32.mrb[0].mxu0
      %v1360 = vadd.f32 %v1263, %v1359
      %v1361 = vpop.f32.mrb[0].mxu0
      %1362 = vmatprep.mubr.bf16.mxu0 0
      %1363 = vmatmul.mubr.bf16.gmra.mrb[0].mxu0 %v1112
      %v1364 = vpop.f32.mrb[0].mxu0
      %v1365 = vadd.f32 %v1268, %v1364
      %v1366 = vpop.f32.mrb[0].mxu0
      %v1367 = vpop.f32.mrb[0].mxu0
      %v1368 = vadd.f32 %v1271, %v1367
      %v1369 = vpop.f32.mrb[0].mxu0
      %1370 = vmatprep.mubr.bf16.mxu0 0
      %1371 = vmatmul.mubr.bf16.gmra.mrb[0].mxu0 %v1114
      %v1372 = vpop.f32.mrb[0].mxu0
      %v1373 = vadd.f32 %v1276, %v1372
      %v1374 = vpop.f32.mrb[0].mxu0
      %v1375 = vpop.f32.mrb[0].mxu0
      %v1376 = vadd.f32 %v1279, %v1375
      %v1377 = vpop.f32.mrb[0].mxu0
      %1378 = vmatprep.mubr.bf16.mxu0 0
      %1379 = vmatmul.mubr.bf16.gmra.mrb[0].mxu0 %v1116
      %v1380 = vpop.f32.mrb[0].mxu0
      %v1381 = vadd.f32 %v1284, %v1380
      %v1382 = vpop.f32.mrb[0].mxu0
      %v1383 = vpop.f32.mrb[0].mxu0
      %v1384 = vadd.f32 %v1287, %v1383
      %v1385 = vpop.f32.mrb[0].mxu0
      %1386 = vmatprep.mubr.bf16.mxu0 0
      %1387 = vmatmul.mubr.bf16.gmra.mrb[0].mxu0 %v1118
      %v1388 = vpop.f32.mrb[0].mxu0
      %v1389 = vadd.f32 %v1292, %v1388
      %v1390 = vpop.f32.mrb[0].mxu0
      %v1391 = vpop.f32.mrb[0].mxu0
      %v1392 = vadd.f32 %v1295, %v1391
      %v1393 = vpop.f32.mrb[0].mxu0
      %1394 = vmatprep.mubr.bf16.mxu0 0
      %1395 = vmatmul.mubr.bf16.gmra.mrb[0].mxu0 %v1120
      %v1396 = vpop.f32.mrb[0].mxu0
      %v1397 = vadd.f32 %v1300, %v1396
      %v1398 = vpop.f32.mrb[0].mxu0
      %v1399 = vpop.f32.mrb[0].mxu0
      %v1400 = vadd.f32 %v1303, %v1399
      %v1401 = vpop.f32.mrb[0].mxu0
      %1402 = vmatprep.mubr.bf16.mxu0 0
      %1403 = vmatmul.mubr.bf16.gmra.mrb[0].mxu0 %v1123
      %v1404 = vpop.f32.mrb[0].mxu0
      %v1405 = vadd.f32 %v1308, %v1404
      %v1406 = vpop.f32.mrb[0].mxu0
      %v1407 = vpop.f32.mrb[0].mxu0
      %v1408 = vadd.f32 %v1311, %v1407
      %v1409 = vpop.f32.mrb[0].mxu0
      %1410 = vmatprep.mubr.bf16.mxu0 0
      %1411 = vmatmul.mubr.bf16.gmra.mrb[0].mxu0 %v1126
      %v1412 = vpop.f32.mrb[0].mxu0
      %v1413 = vadd.f32 %v1316, %v1412
      %v1414 = vpop.f32.mrb[0].mxu0
      %v1415 = vpop.f32.mrb[0].mxu0
      %v1416 = vadd.f32 %v1319, %v1415
      %v1417 = vpop.f32.mrb[0].mxu0
      %1418 = vdwg.mxu0
      %v1419 = vld [vmem:[%s2] sm:$0x1]
      %v1421 = vlaneseq
      %v1422 = vshrl.u32 %v1421, 7
      %v1423 = vsub.s32 0, %v1422
      %v1424 = vrot.slane %v1419, %v1423
      %v1426 = vmul.f32 %v1357, %v1424
      %v1427 = vmul.f32 %v1360, %v1424
      %v1428 = vmul.f32 %v1365, %v1424
      %v1429 = vmul.f32 %v1368, %v1424
      %v1430 = vmul.f32 %v1373, %v1424
      %v1431 = vmul.f32 %v1376, %v1424
      %v1432 = vmul.f32 %v1381, %v1424
      %v1433 = vmul.f32 %v1384, %v1424
      %v1434 = vmul.f32 %v1389, %v1424
      %v1435 = vmul.f32 %v1392, %v1424
      %v1436 = vmul.f32 %v1397, %v1424
      %v1437 = vmul.f32 %v1400, %v1424
      %v1438 = vmul.f32 %v1405, %v1424
      %v1439 = vmul.f32 %v1408, %v1424
      %v1440 = vmul.f32 %v1413, %v1424
      %v1441 = vmul.f32 %v1416, %v1424
      %v1442 = vld [vmem:[%s3] sm:$0x1]
      %v1444 = vlaneseq
      %v1445 = vshrl.u32 %v1444, 7
      %v1446 = vsub.s32 0, %v1445
      %v1447 = vrot.slane %v1442, %v1446
      %v1449 = vadd.f32 %v1426, %v1447
      %v1450 = vadd.f32 %v1427, %v1447
      %v1451 = vadd.f32 %v1428, %v1447
      %v1452 = vadd.f32 %v1429, %v1447
      %v1453 = vadd.f32 %v1430, %v1447
      %v1454 = vadd.f32 %v1431, %v1447
      %v1455 = vadd.f32 %v1432, %v1447
      %v1456 = vadd.f32 %v1433, %v1447
      %v1457 = vadd.f32 %v1434, %v1447
      %v1458 = vadd.f32 %v1435, %v1447
      %v1459 = vadd.f32 %v1436, %v1447
      %v1460 = vadd.f32 %v1437, %v1447
      %v1461 = vadd.f32 %v1438, %v1447
      %v1462 = vadd.f32 %v1439, %v1447
      %v1463 = vadd.f32 %v1440, %v1447
      %v1464 = vadd.f32 %v1441, %v1447
      %v1465 = vmax.f32 %v1449, 0.0
      %v1466 = vmax.f32 %v1450, 0.0
      %v1467 = vmax.f32 %v1451, 0.0
      %v1468 = vmax.f32 %v1452, 0.0
      %v1469 = vmax.f32 %v1453, 0.0
      %v1470 = vmax.f32 %v1454, 0.0
      %v1471 = vmax.f32 %v1455, 0.0
      %v1472 = vmax.f32 %v1456, 0.0
      %v1473 = vmax.f32 %v1457, 0.0
      %v1474 = vmax.f32 %v1458, 0.0
      %v1475 = vmax.f32 %v1459, 0.0
      %v1476 = vmax.f32 %v1460, 0.0
      %v1477 = vmax.f32 %v1461, 0.0
      %v1478 = vmax.f32 %v1462, 0.0
      %v1479 = vmax.f32 %v1463, 0.0
      %v1480 = vmax.f32 %v1464, 0.0
      %v1481 = vmin.f32 %v1465, 20.0
      %v1482 = vmin.f32 %v1466, 20.0
      %v1483 = vmin.f32 %v1467, 20.0
      %v1484 = vmin.f32 %v1468, 20.0
      %v1485 = vmin.f32 %v1469, 20.0
      %v1486 = vmin.f32 %v1470, 20.0
      %v1487 = vmin.f32 %v1471, 20.0
      %v1488 = vmin.f32 %v1472, 20.0
      %v1489 = vmin.f32 %v1473, 20.0
      %v1490 = vmin.f32 %v1474, 20.0
      %v1491 = vmin.f32 %v1475, 20.0
      %v1492 = vmin.f32 %v1476, 20.0
      %v1493 = vmin.f32 %v1477, 20.0
      %v1494 = vmin.f32 %v1478, 20.0
      %v1495 = vmin.f32 %v1479, 20.0
      %v1496 = vmin.f32 %v1480, 20.0
      %v1497 = vsel %vm717, %v1481, -inf
      %v1498 = vsel %vm717, %v1483, -inf
      %v1499 = vmax.f32 %v1497, %v1498
      %v1500 = vsel %vm717, %v1482, -inf
      %v1501 = vsel %vm717, %v1484, -inf
      %v1502 = vmax.f32 %v1500, %v1501
      %v1503 = vsel %vm717, %v1485, -inf
      %v1504 = vsel %vm717, %v1487, -inf
      %v1505 = vmax.f32 %v1503, %v1504
      %v1506 = vsel %vm717, %v1486, -inf
      %v1507 = vsel %vm717, %v1488, -inf
      %v1508 = vmax.f32 %v1506, %v1507
      %v1509 = vsel %vm717, %v1489, -inf
      %v1510 = vsel %vm717, %v1491, -inf
      %v1511 = vmax.f32 %v1509, %v1510
      %v1512 = vsel %vm717, %v1490, -inf
      %v1513 = vsel %vm717, %v1492, -inf
      %v1514 = vmax.f32 %v1512, %v1513
      %v1515 = vsel %vm717, %v1493, -inf
      %v1516 = vsel %vm717, %v1495, -inf
      %v1517 = vmax.f32 %v1515, %v1516
      %v1518 = vsel %vm717, %v1494, -inf
      %v1519 = vsel %vm717, %v1496, -inf
      %v1520 = vmax.f32 %v1518, %v1519
      %v1529 = vcombine.high %v1499, %v1499
      %v1531 = vunpack.c.l.s4 1983009808
      %v1532 = vunpack.c.0.s8 %v1531
      %v1533 = vlaneseq
      %v1534 = vshrl.u32 %v1533, 7
      %v1535 = vsub.s32 %v1532, %v1534
      %v1536 = vrot.slane %v1499, %v1535
      %v1538 = vunpack.c.l.s4 1983009808
      %v1539 = vunpack.c.0.s8 %v1538
      %v1540 = vlaneseq
      %v1541 = vshrl.u32 %v1540, 7
      %v1542 = vsub.s32 %v1539, %v1541
      %v1543 = vrot.slane %v1529, %v1542
      %v1544 = vcombine.high %v1536, %v1536
      %v1545 = vcombine.high %v1543, %v1543
      %v1546 = vcombine.high %v1502, %v1502
      %v1548 = vunpack.c.l.s4 1983009808
      %v1549 = vunpack.c.0.s8 %v1548
      %v1550 = vlaneseq
      %v1551 = vshrl.u32 %v1550, 7
      %v1552 = vsub.s32 %v1549, %v1551
      %v1553 = vrot.slane %v1502, %v1552
      %v1555 = vunpack.c.l.s4 1983009808
      %v1556 = vunpack.c.0.s8 %v1555
      %v1557 = vlaneseq
      %v1558 = vshrl.u32 %v1557, 7
      %v1559 = vsub.s32 %v1556, %v1558
      %v1560 = vrot.slane %v1546, %v1559
      %v1561 = vcombine.high %v1553, %v1553
      %v1562 = vcombine.high %v1560, %v1560
      %v1563 = vcombine.high %v1505, %v1505
      %v1565 = vunpack.c.l.s4 1983009808
      %v1566 = vunpack.c.0.s8 %v1565
      %v1567 = vlaneseq
      %v1568 = vshrl.u32 %v1567, 7
      %v1569 = vsub.s32 %v1566, %v1568
      %v1570 = vrot.slane %v1505, %v1569
      %v1572 = vunpack.c.l.s4 1983009808
      %v1573 = vunpack.c.0.s8 %v1572
      %v1574 = vlaneseq
      %v1575 = vshrl.u32 %v1574, 7
      %v1576 = vsub.s32 %v1573, %v1575
      %v1577 = vrot.slane %v1563, %v1576
      %v1578 = vcombine.high %v1570, %v1570
      %v1579 = vcombine.high %v1577, %v1577
      %v1580 = vcombine.high %v1508, %v1508
      %v1582 = vunpack.c.l.s4 1983009808
      %v1583 = vunpack.c.0.s8 %v1582
      %v1584 = vlaneseq
      %v1585 = vshrl.u32 %v1584, 7
      %v1586 = vsub.s32 %v1583, %v1585
      %v1587 = vrot.slane %v1508, %v1586
      %v1589 = vunpack.c.l.s4 1983009808
      %v1590 = vunpack.c.0.s8 %v1589
      %v1591 = vlaneseq
      %v1592 = vshrl.u32 %v1591, 7
      %v1593 = vsub.s32 %v1590, %v1592
      %v1594 = vrot.slane %v1580, %v1593
      %v1595 = vcombine.high %v1587, %v1587
      %v1596 = vcombine.high %v1594, %v1594
      %v1597 = vcombine.high %v1511, %v1511
      %v1599 = vunpack.c.l.s4 1983009808
      %v1600 = vunpack.c.0.s8 %v1599
      %v1601 = vlaneseq
      %v1602 = vshrl.u32 %v1601, 7
      %v1603 = vsub.s32 %v1600, %v1602
      %v1604 = vrot.slane %v1511, %v1603
      %v1606 = vunpack.c.l.s4 1983009808
      %v1607 = vunpack.c.0.s8 %v1606
      %v1608 = vlaneseq
      %v1609 = vshrl.u32 %v1608, 7
      %v1610 = vsub.s32 %v1607, %v1609
      %v1611 = vrot.slane %v1597, %v1610
      %v1612 = vcombine.high %v1604, %v1604
      %v1613 = vcombine.high %v1611, %v1611
      %v1614 = vcombine.high %v1514, %v1514
      %v1616 = vunpack.c.l.s4 1983009808
      %v1617 = vunpack.c.0.s8 %v1616
      %v1618 = vlaneseq
      %v1619 = vshrl.u32 %v1618, 7
      %v1620 = vsub.s32 %v1617, %v1619
      %v1621 = vrot.slane %v1514, %v1620
      %v1623 = vunpack.c.l.s4 1983009808
      %v1624 = vunpack.c.0.s8 %v1623
      %v1625 = vlaneseq
      %v1626 = vshrl.u32 %v1625, 7
      %v1627 = vsub.s32 %v1624, %v1626
      %v1628 = vrot.slane %v1614, %v1627
      %v1629 = vcombine.high %v1621, %v1621
      %v1630 = vcombine.high %v1628, %v1628
      %v1631 = vcombine.high %v1517, %v1517
      %v1633 = vunpack.c.l.s4 1983009808
      %v1634 = vunpack.c.0.s8 %v1633
      %v1635 = vlaneseq
      %v1636 = vshrl.u32 %v1635, 7
      %v1637 = vsub.s32 %v1634, %v1636
      %v1638 = vrot.slane %v1517, %v1637
      %v1640 = vunpack.c.l.s4 1983009808
      %v1641 = vunpack.c.0.s8 %v1640
      %v1642 = vlaneseq
      %v1643 = vshrl.u32 %v1642, 7
      %v1644 = vsub.s32 %v1641, %v1643
      %v1645 = vrot.slane %v1631, %v1644
      %v1646 = vcombine.high %v1638, %v1638
      %v1647 = vcombine.high %v1645, %v1645
      %v1648 = vcombine.high %v1520, %v1520
      %v1650 = vunpack.c.l.s4 1983009808
      %v1651 = vunpack.c.0.s8 %v1650
      %v1652 = vlaneseq
      %v1653 = vshrl.u32 %v1652, 7
      %v1654 = vsub.s32 %v1651, %v1653
      %v1655 = vrot.slane %v1520, %v1654
      %v1657 = vunpack.c.l.s4 1983009808
      %v1658 = vunpack.c.0.s8 %v1657
      %v1659 = vlaneseq
      %v1660 = vshrl.u32 %v1659, 7
      %v1661 = vsub.s32 %v1658, %v1660
      %v1662 = vrot.slane %v1648, %v1661
      %v1663 = vcombine.high %v1655, %v1655
      %v1664 = vcombine.high %v1662, %v1662
      %vm1697 = vcmask 517120
      %v1698 = vsel %vm1697, %v1536, -inf
      %v1699 = vrot.slane %v1698, 4
      %v1700 = vmax.f32 %v1698, %v1699
      %v1701 = vrot.slane %v1700, 2
      %v1702 = vmax.f32 %v1700, %v1701
      %v1703 = vrot.slane %v1702, 1
      %v1704 = vmax.f32 %v1702, %v1703
      %v1705 = vsel %vm1697, %v1544, -inf
      %v1706 = vrot.slane %v1705, 4
      %v1707 = vmax.f32 %v1705, %v1706
      %v1708 = vrot.slane %v1707, 2
      %v1709 = vmax.f32 %v1707, %v1708
      %v1710 = vrot.slane %v1709, 1
      %v1711 = vmax.f32 %v1709, %v1710
      %v1712 = vsel %vm1697, %v1543, -inf
      %v1713 = vrot.slane %v1712, 4
      %v1714 = vmax.f32 %v1712, %v1713
      %v1715 = vrot.slane %v1714, 2
      %v1716 = vmax.f32 %v1714, %v1715
      %v1717 = vrot.slane %v1716, 1
      %v1718 = vmax.f32 %v1716, %v1717
      %v1719 = vsel %vm1697, %v1545, -inf
      %v1720 = vrot.slane %v1719, 4
      %v1721 = vmax.f32 %v1719, %v1720
      %v1722 = vrot.slane %v1721, 2
      %v1723 = vmax.f32 %v1721, %v1722
      %v1724 = vrot.slane %v1723, 1
      %v1725 = vmax.f32 %v1723, %v1724
      %v1726 = vsel %vm1697, %v1553, -inf
      %v1727 = vrot.slane %v1726, 4
      %v1728 = vmax.f32 %v1726, %v1727
      %v1729 = vrot.slane %v1728, 2
      %v1730 = vmax.f32 %v1728, %v1729
      %v1731 = vrot.slane %v1730, 1
      %v1732 = vmax.f32 %v1730, %v1731
      %v1733 = vsel %vm1697, %v1561, -inf
      %v1734 = vrot.slane %v1733, 4
      %v1735 = vmax.f32 %v1733, %v1734
      %v1736 = vrot.slane %v1735, 2
      %v1737 = vmax.f32 %v1735, %v1736
      %v1738 = vrot.slane %v1737, 1
      %v1739 = vmax.f32 %v1737, %v1738
      %v1740 = vsel %vm1697, %v1560, -inf
      %v1741 = vrot.slane %v1740, 4
      %v1742 = vmax.f32 %v1740, %v1741
      %v1743 = vrot.slane %v1742, 2
      %v1744 = vmax.f32 %v1742, %v1743
      %v1745 = vrot.slane %v1744, 1
      %v1746 = vmax.f32 %v1744, %v1745
      %v1747 = vsel %vm1697, %v1562, -inf
      %v1748 = vrot.slane %v1747, 4
      %v1749 = vmax.f32 %v1747, %v1748
      %v1750 = vrot.slane %v1749, 2
      %v1751 = vmax.f32 %v1749, %v1750
      %v1752 = vrot.slane %v1751, 1
      %v1753 = vmax.f32 %v1751, %v1752
      %v1754 = vsel %vm1697, %v1570, -inf
      %v1755 = vrot.slane %v1754, 4
      %v1756 = vmax.f32 %v1754, %v1755
      %v1757 = vrot.slane %v1756, 2
      %v1758 = vmax.f32 %v1756, %v1757
      %v1759 = vrot.slane %v1758, 1
      %v1760 = vmax.f32 %v1758, %v1759
      %v1761 = vsel %vm1697, %v1578, -inf
      %v1762 = vrot.slane %v1761, 4
      %v1763 = vmax.f32 %v1761, %v1762
      %v1764 = vrot.slane %v1763, 2
      %v1765 = vmax.f32 %v1763, %v1764
      %v1766 = vrot.slane %v1765, 1
      %v1767 = vmax.f32 %v1765, %v1766
      %v1768 = vsel %vm1697, %v1577, -inf
      %v1769 = vrot.slane %v1768, 4
      %v1770 = vmax.f32 %v1768, %v1769
      %v1771 = vrot.slane %v1770, 2
      %v1772 = vmax.f32 %v1770, %v1771
      %v1773 = vrot.slane %v1772, 1
      %v1774 = vmax.f32 %v1772, %v1773
      %v1775 = vsel %vm1697, %v1579, -inf
      %v1776 = vrot.slane %v1775, 4
      %v1777 = vmax.f32 %v1775, %v1776
      %v1778 = vrot.slane %v1777, 2
      %v1779 = vmax.f32 %v1777, %v1778
      %v1780 = vrot.slane %v1779, 1
      %v1781 = vmax.f32 %v1779, %v1780
      %v1782 = vsel %vm1697, %v1587, -inf
      %v1783 = vrot.slane %v1782, 4
      %v1784 = vmax.f32 %v1782, %v1783
      %v1785 = vrot.slane %v1784, 2
      %v1786 = vmax.f32 %v1784, %v1785
      %v1787 = vrot.slane %v1786, 1
      %v1788 = vmax.f32 %v1786, %v1787
      %v1789 = vsel %vm1697, %v1595, -inf
      %v1790 = vrot.slane %v1789, 4
      %v1791 = vmax.f32 %v1789, %v1790
      %v1792 = vrot.slane %v1791, 2
      %v1793 = vmax.f32 %v1791, %v1792
      %v1794 = vrot.slane %v1793, 1
      %v1795 = vmax.f32 %v1793, %v1794
      %v1796 = vsel %vm1697, %v1594, -inf
      %v1797 = vrot.slane %v1796, 4
      %v1798 = vmax.f32 %v1796, %v1797
      %v1799 = vrot.slane %v1798, 2
      %v1800 = vmax.f32 %v1798, %v1799
      %v1801 = vrot.slane %v1800, 1
      %v1802 = vmax.f32 %v1800, %v1801
      %v1803 = vsel %vm1697, %v1596, -inf
      %v1804 = vrot.slane %v1803, 4
      %v1805 = vmax.f32 %v1803, %v1804
      %v1806 = vrot.slane %v1805, 2
      %v1807 = vmax.f32 %v1805, %v1806
      %v1808 = vrot.slane %v1807, 1
      %v1809 = vmax.f32 %v1807, %v1808
      %v1810 = vsel %vm1697, %v1604, -inf
      %v1811 = vrot.slane %v1810, 4
      %v1812 = vmax.f32 %v1810, %v1811
      %v1813 = vrot.slane %v1812, 2
      %v1814 = vmax.f32 %v1812, %v1813
      %v1815 = vrot.slane %v1814, 1
      %v1816 = vmax.f32 %v1814, %v1815
      %v1817 = vsel %vm1697, %v1612, -inf
      %v1818 = vrot.slane %v1817, 4
      %v1819 = vmax.f32 %v1817, %v1818
      %v1820 = vrot.slane %v1819, 2
      %v1821 = vmax.f32 %v1819, %v1820
      %v1822 = vrot.slane %v1821, 1
      %v1823 = vmax.f32 %v1821, %v1822
      %v1824 = vsel %vm1697, %v1611, -inf
      %v1825 = vrot.slane %v1824, 4
      %v1826 = vmax.f32 %v1824, %v1825
      %v1827 = vrot.slane %v1826, 2
      %v1828 = vmax.f32 %v1826, %v1827
      %v1829 = vrot.slane %v1828, 1
      %v1830 = vmax.f32 %v1828, %v1829
      %v1831 = vsel %vm1697, %v1613, -inf
      %v1832 = vrot.slane %v1831, 4
      %v1833 = vmax.f32 %v1831, %v1832
      %v1834 = vrot.slane %v1833, 2
      %v1835 = vmax.f32 %v1833, %v1834
      %v1836 = vrot.slane %v1835, 1
      %v1837 = vmax.f32 %v1835, %v1836
      %v1838 = vsel %vm1697, %v1621, -inf
      %v1839 = vrot.slane %v1838, 4
      %v1840 = vmax.f32 %v1838, %v1839
      %v1841 = vrot.slane %v1840, 2
      %v1842 = vmax.f32 %v1840, %v1841
      %v1843 = vrot.slane %v1842, 1
      %v1844 = vmax.f32 %v1842, %v1843
      %v1845 = vsel %vm1697, %v1629, -inf
      %v1846 = vrot.slane %v1845, 4
      %v1847 = vmax.f32 %v1845, %v1846
      %v1848 = vrot.slane %v1847, 2
      %v1849 = vmax.f32 %v1847, %v1848
      %v1850 = vrot.slane %v1849, 1
      %v1851 = vmax.f32 %v1849, %v1850
      %v1852 = vsel %vm1697, %v1628, -inf
      %v1853 = vrot.slane %v1852, 4
      %v1854 = vmax.f32 %v1852, %v1853
      %v1855 = vrot.slane %v1854, 2
      %v1856 = vmax.f32 %v1854, %v1855
      %v1857 = vrot.slane %v1856, 1
      %v1858 = vmax.f32 %v1856, %v1857
      %v1859 = vsel %vm1697, %v1630, -inf
      %v1860 = vrot.slane %v1859, 4
      %v1861 = vmax.f32 %v1859, %v1860
      %v1862 = vrot.slane %v1861, 2
      %v1863 = vmax.f32 %v1861, %v1862
      %v1864 = vrot.slane %v1863, 1
      %v1865 = vmax.f32 %v1863, %v1864
      %v1866 = vsel %vm1697, %v1638, -inf
      %v1867 = vrot.slane %v1866, 4
      %v1868 = vmax.f32 %v1866, %v1867
      %v1869 = vrot.slane %v1868, 2
      %v1870 = vmax.f32 %v1868, %v1869
      %v1871 = vrot.slane %v1870, 1
      %v1872 = vmax.f32 %v1870, %v1871
      %v1873 = vsel %vm1697, %v1646, -inf
      %v1874 = vrot.slane %v1873, 4
      %v1875 = vmax.f32 %v1873, %v1874
      %v1876 = vrot.slane %v1875, 2
      %v1877 = vmax.f32 %v1875, %v1876
      %v1878 = vrot.slane %v1877, 1
      %v1879 = vmax.f32 %v1877, %v1878
      %v1880 = vsel %vm1697, %v1645, -inf
      %v1881 = vrot.slane %v1880, 4
      %v1882 = vmax.f32 %v1880, %v1881
      %v1883 = vrot.slane %v1882, 2
      %v1884 = vmax.f32 %v1882, %v1883
      %v1885 = vrot.slane %v1884, 1
      %v1886 = vmax.f32 %v1884, %v1885
      %v1887 = vsel %vm1697, %v1647, -inf
      %v1888 = vrot.slane %v1887, 4
      %v1889 = vmax.f32 %v1887, %v1888
      %v1890 = vrot.slane %v1889, 2
      %v1891 = vmax.f32 %v1889, %v1890
      %v1892 = vrot.slane %v1891, 1
      %v1893 = vmax.f32 %v1891, %v1892
      %v1894 = vsel %vm1697, %v1655, -inf
      %v1895 = vrot.slane %v1894, 4
      %v1896 = vmax.f32 %v1894, %v1895
      %v1897 = vrot.slane %v1896, 2
      %v1898 = vmax.f32 %v1896, %v1897
      %v1899 = vrot.slane %v1898, 1
      %v1900 = vmax.f32 %v1898, %v1899
      %v1901 = vsel %vm1697, %v1663, -inf
      %v1902 = vrot.slane %v1901, 4
      %v1903 = vmax.f32 %v1901, %v1902
      %v1904 = vrot.slane %v1903, 2
      %v1905 = vmax.f32 %v1903, %v1904
      %v1906 = vrot.slane %v1905, 1
      %v1907 = vmax.f32 %v1905, %v1906
      %v1908 = vsel %vm1697, %v1662, -inf
      %v1909 = vrot.slane %v1908, 4
      %v1910 = vmax.f32 %v1908, %v1909
      %v1911 = vrot.slane %v1910, 2
      %v1912 = vmax.f32 %v1910, %v1911
      %v1913 = vrot.slane %v1912, 1
      %v1914 = vmax.f32 %v1912, %v1913
      %v1915 = vsel %vm1697, %v1664, -inf
      %v1916 = vrot.slane %v1915, 4
      %v1917 = vmax.f32 %v1915, %v1916
      %v1918 = vrot.slane %v1917, 2
      %v1919 = vmax.f32 %v1917, %v1918
      %v1920 = vrot.slane %v1919, 1
      %v1921 = vmax.f32 %v1919, %v1920
      %v1922 = vpack.c.bf16 %v1704, %v1704
      %v1923 = vpack.c.bf16 %v1711, %v1711
      %v1924 = vpack.c.bf16 %v1718, %v1718
      %v1925 = vpack.c.bf16 %v1725, %v1725
      %v1926 = vpack.c.bf16 %v1732, %v1732
      %v1927 = vpack.c.bf16 %v1739, %v1739
      %v1928 = vpack.c.bf16 %v1746, %v1746
      %v1929 = vpack.c.bf16 %v1753, %v1753
      %v1930 = vpack.c.bf16 %v1760, %v1760
      %v1931 = vpack.c.bf16 %v1767, %v1767
      %v1932 = vpack.c.bf16 %v1774, %v1774
      %v1933 = vpack.c.bf16 %v1781, %v1781
      %v1934 = vpack.c.bf16 %v1788, %v1788
      %v1935 = vpack.c.bf16 %v1795, %v1795
      %v1936 = vpack.c.bf16 %v1802, %v1802
      %v1937 = vpack.c.bf16 %v1809, %v1809
      %v1938 = vpack.c.bf16 %v1816, %v1816
      %v1939 = vpack.c.bf16 %v1823, %v1823
      %v1940 = vpack.c.bf16 %v1830, %v1830
      %v1941 = vpack.c.bf16 %v1837, %v1837
      %v1942 = vpack.c.bf16 %v1844, %v1844
      %v1943 = vpack.c.bf16 %v1851, %v1851
      %v1944 = vpack.c.bf16 %v1858, %v1858
      %v1945 = vpack.c.bf16 %v1865, %v1865
      %v1946 = vpack.c.bf16 %v1872, %v1872
      %v1947 = vpack.c.bf16 %v1879, %v1879
      %v1948 = vpack.c.bf16 %v1886, %v1886
      %v1949 = vpack.c.bf16 %v1893, %v1893
      %v1950 = vpack.c.bf16 %v1900, %v1900
      %v1951 = vpack.c.bf16 %v1907, %v1907
      %v1952 = vpack.c.bf16 %v1914, %v1914
      %v1953 = vpack.c.bf16 %v1921, %v1921
      %v1986 = vunpack.c.l.b16 %v1922
      %v1987 = vunpack.c.l.b16 %v1923
      %v1988 = vunpack.c.l.b16 %v1924
      %v1989 = vunpack.c.l.b16 %v1925
      %v1990 = vunpack.c.l.b16 %v1926
      %v1991 = vunpack.c.l.b16 %v1927
      %v1992 = vunpack.c.l.b16 %v1928
      %v1993 = vunpack.c.l.b16 %v1929
      %v1994 = vunpack.c.l.b16 %v1930
      %v1995 = vunpack.c.l.b16 %v1931
      %v1996 = vunpack.c.l.b16 %v1932
      %v1997 = vunpack.c.l.b16 %v1933
      %v1998 = vunpack.c.l.b16 %v1934
      %v1999 = vunpack.c.l.b16 %v1935
      %v2000 = vunpack.c.l.b16 %v1936
      %v2001 = vunpack.c.l.b16 %v1937
      %v2002 = vunpack.c.l.b16 %v1938
      %v2003 = vunpack.c.l.b16 %v1939
      %v2004 = vunpack.c.l.b16 %v1940
      %v2005 = vunpack.c.l.b16 %v1941
      %v2006 = vunpack.c.l.b16 %v1942
      %v2007 = vunpack.c.l.b16 %v1943
      %v2008 = vunpack.c.l.b16 %v1944
      %v2009 = vunpack.c.l.b16 %v1945
      %v2010 = vunpack.c.l.b16 %v1946
      %v2011 = vunpack.c.l.b16 %v1947
      %v2012 = vunpack.c.l.b16 %v1948
      %v2013 = vunpack.c.l.b16 %v1949
      %v2014 = vunpack.c.l.b16 %v1950
      %v2015 = vunpack.c.l.b16 %v1951
      %v2016 = vunpack.c.l.b16 %v1952
      %v2017 = vunpack.c.l.b16 %v1953
      %v2018 = vpack.c.b16 %v1986, %v1986
      %v2019 = vpack.c.b16 %v1987, %v1987
      %v2020 = vpack.c.b16 %v1988, %v1988
      %v2021 = vpack.c.b16 %v1989, %v1989
      %v2022 = vpack.c.b16 %v1990, %v1990
      %v2023 = vpack.c.b16 %v1991, %v1991
      %v2024 = vpack.c.b16 %v1992, %v1992
      %v2025 = vpack.c.b16 %v1993, %v1993
      %v2026 = vpack.c.b16 %v1994, %v1994
      %v2027 = vpack.c.b16 %v1995, %v1995
      %v2028 = vpack.c.b16 %v1996, %v1996
      %v2029 = vpack.c.b16 %v1997, %v1997
      %v2030 = vpack.c.b16 %v1998, %v1998
      %v2031 = vpack.c.b16 %v1999, %v1999
      %v2032 = vpack.c.b16 %v2000, %v2000
      %v2033 = vpack.c.b16 %v2001, %v2001
      %v2034 = vpack.c.b16 %v2002, %v2002
      %v2035 = vpack.c.b16 %v2003, %v2003
      %v2036 = vpack.c.b16 %v2004, %v2004
      %v2037 = vpack.c.b16 %v2005, %v2005
      %v2038 = vpack.c.b16 %v2006, %v2006
      %v2039 = vpack.c.b16 %v2007, %v2007
      %v2040 = vpack.c.b16 %v2008, %v2008
      %v2041 = vpack.c.b16 %v2009, %v2009
      %v2042 = vpack.c.b16 %v2010, %v2010
      %v2043 = vpack.c.b16 %v2011, %v2011
      %v2044 = vpack.c.b16 %v2012, %v2012
      %v2045 = vpack.c.b16 %v2013, %v2013
      %v2046 = vpack.c.b16 %v2014, %v2014
      %v2047 = vpack.c.b16 %v2015, %v2015
      %v2048 = vpack.c.b16 %v2016, %v2016
      %v2049 = vpack.c.b16 %v2017, %v2017
      %v2050 = vunpack.c.l.b16 %v2018
      %v2051 = vunpack.c.l.b16 %v2019
      %v2052 = vunpack.c.l.b16 %v2020
      %v2053 = vunpack.c.l.b16 %v2021
      %v2054 = vunpack.c.l.b16 %v2022
      %v2055 = vunpack.c.l.b16 %v2023
      %v2056 = vunpack.c.l.b16 %v2024
      %v2057 = vunpack.c.l.b16 %v2025
      %v2058 = vunpack.c.l.b16 %v2026
      %v2059 = vunpack.c.l.b16 %v2027
      %v2060 = vunpack.c.l.b16 %v2028
      %v2061 = vunpack.c.l.b16 %v2029
      %v2062 = vunpack.c.l.b16 %v2030
      %v2063 = vunpack.c.l.b16 %v2031
      %v2064 = vunpack.c.l.b16 %v2032
      %v2065 = vunpack.c.l.b16 %v2033
      %v2066 = vunpack.c.l.b16 %v2034
      %v2067 = vunpack.c.l.b16 %v2035
      %v2068 = vunpack.c.l.b16 %v2036
      %v2069 = vunpack.c.l.b16 %v2037
      %v2070 = vunpack.c.l.b16 %v2038
      %v2071 = vunpack.c.l.b16 %v2039
      %v2072 = vunpack.c.l.b16 %v2040
      %v2073 = vunpack.c.l.b16 %v2041
      %v2074 = vunpack.c.l.b16 %v2042
      %v2075 = vunpack.c.l.b16 %v2043
      %v2076 = vunpack.c.l.b16 %v2044
      %v2077 = vunpack.c.l.b16 %v2045
      %v2078 = vunpack.c.l.b16 %v2046
      %v2079 = vunpack.c.l.b16 %v2047
      %v2080 = vunpack.c.l.b16 %v2048
      %v2081 = vunpack.c.l.b16 %v2049
      %vm2082 = vcmask 1041409
      %v2083 = vsel %vm2082, %v2051, %v2050
      %vm2084 = vcmask 1042434
      %v2085 = vsel %vm2084, %v2052, %v2083
      %vm2086 = vcmask 1043459
      %v2087 = vsel %vm2086, %v2053, %v2085
      %vm2088 = vcmask 1044484
      %v2089 = vsel %vm2088, %v2054, %v2087
      %vm2090 = vcmask 1045509
      %v2091 = vsel %vm2090, %v2055, %v2089
      %vm2092 = vcmask 1046534
      %v2093 = vsel %vm2092, %v2056, %v2091
      %vm2094 = vcmask 1047559
      %v2095 = vsel %vm2094, %v2057, %v2093
      %v2096 = vsel %vm2082, %v2059, %v2058
      %v2097 = vsel %vm2084, %v2060, %v2096
      %v2098 = vsel %vm2086, %v2061, %v2097
      %v2099 = vsel %vm2088, %v2062, %v2098
      %v2100 = vsel %vm2090, %v2063, %v2099
      %v2101 = vsel %vm2092, %v2064, %v2100
      %v2102 = vsel %vm2094, %v2065, %v2101
      %v2103 = vsel %vm2082, %v2067, %v2066
      %v2104 = vsel %vm2084, %v2068, %v2103
      %v2105 = vsel %vm2086, %v2069, %v2104
      %v2106 = vsel %vm2088, %v2070, %v2105
      %v2107 = vsel %vm2090, %v2071, %v2106
      %v2108 = vsel %vm2092, %v2072, %v2107
      %v2109 = vsel %vm2094, %v2073, %v2108
      %v2110 = vsel %vm2082, %v2075, %v2074
      %v2111 = vsel %vm2084, %v2076, %v2110
      %v2112 = vsel %vm2086, %v2077, %v2111
      %v2113 = vsel %vm2088, %v2078, %v2112
      %v2114 = vsel %vm2090, %v2079, %v2113
      %v2115 = vsel %vm2092, %v2080, %v2114
      %v2116 = vsel %vm2094, %v2081, %v2115
      %v2117 = vpack.c.b16 %v2095, %v2095
      %v2118 = vpack.c.b16 %v2102, %v2102
      %v2119 = vpack.c.b16 %v2109, %v2109
      %v2120 = vpack.c.b16 %v2116, %v2116
      %vm2125 = vcmask 519168
      %2126 = vst.msk [vmem:[%s197] sm:$0xf] %vm2125, %v2117
      %2127 = vst.msk [vmem:[%s197 + $0x4] sm:$0xf] %vm2125, %v2118
      %2128 = vst.msk [vmem:[%s197 + $0x8] sm:$0xf] %vm2125, %v2119
      %2129 = vst.msk [vmem:[%s197 + $0xc] sm:$0xf] %vm2125, %v2120
      %p2130 = scmp.lt.s32.totalorder %s15, 1
      %s2131 = scalar_select %p2130, %s15, 1
      %s2132 = smul.addr %s2131, 4
      %s2133 = smul.addr %s2132, 4
      %s2134 = scalar_lea.vmem %s4, %s2133
      // Predicated region
      $region37: #{listener_forward.8} parent=35 // pred_check
        %p2135 = pneg %p122
      $region38: #{listener_forward.8} parent=35 // pred_check_branch
        %2137 = sbr.rel (%p2135) target = $region40
      $region39: #{listener_forward.8} parent=35 // pred_region
        _
      $region40: #{listener_forward.8} parent=35 // pred_fallthru
        _
    $region36: #{listener_forward.8} parent=5 // pred_fallthru
      _
    %p2138 = scmp.le.s32.totalorder 2, %s10
    // Predicated region
    $region41: #{listener_forward.8} parent=5 // pred_check
      %p2139 = pneg %p2138
    $region42: #{listener_forward.8} parent=5 // pred_check_branch
      %2141 = sbr.rel (%p2139) target = $region44
    $region43: #{listener_forward.8} parent=5 // pred_region
      %s2142 = ssub.s32 %s10, 2
      // Predicated region
      $region45: #{listener_forward.8} parent=43 // pred_check
        %p2143 = pneg %p128
      $region46: #{listener_forward.8} parent=43 // pred_check_branch
        %2145 = sbr.rel (%p2143) target = $region48
      $region47: #{listener_forward.8} parent=43 // pred_region
        %p2146 = scmp.lt.s32.totalorder %s16, 1
        %s2147 = scalar_select %p2146, %s16, 1
        %s2148 = smul.addr %s2147, 4
        %s2149 = smul.addr %s2148, 4
        %s2150 = scalar_lea.vmem %s4, %s2149
      $region48: #{listener_forward.8} parent=43 // pred_fallthru
        _
    $region44: #{listener_forward.8} parent=5 // pred_fallthru
      _
  $region6: #{listener_forward.8} parent=0 // loop_footer
    %s14 = sadd.s32 1, %s10
  $region7: #{listener_forward.8} parent=0 // loop_footer_branch
    %9 = sbr.rel target = $region3
  $region8: #{listener_forward.8} parent=0 // loop_exit
    _

// kernel: listener_forward.10
$region0: #{listener_forward.10}
  #allocation0 [shape = 'u32[]', space=smem, size = 0x4, offset = 0x4, fixed_abs, tag = 'smem constant byte address 0x4 - core index']
  #allocation1 [shape = 'u32[144,128]{1,0:T(1,128)}', space=vmem, size = 0x12000, scoped, tag = 'internal scratch']
  %s0 = inlined_call_operand.vmem [shape: bf16[2,6,10,128], index: 0, kind: input, shape index: {}]
  %s1 = inlined_call_operand.vmem [shape: bf16[1152,128], index: 1, kind: input, shape index: {}]
  %s2 = inlined_call_operand.vmem [shape: f32[1,128], index: 2, kind: input, shape index: {}]
  %s3 = inlined_call_operand.vmem [shape: f32[1,128], index: 3, kind: input, shape index: {}]
  %s4 = inlined_call_operand.vmem [shape: bf16[2,2,4,128], index: 4, kind: output, shape index: {}]
  %s5 = sld [smem:[#allocation0]]
  $region49: #{listener_forward.10} parent=0
    _
  %s7 = ssub.s32 1, %s5
  %s8 = scalar_select 0, %s7, %s5
  loop: start=0, step=1, limit=4
  $region2: #{listener_forward.10} parent=0 // loop_pre_header
    _
  $region3: #{listener_forward.10} parent=0 // loop_header
    %s10 = sphi 0, %s14
    %p11 = scmp.ge.s32.totalorder %s10, 4
    %s20 = sphi 0, %s22
    %s23 = sphi 0, %s20
    %s24 = sphi 0, %s23
    %s40 = sphi 0, %s24
    %s44 = sphi 0, %s44
    %s46 = sphi 0, %s44
    %s47 = sphi 0, %s46
    %s61 = sphi 0, %s47
    %s65 = sphi 0, %s65
    %s67 = sphi 0, %s65
    %s68 = sphi 0, %s67
    %s82 = sphi 0, %s68
    %s86 = sphi 0, %s86
    %s88 = sphi 0, %s86
    %s89 = sphi 0, %s88
    %s103 = sphi 0, %s89
    %s109 = sphi 0, %s111
    %s112 = sphi 0, %s109
    %s113 = sphi 0, %s112
    %s129 = sphi 0, %s113
  $region4: #{listener_forward.10} parent=0 // loop_header_branch
    %13 = sbr.rel (%p11) target = $region8
  $region5: #{listener_forward.10} parent=0 // loop_body
    %s15 = ssub.s32 %s10, 1
    %s16 = ssub.s32 %s10, 2
    %s17 = sadd.s32 %s10, 1
    %s18 = ssub.s32 %s10, %s17
    %p19 = scmp.eq.s32.totalorder %s18, 0
    %s21 = sadd.s32 %s20, 1
    %s22 = scalar_select %p19, %s20, %s21
    %p25 = pneg %p19
    %p26 = scmp.eq.s32.totalorder %s10, 1
    %p27 = por %p25, %p26
    %p28 = scmp.ne.s32.totalorder %s20, %s23
    %p29 = scmp.eq.s32.totalorder %s10, 0
    %p30 = por %p28, %p29
    %p31 = scmp.ne.s32.totalorder %s20, %s23
    %p32 = scmp.eq.s32.totalorder %s15, 1
    %p33 = por %p31, %p32
    %p34 = scmp.ne.s32.totalorder %s23, %s24
    %p35 = scmp.eq.s32.totalorder %s15, 0
    %p36 = por %p34, %p35
    %p37 = scmp.ne.s32.totalorder %s23, %s24
    %p38 = scmp.eq.s32.totalorder %s16, 1
    %p39 = por %p37, %p38
    %p41 = scmp.ne.s32.totalorder %s24, %s40
    %p42 = scmp.eq.s32.totalorder %s16, 0
    %p43 = por %p41, %p42
    %s45 = sadd.s32 %s44, 1
    %p48 = scmp.eq.s32.totalorder %s10, 1
    %p49 = scmp.ne.s32.totalorder %s44, %s46
    %p50 = scmp.eq.s32.totalorder %s10, 0
    %p51 = por %p49, %p50
    %p52 = scmp.ne.s32.totalorder %s44, %s46
    %p53 = scmp.eq.s32.totalorder %s15, 1
    %p54 = por %p52, %p53
    %p55 = scmp.ne.s32.totalorder %s46, %s47
    %p56 = scmp.eq.s32.totalorder %s15, 0
    %p57 = por %p55, %p56
    %p58 = scmp.ne.s32.totalorder %s46, %s47
    %p59 = scmp.eq.s32.totalorder %s16, 1
    %p60 = por %p58, %p59
    %p62 = scmp.ne.s32.totalorder %s47, %s61
    %p63 = scmp.eq.s32.totalorder %s16, 0
    %p64 = por %p62, %p63
    %s66 = sadd.s32 %s65, 1
    %p69 = scmp.eq.s32.totalorder %s10, 1
    %p70 = scmp.ne.s32.totalorder %s65, %s67
    %p71 = scmp.eq.s32.totalorder %s10, 0
    %p72 = por %p70, %p71
    %p73 = scmp.ne.s32.totalorder %s65, %s67
    %p74 = scmp.eq.s32.totalorder %s15, 1
    %p75 = por %p73, %p74
    %p76 = scmp.ne.s32.totalorder %s67, %s68
    %p77 = scmp.eq.s32.totalorder %s15, 0
    %p78 = por %p76, %p77
    %p79 = scmp.ne.s32.totalorder %s67, %s68
    %p80 = scmp.eq.s32.totalorder %s16, 1
    %p81 = por %p79, %p80
    %p83 = scmp.ne.s32.totalorder %s68, %s82
    %p84 = scmp.eq.s32.totalorder %s16, 0
    %p85 = por %p83, %p84
    %s87 = sadd.s32 %s86, 1
    %p90 = scmp.eq.s32.totalorder %s10, 1
    %p91 = scmp.ne.s32.totalorder %s86, %s88
    %p92 = scmp.eq.s32.totalorder %s10, 0
    %p93 = por %p91, %p92
    %p94 = scmp.ne.s32.totalorder %s86, %s88
    %p95 = scmp.eq.s32.totalorder %s15, 1
    %p96 = por %p94, %p95
    %p97 = scmp.ne.s32.totalorder %s88, %s89
    %p98 = scmp.eq.s32.totalorder %s15, 0
    %p99 = por %p97, %p98
    %p100 = scmp.ne.s32.totalorder %s88, %s89
    %p101 = scmp.eq.s32.totalorder %s16, 1
    %p102 = por %p100, %p101
    %p104 = scmp.ne.s32.totalorder %s89, %s103
    %p105 = scmp.eq.s32.totalorder %s16, 0
    %p106 = por %p104, %p105
    %s107 = ssub.s32 %s10, %s17
    %p108 = scmp.eq.s32.totalorder %s107, 0
    %s110 = sadd.s32 %s109, 1
    %s111 = scalar_select %p108, %s109, %s110
    %p114 = pneg %p108
    %p115 = scmp.eq.s32.totalorder %s10, 1
    %p116 = por %p114, %p115
    %p117 = scmp.ne.s32.totalorder %s109, %s112
    %p118 = scmp.eq.s32.totalorder %s10, 0
    %p119 = por %p117, %p118
    %p120 = scmp.ne.s32.totalorder %s109, %s112
    %p121 = scmp.eq.s32.totalorder %s15, 1
    %p122 = por %p120, %p121
    %p123 = scmp.ne.s32.totalorder %s112, %s113
    %p124 = scmp.eq.s32.totalorder %s15, 0
    %p125 = por %p123, %p124
    %p126 = scmp.ne.s32.totalorder %s112, %s113
    %p127 = scmp.eq.s32.totalorder %s16, 1
    %p128 = por %p126, %p127
    %p130 = scmp.ne.s32.totalorder %s113, %s129
    %p131 = scmp.eq.s32.totalorder %s16, 0
    %p132 = por %p130, %p131
    %p133 = scmp.le.s32.totalorder 1, %s10
    %p134 = scmp.lt.s32.totalorder %s10, 3
    %p135 = pnand %p133, %p134
    %p136 = pneg %p135
    // Predicated region
    $region9: #{listener_forward.10} parent=5 // pred_check
      _
    $region10: #{listener_forward.10} parent=5 // pred_check_branch
      %138 = sbr.rel (%p135) target = $region12
    $region11: #{listener_forward.10} parent=5 // pred_region
      %s139 = ssub.s32 %s10, 1
      // Predicated region
      $region13: #{listener_forward.10} parent=11 // pred_check
        %p140 = pneg %p57
      $region14: #{listener_forward.10} parent=11 // pred_check_branch
        %142 = sbr.rel (%p140) target = $region16
      $region15: #{listener_forward.10} parent=11 // pred_region
        _
      $region16: #{listener_forward.10} parent=11 // pred_fallthru
        _
      // Predicated region
      $region17: #{listener_forward.10} parent=11 // pred_check
        %p143 = pneg %p78
      $region18: #{listener_forward.10} parent=11 // pred_check_branch
        %145 = sbr.rel (%p143) target = $region20
      $region19: #{listener_forward.10} parent=11 // pred_region
        _
      $region20: #{listener_forward.10} parent=11 // pred_fallthru
        _
      // Predicated region
      $region21: #{listener_forward.10} parent=11 // pred_check
        %p146 = pneg %p99
      $region22: #{listener_forward.10} parent=11 // pred_check_branch
        %148 = sbr.rel (%p146) target = $region24
      $region23: #{listener_forward.10} parent=11 // pred_region
        _
      $region24: #{listener_forward.10} parent=11 // pred_fallthru
        _
    $region12: #{listener_forward.10} parent=5 // pred_fallthru
      _
    %p149 = scmp.lt.s32.totalorder %s10, 2
    // Predicated region
    $region25: #{listener_forward.10} parent=5 // pred_check
      %p150 = pneg %p149
    $region26: #{listener_forward.10} parent=5 // pred_check_branch
      %152 = sbr.rel (%p150) target = $region28
    $region27: #{listener_forward.10} parent=5 // pred_region
      // Predicated region
      $region29: #{listener_forward.10} parent=27 // pred_check
        %p153 = pneg %p30
      $region30: #{listener_forward.10} parent=27 // pred_check_branch
        %155 = sbr.rel (%p153) target = $region32
      $region31: #{listener_forward.10} parent=27 // pred_region
        %p156 = scmp.lt.s32.totalorder %s10, 1
        %s157 = scalar_select %p156, %s10, 1
        %s158 = smul.addr %s157, 12
        %s159 = smul.addr %s158, 4
        %s160 = scalar_lea.vmem %s0, %s159
      $region32: #{listener_forward.10} parent=27 // pred_fallthru
        _
    $region28: #{listener_forward.10} parent=5 // pred_fallthru
      _
    %p161 = scmp.le.s32.totalorder 1, %s10
    %p162 = scmp.lt.s32.totalorder %s10, 3
    %p163 = pnand %p161, %p162
    %p164 = pneg %p163
    // Predicated region
    $region33: #{listener_forward.10} parent=5 // pred_check
      _
    $region34: #{listener_forward.10} parent=5 // pred_check_branch
      %166 = sbr.rel (%p163) target = $region36
    $region35: #{listener_forward.10} parent=5 // pred_region
      %s167 = ssub.s32 %s10, 1
      %p168 = scmp.lt.s32.totalorder %s15, 1
      %s169 = scalar_select %p168, %s15, 1
      %s170 = smul.addr %s169, 12
      %s171 = smul.addr %s170, 4
      %s172 = scalar_lea.vmem %s0, %s171
      %p173 = pneg %p36
      %p174 = pneg %p33
      %p175 = pneg %p57
      %p176 = pneg %p54
      %p177 = pneg %p78
      %p178 = pneg %p75
      %p179 = pneg %p99
      %p180 = pneg %p96
      %p181 = pneg %p125
      %p182 = pneg %p122
      %p183 = scmp.lt.s32.totalorder %s15, 1
      %s184 = scalar_select %p183, %s15, 1
      %s185 = smul.addr %s184, 2
      %s186 = smul.addr %s185, 2
      %s187 = scalar_lea.vmem %s4, %s186
      %p188 = scmp.lt.s32.totalorder %s15, 1
      %s189 = scalar_select %p188, %s15, 1
      %s190 = smul.addr %s189, 12
      %s191 = smul.addr %s190, 4
      %s192 = scalar_lea.vmem %s0, %s191
      %p193 = scmp.lt.s32.totalorder %s15, 1
      %s194 = scalar_select %p193, %s15, 1
      %s195 = smul.addr %s194, 2
      %s196 = smul.addr %s195, 2
      %s197 = scalar_lea.vmem %s4, %s196
      %v199 = vld [vmem:[%s192] sm:$0xf]
      %v200 = vld [vmem:[%s192 + $0x4] sm:$0x1]
      %v201 = vld [vmem:[%s192 + $0x8] sm:$0xf]
      %v202 = vld [vmem:[%s192 + $0xc] sm:$0x1]
      %v203 = vld [vmem:[%s192 + $0x10] sm:$0xf]
      %v204 = vld [vmem:[%s192 + $0x14] sm:$0x1]
      %v205 = vld [vmem:[%s192 + $0x18] sm:$0xf]
      %v206 = vld [vmem:[%s192 + $0x1c] sm:$0x1]
      %v207 = vld [vmem:[%s192 + $0x20] sm:$0xf]
      %v208 = vld [vmem:[%s192 + $0x24] sm:$0x1]
      %v209 = vld [vmem:[%s192 + $0x28] sm:$0xf]
      %v210 = vld [vmem:[%s192 + $0x2c] sm:$0x1]
      %vm211 = vsmask.f32 3328
      %vm212 = vsmask.f32 7440
      %vm213 = vmor %vm211, %vm212
      %v215 = vshrl.u32 %v199, 16
      %v217 = vrot.slane %v215, 4
      %v218 = vshll.u32 %v199, 16
      %v220 = vrot.slane %v218, 5
      %v221 = vor.u32 %v217, %v220
      %v222 = vrot.slane %v221, 4
      %v224 = vshll.u32 %v200, 16
      %v226 = vrot.slane %v224, 5
      %v227 = vsel %vm213, %v222, %v226
      %v229 = vshrl.u32 %v201, 16
      %v231 = vrot.slane %v229, 4
      %v232 = vshll.u32 %v201, 16
      %v234 = vrot.slane %v232, 5
      %v235 = vor.u32 %v231, %v234
      %v236 = vrot.slane %v235, 4
      %v238 = vshll.u32 %v202, 16
      %v240 = vrot.slane %v238, 5
      %v241 = vsel %vm213, %v236, %v240
      %v243 = vshrl.u32 %v203, 16
      %v245 = vrot.slane %v243, 4
      %v246 = vshll.u32 %v203, 16
      %v248 = vrot.slane %v246, 5
      %v249 = vor.u32 %v245, %v248
      %v250 = vrot.slane %v249, 4
      %v252 = vshll.u32 %v204, 16
      %v254 = vrot.slane %v252, 5
      %v255 = vsel %vm213, %v250, %v254
      %v257 = vshrl.u32 %v205, 16
      %v259 = vrot.slane %v257, 4
      %v260 = vshll.u32 %v205, 16
      %v262 = vrot.slane %v260, 5
      %v263 = vor.u32 %v259, %v262
      %v264 = vrot.slane %v263, 4
      %v266 = vshll.u32 %v206, 16
      %v268 = vrot.slane %v266, 5
      %v269 = vsel %vm213, %v264, %v268
      %vm278 = vcmask 1042432
      %vm279 = vcmask 1046532
      %vm280 = vmor %vm278, %vm279
      %v281 = vrot.slane %v199, 5
      %v282 = vrot.slane %v281, 4
      %v283 = vrot.slane %v200, 5
      %v284 = vsel %vm280, %v282, %v283
      %v285 = vrot.slane %v201, 5
      %v286 = vrot.slane %v285, 4
      %v287 = vrot.slane %v202, 5
      %v288 = vsel %vm280, %v286, %v287
      %v289 = vrot.slane %v203, 5
      %v290 = vrot.slane %v289, 4
      %v291 = vrot.slane %v204, 5
      %v292 = vsel %vm280, %v290, %v291
      %v293 = vrot.slane %v205, 5
      %v294 = vrot.slane %v293, 4
      %v295 = vrot.slane %v206, 5
      %v296 = vsel %vm280, %v294, %v295
      %v298 = vshrl.u32 %v207, 16
      %v300 = vrot.slane %v298, 4
      %v301 = vshll.u32 %v207, 16
      %v303 = vrot.slane %v301, 5
      %v304 = vor.u32 %v300, %v303
      %v305 = vrot.slane %v304, 4
      %v307 = vshll.u32 %v208, 16
      %v309 = vrot.slane %v307, 5
      %v310 = vsel %vm213, %v305, %v309
      %v313 = vrot.slane %v207, 5
      %v314 = vrot.slane %v313, 4
      %v315 = vrot.slane %v208, 5
      %v316 = vsel %vm280, %v314, %v315
      %v318 = vshrl.u32 %v209, 16
      %v320 = vrot.slane %v318, 4
      %v321 = vshll.u32 %v209, 16
      %v323 = vrot.slane %v321, 5
      %v324 = vor.u32 %v320, %v323
      %v325 = vrot.slane %v324, 4
      %v327 = vshll.u32 %v210, 16
      %v329 = vrot.slane %v327, 5
      %v330 = vsel %vm213, %v325, %v329
      %v333 = vrot.slane %v209, 5
      %v334 = vrot.slane %v333, 4
      %v335 = vrot.slane %v210, 5
      %v336 = vsel %vm280, %v334, %v335
      %v337 = vunpack.c.l.b16 %v199
      %v338 = vunpack.c.l.b16 %v201
      %v339 = vunpack.c.l.b16 %v203
      %v340 = vunpack.c.l.b16 %v205
      %v341 = vpack.c.b16 %v338, %v337
      %v342 = vpack.c.b16 %v340, %v339
      %v345 = vunpack.c.l.b16 %v227
      %v346 = vunpack.c.l.b16 %v241
      %v347 = vunpack.c.l.b16 %v255
      %v348 = vunpack.c.l.b16 %v269
      %v349 = vpack.c.b16 %v346, %v345
      %v350 = vpack.c.b16 %v348, %v347
      %v353 = vunpack.c.l.b16 %v284
      %v354 = vunpack.c.l.b16 %v288
      %v355 = vunpack.c.l.b16 %v292
      %v356 = vunpack.c.l.b16 %v296
      %v357 = vpack.c.b16 %v354, %v353
      %v358 = vpack.c.b16 %v356, %v355
      %v361 = vunpack.c.l.b16 %v207
      %v362 = vpack.c.b16 %v339, %v338
      %v363 = vpack.c.b16 %v361, %v340
      %v366 = vunpack.c.l.b16 %v310
      %v367 = vpack.c.b16 %v347, %v346
      %v368 = vpack.c.b16 %v366, %v348
      %v371 = vunpack.c.l.b16 %v316
      %v372 = vpack.c.b16 %v355, %v354
      %v373 = vpack.c.b16 %v371, %v356
      %v376 = vunpack.c.l.b16 %v209
      %v377 = vpack.c.b16 %v376, %v361
      %v379 = vunpack.c.l.b16 %v330
      %v380 = vpack.c.b16 %v379, %v366
      %v382 = vunpack.c.l.b16 %v336
      %v383 = vpack.c.b16 %v382, %v371
      %v385 = vld [vmem:[%s1] sm:$0xf]
      %v386 = vld [vmem:[%s1 + $0x4] sm:$0xf]
      %v387 = vld [vmem:[%s1 + $0x8] sm:$0xf]
      %v388 = vld [vmem:[%s1 + $0xc] sm:$0xf]
      %v389 = vld [vmem:[%s1 + $0x10] sm:$0xf]
      %v390 = vld [vmem:[%s1 + $0x14] sm:$0xf]
      %v391 = vld [vmem:[%s1 + $0x18] sm:$0xf]
      %v392 = vld [vmem:[%s1 + $0x1c] sm:$0xf]
      %v393 = vld [vmem:[%s1 + $0x20] sm:$0xf]
      %v394 = vld [vmem:[%s1 + $0x24] sm:$0xf]
      %v395 = vld [vmem:[%s1 + $0x28] sm:$0xf]
      %v396 = vld [vmem:[%s1 + $0x2c] sm:$0xf]
      %v397 = vld [vmem:[%s1 + $0x30] sm:$0xf]
      %v398 = vld [vmem:[%s1 + $0x34] sm:$0xf]
      %v399 = vld [vmem:[%s1 + $0x38] sm:$0xf]
      %v400 = vld [vmem:[%s1 + $0x3c] sm:$0xf]
      %v401 = vld [vmem:[%s1 + $0x40] sm:$0xf]
      %v402 = vld [vmem:[%s1 + $0x44] sm:$0xf]
      %v403 = vld [vmem:[%s1 + $0x48] sm:$0xf]
      %v404 = vld [vmem:[%s1 + $0x4c] sm:$0xf]
      %v405 = vld [vmem:[%s1 + $0x50] sm:$0xf]
      %v406 = vld [vmem:[%s1 + $0x54] sm:$0xf]
      %v407 = vld [vmem:[%s1 + $0x58] sm:$0xf]
      %v408 = vld [vmem:[%s1 + $0x5c] sm:$0xf]
      %v409 = vld [vmem:[%s1 + $0x60] sm:$0xf]
      %v410 = vld [vmem:[%s1 + $0x64] sm:$0xf]
      %v411 = vld [vmem:[%s1 + $0x68] sm:$0xf]
      %v412 = vld [vmem:[%s1 + $0x6c] sm:$0xf]
      %v413 = vld [vmem:[%s1 + $0x70] sm:$0xf]
      %v414 = vld [vmem:[%s1 + $0x74] sm:$0xf]
      %v415 = vld [vmem:[%s1 + $0x78] sm:$0xf]
      %v416 = vld [vmem:[%s1 + $0x7c] sm:$0xf]
      %v417 = vld [vmem:[%s1 + $0x80] sm:$0xf]
      %v418 = vld [vmem:[%s1 + $0x84] sm:$0xf]
      %v419 = vld [vmem:[%s1 + $0x88] sm:$0xf]
      %v420 = vld [vmem:[%s1 + $0x8c] sm:$0xf]
      %v421 = vld [vmem:[%s1 + $0x90] sm:$0xf]
      %v422 = vld [vmem:[%s1 + $0x94] sm:$0xf]
      %v423 = vld [vmem:[%s1 + $0x98] sm:$0xf]
      %v424 = vld [vmem:[%s1 + $0x9c] sm:$0xf]
      %v425 = vld [vmem:[%s1 + $0xa0] sm:$0xf]
      %v426 = vld [vmem:[%s1 + $0xa4] sm:$0xf]
      %v427 = vld [vmem:[%s1 + $0xa8] sm:$0xf]
      %v428 = vld [vmem:[%s1 + $0xac] sm:$0xf]
      %v429 = vld [vmem:[%s1 + $0xb0] sm:$0xf]
      %v430 = vld [vmem:[%s1 + $0xb4] sm:$0xf]
      %v431 = vld [vmem:[%s1 + $0xb8] sm:$0xf]
      %v432 = vld [vmem:[%s1 + $0xbc] sm:$0xf]
      %v433 = vld [vmem:[%s1 + $0xc0] sm:$0xf]
      %v434 = vld [vmem:[%s1 + $0xc4] sm:$0xf]
      %v435 = vld [vmem:[%s1 + $0xc8] sm:$0xf]
      %v436 = vld [vmem:[%s1 + $0xcc] sm:$0xf]
      %v437 = vld [vmem:[%s1 + $0xd0] sm:$0xf]
      %v438 = vld [vmem:[%s1 + $0xd4] sm:$0xf]
      %v439 = vld [vmem:[%s1 + $0xd8] sm:$0xf]
      %v440 = vld [vmem:[%s1 + $0xdc] sm:$0xf]
      %v441 = vld [vmem:[%s1 + $0xe0] sm:$0xf]
      %v442 = vld [vmem:[%s1 + $0xe4] sm:$0xf]
      %v443 = vld [vmem:[%s1 + $0xe8] sm:$0xf]
      %v444 = vld [vmem:[%s1 + $0xec] sm:$0xf]
      %v445 = vld [vmem:[%s1 + $0xf0] sm:$0xf]
      %v446 = vld [vmem:[%s1 + $0xf4] sm:$0xf]
      %v447 = vld [vmem:[%s1 + $0xf8] sm:$0xf]
      %v448 = vld [vmem:[%s1 + $0xfc] sm:$0xf]
      %v449 = vld [vmem:[%s1 + $0x100] sm:$0xf]
      %v450 = vld [vmem:[%s1 + $0x104] sm:$0xf]
      %v451 = vld [vmem:[%s1 + $0x108] sm:$0xf]
      %v452 = vld [vmem:[%s1 + $0x10c] sm:$0xf]
      %v453 = vld [vmem:[%s1 + $0x110] sm:$0xf]
      %v454 = vld [vmem:[%s1 + $0x114] sm:$0xf]
      %v455 = vld [vmem:[%s1 + $0x118] sm:$0xf]
      %v456 = vld [vmem:[%s1 + $0x11c] sm:$0xf]
      %v457 = vld [vmem:[%s1 + $0x120] sm:$0xf]
      %v458 = vld [vmem:[%s1 + $0x124] sm:$0xf]
      %v459 = vld [vmem:[%s1 + $0x128] sm:$0xf]
      %v460 = vld [vmem:[%s1 + $0x12c] sm:$0xf]
      %v461 = vld [vmem:[%s1 + $0x130] sm:$0xf]
      %v462 = vld [vmem:[%s1 + $0x134] sm:$0xf]
      %v463 = vld [vmem:[%s1 + $0x138] sm:$0xf]
      %v464 = vld [vmem:[%s1 + $0x13c] sm:$0xf]
      %v465 = vld [vmem:[%s1 + $0x140] sm:$0xf]
      %v466 = vld [vmem:[%s1 + $0x144] sm:$0xf]
      %v467 = vld [vmem:[%s1 + $0x148] sm:$0xf]
      %v468 = vld [vmem:[%s1 + $0x14c] sm:$0xf]
      %v469 = vld [vmem:[%s1 + $0x150] sm:$0xf]
      %v470 = vld [vmem:[%s1 + $0x154] sm:$0xf]
      %v471 = vld [vmem:[%s1 + $0x158] sm:$0xf]
      %v472 = vld [vmem:[%s1 + $0x15c] sm:$0xf]
      %v473 = vld [vmem:[%s1 + $0x160] sm:$0xf]
      %v474 = vld [vmem:[%s1 + $0x164] sm:$0xf]
      %v475 = vld [vmem:[%s1 + $0x168] sm:$0xf]
      %v476 = vld [vmem:[%s1 + $0x16c] sm:$0xf]
      %v477 = vld [vmem:[%s1 + $0x170] sm:$0xf]
      %v478 = vld [vmem:[%s1 + $0x174] sm:$0xf]
      %v479 = vld [vmem:[%s1 + $0x178] sm:$0xf]
      %v480 = vld [vmem:[%s1 + $0x17c] sm:$0xf]
      %v481 = vld [vmem:[%s1 + $0x180] sm:$0xf]
      %v482 = vld [vmem:[%s1 + $0x184] sm:$0xf]
      %v483 = vld [vmem:[%s1 + $0x188] sm:$0xf]
      %v484 = vld [vmem:[%s1 + $0x18c] sm:$0xf]
      %v485 = vld [vmem:[%s1 + $0x190] sm:$0xf]
      %v486 = vld [vmem:[%s1 + $0x194] sm:$0xf]
      %v487 = vld [vmem:[%s1 + $0x198] sm:$0xf]
      %v488 = vld [vmem:[%s1 + $0x19c] sm:$0xf]
      %v489 = vld [vmem:[%s1 + $0x1a0] sm:$0xf]
      %v490 = vld [vmem:[%s1 + $0x1a4] sm:$0xf]
      %v491 = vld [vmem:[%s1 + $0x1a8] sm:$0xf]
      %v492 = vld [vmem:[%s1 + $0x1ac] sm:$0xf]
      %v493 = vld [vmem:[%s1 + $0x1b0] sm:$0xf]
      %v494 = vld [vmem:[%s1 + $0x1b4] sm:$0xf]
      %v495 = vld [vmem:[%s1 + $0x1b8] sm:$0xf]
      %v496 = vld [vmem:[%s1 + $0x1bc] sm:$0xf]
      %v497 = vld [vmem:[%s1 + $0x1c0] sm:$0xf]
      %v498 = vld [vmem:[%s1 + $0x1c4] sm:$0xf]
      %v499 = vld [vmem:[%s1 + $0x1c8] sm:$0xf]
      %v500 = vld [vmem:[%s1 + $0x1cc] sm:$0xf]
      %v501 = vld [vmem:[%s1 + $0x1d0] sm:$0xf]
      %v502 = vld [vmem:[%s1 + $0x1d4] sm:$0xf]
      %v503 = vld [vmem:[%s1 + $0x1d8] sm:$0xf]
      %v504 = vld [vmem:[%s1 + $0x1dc] sm:$0xf]
      %v505 = vld [vmem:[%s1 + $0x1e0] sm:$0xf]
      %v506 = vld [vmem:[%s1 + $0x1e4] sm:$0xf]
      %v507 = vld [vmem:[%s1 + $0x1e8] sm:$0xf]
      %v508 = vld [vmem:[%s1 + $0x1ec] sm:$0xf]
      %v509 = vld [vmem:[%s1 + $0x1f0] sm:$0xf]
      %v510 = vld [vmem:[%s1 + $0x1f4] sm:$0xf]
      %v511 = vld [vmem:[%s1 + $0x1f8] sm:$0xf]
      %v512 = vld [vmem:[%s1 + $0x1fc] sm:$0xf]
      %v513 = vld [vmem:[%s1 + $0x200] sm:$0xf]
      %v514 = vld [vmem:[%s1 + $0x204] sm:$0xf]
      %v515 = vld [vmem:[%s1 + $0x208] sm:$0xf]
      %v516 = vld [vmem:[%s1 + $0x20c] sm:$0xf]
      %v517 = vld [vmem:[%s1 + $0x210] sm:$0xf]
      %v518 = vld [vmem:[%s1 + $0x214] sm:$0xf]
      %v519 = vld [vmem:[%s1 + $0x218] sm:$0xf]
      %v520 = vld [vmem:[%s1 + $0x21c] sm:$0xf]
      %v521 = vld [vmem:[%s1 + $0x220] sm:$0xf]
      %v522 = vld [vmem:[%s1 + $0x224] sm:$0xf]
      %v523 = vld [vmem:[%s1 + $0x228] sm:$0xf]
      %v524 = vld [vmem:[%s1 + $0x22c] sm:$0xf]
      %v525 = vld [vmem:[%s1 + $0x230] sm:$0xf]
      %v526 = vld [vmem:[%s1 + $0x234] sm:$0xf]
      %v527 = vld [vmem:[%s1 + $0x238] sm:$0xf]
      %v528 = vld [vmem:[%s1 + $0x23c] sm:$0xf]
      %v673 = vunpack.c.l.b16 %v385
      %v674 = vunpack.c.l.b16 %v386
      %v675 = vunpack.c.l.b16 %v387
      %v676 = vunpack.c.l.b16 %v388
      %v677 = vunpack.c.l.b16 %v389
      %v678 = vunpack.c.l.b16 %v390
      %v679 = vunpack.c.l.b16 %v391
      %v680 = vunpack.c.l.b16 %v392
      %v681 = vunpack.c.l.b16 %v393
      %v682 = vunpack.c.l.b16 %v394
      %v683 = vunpack.c.l.b16 %v395
      %v684 = vunpack.c.l.b16 %v396
      %v685 = vunpack.c.l.b16 %v397
      %v686 = vunpack.c.l.b16 %v398
      %v687 = vunpack.c.l.b16 %v399
      %v688 = vunpack.c.l.b16 %v400
      %v689 = vunpack.c.l.b16 %v401
      %v690 = vunpack.c.l.b16 %v402
      %v691 = vunpack.c.l.b16 %v403
      %v692 = vunpack.c.l.b16 %v404
      %v693 = vunpack.c.l.b16 %v405
      %v694 = vunpack.c.l.b16 %v406
      %v695 = vunpack.c.l.b16 %v407
      %v696 = vunpack.c.l.b16 %v408
      %v697 = vunpack.c.l.b16 %v409
      %v698 = vunpack.c.l.b16 %v410
      %v699 = vunpack.c.l.b16 %v411
      %v700 = vunpack.c.l.b16 %v412
      %v701 = vunpack.c.l.b16 %v413
      %v702 = vunpack.c.l.b16 %v414
      %v703 = vunpack.c.l.b16 %v415
      %v704 = vunpack.c.l.b16 %v416
      %v705 = vunpack.c.l.b16 %v417
      %v706 = vunpack.c.l.b16 %v418
      %v707 = vunpack.c.l.b16 %v419
      %v708 = vunpack.c.l.b16 %v420
      %v709 = vunpack.c.l.b16 %v421
      %v710 = vunpack.c.l.b16 %v422
      %v711 = vunpack.c.l.b16 %v423
      %v712 = vunpack.c.l.b16 %v424
      %v713 = vunpack.c.l.b16 %v425
      %v714 = vunpack.c.l.b16 %v426
      %v715 = vunpack.c.l.b16 %v427
      %v716 = vunpack.c.l.b16 %v428
      %v717 = vunpack.c.l.b16 %v429
      %v718 = vunpack.c.l.b16 %v430
      %v719 = vunpack.c.l.b16 %v431
      %v720 = vunpack.c.l.b16 %v432
      %v721 = vunpack.c.l.b16 %v433
      %v722 = vunpack.c.l.b16 %v434
      %v723 = vunpack.c.l.b16 %v435
      %v724 = vunpack.c.l.b16 %v436
      %v725 = vunpack.c.l.b16 %v437
      %v726 = vunpack.c.l.b16 %v438
      %v727 = vunpack.c.l.b16 %v439
      %v728 = vunpack.c.l.b16 %v440
      %v729 = vunpack.c.l.b16 %v441
      %v730 = vunpack.c.l.b16 %v442
      %v731 = vunpack.c.l.b16 %v443
      %v732 = vunpack.c.l.b16 %v444
      %v733 = vunpack.c.l.b16 %v445
      %v734 = vunpack.c.l.b16 %v446
      %v735 = vunpack.c.l.b16 %v447
      %v736 = vunpack.c.l.b16 %v448
      %v737 = vunpack.c.l.b16 %v449
      %v738 = vunpack.c.l.b16 %v450
      %v739 = vunpack.c.l.b16 %v451
      %v740 = vunpack.c.l.b16 %v452
      %v741 = vunpack.c.l.b16 %v453
      %v742 = vunpack.c.l.b16 %v454
      %v743 = vunpack.c.l.b16 %v455
      %v744 = vunpack.c.l.b16 %v456
      %v745 = vunpack.c.l.b16 %v457
      %v746 = vunpack.c.l.b16 %v458
      %v747 = vunpack.c.l.b16 %v459
      %v748 = vunpack.c.l.b16 %v460
      %v749 = vunpack.c.l.b16 %v461
      %v750 = vunpack.c.l.b16 %v462
      %v751 = vunpack.c.l.b16 %v463
      %v752 = vunpack.c.l.b16 %v464
      %v753 = vunpack.c.l.b16 %v465
      %v754 = vunpack.c.l.b16 %v466
      %v755 = vunpack.c.l.b16 %v467
      %v756 = vunpack.c.l.b16 %v468
      %v757 = vunpack.c.l.b16 %v469
      %v758 = vunpack.c.l.b16 %v470
      %v759 = vunpack.c.l.b16 %v471
      %v760 = vunpack.c.l.b16 %v472
      %v761 = vunpack.c.l.b16 %v473
      %v762 = vunpack.c.l.b16 %v474
      %v763 = vunpack.c.l.b16 %v475
      %v764 = vunpack.c.l.b16 %v476
      %v765 = vunpack.c.l.b16 %v477
      %v766 = vunpack.c.l.b16 %v478
      %v767 = vunpack.c.l.b16 %v479
      %v768 = vunpack.c.l.b16 %v480
      %v769 = vunpack.c.l.b16 %v481
      %v770 = vunpack.c.l.b16 %v482
      %v771 = vunpack.c.l.b16 %v483
      %v772 = vunpack.c.l.b16 %v484
      %v773 = vunpack.c.l.b16 %v485
      %v774 = vunpack.c.l.b16 %v486
      %v775 = vunpack.c.l.b16 %v487
      %v776 = vunpack.c.l.b16 %v488
      %v777 = vunpack.c.l.b16 %v489
      %v778 = vunpack.c.l.b16 %v490
      %v779 = vunpack.c.l.b16 %v491
      %v780 = vunpack.c.l.b16 %v492
      %v781 = vunpack.c.l.b16 %v493
      %v782 = vunpack.c.l.b16 %v494
      %v783 = vunpack.c.l.b16 %v495
      %v784 = vunpack.c.l.b16 %v496
      %v785 = vunpack.c.l.b16 %v497
      %v786 = vunpack.c.l.b16 %v498
      %v787 = vunpack.c.l.b16 %v499
      %v788 = vunpack.c.l.b16 %v500
      %v789 = vunpack.c.l.b16 %v501
      %v790 = vunpack.c.l.b16 %v502
      %v791 = vunpack.c.l.b16 %v503
      %v792 = vunpack.c.l.b16 %v504
      %v793 = vunpack.c.l.b16 %v505
      %v794 = vunpack.c.l.b16 %v506
      %v795 = vunpack.c.l.b16 %v507
      %v796 = vunpack.c.l.b16 %v508
      %v797 = vunpack.c.l.b16 %v509
      %v798 = vunpack.c.l.b16 %v510
      %v799 = vunpack.c.l.b16 %v511
      %v800 = vunpack.c.l.b16 %v512
      %v801 = vunpack.c.l.b16 %v513
      %v802 = vunpack.c.l.b16 %v514
      %v803 = vunpack.c.l.b16 %v515
      %v804 = vunpack.c.l.b16 %v516
      %v805 = vunpack.c.l.b16 %v517
      %v806 = vunpack.c.l.b16 %v518
      %v807 = vunpack.c.l.b16 %v519
      %v808 = vunpack.c.l.b16 %v520
      %v809 = vunpack.c.l.b16 %v521
      %v810 = vunpack.c.l.b16 %v522
      %v811 = vunpack.c.l.b16 %v523
      %v812 = vunpack.c.l.b16 %v524
      %v813 = vunpack.c.l.b16 %v525
      %v814 = vunpack.c.l.b16 %v526
      %v815 = vunpack.c.l.b16 %v527
      %v816 = vunpack.c.l.b16 %v528
      %v817 = vpack.c.b16 %v674, %v673
      %v818 = vpack.c.b16 %v676, %v675
      %v819 = vpack.c.b16 %v678, %v677
      %v820 = vpack.c.b16 %v680, %v679
      %v821 = vpack.c.b16 %v682, %v681
      %v822 = vpack.c.b16 %v684, %v683
      %v823 = vpack.c.b16 %v686, %v685
      %v824 = vpack.c.b16 %v688, %v687
      %v825 = vpack.c.b16 %v690, %v689
      %v826 = vpack.c.b16 %v692, %v691
      %v827 = vpack.c.b16 %v694, %v693
      %v828 = vpack.c.b16 %v696, %v695
      %v829 = vpack.c.b16 %v698, %v697
      %v830 = vpack.c.b16 %v700, %v699
      %v831 = vpack.c.b16 %v702, %v701
      %v832 = vpack.c.b16 %v704, %v703
      %v833 = vpack.c.b16 %v706, %v705
      %v834 = vpack.c.b16 %v708, %v707
      %v835 = vpack.c.b16 %v710, %v709
      %v836 = vpack.c.b16 %v712, %v711
      %v837 = vpack.c.b16 %v714, %v713
      %v838 = vpack.c.b16 %v716, %v715
      %v839 = vpack.c.b16 %v718, %v717
      %v840 = vpack.c.b16 %v720, %v719
      %v841 = vpack.c.b16 %v722, %v721
      %v842 = vpack.c.b16 %v724, %v723
      %v843 = vpack.c.b16 %v726, %v725
      %v844 = vpack.c.b16 %v728, %v727
      %v845 = vpack.c.b16 %v730, %v729
      %v846 = vpack.c.b16 %v732, %v731
      %v847 = vpack.c.b16 %v734, %v733
      %v848 = vpack.c.b16 %v736, %v735
      %v849 = vpack.c.b16 %v738, %v737
      %v850 = vpack.c.b16 %v740, %v739
      %v851 = vpack.c.b16 %v742, %v741
      %v852 = vpack.c.b16 %v744, %v743
      %v853 = vpack.c.b16 %v746, %v745
      %v854 = vpack.c.b16 %v748, %v747
      %v855 = vpack.c.b16 %v750, %v749
      %v856 = vpack.c.b16 %v752, %v751
      %v857 = vpack.c.b16 %v754, %v753
      %v858 = vpack.c.b16 %v756, %v755
      %v859 = vpack.c.b16 %v758, %v757
      %v860 = vpack.c.b16 %v760, %v759
      %v861 = vpack.c.b16 %v762, %v761
      %v862 = vpack.c.b16 %v764, %v763
      %v863 = vpack.c.b16 %v766, %v765
      %v864 = vpack.c.b16 %v768, %v767
      %v865 = vpack.c.b16 %v770, %v769
      %v866 = vpack.c.b16 %v772, %v771
      %v867 = vpack.c.b16 %v774, %v773
      %v868 = vpack.c.b16 %v776, %v775
      %v869 = vpack.c.b16 %v778, %v777
      %v870 = vpack.c.b16 %v780, %v779
      %v871 = vpack.c.b16 %v782, %v781
      %v872 = vpack.c.b16 %v784, %v783
      %v873 = vpack.c.b16 %v786, %v785
      %v874 = vpack.c.b16 %v788, %v787
      %v875 = vpack.c.b16 %v790, %v789
      %v876 = vpack.c.b16 %v792, %v791
      %v877 = vpack.c.b16 %v794, %v793
      %v878 = vpack.c.b16 %v796, %v795
      %v879 = vpack.c.b16 %v798, %v797
      %v880 = vpack.c.b16 %v800, %v799
      %v881 = vpack.c.b16 %v802, %v801
      %v882 = vpack.c.b16 %v804, %v803
      %v883 = vpack.c.b16 %v806, %v805
      %v884 = vpack.c.b16 %v808, %v807
      %v885 = vpack.c.b16 %v810, %v809
      %v886 = vpack.c.b16 %v812, %v811
      %v887 = vpack.c.b16 %v814, %v813
      %v888 = vpack.c.b16 %v816, %v815
      %961 = vmatprep.subr.bf16.mxu0 0
      %962 = vmatpush1.bf16.msra.mxu0 %v817
      %963 = vmatprep.subr.bf16.mxu0 0
      %964 = vmatpush1.bf16.msra.mxu0 %v818
      %965 = vmatprep.subr.bf16.mxu0 0
      %966 = vmatpush1.bf16.msra.mxu0 %v819
      %967 = vmatprep.subr.bf16.mxu0 0
      %968 = vmatpush1.bf16.msra.mxu0 %v820
      %969 = vmatprep.subr.bf16.mxu0 0
      %970 = vmatpush1.bf16.msra.mxu0 %v821
      %971 = vmatprep.subr.bf16.mxu0 0
      %972 = vmatpush1.bf16.msra.mxu0 %v822
      %973 = vmatprep.subr.bf16.mxu0 0
      %974 = vmatpush1.bf16.msra.mxu0 %v823
      %975 = vmatprep.subr.bf16.mxu0 0
      %976 = vmatpush1.bf16.msra.mxu0 %v824
      %977 = vmatprep.subr.bf16.mxu0 0
      %978 = vmatpush1.bf16.msra.mxu0 %v825
      %979 = vmatprep.subr.bf16.mxu0 0
      %980 = vmatpush1.bf16.msra.mxu0 %v826
      %981 = vmatprep.subr.bf16.mxu0 0
      %982 = vmatpush1.bf16.msra.mxu0 %v827
      %983 = vmatprep.subr.bf16.mxu0 0
      %984 = vmatpush1.bf16.msra.mxu0 %v828
      %985 = vmatprep.subr.bf16.mxu0 0
      %986 = vmatpush1.bf16.msra.mxu0 %v829
      %987 = vmatprep.subr.bf16.mxu0 0
      %988 = vmatpush1.bf16.msra.mxu0 %v830
      %989 = vmatprep.subr.bf16.mxu0 0
      %990 = vmatpush1.bf16.msra.mxu0 %v831
      %991 = vmatprep.subr.bf16.mxu0 0
      %992 = vmatpush1.bf16.msra.mxu0 %v832
      %993 = vmatprep.mubr.bf16.mxu0 %v349
      %994 = vmatmul.mubr.bf16.gmra.mrb[0].mxu0 %v341
      %v995 = vpop.f32.mrb[0].mxu0
      %v996 = vadd.f32 0.0, %v995
      %v997 = vpop.f32.mrb[0].mxu0
      %v998 = vpop.f32.mrb[0].mxu0
      %v999 = vadd.f32 0.0, %v998
      %v1000 = vpop.f32.mrb[0].mxu0
      %1001 = vmatprep.mubr.bf16.mxu0 %v350
      %1002 = vmatmul.mubr.bf16.gmra.mrb[0].mxu0 %v342
      %v1003 = vpop.f32.mrb[0].mxu0
      %v1004 = vadd.f32 0.0, %v1003
      %v1005 = vpop.f32.mrb[0].mxu0
      %v1006 = vpop.f32.mrb[0].mxu0
      %v1007 = vadd.f32 0.0, %v1006
      %v1008 = vpop.f32.mrb[0].mxu0
      %1009 = vdwg.mxu0
      %1010 = vmatprep.subr.bf16.mxu0 0
      %1011 = vmatpush1.bf16.msra.mxu0 %v833
      %1012 = vmatprep.subr.bf16.mxu0 0
      %1013 = vmatpush1.bf16.msra.mxu0 %v834
      %1014 = vmatprep.subr.bf16.mxu0 0
      %1015 = vmatpush1.bf16.msra.mxu0 %v835
      %1016 = vmatprep.subr.bf16.mxu0 0
      %1017 = vmatpush1.bf16.msra.mxu0 %v836
      %1018 = vmatprep.subr.bf16.mxu0 0
      %1019 = vmatpush1.bf16.msra.mxu0 %v837
      %1020 = vmatprep.subr.bf16.mxu0 0
      %1021 = vmatpush1.bf16.msra.mxu0 %v838
      %1022 = vmatprep.subr.bf16.mxu0 0
      %1023 = vmatpush1.bf16.msra.mxu0 %v839
      %1024 = vmatprep.subr.bf16.mxu0 0
      %1025 = vmatpush1.bf16.msra.mxu0 %v840
      %1026 = vmatprep.subr.bf16.mxu0 0
      %1027 = vmatpush1.bf16.msra.mxu0 %v841
      %1028 = vmatprep.subr.bf16.mxu0 0
      %1029 = vmatpush1.bf16.msra.mxu0 %v842
      %1030 = vmatprep.subr.bf16.mxu0 0
      %1031 = vmatpush1.bf16.msra.mxu0 %v843
      %1032 = vmatprep.subr.bf16.mxu0 0
      %1033 = vmatpush1.bf16.msra.mxu0 %v844
      %1034 = vmatprep.subr.bf16.mxu0 0
      %1035 = vmatpush1.bf16.msra.mxu0 %v845
      %1036 = vmatprep.subr.bf16.mxu0 0
      %1037 = vmatpush1.bf16.msra.mxu0 %v846
      %1038 = vmatprep.subr.bf16.mxu0 0
      %1039 = vmatpush1.bf16.msra.mxu0 %v847
      %1040 = vmatprep.subr.bf16.mxu0 0
      %1041 = vmatpush1.bf16.msra.mxu0 %v848
      %1042 = vmatprep.mubr.bf16.mxu0 %v362
      %1043 = vmatmul.mubr.bf16.gmra.mrb[0].mxu0 %v357
      %v1044 = vpop.f32.mrb[0].mxu0
      %v1045 = vadd.f32 %v996, %v1044
      %v1046 = vpop.f32.mrb[0].mxu0
      %v1047 = vpop.f32.mrb[0].mxu0
      %v1048 = vadd.f32 %v999, %v1047
      %v1049 = vpop.f32.mrb[0].mxu0
      %1050 = vmatprep.mubr.bf16.mxu0 %v363
      %1051 = vmatmul.mubr.bf16.gmra.mrb[0].mxu0 %v358
      %v1052 = vpop.f32.mrb[0].mxu0
      %v1053 = vadd.f32 %v1004, %v1052
      %v1054 = vpop.f32.mrb[0].mxu0
      %v1055 = vpop.f32.mrb[0].mxu0
      %v1056 = vadd.f32 %v1007, %v1055
      %v1057 = vpop.f32.mrb[0].mxu0
      %1058 = vdwg.mxu0
      %1059 = vmatprep.subr.bf16.mxu0 0
      %1060 = vmatpush1.bf16.msra.mxu0 %v849
      %1061 = vmatprep.subr.bf16.mxu0 0
      %1062 = vmatpush1.bf16.msra.mxu0 %v850
      %1063 = vmatprep.subr.bf16.mxu0 0
      %1064 = vmatpush1.bf16.msra.mxu0 %v851
      %1065 = vmatprep.subr.bf16.mxu0 0
      %1066 = vmatpush1.bf16.msra.mxu0 %v852
      %1067 = vmatprep.subr.bf16.mxu0 0
      %1068 = vmatpush1.bf16.msra.mxu0 %v853
      %1069 = vmatprep.subr.bf16.mxu0 0
      %1070 = vmatpush1.bf16.msra.mxu0 %v854
      %1071 = vmatprep.subr.bf16.mxu0 0
      %1072 = vmatpush1.bf16.msra.mxu0 %v855
      %1073 = vmatprep.subr.bf16.mxu0 0
      %1074 = vmatpush1.bf16.msra.mxu0 %v856
      %1075 = vmatprep.subr.bf16.mxu0 0
      %1076 = vmatpush1.bf16.msra.mxu0 %v857
      %1077 = vmatprep.subr.bf16.mxu0 0
      %1078 = vmatpush1.bf16.msra.mxu0 %v858
      %1079 = vmatprep.subr.bf16.mxu0 0
      %1080 = vmatpush1.bf16.msra.mxu0 %v859
      %1081 = vmatprep.subr.bf16.mxu0 0
      %1082 = vmatpush1.bf16.msra.mxu0 %v860
      %1083 = vmatprep.subr.bf16.mxu0 0
      %1084 = vmatpush1.bf16.msra.mxu0 %v861
      %1085 = vmatprep.subr.bf16.mxu0 0
      %1086 = vmatpush1.bf16.msra.mxu0 %v862
      %1087 = vmatprep.subr.bf16.mxu0 0
      %1088 = vmatpush1.bf16.msra.mxu0 %v863
      %1089 = vmatprep.subr.bf16.mxu0 0
      %1090 = vmatpush1.bf16.msra.mxu0 %v864
      %1091 = vmatprep.mubr.bf16.mxu0 %v372
      %1092 = vmatmul.mubr.bf16.gmra.mrb[0].mxu0 %v367
      %v1093 = vpop.f32.mrb[0].mxu0
      %v1094 = vadd.f32 %v1045, %v1093
      %v1095 = vpop.f32.mrb[0].mxu0
      %v1096 = vpop.f32.mrb[0].mxu0
      %v1097 = vadd.f32 %v1048, %v1096
      %v1098 = vpop.f32.mrb[0].mxu0
      %1099 = vmatprep.mubr.bf16.mxu0 %v373
      %1100 = vmatmul.mubr.bf16.gmra.mrb[0].mxu0 %v368
      %v1101 = vpop.f32.mrb[0].mxu0
      %v1102 = vadd.f32 %v1053, %v1101
      %v1103 = vpop.f32.mrb[0].mxu0
      %v1104 = vpop.f32.mrb[0].mxu0
      %v1105 = vadd.f32 %v1056, %v1104
      %v1106 = vpop.f32.mrb[0].mxu0
      %1107 = vdwg.mxu0
      %1108 = vmatprep.subr.bf16.mxu0 0
      %1109 = vmatpush1.bf16.msra.mxu0 %v865
      %1110 = vmatprep.subr.bf16.mxu0 0
      %1111 = vmatpush1.bf16.msra.mxu0 %v866
      %1112 = vmatprep.subr.bf16.mxu0 0
      %1113 = vmatpush1.bf16.msra.mxu0 %v867
      %1114 = vmatprep.subr.bf16.mxu0 0
      %1115 = vmatpush1.bf16.msra.mxu0 %v868
      %1116 = vmatprep.subr.bf16.mxu0 0
      %1117 = vmatpush1.bf16.msra.mxu0 %v869
      %1118 = vmatprep.subr.bf16.mxu0 0
      %1119 = vmatpush1.bf16.msra.mxu0 %v870
      %1120 = vmatprep.subr.bf16.mxu0 0
      %1121 = vmatpush1.bf16.msra.mxu0 %v871
      %1122 = vmatprep.subr.bf16.mxu0 0
      %1123 = vmatpush1.bf16.msra.mxu0 %v872
      %1124 = vmatprep.subr.bf16.mxu0 0
      %1125 = vmatpush1.bf16.msra.mxu0 %v873
      %1126 = vmatprep.subr.bf16.mxu0 0
      %1127 = vmatpush1.bf16.msra.mxu0 %v874
      %1128 = vmatprep.subr.bf16.mxu0 0
      %1129 = vmatpush1.bf16.msra.mxu0 %v875
      %1130 = vmatprep.subr.bf16.mxu0 0
      %1131 = vmatpush1.bf16.msra.mxu0 %v876
      %1132 = vmatprep.subr.bf16.mxu0 0
      %1133 = vmatpush1.bf16.msra.mxu0 %v877
      %1134 = vmatprep.subr.bf16.mxu0 0
      %1135 = vmatpush1.bf16.msra.mxu0 %v878
      %1136 = vmatprep.subr.bf16.mxu0 0
      %1137 = vmatpush1.bf16.msra.mxu0 %v879
      %1138 = vmatprep.subr.bf16.mxu0 0
      %1139 = vmatpush1.bf16.msra.mxu0 %v880
      %1140 = vmatprep.mubr.bf16.mxu0 %v350
      %1141 = vmatmul.mubr.bf16.gmra.mrb[0].mxu0 %v342
      %v1142 = vpop.f32.mrb[0].mxu0
      %v1143 = vadd.f32 %v1094, %v1142
      %v1144 = vpop.f32.mrb[0].mxu0
      %v1145 = vpop.f32.mrb[0].mxu0
      %v1146 = vadd.f32 %v1097, %v1145
      %v1147 = vpop.f32.mrb[0].mxu0
      %1148 = vmatprep.mubr.bf16.mxu0 %v380
      %1149 = vmatmul.mubr.bf16.gmra.mrb[0].mxu0 %v377
      %v1150 = vpop.f32.mrb[0].mxu0
      %v1151 = vadd.f32 %v1102, %v1150
      %v1152 = vpop.f32.mrb[0].mxu0
      %v1153 = vpop.f32.mrb[0].mxu0
      %v1154 = vadd.f32 %v1105, %v1153
      %v1155 = vpop.f32.mrb[0].mxu0
      %1156 = vdwg.mxu0
      %1157 = vmatprep.subr.bf16.mxu0 0
      %1158 = vmatpush1.bf16.msra.mxu0 %v881
      %1159 = vmatprep.subr.bf16.mxu0 0
      %1160 = vmatpush1.bf16.msra.mxu0 %v882
      %1161 = vmatprep.subr.bf16.mxu0 0
      %1162 = vmatpush1.bf16.msra.mxu0 %v883
      %1163 = vmatprep.subr.bf16.mxu0 0
      %1164 = vmatpush1.bf16.msra.mxu0 %v884
      %1165 = vmatprep.subr.bf16.mxu0 0
      %1166 = vmatpush1.bf16.msra.mxu0 %v885
      %1167 = vmatprep.subr.bf16.mxu0 0
      %1168 = vmatpush1.bf16.msra.mxu0 %v886
      %1169 = vmatprep.subr.bf16.mxu0 0
      %1170 = vmatpush1.bf16.msra.mxu0 %v887
      %1171 = vmatprep.subr.bf16.mxu0 0
      %1172 = vmatpush1.bf16.msra.mxu0 %v888
      %1173 = vmatprep.subr.bf16.mxu0 0
      %1174 = vmatpush1.bf16.msra.mxu0 0
      %1175 = vmatprep.subr.bf16.mxu0 0
      %1176 = vmatpush1.bf16.msra.mxu0 0
      %1177 = vmatprep.subr.bf16.mxu0 0
      %1178 = vmatpush1.bf16.msra.mxu0 0
      %1179 = vmatprep.subr.bf16.mxu0 0
      %1180 = vmatpush1.bf16.msra.mxu0 0
      %1181 = vmatprep.subr.bf16.mxu0 0
      %1182 = vmatpush1.bf16.msra.mxu0 0
      %1183 = vmatprep.subr.bf16.mxu0 0
      %1184 = vmatpush1.bf16.msra.mxu0 0
      %1185 = vmatprep.subr.bf16.mxu0 0
      %1186 = vmatpush1.bf16.msra.mxu0 0
      %1187 = vmatprep.subr.bf16.mxu0 0
      %1188 = vmatpush1.bf16.msra.mxu0 0
      %1189 = vmatprep.mubr.bf16.mxu0 0
      %1190 = vmatmul.mubr.bf16.gmra.mrb[0].mxu0 %v358
      %v1191 = vpop.f32.mrb[0].mxu0
      %v1192 = vadd.f32 %v1143, %v1191
      %v1193 = vpop.f32.mrb[0].mxu0
      %v1194 = vpop.f32.mrb[0].mxu0
      %v1195 = vadd.f32 %v1146, %v1194
      %v1196 = vpop.f32.mrb[0].mxu0
      %1197 = vmatprep.mubr.bf16.mxu0 0
      %1198 = vmatmul.mubr.bf16.gmra.mrb[0].mxu0 %v383
      %v1199 = vpop.f32.mrb[0].mxu0
      %v1200 = vadd.f32 %v1151, %v1199
      %v1201 = vpop.f32.mrb[0].mxu0
      %v1202 = vpop.f32.mrb[0].mxu0
      %v1203 = vadd.f32 %v1154, %v1202
      %v1204 = vpop.f32.mrb[0].mxu0
      %1205 = vdwg.mxu0
      %v1206 = vld [vmem:[%s2] sm:$0x1]
      %v1208 = vlaneseq
      %v1209 = vshrl.u32 %v1208, 7
      %v1210 = vsub.s32 0, %v1209
      %v1211 = vrot.slane %v1206, %v1210
      %v1213 = vmul.f32 %v1192, %v1211
      %v1214 = vmul.f32 %v1195, %v1211
      %v1215 = vmul.f32 %v1200, %v1211
      %v1216 = vmul.f32 %v1203, %v1211
      %v1217 = vld [vmem:[%s3] sm:$0x1]
      %v1219 = vlaneseq
      %v1220 = vshrl.u32 %v1219, 7
      %v1221 = vsub.s32 0, %v1220
      %v1222 = vrot.slane %v1217, %v1221
      %v1224 = vadd.f32 %v1213, %v1222
      %v1225 = vadd.f32 %v1214, %v1222
      %v1226 = vadd.f32 %v1215, %v1222
      %v1227 = vadd.f32 %v1216, %v1222
      %v1228 = vmax.f32 %v1224, 0.0
      %v1229 = vmax.f32 %v1225, 0.0
      %v1230 = vmax.f32 %v1226, 0.0
      %v1231 = vmax.f32 %v1227, 0.0
      %v1232 = vmin.f32 %v1228, 20.0
      %v1233 = vmin.f32 %v1229, 20.0
      %v1234 = vmin.f32 %v1230, 20.0
      %v1235 = vmin.f32 %v1231, 20.0
      %v1236 = vmax.f32 %v1232, %v1233
      %v1237 = vmax.f32 %v1234, %v1235
      %v1240 = vcombine.high %v1236, %v1236
      %v1242 = vunpack.c.l.s4 1983009808
      %v1243 = vunpack.c.0.s8 %v1242
      %v1244 = vlaneseq
      %v1245 = vshrl.u32 %v1244, 7
      %v1246 = vsub.s32 %v1243, %v1245
      %v1247 = vrot.slane %v1236, %v1246
      %v1249 = vunpack.c.l.s4 1983009808
      %v1250 = vunpack.c.0.s8 %v1249
      %v1251 = vlaneseq
      %v1252 = vshrl.u32 %v1251, 7
      %v1253 = vsub.s32 %v1250, %v1252
      %v1254 = vrot.slane %v1240, %v1253
      %v1255 = vcombine.high %v1247, %v1247
      %v1256 = vcombine.high %v1254, %v1254
      %v1257 = vcombine.high %v1237, %v1237
      %v1259 = vunpack.c.l.s4 1983009808
      %v1260 = vunpack.c.0.s8 %v1259
      %v1261 = vlaneseq
      %v1262 = vshrl.u32 %v1261, 7
      %v1263 = vsub.s32 %v1260, %v1262
      %v1264 = vrot.slane %v1237, %v1263
      %v1266 = vunpack.c.l.s4 1983009808
      %v1267 = vunpack.c.0.s8 %v1266
      %v1268 = vlaneseq
      %v1269 = vshrl.u32 %v1268, 7
      %v1270 = vsub.s32 %v1267, %v1269
      %v1271 = vrot.slane %v1257, %v1270
      %v1272 = vcombine.high %v1264, %v1264
      %v1273 = vcombine.high %v1271, %v1271
      %vm1282 = vcmask 1041408
      %v1283 = vsel %vm1282, %v1247, -inf
      %v1284 = vrot.slane %v1283, 4
      %v1285 = vmax.f32 %v1283, %v1284
      %v1286 = vrot.slane %v1285, 2
      %v1287 = vmax.f32 %v1285, %v1286
      %v1288 = vrot.slane %v1287, 1
      %v1289 = vmax.f32 %v1287, %v1288
      %v1290 = vsel %vm1282, %v1255, -inf
      %v1291 = vrot.slane %v1290, 4
      %v1292 = vmax.f32 %v1290, %v1291
      %v1293 = vrot.slane %v1292, 2
      %v1294 = vmax.f32 %v1292, %v1293
      %v1295 = vrot.slane %v1294, 1
      %v1296 = vmax.f32 %v1294, %v1295
      %v1297 = vsel %vm1282, %v1254, -inf
      %v1298 = vrot.slane %v1297, 4
      %v1299 = vmax.f32 %v1297, %v1298
      %v1300 = vrot.slane %v1299, 2
      %v1301 = vmax.f32 %v1299, %v1300
      %v1302 = vrot.slane %v1301, 1
      %v1303 = vmax.f32 %v1301, %v1302
      %v1304 = vsel %vm1282, %v1256, -inf
      %v1305 = vrot.slane %v1304, 4
      %v1306 = vmax.f32 %v1304, %v1305
      %v1307 = vrot.slane %v1306, 2
      %v1308 = vmax.f32 %v1306, %v1307
      %v1309 = vrot.slane %v1308, 1
      %v1310 = vmax.f32 %v1308, %v1309
      %v1311 = vsel %vm1282, %v1264, -inf
      %v1312 = vrot.slane %v1311, 4
      %v1313 = vmax.f32 %v1311, %v1312
      %v1314 = vrot.slane %v1313, 2
      %v1315 = vmax.f32 %v1313, %v1314
      %v1316 = vrot.slane %v1315, 1
      %v1317 = vmax.f32 %v1315, %v1316
      %v1318 = vsel %vm1282, %v1272, -inf
      %v1319 = vrot.slane %v1318, 4
      %v1320 = vmax.f32 %v1318, %v1319
      %v1321 = vrot.slane %v1320, 2
      %v1322 = vmax.f32 %v1320, %v1321
      %v1323 = vrot.slane %v1322, 1
      %v1324 = vmax.f32 %v1322, %v1323
      %v1325 = vsel %vm1282, %v1271, -inf
      %v1326 = vrot.slane %v1325, 4
      %v1327 = vmax.f32 %v1325, %v1326
      %v1328 = vrot.slane %v1327, 2
      %v1329 = vmax.f32 %v1327, %v1328
      %v1330 = vrot.slane %v1329, 1
      %v1331 = vmax.f32 %v1329, %v1330
      %v1332 = vsel %vm1282, %v1273, -inf
      %v1333 = vrot.slane %v1332, 4
      %v1334 = vmax.f32 %v1332, %v1333
      %v1335 = vrot.slane %v1334, 2
      %v1336 = vmax.f32 %v1334, %v1335
      %v1337 = vrot.slane %v1336, 1
      %v1338 = vmax.f32 %v1336, %v1337
      %v1339 = vpack.c.bf16 %v1289, %v1289
      %v1340 = vpack.c.bf16 %v1296, %v1296
      %v1341 = vpack.c.bf16 %v1303, %v1303
      %v1342 = vpack.c.bf16 %v1310, %v1310
      %v1343 = vpack.c.bf16 %v1317, %v1317
      %v1344 = vpack.c.bf16 %v1324, %v1324
      %v1345 = vpack.c.bf16 %v1331, %v1331
      %v1346 = vpack.c.bf16 %v1338, %v1338
      %v1356 = vunpack.c.l.s4 1983009808
      %v1357 = vunpack.c.0.s8 %v1356
      %v1358 = vlaneseq
      %v1359 = vshrl.u32 %v1358, 7
      %v1360 = vsub.s32 %v1357, %v1359
      %v1361 = vrot.slane %v1339, %v1360
      %v1363 = vunpack.c.l.s4 1983009808
      %v1364 = vunpack.c.0.s8 %v1363
      %v1365 = vlaneseq
      %v1366 = vshrl.u32 %v1365, 7
      %v1367 = vsub.s32 %v1364, %v1366
      %v1368 = vrot.slane %v1340, %v1367
      %v1370 = vunpack.c.l.s4 1983009808
      %v1371 = vunpack.c.0.s8 %v1370
      %v1372 = vlaneseq
      %v1373 = vshrl.u32 %v1372, 7
      %v1374 = vsub.s32 %v1371, %v1373
      %v1375 = vrot.slane %v1341, %v1374
      %v1377 = vunpack.c.l.s4 1983009808
      %v1378 = vunpack.c.0.s8 %v1377
      %v1379 = vlaneseq
      %v1380 = vshrl.u32 %v1379, 7
      %v1381 = vsub.s32 %v1378, %v1380
      %v1382 = vrot.slane %v1342, %v1381
      %v1384 = vunpack.c.l.s4 1983009808
      %v1385 = vunpack.c.0.s8 %v1384
      %v1386 = vlaneseq
      %v1387 = vshrl.u32 %v1386, 7
      %v1388 = vsub.s32 %v1385, %v1387
      %v1389 = vrot.slane %v1343, %v1388
      %v1391 = vunpack.c.l.s4 1983009808
      %v1392 = vunpack.c.0.s8 %v1391
      %v1393 = vlaneseq
      %v1394 = vshrl.u32 %v1393, 7
      %v1395 = vsub.s32 %v1392, %v1394
      %v1396 = vrot.slane %v1344, %v1395
      %v1398 = vunpack.c.l.s4 1983009808
      %v1399 = vunpack.c.0.s8 %v1398
      %v1400 = vlaneseq
      %v1401 = vshrl.u32 %v1400, 7
      %v1402 = vsub.s32 %v1399, %v1401
      %v1403 = vrot.slane %v1345, %v1402
      %v1405 = vunpack.c.l.s4 1983009808
      %v1406 = vunpack.c.0.s8 %v1405
      %v1407 = vlaneseq
      %v1408 = vshrl.u32 %v1407, 7
      %v1409 = vsub.s32 %v1406, %v1408
      %v1410 = vrot.slane %v1346, %v1409
      %v1412 = vunpack.c.l.s4 1983009808
      %v1413 = vunpack.c.0.s8 %v1412
      %v1414 = vlaneseq
      %v1415 = vshrl.u32 %v1414, 7
      %v1416 = vsub.s32 %v1413, %v1415
      %v1417 = vrot.slane %v1361, %v1416
      %v1419 = vunpack.c.l.s4 1983009808
      %v1420 = vunpack.c.0.s8 %v1419
      %v1421 = vlaneseq
      %v1422 = vshrl.u32 %v1421, 7
      %v1423 = vsub.s32 %v1420, %v1422
      %v1424 = vrot.slane %v1368, %v1423
      %v1426 = vunpack.c.l.s4 1983009808
      %v1427 = vunpack.c.0.s8 %v1426
      %v1428 = vlaneseq
      %v1429 = vshrl.u32 %v1428, 7
      %v1430 = vsub.s32 %v1427, %v1429
      %v1431 = vrot.slane %v1375, %v1430
      %v1433 = vunpack.c.l.s4 1983009808
      %v1434 = vunpack.c.0.s8 %v1433
      %v1435 = vlaneseq
      %v1436 = vshrl.u32 %v1435, 7
      %v1437 = vsub.s32 %v1434, %v1436
      %v1438 = vrot.slane %v1382, %v1437
      %v1440 = vunpack.c.l.s4 1983009808
      %v1441 = vunpack.c.0.s8 %v1440
      %v1442 = vlaneseq
      %v1443 = vshrl.u32 %v1442, 7
      %v1444 = vsub.s32 %v1441, %v1443
      %v1445 = vrot.slane %v1389, %v1444
      %v1447 = vunpack.c.l.s4 1983009808
      %v1448 = vunpack.c.0.s8 %v1447
      %v1449 = vlaneseq
      %v1450 = vshrl.u32 %v1449, 7
      %v1451 = vsub.s32 %v1448, %v1450
      %v1452 = vrot.slane %v1396, %v1451
      %v1454 = vunpack.c.l.s4 1983009808
      %v1455 = vunpack.c.0.s8 %v1454
      %v1456 = vlaneseq
      %v1457 = vshrl.u32 %v1456, 7
      %v1458 = vsub.s32 %v1455, %v1457
      %v1459 = vrot.slane %v1403, %v1458
      %v1461 = vunpack.c.l.s4 1983009808
      %v1462 = vunpack.c.0.s8 %v1461
      %v1463 = vlaneseq
      %v1464 = vshrl.u32 %v1463, 7
      %v1465 = vsub.s32 %v1462, %v1464
      %v1466 = vrot.slane %v1410, %v1465
      %v1467 = vunpack.c.l.b16 %v1417
      %v1468 = vunpack.c.l.b16 %v1424
      %v1469 = vunpack.c.l.b16 %v1431
      %v1470 = vunpack.c.l.b16 %v1438
      %v1471 = vunpack.c.l.b16 %v1445
      %v1472 = vunpack.c.l.b16 %v1452
      %v1473 = vunpack.c.l.b16 %v1459
      %v1474 = vunpack.c.l.b16 %v1466
      %v1475 = vrot.slane %v1468, 7
      %vm1476 = vcmask 1041409
      %v1477 = vsel %vm1476, %v1475, %v1467
      %v1478 = vrot.slane %v1469, 6
      %vm1479 = vcmask 1042434
      %v1480 = vsel %vm1479, %v1478, %v1477
      %v1481 = vrot.slane %v1470, 5
      %vm1482 = vcmask 1043459
      %v1483 = vsel %vm1482, %v1481, %v1480
      %v1484 = vrot.slane %v1472, 7
      %v1485 = vsel %vm1476, %v1484, %v1471
      %v1486 = vrot.slane %v1473, 6
      %v1487 = vsel %vm1479, %v1486, %v1485
      %v1488 = vrot.slane %v1474, 5
      %v1489 = vsel %vm1482, %v1488, %v1487
      %v1490 = vpack.c.b16 %v1483, %v1483
      %v1491 = vpack.c.b16 %v1489, %v1489
      %v1493 = vunpack.c.l.s4 1983009808
      %v1494 = vunpack.c.0.s8 %v1493
      %v1495 = vlaneseq
      %v1496 = vshrl.u32 %v1495, 7
      %v1497 = vsub.s32 %v1494, %v1496
      %v1498 = vrot.slane %v1490, %v1497
      %v1500 = vunpack.c.l.s4 1983009808
      %v1501 = vunpack.c.0.s8 %v1500
      %v1502 = vlaneseq
      %v1503 = vshrl.u32 %v1502, 7
      %v1504 = vsub.s32 %v1501, %v1503
      %v1505 = vrot.slane %v1491, %v1504
      %1508 = vst [vmem:[%s197] sm:$0x3] %v1498
      %1509 = vst [vmem:[%s197 + $0x2] sm:$0x3] %v1505
      %p1510 = scmp.lt.s32.totalorder %s15, 1
      %s1511 = scalar_select %p1510, %s15, 1
      %s1512 = smul.addr %s1511, 2
      %s1513 = smul.addr %s1512, 2
      %s1514 = scalar_lea.vmem %s4, %s1513
      // Predicated region
      $region37: #{listener_forward.10} parent=35 // pred_check
        %p1515 = pneg %p122
      $region38: #{listener_forward.10} parent=35 // pred_check_branch
        %1517 = sbr.rel (%p1515) target = $region40
      $region39: #{listener_forward.10} parent=35 // pred_region
        _
      $region40: #{listener_forward.10} parent=35 // pred_fallthru
        _
    $region36: #{listener_forward.10} parent=5 // pred_fallthru
      _
    %p1518 = scmp.le.s32.totalorder 2, %s10
    // Predicated region
    $region41: #{listener_forward.10} parent=5 // pred_check
      %p1519 = pneg %p1518
    $region42: #{listener_forward.10} parent=5 // pred_check_branch
      %1521 = sbr.rel (%p1519) target = $region44
    $region43: #{listener_forward.10} parent=5 // pred_region
      %s1522 = ssub.s32 %s10, 2
      // Predicated region
      $region45: #{listener_forward.10} parent=43 // pred_check
        %p1523 = pneg %p128
      $region46: #{listener_forward.10} parent=43 // pred_check_branch
        %1525 = sbr.rel (%p1523) target = $region48
      $region47: #{listener_forward.10} parent=43 // pred_region
        %p1526 = scmp.lt.s32.totalorder %s16, 1
        %s1527 = scalar_select %p1526, %s16, 1
        %s1528 = smul.addr %s1527, 2
        %s1529 = smul.addr %s1528, 2
        %s1530 = scalar_lea.vmem %s4, %s1529
      $region48: #{listener_forward.10} parent=43 // pred_fallthru
        _
    $region44: #{listener_forward.10} parent=5 // pred_fallthru
      _
  $region6: #{listener_forward.10} parent=0 // loop_footer
    %s14 = sadd.s32 1, %s10
  $region7: #{listener_forward.10} parent=0 // loop_footer_branch
    %9 = sbr.rel target = $region3
  $region8: #{listener_forward.10} parent=0 // loop_exit
    _

// kernel: listener_forward.11
$region0: #{listener_forward.11}
  #allocation0 [shape = 'u32[]', space=smem, size = 0x4, offset = 0x4, fixed_abs, tag = 'smem constant byte address 0x4 - core index']
  #allocation1 [shape = 'u32[144,128]{1,0:T(1,128)}', space=vmem, size = 0x12000, scoped, tag = 'internal scratch']
  #allocation2 [shape = 'f32[2,128]{1,0:T(2,128)}', space=vmem, size = 0x400, scoped, tag = 'scratch operand']
  #allocation3 [shape = 'f32[2,128]{1,0:T(2,128)}', space=vmem, size = 0x400, scoped, tag = 'scratch operand']
  %s0 = inlined_call_operand.vmem [shape: s32[2,1], index: 0, kind: input, shape index: {}]
  %s1 = inlined_call_operand.vmem [shape: f32[4,2,1024], index: 1, kind: input, shape index: {}]
  %s2 = inlined_call_operand.vmem [shape: bf16[2,128,512], index: 2, kind: input, shape index: {}]
  %s3 = inlined_call_operand.vmem [shape: f32[4,2,256], index: 3, kind: output, shape index: {}]
  %s4 = sld [smem:[#allocation0]]
  $region124: #{listener_forward.11} parent=0
    _
  %s6 = ssub.s32 1, %s4
  %s7 = scalar_select 0, %s6, %s4
  $region1: #{listener_forward.11} parent=0
    #allocation4 [shape = 'u8[32768]{0}', space=vmem, size = 0x8000, scoped, tag = 'input window, operand 1']
    #allocation5 [shape = 'u8[8192]{0}', space=vmem, size = 0x2000, scoped, tag = 'output window, operand 0']
    loop: start=0, step=1, limit=4
    $region2: #{listener_forward.11} parent=1 // loop_pre_header
      _
    $region3: #{listener_forward.11} parent=1 // loop_header
      %s9 = sphi 0, %s13
      %p10 = scmp.ge.s32.totalorder %s9, 4
      %s16 = sphi 0, %s28
      %s17 = sphi 0, %s24
      %s18 = sphi 0, %s16
      %s19 = sphi 0, %s17
      %s20 = sphi 0, %s18
      %s21 = sphi 0, %s19
      %s29 = sphi 0, %s29
      %s31 = sphi 0, %s29
      %s32 = sphi 0, %s31
      %s46 = sphi 0, %s32
      %s62 = sphi 0, %s64
      %s65 = sphi 0, %s62
      %s66 = sphi 0, %s65
      %s82 = sphi 0, %s66
      %s88 = sphi 0, %s90
      %s91 = sphi 0, %s88
      %s92 = sphi 0, %s91
      %s108 = sphi 0, %s92
      %s124 = sphi 0, %s126
      %s127 = sphi 0, %s124
      %s128 = sphi 0, %s127
      %s144 = sphi 0, %s128
    $region4: #{listener_forward.11} parent=1 // loop_header_branch
      %12 = sbr.rel (%p10) target = $region8
    $region5: #{listener_forward.11} parent=1 // loop_body
      %s14 = ssub.s32 %s9, 1
      %s15 = ssub.s32 %s9, 2
      %s22 = sadd.s32 1, %s17
      %p23 = scmp.ge.s32.totalorder %s22, 1
      %s24 = scalar_select %p23, 0, %s22
      %s25 = sadd.s32 1, %s16
      %s26 = scalar_select %p23, %s25, %s16
      %p27 = scmp.ge.s32.totalorder %s26, 2
      %s28 = scalar_select %p27, 0, %s26
      %s30 = sadd.s32 %s29, 1
      %p33 = scmp.eq.s32.totalorder %s9, 1
      %p34 = scmp.ne.s32.totalorder %s29, %s31
      %p35 = scmp.eq.s32.totalorder %s9, 0
      %p36 = por %p34, %p35
      %p37 = scmp.ne.s32.totalorder %s29, %s31
      %p38 = scmp.eq.s32.totalorder %s14, 1
      %p39 = por %p37, %p38
      %p40 = scmp.ne.s32.totalorder %s31, %s32
      %p41 = scmp.eq.s32.totalorder %s14, 0
      %p42 = por %p40, %p41
      %p43 = scmp.ne.s32.totalorder %s31, %s32
      %p44 = scmp.eq.s32.totalorder %s15, 1
      %p45 = por %p43, %p44
      %p47 = scmp.ne.s32.totalorder %s32, %s46
      %p48 = scmp.eq.s32.totalorder %s15, 0
      %p49 = por %p47, %p48
      %s50 = smul.u32 %s17, 2
      %s51 = ssub.s32 0, %s50
      %s52 = smul.u32 %s16, %s51
      %s53 = sadd.s32 %s17, %s52
      %s54 = smul.u32 %s24, 2
      %s55 = ssub.s32 0, %s54
      %s56 = smul.u32 %s28, %s55
      %s57 = sadd.s32 %s24, %s56
      %s58 = ssub.s32 %s53, %s57
      %s59 = ssub.s32 %s16, %s28
      %s60 = sor.u32 %s58, %s59
      %p61 = scmp.eq.s32.totalorder %s60, 0
      %s63 = sadd.s32 %s62, 1
      %s64 = scalar_select %p61, %s62, %s63
      %p67 = pneg %p61
      %p68 = scmp.eq.s32.totalorder %s9, 1
      %p69 = por %p67, %p68
      %p70 = scmp.ne.s32.totalorder %s62, %s65
      %p71 = scmp.eq.s32.totalorder %s9, 0
      %p72 = por %p70, %p71
      %p73 = scmp.ne.s32.totalorder %s62, %s65
      %p74 = scmp.eq.s32.totalorder %s14, 1
      %p75 = por %p73, %p74
      %p76 = scmp.ne.s32.totalorder %s65, %s66
      %p77 = scmp.eq.s32.totalorder %s14, 0
      %p78 = por %p76, %p77
      %p79 = scmp.ne.s32.totalorder %s65, %s66
      %p80 = scmp.eq.s32.totalorder %s15, 1
      %p81 = por %p79, %p80
      %p83 = scmp.ne.s32.totalorder %s66, %s82
      %p84 = scmp.eq.s32.totalorder %s15, 0
      %p85 = por %p83, %p84
      %s86 = ssub.s32 %s16, %s28
      %p87 = scmp.eq.s32.totalorder %s86, 0
      %s89 = sadd.s32 %s88, 1
      %s90 = scalar_select %p87, %s88, %s89
      %p93 = pneg %p87
      %p94 = scmp.eq.s32.totalorder %s9, 1
      %p95 = por %p93, %p94
      %p96 = scmp.ne.s32.totalorder %s88, %s91
      %p97 = scmp.eq.s32.totalorder %s9, 0
      %p98 = por %p96, %p97
      %p99 = scmp.ne.s32.totalorder %s88, %s91
      %p100 = scmp.eq.s32.totalorder %s14, 1
      %p101 = por %p99, %p100
      %p102 = scmp.ne.s32.totalorder %s91, %s92
      %p103 = scmp.eq.s32.totalorder %s14, 0
      %p104 = por %p102, %p103
      %p105 = scmp.ne.s32.totalorder %s91, %s92
      %p106 = scmp.eq.s32.totalorder %s15, 1
      %p107 = por %p105, %p106
      %p109 = scmp.ne.s32.totalorder %s92, %s108
      %p110 = scmp.eq.s32.totalorder %s15, 0
      %p111 = por %p109, %p110
      %s112 = smul.u32 %s17, 2
      %s113 = ssub.s32 0, %s112
      %s114 = smul.u32 %s16, %s113
      %s115 = sadd.s32 %s17, %s114
      %s116 = smul.u32 %s24, 2
      %s117 = ssub.s32 0, %s116
      %s118 = smul.u32 %s28, %s117
      %s119 = sadd.s32 %s24, %s118
      %s120 = ssub.s32 %s115, %s119
      %s121 = ssub.s32 %s16, %s28
      %s122 = sor.u32 %s120, %s121
      %p123 = scmp.eq.s32.totalorder %s122, 0
      %s125 = sadd.s32 %s124, 1
      %s126 = scalar_select %p123, %s124, %s125
      %p129 = pneg %p123
      %p130 = scmp.eq.s32.totalorder %s9, 1
      %p131 = por %p129, %p130
      %p132 = scmp.ne.s32.totalorder %s124, %s127
      %p133 = scmp.eq.s32.totalorder %s9, 0
      %p134 = por %p132, %p133
      %p135 = scmp.ne.s32.totalorder %s124, %s127
      %p136 = scmp.eq.s32.totalorder %s14, 1
      %p137 = por %p135, %p136
      %p138 = scmp.ne.s32.totalorder %s127, %s128
      %p139 = scmp.eq.s32.totalorder %s14, 0
      %p140 = por %p138, %p139
      %p141 = scmp.ne.s32.totalorder %s127, %s128
      %p142 = scmp.eq.s32.totalorder %s15, 1
      %p143 = por %p141, %p142
      %p145 = scmp.ne.s32.totalorder %s128, %s144
      %p146 = scmp.eq.s32.totalorder %s15, 0
      %p147 = por %p145, %p146
      %p148 = scmp.le.s32.totalorder 1, %s9
      %p149 = scmp.lt.s32.totalorder %s9, 3
      %p150 = pnand %p148, %p149
      %p151 = pneg %p150
      // Predicated region
      $region9: #{listener_forward.11} parent=5 // pred_check
        _
      $region10: #{listener_forward.11} parent=5 // pred_check_branch
        %153 = sbr.rel (%p150) target = $region12
      $region11: #{listener_forward.11} parent=5 // pred_region
        %s154 = ssub.s32 %s9, 1
        // Predicated region
        $region13: #{listener_forward.11} parent=11 // pred_check
          %p155 = pneg %p42
        $region14: #{listener_forward.11} parent=11 // pred_check_branch
          %157 = sbr.rel (%p155) target = $region16
        $region15: #{listener_forward.11} parent=11 // pred_region
          _
        $region16: #{listener_forward.11} parent=11 // pred_fallthru
          _
      $region12: #{listener_forward.11} parent=5 // pred_fallthru
        _
      %p158 = scmp.lt.s32.totalorder %s9, 2
      // Predicated region
      $region17: #{listener_forward.11} parent=5 // pred_check
        %p159 = pneg %p158
      $region18: #{listener_forward.11} parent=5 // pred_check_branch
        %161 = sbr.rel (%p159) target = $region20
      $region19: #{listener_forward.11} parent=5 // pred_region
        // Predicated region
        $region21: #{listener_forward.11} parent=19 // pred_check
          %p162 = pneg %p72
        $region22: #{listener_forward.11} parent=19 // pred_check_branch
          %164 = sbr.rel (%p162) target = $region24
        $region23: #{listener_forward.11} parent=19 // pred_region
          %s165 = sand.u32 %s62, 1
          %s166 = sand.u32 %s62, 1
          %s167 = smul.addr %s166, 32
          %s168 = scalar_lea.vmem [#allocation4], %s167
          %s169 = smul.u32 %s17, 2
          %s170 = ssub.s32 0, %s169
          %s171 = smul.u32 %s16, %s170
          %s172 = sadd.s32 %s17, %s171
          %s173 = smul.u32 4, %s172
          %s174 = smul.u32 4, %s16
          %s175 = smul.addr %s173, 8
          %s176 = sadd.s32 %s174, %s175
          %s177 = smul.addr %s176, 2
          %s178 = scalar_lea.vmem %s1, %s177
          // Predicated region
          $region25: #{listener_forward.11} parent=23 // pred_check
            _
          $region26: #{listener_forward.11} parent=23 // pred_check_branch
            %180 = sbr.rel (0) target = $region28
          $region27: #{listener_forward.11} parent=23 // pred_region
            // Predicated region
            $region29: #{listener_forward.11} parent=27 // pred_check
              _
            $region30: #{listener_forward.11} parent=27 // pred_check_branch
              %182 = sbr.rel (0) target = $region32
            $region31: #{listener_forward.11} parent=27 // pred_region
              // Predicated region
              $region44: #{listener_forward.11} parent=31 // pred_check
                _
              $region45: #{listener_forward.11} parent=31 // pred_check_branch
                %203 = sbr.rel (0) target = $region47
              $region46: #{listener_forward.11} parent=31 // pred_region
                loop: start=0, step=1, limit=1
                $region48: #{listener_forward.11} parent=46 // loop_pre_header
                  _
                $region49: #{listener_forward.11} parent=46 // loop_header
                  %s205 = sphi 0, %s209
                  %p206 = scmp.ge.s32.totalorder %s205, 1
                  %s210 = sphi %s178, %s178
                  %s211 = sphi %s168, %s168
                $region50: #{listener_forward.11} parent=46 // loop_header_branch
                  %208 = sbr.rel (%p206) target = $region54
                $region51: #{listener_forward.11} parent=46 // loop_body
                  %v212 = vld [vmem:[%s210] sm:$0xff]
                  %213 = vst [vmem:[%s211] sm:$0xff] %v212
                  %v214 = vld [vmem:[%s210 + $0x10] sm:$0xff]
                  %215 = vst [vmem:[%s211 + $0x8] sm:$0xff] %v214
                  %v216 = vld [vmem:[%s210 + $0x20] sm:$0xff]
                  %217 = vst [vmem:[%s211 + $0x10] sm:$0xff] %v216
                  %v218 = vld [vmem:[%s210 + $0x30] sm:$0xff]
                  %219 = vst [vmem:[%s211 + $0x18] sm:$0xff] %v218
                $region52: #{listener_forward.11} parent=46 // loop_footer
                  %s209 = sadd.s32 1, %s205
                $region53: #{listener_forward.11} parent=46 // loop_footer_branch
                  %204 = sbr.rel target = $region49
                $region54: #{listener_forward.11} parent=46 // loop_exit
                  _
              $region47: #{listener_forward.11} parent=31 // pred_fallthru
                _
              // Predicated region
              $region55: #{listener_forward.11} parent=31 // pred_check
                _
              $region56: #{listener_forward.11} parent=31 // pred_check_branch
                %221 = sbr.rel target = $region58
              $region57: #{listener_forward.11} parent=31 // pred_region
                _
              $region58: #{listener_forward.11} parent=31 // pred_fallthru
                _
            $region32: #{listener_forward.11} parent=27 // pred_fallthru
              _
            // Predicated region
            $region33: #{listener_forward.11} parent=27 // pred_check
              _
            $region34: #{listener_forward.11} parent=27 // pred_check_branch
              %184 = sbr.rel target = $region36
            $region35: #{listener_forward.11} parent=27 // pred_region
              loop: start=0, step=1, limit=1
              $region37: #{listener_forward.11} parent=35 // loop_pre_header
                _
              $region38: #{listener_forward.11} parent=35 // loop_header
                %s187 = sphi 0, %s191
                %p188 = scmp.ge.s32.totalorder %s187, 1
                %s192 = sphi %s178, %s178
                %s193 = sphi %s168, %s168
              $region39: #{listener_forward.11} parent=35 // loop_header_branch
                %190 = sbr.rel (%p188) target = $region43
              $region40: #{listener_forward.11} parent=35 // loop_body
                %v194 = vld [vmem:[%s192] sm:$0xff]
                %195 = vst [vmem:[%s193] sm:$0xff] %v194
                %v196 = vld [vmem:[%s192 + $0x10] sm:$0xff]
                %197 = vst [vmem:[%s193 + $0x8] sm:$0xff] %v196
                %v198 = vld [vmem:[%s192 + $0x20] sm:$0xff]
                %199 = vst [vmem:[%s193 + $0x10] sm:$0xff] %v198
                %v200 = vld [vmem:[%s192 + $0x30] sm:$0xff]
                %201 = vst [vmem:[%s193 + $0x18] sm:$0xff] %v200
              $region41: #{listener_forward.11} parent=35 // loop_footer
                %s191 = sadd.s32 1, %s187
              $region42: #{listener_forward.11} parent=35 // loop_footer_branch
                %186 = sbr.rel target = $region38
              $region43: #{listener_forward.11} parent=35 // loop_exit
                _
            $region36: #{listener_forward.11} parent=27 // pred_fallthru
              _
          $region28: #{listener_forward.11} parent=23 // pred_fallthru
            _
          %222 = vnop
        $region24: #{listener_forward.11} parent=19 // pred_fallthru
          _
        // Predicated region
        $region59: #{listener_forward.11} parent=19 // pred_check
          %p223 = pneg %p98
        $region60: #{listener_forward.11} parent=19 // pred_check_branch
          %225 = sbr.rel (%p223) target = $region62
        $region61: #{listener_forward.11} parent=19 // pred_region
          %p226 = scmp.lt.s32.totalorder %s16, 1
          %s227 = scalar_select %p226, %s16, 1
          %s228 = smul.addr %s227, 64
          %s229 = smul.addr %s228, 4
          %s230 = scalar_lea.vmem %s2, %s229
        $region62: #{listener_forward.11} parent=19 // pred_fallthru
          _
      $region20: #{listener_forward.11} parent=5 // pred_fallthru
        _
      %p231 = scmp.le.s32.totalorder 1, %s9
      %p232 = scmp.lt.s32.totalorder %s9, 3
      %p233 = pnand %p231, %p232
      %p234 = pneg %p233
      // Predicated region
      $region63: #{listener_forward.11} parent=5 // pred_check
        _
      $region64: #{listener_forward.11} parent=5 // pred_check_branch
        %236 = sbr.rel (%p233) target = $region66
      $region65: #{listener_forward.11} parent=5 // pred_region
        %s237 = ssub.s32 %s9, 1
        %s238 = sand.u32 %s65, 1
        %s239 = sand.u32 %s65, 1
        %s240 = smul.addr %s239, 32
        %s241 = scalar_lea.vmem [#allocation4], %s240
        // Predicated region
        $region67: #{listener_forward.11} parent=65 // pred_check
          %p242 = pneg %p78
        $region68: #{listener_forward.11} parent=65 // pred_check_branch
          %244 = sbr.rel (%p242) target = $region70
        $region69: #{listener_forward.11} parent=65 // pred_region
          _
        $region70: #{listener_forward.11} parent=65 // pred_fallthru
          _
        %p245 = pneg %p42
        %p246 = pneg %p39
        %s247 = sand.u32 %s65, 1
        %s248 = sand.u32 %s65, 1
        %s249 = smul.addr %s248, 32
        %s250 = scalar_lea.vmem [#allocation4], %s249
        %p251 = pneg %p78
        %p252 = pneg %p75
        %p253 = scmp.lt.s32.totalorder %s18, 1
        %s254 = scalar_select %p253, %s18, 1
        %s255 = smul.addr %s254, 64
        %s256 = smul.addr %s255, 4
        %s257 = scalar_lea.vmem %s2, %s256
        %p258 = pneg %p104
        %p259 = pneg %p101
        %p260 = pneg %p140
        %p261 = pneg %p137
        %s262 = sand.u32 %s127, 1
        %s263 = sand.u32 %s127, 1
        %s264 = smul.addr %s263, 8
        %s265 = scalar_lea.vmem [#allocation5], %s264
        %s266 = smul.u32 %s19, 2
        %s267 = ssub.s32 0, %s266
        %s268 = smul.u32 %s18, %s267
        %s269 = sadd.s32 %s19, %s268
        %s270 = smul.u32 4, %s269
        %s271 = smul.u32 4, %s18
        %p272 = scmp.lt.s32.totalorder %s18, 1
        %s273 = scalar_select %p272, %s18, 1
        %s274 = smul.addr %s273, 64
        %s275 = smul.addr %s274, 4
        %s276 = scalar_lea.vmem %s2, %s275
        %s277 = smul.u32 %s19, 2
        %s278 = ssub.s32 0, %s277
        %s279 = smul.u32 %s18, %s278
        %s280 = sadd.s32 %s19, %s279
        %s281 = smul.u32 4, %s280
        %p283 = scmp.eq.s32.totalorder %s19, 0
        // Predicated region
        $region71: #{listener_forward.11} parent=65 // pred_check
          %p284 = pneg %p283
        $region72: #{listener_forward.11} parent=65 // pred_check_branch
          %286 = sbr.rel (%p284) target = $region74
        $region73: #{listener_forward.11} parent=65 // pred_region
          %287 = vst [vmem:[#allocation2] sm:$0x3] 0.0
          %288 = vst [vmem:[#allocation3] sm:$0x3] 0.0
        $region74: #{listener_forward.11} parent=65 // pred_fallthru
          _
        %v289 = vld [vmem:[%s0] sm:$0x3]
        %v290 = vld [vmem:[%s276] sm:$0xff]
        %v291 = vld [vmem:[%s276 + $0x8] sm:$0xff]
        %v292 = vld [vmem:[%s276 + $0x10] sm:$0xff]
        %v293 = vld [vmem:[%s276 + $0x18] sm:$0xff]
        %v294 = vld [vmem:[%s276 + $0x20] sm:$0xff]
        %v295 = vld [vmem:[%s276 + $0x28] sm:$0xff]
        %v296 = vld [vmem:[%s276 + $0x30] sm:$0xff]
        %v297 = vld [vmem:[%s276 + $0x38] sm:$0xff]
        %v298 = vld [vmem:[%s276 + $0x40] sm:$0xff]
        %v299 = vld [vmem:[%s276 + $0x48] sm:$0xff]
        %v300 = vld [vmem:[%s276 + $0x50] sm:$0xff]
        %v301 = vld [vmem:[%s276 + $0x58] sm:$0xff]
        %v302 = vld [vmem:[%s276 + $0x60] sm:$0xff]
        %v303 = vld [vmem:[%s276 + $0x68] sm:$0xff]
        %v304 = vld [vmem:[%s276 + $0x70] sm:$0xff]
        %v305 = vld [vmem:[%s276 + $0x78] sm:$0xff]
        %v306 = vld [vmem:[%s276 + $0x80] sm:$0xff]
        %v307 = vld [vmem:[%s276 + $0x88] sm:$0xff]
        %v308 = vld [vmem:[%s276 + $0x90] sm:$0xff]
        %v309 = vld [vmem:[%s276 + $0x98] sm:$0xff]
        %v310 = vld [vmem:[%s276 + $0xa0] sm:$0xff]
        %v311 = vld [vmem:[%s276 + $0xa8] sm:$0xff]
        %v312 = vld [vmem:[%s276 + $0xb0] sm:$0xff]
        %v313 = vld [vmem:[%s276 + $0xb8] sm:$0xff]
        %v314 = vld [vmem:[%s276 + $0xc0] sm:$0xff]
        %v315 = vld [vmem:[%s276 + $0xc8] sm:$0xff]
        %v316 = vld [vmem:[%s276 + $0xd0] sm:$0xff]
        %v317 = vld [vmem:[%s276 + $0xd8] sm:$0xff]
        %v318 = vld [vmem:[%s276 + $0xe0] sm:$0xff]
        %v319 = vld [vmem:[%s276 + $0xe8] sm:$0xff]
        %v320 = vld [vmem:[%s276 + $0xf0] sm:$0xff]
        %v321 = vld [vmem:[%s276 + $0xf8] sm:$0xff]
        %s322 = smul.u32 %s19, 2
        %s323 = ssub.s32 0, %s322
        %s324 = smul.u32 %s18, %s323
        %s325 = sadd.s32 %s19, %s324
        %s326 = smul.u32 %s325, 4
        %v327 = vld [vmem:[#allocation2] sm:$0x3]
        %v328 = vld [vmem:[#allocation3] sm:$0x3]
        %s329 = smul.u32 %s18, 3
        %s330 = sadd.s32 %s326, %s329
        %s331 = smul.u32 %s329, 4
        %s332 = smul.addr %s331, 2
        %s333 = scalar_lea.vmem %s241, %s332 [#allocation4]
        %v334 = vld [vmem:[%s333] sm:$0xff]
        %v335 = vpack.c.bf16 %v327, %v327
        %v368 = vunpack.c.l.b16 %v290
        %v369 = vunpack.c.h.b16 %v290
        %v370 = vunpack.c.l.b16 %v291
        %v371 = vunpack.c.h.b16 %v291
        %v372 = vunpack.c.l.b16 %v292
        %v373 = vunpack.c.h.b16 %v292
        %v374 = vunpack.c.l.b16 %v293
        %v375 = vunpack.c.h.b16 %v293
        %v376 = vunpack.c.l.b16 %v294
        %v377 = vunpack.c.h.b16 %v294
        %v378 = vunpack.c.l.b16 %v295
        %v379 = vunpack.c.h.b16 %v295
        %v380 = vunpack.c.l.b16 %v296
        %v381 = vunpack.c.h.b16 %v296
        %v382 = vunpack.c.l.b16 %v297
        %v383 = vunpack.c.h.b16 %v297
        %v384 = vunpack.c.l.b16 %v298
        %v385 = vunpack.c.h.b16 %v298
        %v386 = vunpack.c.l.b16 %v299
        %v387 = vunpack.c.h.b16 %v299
        %v388 = vunpack.c.l.b16 %v300
        %v389 = vunpack.c.h.b16 %v300
        %v390 = vunpack.c.l.b16 %v301
        %v391 = vunpack.c.h.b16 %v301
        %v392 = vunpack.c.l.b16 %v302
        %v393 = vunpack.c.h.b16 %v302
        %v394 = vunpack.c.l.b16 %v303
        %v395 = vunpack.c.h.b16 %v303
        %v396 = vunpack.c.l.b16 %v304
        %v397 = vunpack.c.h.b16 %v304
        %v398 = vunpack.c.l.b16 %v305
        %v399 = vunpack.c.h.b16 %v305
        %v400 = vunpack.c.l.b16 %v306
        %v401 = vunpack.c.h.b16 %v306
        %v402 = vunpack.c.l.b16 %v307
        %v403 = vunpack.c.h.b16 %v307
        %v404 = vunpack.c.l.b16 %v308
        %v405 = vunpack.c.h.b16 %v308
        %v406 = vunpack.c.l.b16 %v309
        %v407 = vunpack.c.h.b16 %v309
        %v408 = vunpack.c.l.b16 %v310
        %v409 = vunpack.c.h.b16 %v310
        %v410 = vunpack.c.l.b16 %v311
        %v411 = vunpack.c.h.b16 %v311
        %v412 = vunpack.c.l.b16 %v312
        %v413 = vunpack.c.h.b16 %v312
        %v414 = vunpack.c.l.b16 %v313
        %v415 = vunpack.c.h.b16 %v313
        %v416 = vunpack.c.l.b16 %v314
        %v417 = vunpack.c.h.b16 %v314
        %v418 = vunpack.c.l.b16 %v315
        %v419 = vunpack.c.h.b16 %v315
        %v420 = vunpack.c.l.b16 %v316
        %v421 = vunpack.c.h.b16 %v316
        %v422 = vunpack.c.l.b16 %v317
        %v423 = vunpack.c.h.b16 %v317
        %v424 = vunpack.c.l.b16 %v318
        %v425 = vunpack.c.h.b16 %v318
        %v426 = vunpack.c.l.b16 %v319
        %v427 = vunpack.c.h.b16 %v319
        %v428 = vunpack.c.l.b16 %v320
        %v429 = vunpack.c.h.b16 %v320
        %v430 = vunpack.c.l.b16 %v321
        %v431 = vunpack.c.h.b16 %v321
        %v432 = vpack.c.b16 %v372, %v368
        %v433 = vpack.c.b16 %v373, %v369
        %v434 = vpack.c.b16 %v374, %v370
        %v435 = vpack.c.b16 %v375, %v371
        %v436 = vpack.c.b16 %v380, %v376
        %v437 = vpack.c.b16 %v381, %v377
        %v438 = vpack.c.b16 %v382, %v378
        %v439 = vpack.c.b16 %v383, %v379
        %v440 = vpack.c.b16 %v388, %v384
        %v441 = vpack.c.b16 %v389, %v385
        %v442 = vpack.c.b16 %v390, %v386
        %v443 = vpack.c.b16 %v391, %v387
        %v444 = vpack.c.b16 %v396, %v392
        %v445 = vpack.c.b16 %v397, %v393
        %v446 = vpack.c.b16 %v398, %v394
        %v447 = vpack.c.b16 %v399, %v395
        %v448 = vpack.c.b16 %v404, %v400
        %v449 = vpack.c.b16 %v405, %v401
        %v450 = vpack.c.b16 %v406, %v402
        %v451 = vpack.c.b16 %v407, %v403
        %v452 = vpack.c.b16 %v412, %v408
        %v453 = vpack.c.b16 %v413, %v409
        %v454 = vpack.c.b16 %v414, %v410
        %v455 = vpack.c.b16 %v415, %v411
        %v456 = vpack.c.b16 %v420, %v416
        %v457 = vpack.c.b16 %v421, %v417
        %v458 = vpack.c.b16 %v422, %v418
        %v459 = vpack.c.b16 %v423, %v419
        %v460 = vpack.c.b16 %v428, %v424
        %v461 = vpack.c.b16 %v429, %v425
        %v462 = vpack.c.b16 %v430, %v426
        %v463 = vpack.c.b16 %v431, %v427
        %496 = vmatprep.subr.bf16.mxu0 %v433
        %497 = vmatpush1.bf16.msra.mxu0 %v432
        %498 = vmatprep.subr.bf16.mxu0 %v437
        %499 = vmatpush1.bf16.msra.mxu0 %v436
        %500 = vmatprep.subr.bf16.mxu0 %v441
        %501 = vmatpush1.bf16.msra.mxu0 %v440
        %502 = vmatprep.subr.bf16.mxu0 %v445
        %503 = vmatpush1.bf16.msra.mxu0 %v444
        %504 = vmatprep.subr.bf16.mxu0 %v449
        %505 = vmatpush1.bf16.msra.mxu0 %v448
        %506 = vmatprep.subr.bf16.mxu0 %v453
        %507 = vmatpush1.bf16.msra.mxu0 %v452
        %508 = vmatprep.subr.bf16.mxu0 %v457
        %509 = vmatpush1.bf16.msra.mxu0 %v456
        %510 = vmatprep.subr.bf16.mxu0 %v461
        %511 = vmatpush1.bf16.msra.mxu0 %v460
        %512 = vmatprep.subr.bf16.mxu0 0
        %513 = vmatpush1.bf16.msra.mxu0 0
        %514 = vmatprep.subr.bf16.mxu0 0
        %515 = vmatpush1.bf16.msra.mxu0 0
        %516 = vmatprep.subr.bf16.mxu0 0
        %517 = vmatpush1.bf16.msra.mxu0 0
        %518 = vmatprep.subr.bf16.mxu0 0
        %519 = vmatpush1.bf16.msra.mxu0 0
        %520 = vmatprep.subr.bf16.mxu0 0
        %521 = vmatpush1.bf16.msra.mxu0 0
        %522 = vmatprep.subr.bf16.mxu0 0
        %523 = vmatpush1.bf16.msra.mxu0 0
        %524 = vmatprep.subr.bf16.mxu0 0
        %525 = vmatpush1.bf16.msra.mxu0 0
        %526 = vmatprep.subr.bf16.mxu0 0
        %527 = vmatpush1.bf16.msra.mxu0 0
        %528 = vmatprep.mubr.bf16.mxu0 0
        %529 = vmatmul.mubr.bf16.gmra.mrb[0].mxu0 %v335
        %v530 = vpop.f32.mrb[0].mxu0
        %v531 = vadd.f32 0.0, %v530
        %v532 = vpop.f32.mrb[0].mxu0
        %v533 = vadd.f32 0.0, %v532
        %v534 = vpop.f32.mrb[0].mxu0
        %v535 = vpop.f32.mrb[0].mxu0
        %536 = vdwg.mxu0
        %537 = vmatprep.subr.bf16.mxu0 %v435
        %538 = vmatpush1.bf16.msra.mxu0 %v434
        %539 = vmatprep.subr.bf16.mxu0 %v439
        %540 = vmatpush1.bf16.msra.mxu0 %v438
        %541 = vmatprep.subr.bf16.mxu0 %v443
        %542 = vmatpush1.bf16.msra.mxu0 %v442
        %543 = vmatprep.subr.bf16.mxu0 %v447
        %544 = vmatpush1.bf16.msra.mxu0 %v446
        %545 = vmatprep.subr.bf16.mxu0 %v451
        %546 = vmatpush1.bf16.msra.mxu0 %v450
        %547 = vmatprep.subr.bf16.mxu0 %v455
        %548 = vmatpush1.bf16.msra.mxu0 %v454
        %549 = vmatprep.subr.bf16.mxu0 %v459
        %550 = vmatpush1.bf16.msra.mxu0 %v458
        %551 = vmatprep.subr.bf16.mxu0 %v463
        %552 = vmatpush1.bf16.msra.mxu0 %v462
        %553 = vmatprep.subr.bf16.mxu0 0
        %554 = vmatpush1.bf16.msra.mxu0 0
        %555 = vmatprep.subr.bf16.mxu0 0
        %556 = vmatpush1.bf16.msra.mxu0 0
        %557 = vmatprep.subr.bf16.mxu0 0
        %558 = vmatpush1.bf16.msra.mxu0 0
        %559 = vmatprep.subr.bf16.mxu0 0
        %560 = vmatpush1.bf16.msra.mxu0 0
        %561 = vmatprep.subr.bf16.mxu0 0
        %562 = vmatpush1.bf16.msra.mxu0 0
        %563 = vmatprep.subr.bf16.mxu0 0
        %564 = vmatpush1.bf16.msra.mxu0 0
        %565 = vmatprep.subr.bf16.mxu0 0
        %566 = vmatpush1.bf16.msra.mxu0 0
        %567 = vmatprep.subr.bf16.mxu0 0
        %568 = vmatpush1.bf16.msra.mxu0 0
        %569 = vmatprep.mubr.bf16.mxu0 0
        %570 = vmatmul.mubr.bf16.gmra.mrb[0].mxu0 %v335
        %v571 = vpop.f32.mrb[0].mxu0
        %v572 = vadd.f32 0.0, %v571
        %v573 = vpop.f32.mrb[0].mxu0
        %v574 = vadd.f32 0.0, %v573
        %v575 = vpop.f32.mrb[0].mxu0
        %v576 = vpop.f32.mrb[0].mxu0
        %577 = vdwg.mxu0
        %v582 = vcombine.low %v531, %v533
        %v583 = vcombine.low %v572, %v574
        %v585 = vunpack.c.l.s4 1983009808
        %v586 = vunpack.c.0.s8 %v585
        %v587 = vlaneseq
        %v588 = vshrl.u32 %v587, 7
        %v589 = vsub.s32 %v586, %v588
        %v590 = vrot.slane %v582, %v589
        %v592 = vunpack.c.l.s4 1983009808
        %v593 = vunpack.c.0.s8 %v592
        %v594 = vlaneseq
        %v595 = vshrl.u32 %v594, 7
        %v596 = vsub.s32 %v593, %v595
        %v597 = vrot.slane %v583, %v596
        %v598 = vcombine.low %v590, %v597
        %v600 = vadd.f32 %v334, %v598
        %v601 = vxor.u32 %v600, 2147483648
        %v602 = vmul.f32 %v601, 1.442695
        %v603 = vpow.pop %v602
        %v604 = vadd.f32 %v603, 1.0
        %v605 = vrcp.pop %v604
        %v606 = vmul.f32 1.0, %v605
        %v608 = vrot.slane %v600, 6
        %v610 = vtanh.pop %v608
        %v612 = vrot.slane %v606, 2
        %v614 = vmul.f32 %v612, %v328
        %v615 = vmul.f32 %v606, %v610
        %v616 = vadd.f32 %v614, %v615
        %v617 = vtanh.pop %v616
        %v618 = vrot.slane %v606, 4
        %v620 = vmul.f32 %v618, %v617
        %v621 = vstv %s330
        %vm622 = vcmp.lt.s32.totalorder %v621, %v289
        %v623 = vsel %vm622, 1, 0
        %624 = vset.pattern.permute.xlu0 0
        %625 = vperm.xlu0 %624, %v623
        %v626 = vpop.permute.xlu0 %625
        %vm627 = vcmp.eq.s32.totalorder %v626, 1
        %v628 = vsel %vm627, %v616, %v328
        %v629 = vsel %vm627, %v620, %v327
        %v630 = vsel %vm627, %v620, 0.0
        %s631 = smul.u32 %s329, 2
        %s632 = scalar_lea.vmem %s265, %s631 [#allocation5]
        %633 = vst [vmem:[%s632] sm:$0x3] %v630
        %s634 = sadd.s32 %s18, 1
        %s635 = sadd.s32 %s326, %s634
        %s636 = smul.u32 %s634, 4
        %s637 = smul.addr %s636, 2
        %s638 = scalar_lea.vmem %s241, %s637 [#allocation4]
        %v639 = vld [vmem:[%s638] sm:$0xff]
        %v640 = vpack.c.bf16 %v629, %v629
        %641 = vmatprep.subr.bf16.mxu0 %v433
        %642 = vmatpush1.bf16.msra.mxu0 %v432
        %643 = vmatprep.subr.bf16.mxu0 %v437
        %644 = vmatpush1.bf16.msra.mxu0 %v436
        %645 = vmatprep.subr.bf16.mxu0 %v441
        %646 = vmatpush1.bf16.msra.mxu0 %v440
        %647 = vmatprep.subr.bf16.mxu0 %v445
        %648 = vmatpush1.bf16.msra.mxu0 %v444
        %649 = vmatprep.subr.bf16.mxu0 %v449
        %650 = vmatpush1.bf16.msra.mxu0 %v448
        %651 = vmatprep.subr.bf16.mxu0 %v453
        %652 = vmatpush1.bf16.msra.mxu0 %v452
        %653 = vmatprep.subr.bf16.mxu0 %v457
        %654 = vmatpush1.bf16.msra.mxu0 %v456
        %655 = vmatprep.subr.bf16.mxu0 %v461
        %656 = vmatpush1.bf16.msra.mxu0 %v460
        %657 = vmatprep.subr.bf16.mxu0 0
        %658 = vmatpush1.bf16.msra.mxu0 0
        %659 = vmatprep.subr.bf16.mxu0 0
        %660 = vmatpush1.bf16.msra.mxu0 0
        %661 = vmatprep.subr.bf16.mxu0 0
        %662 = vmatpush1.bf16.msra.mxu0 0
        %663 = vmatprep.subr.bf16.mxu0 0
        %664 = vmatpush1.bf16.msra.mxu0 0
        %665 = vmatprep.subr.bf16.mxu0 0
        %666 = vmatpush1.bf16.msra.mxu0 0
        %667 = vmatprep.subr.bf16.mxu0 0
        %668 = vmatpush1.bf16.msra.mxu0 0
        %669 = vmatprep.subr.bf16.mxu0 0
        %670 = vmatpush1.bf16.msra.mxu0 0
        %671 = vmatprep.subr.bf16.mxu0 0
        %672 = vmatpush1.bf16.msra.mxu0 0
        %673 = vmatprep.mubr.bf16.mxu0 0
        %674 = vmatmul.mubr.bf16.gmra.mrb[0].mxu0 %v640
        %v675 = vpop.f32.mrb[0].mxu0
        %v676 = vadd.f32 0.0, %v675
        %v677 = vpop.f32.mrb[0].mxu0
        %v678 = vadd.f32 0.0, %v677
        %v679 = vpop.f32.mrb[0].mxu0
        %v680 = vpop.f32.mrb[0].mxu0
        %681 = vdwg.mxu0
        %682 = vmatprep.subr.bf16.mxu0 %v435
        %683 = vmatpush1.bf16.msra.mxu0 %v434
        %684 = vmatprep.subr.bf16.mxu0 %v439
        %685 = vmatpush1.bf16.msra.mxu0 %v438
        %686 = vmatprep.subr.bf16.mxu0 %v443
        %687 = vmatpush1.bf16.msra.mxu0 %v442
        %688 = vmatprep.subr.bf16.mxu0 %v447
        %689 = vmatpush1.bf16.msra.mxu0 %v446
        %690 = vmatprep.subr.bf16.mxu0 %v451
        %691 = vmatpush1.bf16.msra.mxu0 %v450
        %692 = vmatprep.subr.bf16.mxu0 %v455
        %693 = vmatpush1.bf16.msra.mxu0 %v454
        %694 = vmatprep.subr.bf16.mxu0 %v459
        %695 = vmatpush1.bf16.msra.mxu0 %v458
        %696 = vmatprep.subr.bf16.mxu0 %v463
        %697 = vmatpush1.bf16.msra.mxu0 %v462
        %698 = vmatprep.subr.bf16.mxu0 0
        %699 = vmatpush1.bf16.msra.mxu0 0
        %700 = vmatprep.subr.bf16.mxu0 0
        %701 = vmatpush1.bf16.msra.mxu0 0
        %702 = vmatprep.subr.bf16.mxu0 0
        %703 = vmatpush1.bf16.msra.mxu0 0
        %704 = vmatprep.subr.bf16.mxu0 0
        %705 = vmatpush1.bf16.msra.mxu0 0
        %706 = vmatprep.subr.bf16.mxu0 0
        %707 = vmatpush1.bf16.msra.mxu0 0
        %708 = vmatprep.subr.bf16.mxu0 0
        %709 = vmatpush1.bf16.msra.mxu0 0
        %710 = vmatprep.subr.bf16.mxu0 0
        %711 = vmatpush1.bf16.msra.mxu0 0
        %712 = vmatprep.subr.bf16.mxu0 0
        %713 = vmatpush1.bf16.msra.mxu0 0
        %714 = vmatprep.mubr.bf16.mxu0 0
        %715 = vmatmul.mubr.bf16.gmra.mrb[0].mxu0 %v640
        %v716 = vpop.f32.mrb[0].mxu0
        %v717 = vadd.f32 0.0, %v716
        %v718 = vpop.f32.mrb[0].mxu0
        %v719 = vadd.f32 0.0, %v718
        %v720 = vpop.f32.mrb[0].mxu0
        %v721 = vpop.f32.mrb[0].mxu0
        %722 = vdwg.mxu0
        %v727 = vcombine.low %v676, %v678
        %v728 = vcombine.low %v717, %v719
        %v730 = vunpack.c.l.s4 1983009808
        %v731 = vunpack.c.0.s8 %v730
        %v732 = vlaneseq
        %v733 = vshrl.u32 %v732, 7
        %v734 = vsub.s32 %v731, %v733
        %v735 = vrot.slane %v727, %v734
        %v737 = vunpack.c.l.s4 1983009808
        %v738 = vunpack.c.0.s8 %v737
        %v739 = vlaneseq
        %v740 = vshrl.u32 %v739, 7
        %v741 = vsub.s32 %v738, %v740
        %v742 = vrot.slane %v728, %v741
        %v743 = vcombine.low %v735, %v742
        %v745 = vadd.f32 %v639, %v743
        %v746 = vxor.u32 %v745, 2147483648
        %v747 = vmul.f32 %v746, 1.442695
        %v748 = vpow.pop %v747
        %v749 = vadd.f32 %v748, 1.0
        %v750 = vrcp.pop %v749
        %v751 = vmul.f32 1.0, %v750
        %v753 = vrot.slane %v745, 6
        %v755 = vtanh.pop %v753
        %v757 = vrot.slane %v751, 2
        %v759 = vmul.f32 %v757, %v628
        %v760 = vmul.f32 %v751, %v755
        %v761 = vadd.f32 %v759, %v760
        %v762 = vtanh.pop %v761
        %v763 = vrot.slane %v751, 4
        %v765 = vmul.f32 %v763, %v762
        %v766 = vstv %s635
        %vm767 = vcmp.lt.s32.totalorder %v766, %v289
        %v768 = vsel %vm767, 1, 0
        %769 = vset.pattern.permute.xlu0 0
        %770 = vperm.xlu0 %769, %v768
        %v771 = vpop.permute.xlu0 %770
        %vm772 = vcmp.eq.s32.totalorder %v771, 1
        %v773 = vsel %vm772, %v761, %v628
        %v774 = vsel %vm772, %v765, %v629
        %v775 = vsel %vm772, %v765, 0.0
        %s776 = smul.u32 %s634, 2
        %s777 = scalar_lea.vmem %s265, %s776 [#allocation5]
        %778 = vst [vmem:[%s777] sm:$0x3] %v775
        %s779 = ssub.s32 2, %s18
        %s780 = sadd.s32 %s326, %s779
        %s781 = smul.u32 %s779, 4
        %s782 = smul.addr %s781, 2
        %s783 = scalar_lea.vmem %s241, %s782 [#allocation4]
        %v784 = vld [vmem:[%s783] sm:$0xff]
        %v785 = vpack.c.bf16 %v774, %v774
        %786 = vmatprep.subr.bf16.mxu0 %v433
        %787 = vmatpush1.bf16.msra.mxu0 %v432
        %788 = vmatprep.subr.bf16.mxu0 %v437
        %789 = vmatpush1.bf16.msra.mxu0 %v436
        %790 = vmatprep.subr.bf16.mxu0 %v441
        %791 = vmatpush1.bf16.msra.mxu0 %v440
        %792 = vmatprep.subr.bf16.mxu0 %v445
        %793 = vmatpush1.bf16.msra.mxu0 %v444
        %794 = vmatprep.subr.bf16.mxu0 %v449
        %795 = vmatpush1.bf16.msra.mxu0 %v448
        %796 = vmatprep.subr.bf16.mxu0 %v453
        %797 = vmatpush1.bf16.msra.mxu0 %v452
        %798 = vmatprep.subr.bf16.mxu0 %v457
        %799 = vmatpush1.bf16.msra.mxu0 %v456
        %800 = vmatprep.subr.bf16.mxu0 %v461
        %801 = vmatpush1.bf16.msra.mxu0 %v460
        %802 = vmatprep.subr.bf16.mxu0 0
        %803 = vmatpush1.bf16.msra.mxu0 0
        %804 = vmatprep.subr.bf16.mxu0 0
        %805 = vmatpush1.bf16.msra.mxu0 0
        %806 = vmatprep.subr.bf16.mxu0 0
        %807 = vmatpush1.bf16.msra.mxu0 0
        %808 = vmatprep.subr.bf16.mxu0 0
        %809 = vmatpush1.bf16.msra.mxu0 0
        %810 = vmatprep.subr.bf16.mxu0 0
        %811 = vmatpush1.bf16.msra.mxu0 0
        %812 = vmatprep.subr.bf16.mxu0 0
        %813 = vmatpush1.bf16.msra.mxu0 0
        %814 = vmatprep.subr.bf16.mxu0 0
        %815 = vmatpush1.bf16.msra.mxu0 0
        %816 = vmatprep.subr.bf16.mxu0 0
        %817 = vmatpush1.bf16.msra.mxu0 0
        %818 = vmatprep.mubr.bf16.mxu0 0
        %819 = vmatmul.mubr.bf16.gmra.mrb[0].mxu0 %v785
        %v820 = vpop.f32.mrb[0].mxu0
        %v821 = vadd.f32 0.0, %v820
        %v822 = vpop.f32.mrb[0].mxu0
        %v823 = vadd.f32 0.0, %v822
        %v824 = vpop.f32.mrb[0].mxu0
        %v825 = vpop.f32.mrb[0].mxu0
        %826 = vdwg.mxu0
        %827 = vmatprep.subr.bf16.mxu0 %v435
        %828 = vmatpush1.bf16.msra.mxu0 %v434
        %829 = vmatprep.subr.bf16.mxu0 %v439
        %830 = vmatpush1.bf16.msra.mxu0 %v438
        %831 = vmatprep.subr.bf16.mxu0 %v443
        %832 = vmatpush1.bf16.msra.mxu0 %v442
        %833 = vmatprep.subr.bf16.mxu0 %v447
        %834 = vmatpush1.bf16.msra.mxu0 %v446
        %835 = vmatprep.subr.bf16.mxu0 %v451
        %836 = vmatpush1.bf16.msra.mxu0 %v450
        %837 = vmatprep.subr.bf16.mxu0 %v455
        %838 = vmatpush1.bf16.msra.mxu0 %v454
        %839 = vmatprep.subr.bf16.mxu0 %v459
        %840 = vmatpush1.bf16.msra.mxu0 %v458
        %841 = vmatprep.subr.bf16.mxu0 %v463
        %842 = vmatpush1.bf16.msra.mxu0 %v462
        %843 = vmatprep.subr.bf16.mxu0 0
        %844 = vmatpush1.bf16.msra.mxu0 0
        %845 = vmatprep.subr.bf16.mxu0 0
        %846 = vmatpush1.bf16.msra.mxu0 0
        %847 = vmatprep.subr.bf16.mxu0 0
        %848 = vmatpush1.bf16.msra.mxu0 0
        %849 = vmatprep.subr.bf16.mxu0 0
        %850 = vmatpush1.bf16.msra.mxu0 0
        %851 = vmatprep.subr.bf16.mxu0 0
        %852 = vmatpush1.bf16.msra.mxu0 0
        %853 = vmatprep.subr.bf16.mxu0 0
        %854 = vmatpush1.bf16.msra.mxu0 0
        %855 = vmatprep.subr.bf16.mxu0 0
        %856 = vmatpush1.bf16.msra.mxu0 0
        %857 = vmatprep.subr.bf16.mxu0 0
        %858 = vmatpush1.bf16.msra.mxu0 0
        %859 = vmatprep.mubr.bf16.mxu0 0
        %860 = vmatmul.mubr.bf16.gmra.mrb[0].mxu0 %v785
        %v861 = vpop.f32.mrb[0].mxu0
        %v862 = vadd.f32 0.0, %v861
        %v863 = vpop.f32.mrb[0].mxu0
        %v864 = vadd.f32 0.0, %v863
        %v865 = vpop.f32.mrb[0].mxu0
        %v866 = vpop.f32.mrb[0].mxu0
        %867 = vdwg.mxu0
        %v872 = vcombine.low %v821, %v823
        %v873 = vcombine.low %v862, %v864
        %v875 = vunpack.c.l.s4 1983009808
        %v876 = vunpack.c.0.s8 %v875
        %v877 = vlaneseq
        %v878 = vshrl.u32 %v877, 7
        %v879 = vsub.s32 %v876, %v878
        %v880 = vrot.slane %v872, %v879
        %v882 = vunpack.c.l.s4 1983009808
        %v883 = vunpack.c.0.s8 %v882
        %v884 = vlaneseq
        %v885 = vshrl.u32 %v884, 7
        %v886 = vsub.s32 %v883, %v885
        %v887 = vrot.slane %v873, %v886
        %v888 = vcombine.low %v880, %v887
        %v890 = vadd.f32 %v784, %v888
        %v891 = vxor.u32 %v890, 2147483648
        %v892 = vmul.f32 %v891, 1.442695
        %v893 = vpow.pop %v892
        %v894 = vadd.f32 %v893, 1.0
        %v895 = vrcp.pop %v894
        %v896 = vmul.f32 1.0, %v895
        %v898 = vrot.slane %v890, 6
        %v900 = vtanh.pop %v898
        %v902 = vrot.slane %v896, 2
        %v904 = vmul.f32 %v902, %v773
        %v905 = vmul.f32 %v896, %v900
        %v906 = vadd.f32 %v904, %v905
        %v907 = vtanh.pop %v906
        %v908 = vrot.slane %v896, 4
        %v910 = vmul.f32 %v908, %v907
        %v911 = vstv %s780
        %vm912 = vcmp.lt.s32.totalorder %v911, %v289
        %v913 = vsel %vm912, 1, 0
        %914 = vset.pattern.permute.xlu0 0
        %915 = vperm.xlu0 %914, %v913
        %v916 = vpop.permute.xlu0 %915
        %vm917 = vcmp.eq.s32.totalorder %v916, 1
        %v918 = vsel %vm917, %v906, %v773
        %v919 = vsel %vm917, %v910, %v774
        %v920 = vsel %vm917, %v910, 0.0
        %s921 = smul.u32 %s779, 2
        %s922 = scalar_lea.vmem %s265, %s921 [#allocation5]
        %923 = vst [vmem:[%s922] sm:$0x3] %v920
        %s924 = smul.u32 %s18, 4294967293
        %s925 = sadd.s32 %s924, 3
        %s926 = sadd.s32 %s326, %s925
        %s927 = smul.u32 %s925, 4
        %s928 = smul.addr %s927, 2
        %s929 = scalar_lea.vmem %s241, %s928 [#allocation4]
        %v930 = vld [vmem:[%s929] sm:$0xff]
        %v931 = vpack.c.bf16 %v919, %v919
        %932 = vmatprep.subr.bf16.mxu0 %v433
        %933 = vmatpush1.bf16.msra.mxu0 %v432
        %934 = vmatprep.subr.bf16.mxu0 %v437
        %935 = vmatpush1.bf16.msra.mxu0 %v436
        %936 = vmatprep.subr.bf16.mxu0 %v441
        %937 = vmatpush1.bf16.msra.mxu0 %v440
        %938 = vmatprep.subr.bf16.mxu0 %v445
        %939 = vmatpush1.bf16.msra.mxu0 %v444
        %940 = vmatprep.subr.bf16.mxu0 %v449
        %941 = vmatpush1.bf16.msra.mxu0 %v448
        %942 = vmatprep.subr.bf16.mxu0 %v453
        %943 = vmatpush1.bf16.msra.mxu0 %v452
        %944 = vmatprep.subr.bf16.mxu0 %v457
        %945 = vmatpush1.bf16.msra.mxu0 %v456
        %946 = vmatprep.subr.bf16.mxu0 %v461
        %947 = vmatpush1.bf16.msra.mxu0 %v460
        %948 = vmatprep.subr.bf16.mxu0 0
        %949 = vmatpush1.bf16.msra.mxu0 0
        %950 = vmatprep.subr.bf16.mxu0 0
        %951 = vmatpush1.bf16.msra.mxu0 0
        %952 = vmatprep.subr.bf16.mxu0 0
        %953 = vmatpush1.bf16.msra.mxu0 0
        %954 = vmatprep.subr.bf16.mxu0 0
        %955 = vmatpush1.bf16.msra.mxu0 0
        %956 = vmatprep.subr.bf16.mxu0 0
        %957 = vmatpush1.bf16.msra.mxu0 0
        %958 = vmatprep.subr.bf16.mxu0 0
        %959 = vmatpush1.bf16.msra.mxu0 0
        %960 = vmatprep.subr.bf16.mxu0 0
        %961 = vmatpush1.bf16.msra.mxu0 0
        %962 = vmatprep.subr.bf16.mxu0 0
        %963 = vmatpush1.bf16.msra.mxu0 0
        %964 = vmatprep.mubr.bf16.mxu0 0
        %965 = vmatmul.mubr.bf16.gmra.mrb[0].mxu0 %v931
        %v966 = vpop.f32.mrb[0].mxu0
        %v967 = vadd.f32 0.0, %v966
        %v968 = vpop.f32.mrb[0].mxu0
        %v969 = vadd.f32 0.0, %v968
        %v970 = vpop.f32.mrb[0].mxu0
        %v971 = vpop.f32.mrb[0].mxu0
        %972 = vdwg.mxu0
        %973 = vmatprep.subr.bf16.mxu0 %v435
        %974 = vmatpush1.bf16.msra.mxu0 %v434
        %975 = vmatprep.subr.bf16.mxu0 %v439
        %976 = vmatpush1.bf16.msra.mxu0 %v438
        %977 = vmatprep.subr.bf16.mxu0 %v443
        %978 = vmatpush1.bf16.msra.mxu0 %v442
        %979 = vmatprep.subr.bf16.mxu0 %v447
        %980 = vmatpush1.bf16.msra.mxu0 %v446
        %981 = vmatprep.subr.bf16.mxu0 %v451
        %982 = vmatpush1.bf16.msra.mxu0 %v450
        %983 = vmatprep.subr.bf16.mxu0 %v455
        %984 = vmatpush1.bf16.msra.mxu0 %v454
        %985 = vmatprep.subr.bf16.mxu0 %v459
        %986 = vmatpush1.bf16.msra.mxu0 %v458
        %987 = vmatprep.subr.bf16.mxu0 %v463
        %988 = vmatpush1.bf16.msra.mxu0 %v462
        %989 = vmatprep.subr.bf16.mxu0 0
        %990 = vmatpush1.bf16.msra.mxu0 0
        %991 = vmatprep.subr.bf16.mxu0 0
        %992 = vmatpush1.bf16.msra.mxu0 0
        %993 = vmatprep.subr.bf16.mxu0 0
        %994 = vmatpush1.bf16.msra.mxu0 0
        %995 = vmatprep.subr.bf16.mxu0 0
        %996 = vmatpush1.bf16.msra.mxu0 0
        %997 = vmatprep.subr.bf16.mxu0 0
        %998 = vmatpush1.bf16.msra.mxu0 0
        %999 = vmatprep.subr.bf16.mxu0 0
        %1000 = vmatpush1.bf16.msra.mxu0 0
        %1001 = vmatprep.subr.bf16.mxu0 0
        %1002 = vmatpush1.bf16.msra.mxu0 0
        %1003 = vmatprep.subr.bf16.mxu0 0
        %1004 = vmatpush1.bf16.msra.mxu0 0
        %1005 = vmatprep.mubr.bf16.mxu0 0
        %1006 = vmatmul.mubr.bf16.gmra.mrb[0].mxu0 %v931
        %v1007 = vpop.f32.mrb[0].mxu0
        %v1008 = vadd.f32 0.0, %v1007
        %v1009 = vpop.f32.mrb[0].mxu0
        %v1010 = vadd.f32 0.0, %v1009
        %v1011 = vpop.f32.mrb[0].mxu0
        %v1012 = vpop.f32.mrb[0].mxu0
        %1013 = vdwg.mxu0
        %v1018 = vcombine.low %v967, %v969
        %v1019 = vcombine.low %v1008, %v1010
        %v1021 = vunpack.c.l.s4 1983009808
        %v1022 = vunpack.c.0.s8 %v1021
        %v1023 = vlaneseq
        %v1024 = vshrl.u32 %v1023, 7
        %v1025 = vsub.s32 %v1022, %v1024
        %v1026 = vrot.slane %v1018, %v1025
        %v1028 = vunpack.c.l.s4 1983009808
        %v1029 = vunpack.c.0.s8 %v1028
        %v1030 = vlaneseq
        %v1031 = vshrl.u32 %v1030, 7
        %v1032 = vsub.s32 %v1029, %v1031
        %v1033 = vrot.slane %v1019, %v1032
        %v1034 = vcombine.low %v1026, %v1033
        %v1036 = vadd.f32 %v930, %v1034
        %v1037 = vxor.u32 %v1036, 2147483648
        %v1038 = vmul.f32 %v1037, 1.442695
        %v1039 = vpow.pop %v1038
        %v1040 = vadd.f32 %v1039, 1.0
        %v1041 = vrcp.pop %v1040
        %v1042 = vmul.f32 1.0, %v1041
        %v1044 = vrot.slane %v1036, 6
        %v1046 = vtanh.pop %v1044
        %v1048 = vrot.slane %v1042, 2
        %v1050 = vmul.f32 %v1048, %v918
        %v1051 = vmul.f32 %v1042, %v1046
        %v1052 = vadd.f32 %v1050, %v1051
        %v1053 = vtanh.pop %v1052
        %v1054 = vrot.slane %v1042, 4
        %v1056 = vmul.f32 %v1054, %v1053
        %v1057 = vstv %s926
        %vm1058 = vcmp.lt.s32.totalorder %v1057, %v289
        %v1059 = vsel %vm1058, 1, 0
        %1060 = vset.pattern.permute.xlu0 0
        %1061 = vperm.xlu0 %1060, %v1059
        %v1062 = vpop.permute.xlu0 %1061
        %vm1063 = vcmp.eq.s32.totalorder %v1062, 1
        %v1064 = vsel %vm1063, %v1052, %v918
        %v1065 = vsel %vm1063, %v1056, %v919
        %v1066 = vsel %vm1063, %v1056, 0.0
        %s1067 = smul.u32 %s925, 2
        %s1068 = scalar_lea.vmem %s265, %s1067 [#allocation5]
        %1069 = vst [vmem:[%s1068] sm:$0x3] %v1066
        %1070 = vst [vmem:[#allocation2] sm:$0x3] %v1065
        %1071 = vst [vmem:[#allocation3] sm:$0x3] %v1064
        %s1072 = sand.u32 %s127, 1
        %s1073 = sand.u32 %s127, 1
        %s1074 = smul.addr %s1073, 8
        %s1075 = scalar_lea.vmem [#allocation5], %s1074
        // Predicated region
        $region75: #{listener_forward.11} parent=65 // pred_check
          %p1076 = pneg %p137
        $region76: #{listener_forward.11} parent=65 // pred_check_branch
          %1078 = sbr.rel (%p1076) target = $region78
        $region77: #{listener_forward.11} parent=65 // pred_region
          %s1079 = smul.u32 %s19, 2
          %s1080 = ssub.s32 0, %s1079
          %s1081 = smul.u32 %s18, %s1080
          %s1082 = sadd.s32 %s19, %s1081
          %s1083 = smul.u32 4, %s1082
          %s1084 = smul.addr %s1083, 2
          %s1085 = sadd.s32 %s18, %s1084
          %s1086 = smul.addr %s1085, 2
          %s1087 = scalar_lea.vmem %s3, %s1086
          // Predicated region
          $region79: #{listener_forward.11} parent=77 // pred_check
            _
          $region80: #{listener_forward.11} parent=77 // pred_check_branch
            %1089 = sbr.rel (0) target = $region82
          $region81: #{listener_forward.11} parent=77 // pred_region
            // Predicated region
            $region83: #{listener_forward.11} parent=81 // pred_check
              _
            $region84: #{listener_forward.11} parent=81 // pred_check_branch
              %1091 = sbr.rel target = $region86
            $region85: #{listener_forward.11} parent=81 // pred_region
              // Predicated region
              $region98: #{listener_forward.11} parent=85 // pred_check
                _
              $region99: #{listener_forward.11} parent=85 // pred_check_branch
                %1112 = sbr.rel (0) target = $region101
              $region100: #{listener_forward.11} parent=85 // pred_region
                loop: start=0, step=1, limit=1
                $region102: #{listener_forward.11} parent=100 // loop_pre_header
                  _
                $region103: #{listener_forward.11} parent=100 // loop_header
                  %s1114 = sphi 0, %s1118
                  %p1115 = scmp.ge.s32.totalorder %s1114, 1
                  %s1119 = sphi %s1075, %s1075
                  %s1120 = sphi %s1087, %s1087
                $region104: #{listener_forward.11} parent=100 // loop_header_branch
                  %1117 = sbr.rel (%p1115) target = $region108
                $region105: #{listener_forward.11} parent=100 // loop_body
                  _
                $region106: #{listener_forward.11} parent=100 // loop_footer
                  %s1118 = sadd.s32 1, %s1114
                $region107: #{listener_forward.11} parent=100 // loop_footer_branch
                  %1113 = sbr.rel target = $region103
                $region108: #{listener_forward.11} parent=100 // loop_exit
                  _
                loop: start=0, step=1, limit=1
                $region109: #{listener_forward.11} parent=100 // loop_pre_header
                  _
                $region110: #{listener_forward.11} parent=100 // loop_header
                  %s1123 = sphi 0, %s1127
                  %p1124 = scmp.ge.s32.totalorder %s1123, 1
                  %s1128 = sphi %s1075, %s1075
                  %s1129 = sphi %s1087, %s1087
                $region111: #{listener_forward.11} parent=100 // loop_header_branch
                  %1126 = sbr.rel (%p1124) target = $region115
                $region112: #{listener_forward.11} parent=100 // loop_body
                  %v1130 = vld [vmem:[%s1128] sm:$0x3]
                  %1131 = vst [vmem:[%s1129] sm:$0x3] %v1130
                  %v1132 = vld [vmem:[%s1128 + $0x2] sm:$0x3]
                  %1133 = vst [vmem:[%s1129 + $0x4] sm:$0x3] %v1132
                  %v1134 = vld [vmem:[%s1128 + $0x4] sm:$0x3]
                  %1135 = vst [vmem:[%s1129 + $0x8] sm:$0x3] %v1134
                  %v1136 = vld [vmem:[%s1128 + $0x6] sm:$0x3]
                  %1137 = vst [vmem:[%s1129 + $0xc] sm:$0x3] %v1136
                $region113: #{listener_forward.11} parent=100 // loop_footer
                  %s1127 = sadd.s32 1, %s1123
                $region114: #{listener_forward.11} parent=100 // loop_footer_branch
                  %1122 = sbr.rel target = $region110
                $region115: #{listener_forward.11} parent=100 // loop_exit
                  _
              $region101: #{listener_forward.11} parent=85 // pred_fallthru
                _
            $region86: #{listener_forward.11} parent=81 // pred_fallthru
              _
            // Predicated region
            $region87: #{listener_forward.11} parent=81 // pred_check
              _
            $region88: #{listener_forward.11} parent=81 // pred_check_branch
              %1093 = sbr.rel (0) target = $region90
            $region89: #{listener_forward.11} parent=81 // pred_region
              loop: start=0, step=1, limit=1
              $region91: #{listener_forward.11} parent=89 // loop_pre_header
                _
              $region92: #{listener_forward.11} parent=89 // loop_header
                %s1096 = sphi 0, %s1100
                %p1097 = scmp.ge.s32.totalorder %s1096, 1
                %s1101 = sphi %s1075, %s1075
                %s1102 = sphi %s1087, %s1087
              $region93: #{listener_forward.11} parent=89 // loop_header_branch
                %1099 = sbr.rel (%p1097) target = $region97
              $region94: #{listener_forward.11} parent=89 // loop_body
                %v1103 = vld [vmem:[%s1101] sm:$0x3]
                %1104 = vst [vmem:[%s1102] sm:$0x3] %v1103
                %v1105 = vld [vmem:[%s1101 + $0x2] sm:$0x3]
                %1106 = vst [vmem:[%s1102 + $0x4] sm:$0x3] %v1105
                %v1107 = vld [vmem:[%s1101 + $0x4] sm:$0x3]
                %1108 = vst [vmem:[%s1102 + $0x8] sm:$0x3] %v1107
                %v1109 = vld [vmem:[%s1101 + $0x6] sm:$0x3]
                %1110 = vst [vmem:[%s1102 + $0xc] sm:$0x3] %v1109
              $region95: #{listener_forward.11} parent=89 // loop_footer
                %s1100 = sadd.s32 1, %s1096
              $region96: #{listener_forward.11} parent=89 // loop_footer_branch
                %1095 = sbr.rel target = $region92
              $region97: #{listener_forward.11} parent=89 // loop_exit
                _
            $region90: #{listener_forward.11} parent=81 // pred_fallthru
              _
          $region82: #{listener_forward.11} parent=77 // pred_fallthru
            _
          %1138 = vnop
        $region78: #{listener_forward.11} parent=65 // pred_fallthru
          _
      $region66: #{listener_forward.11} parent=5 // pred_fallthru
        _
      %p1139 = scmp.le.s32.totalorder 2, %s9
      // Predicated region
      $region116: #{listener_forward.11} parent=5 // pred_check
        %p1140 = pneg %p1139
      $region117: #{listener_forward.11} parent=5 // pred_check_branch
        %1142 = sbr.rel (%p1140) target = $region119
      $region118: #{listener_forward.11} parent=5 // pred_region
        %s1143 = ssub.s32 %s9, 2
        // Predicated region
        $region120: #{listener_forward.11} parent=118 // pred_check
          %p1144 = pneg %p143
        $region121: #{listener_forward.11} parent=118 // pred_check_branch
          %1146 = sbr.rel (%p1144) target = $region123
        $region122: #{listener_forward.11} parent=118 // pred_region
          %s1147 = sand.u32 %s128, 1
          %s1148 = sand.u32 %s128, 1
          %s1149 = smul.addr %s1148, 8
          %s1150 = scalar_lea.vmem [#allocation5], %s1149
        $region123: #{listener_forward.11} parent=118 // pred_fallthru
          _
      $region119: #{listener_forward.11} parent=5 // pred_fallthru
        _
    $region6: #{listener_forward.11} parent=1 // loop_footer
      %s13 = sadd.s32 1, %s9
    $region7: #{listener_forward.11} parent=1 // loop_footer_branch
      %8 = sbr.rel target = $region3
    $region8: #{listener_forward.11} parent=1 // loop_exit
      _

</llo_original>
